<compile_context>
chip_gen: v5e
topology: v5e:2x2
jax: 0.10.0
libtpu: 0.0.40
codegen_flags: <defaults>
</compile_context>

<pallas_src>
import functools

import numpy as np
import jax
import jax.numpy as jnp
from jax import lax
from jax.experimental import pallas as pl
from jax.experimental.pallas import tpu as pltpu

INPUT_SIZE = 128
N_CH = 64


# ---------------------------------------------------------------------------
# Fused Pallas kernel
# ---------------------------------------------------------------------------
def _generator_kernel(
    noise_ref, cls_ref, w1n_ref, w1c_ref, b1_ref,
    wd1_ref, bd1_ref, g1_ref, be1_ref,
    wd2_ref, bd2_ref, g2_ref, be2_ref,
    wcm_ref, bc_ref,
    o_ref,
    a1_ref, a2_ref, y3_ref, img_ref,
    *, batch):
  B = batch
  f32 = jnp.float32
  EPS = 1e-5

  # ---- Stage 1: Linear(138 -> 4096) + ReLU --------------------------------
  # w1 columns pre-permuted offline to (i4, j4, c256) order.
  h1 = jnp.dot(noise_ref[...], w1n_ref[...], preferred_element_type=f32)
  h1 = h1 + jnp.dot(cls_ref[...], w1c_ref[...], preferred_element_type=f32)
  h1 = jnp.maximum(h1 + b1_ref[...], 0.0)                      # (B, 4096)
  # a1[(i4, b), j4*256 + c] = X[b, c, i4, j4]
  for i4 in range(4):
    a1_ref[i4 * B:(i4 + 1) * B, :] = h1[:, i4 * 1024:(i4 + 1) * 1024]

  # ---- Stage 2: ConvTranspose2d(256->128, k=2, s=2) -----------------------
  wd1 = wd1_ref[...]                                           # (256, 512)
  bd1 = bd1_ref[...]                                           # (1, 512)
  for j4 in range(4):
    m = jnp.dot(a1_ref[:, j4 * 256:(j4 + 1) * 256], wd1,
                preferred_element_type=f32) + bd1              # (4B, 512)
    for kh in range(2):                                        # row re-stack
      a2_ref[kh * 4 * B:(kh + 1) * 4 * B, j4 * 256:(j4 + 1) * 256] = (
          m[:, kh * 256:(kh + 1) * 256])
  # a2[(kh1, i4, b), j8*128 + co] = deconv1[b, co, 2*i4+kh1, j8]

  # ---- Stage 3: BatchNorm2d(128) batch statistics (biased var) ------------
  y = a2_ref[...]                                              # (8B, 1024)
  s = jnp.sum(y, axis=0, keepdims=True)
  q = jnp.sum(y * y, axis=0, keepdims=True)
  s1 = s[:, 0:128]
  q1 = q[:, 0:128]
  for g in range(1, 8):
    s1 = s1 + s[:, g * 128:(g + 1) * 128]
    q1 = q1 + q[:, g * 128:(g + 1) * 128]
  n1 = float(64 * B)
  mean1 = s1 / n1
  var1 = q1 / n1 - mean1 * mean1
  scale1 = lax.rsqrt(var1 + EPS) * g1_ref[...]
  shift1 = be1_ref[...] - mean1 * scale1

  # ---- Stage 4: (BN1+ReLU fused) ConvTranspose2d(128->64, k=2, s=2) -------
  wd2 = wd2_ref[...]                                           # (128, 256)
  bd2 = bd2_ref[...]                                           # (1, 256)
  for j8 in range(8):
    lhs = jnp.maximum(
        a2_ref[:, j8 * 128:(j8 + 1) * 128] * scale1 + shift1, 0.0)
    m = jnp.dot(lhs, wd2, preferred_element_type=f32) + bd2    # (8B, 256)
    for kh in range(2):
      y3_ref[kh * 8 * B:(kh + 1) * 8 * B, j8 * 128:(j8 + 1) * 128] = (
          m[:, kh * 128:(kh + 1) * 128])
  # y3[(kh2, kh1, i4, b), j16*64 + c] = deconv2[b, c, 4*i4+2*kh1+kh2, j16]

  # ---- Stage 5: BatchNorm2d(64) + ReLU, then row permute to (b, i16) ------
  y = y3_ref[...]                                              # (16B, 1024)
  s = jnp.sum(y, axis=0, keepdims=True)
  q = jnp.sum(y * y, axis=0, keepdims=True)
  s2 = s[:, 0:64]
  q2 = q[:, 0:64]
  for g in range(1, 16):
    s2 = s2 + s[:, g * 64:(g + 1) * 64]
    q2 = q2 + q[:, g * 64:(g + 1) * 64]
  n2 = float(256 * B)
  mean2 = s2 / n2
  var2 = q2 / n2 - mean2 * mean2
  scale2 = lax.rsqrt(var2 + EPS) * g2_ref[...]
  shift2 = be2_ref[...] - mean2 * scale2
  for g in range(16):                                          # normalize in place
    blk = y3_ref[:, g * 64:(g + 1) * 64]
    y3_ref[:, g * 64:(g + 1) * 64] = jnp.maximum(blk * scale2 + shift2, 0.0)

  # scatter rows (kh2,kh1,i4,b) -> natural (b, i16), with one halo row each side
  img_ref[0:1, :] = jnp.zeros((1, 1024), f32)
  img_ref[16 * B + 1:16 * B + 2, :] = jnp.zeros((1, 1024), f32)
  for b in range(B):
    for i4 in range(4):
      for kh1 in range(2):
        for kh2 in range(2):
          src = kh2 * 8 * B + kh1 * 4 * B + i4 * B + b
          dst = b * 16 + 4 * i4 + 2 * kh1 + kh2
          img_ref[dst + 1:dst + 2, :] = y3_ref[src:src + 1, :]

  # ---- Stage 6: Conv2d(64->1, 3x3, pad=1) + tanh --------------------------
  # Three banded matmuls (one per row shift dh); wcm encodes the dw band.
  i16 = lax.broadcasted_iota(jnp.int32, (16 * B, 1), 0) % 16
  acc = jnp.zeros((16 * B, 16), f32) + bc_ref[...]
  for dh in (-1, 0, 1):
    rows = img_ref[1 + dh:1 + dh + 16 * B, :]                  # (16B, 1024)
    if dh != 0:
      valid = jnp.logical_and(i16 + dh >= 0, i16 + dh <= 15)
      rows = jnp.where(valid, rows, 0.0)
    acc = acc + jnp.dot(rows, wcm_ref[:, (dh + 1) * 16:(dh + 2) * 16],
                        preferred_element_type=f32)
  o_ref[...] = jnp.tanh(acc)                                   # (16B, 16)


# ---------------------------------------------------------------------------
# Parameters (PyTorch-layout) and conversion to kernel operands
# ---------------------------------------------------------------------------
def init_params(key):
  ks = jax.random.split(key, 8)

  def uni(k, shape, fan_in):
    bound = 1.0 / float(np.sqrt(fan_in))
    return jax.random.uniform(k, shape, jnp.float32, -bound, bound)

  p = {}
  p["lin_w"] = uni(ks[0], (4096, INPUT_SIZE + 10), INPUT_SIZE + 10)
  p["lin_b"] = uni(ks[1], (4096,), INPUT_SIZE + 10)
  p["d1_w"] = uni(ks[2], (4 * N_CH, 2 * N_CH, 2, 2), 4 * N_CH * 4)   # (Cin,Cout,kh,kw)
  p["d1_b"] = uni(ks[3], (2 * N_CH,), 4 * N_CH * 4)
  p["bn1_g"] = jnp.ones((2 * N_CH,), jnp.float32)
  p["bn1_b"] = jnp.zeros((2 * N_CH,), jnp.float32)
  p["d2_w"] = uni(ks[4], (2 * N_CH, N_CH, 2, 2), 2 * N_CH * 4)
  p["d2_b"] = uni(ks[5], (N_CH,), 2 * N_CH * 4)
  p["bn2_g"] = jnp.ones((N_CH,), jnp.float32)
  p["bn2_b"] = jnp.zeros((N_CH,), jnp.float32)
  p["conv_w"] = uni(ks[6], (1, N_CH, 3, 3), N_CH * 9)                # (out,in,kh,kw)
  p["conv_b"] = uni(ks[7], (1,), N_CH * 9)
  return p


def prepare_operands(params):
  """One-time, host-side re-layout of the PyTorch-style weights."""
  f32 = jnp.float32
  # Linear: transpose to (in,out), permute out columns to (i4, j4, c256),
  # split the contraction dim into noise(128) and class(10 -> padded 16).
  wt = params["lin_w"].astype(f32).T                            # (138, 4096)
  wt = wt.reshape(138, 256, 4, 4).transpose(0, 2, 3, 1).reshape(138, 4096)
  w1n = wt[:INPUT_SIZE]                                         # (128, 4096)
  w1c = jnp.pad(wt[INPUT_SIZE:], ((0, 6), (0, 0)))              # (16, 4096)
  b1 = params["lin_b"].astype(f32).reshape(256, 4, 4).transpose(1, 2, 0)
  b1 = b1.reshape(1, 4096)
  # Deconvs: (Cin, Cout, kh, kw) -> (Cin, kh*... + kw*... + Cout)
  wd1 = params["d1_w"].astype(f32).transpose(0, 2, 3, 1).reshape(256, 512)
  bd1 = jnp.tile(params["d1_b"].astype(f32), 4).reshape(1, 512)
  wd2 = params["d2_w"].astype(f32).transpose(0, 2, 3, 1).reshape(128, 256)
  bd2 = jnp.tile(params["d2_b"].astype(f32), 4).reshape(1, 256)
  g1 = params["bn1_g"].astype(f32).reshape(1, 128)
  be1 = params["bn1_b"].astype(f32).reshape(1, 128)
  g2 = params["bn2_g"].astype(f32).reshape(1, 64)
  be2 = params["bn2_b"].astype(f32).reshape(1, 64)
  # 3x3 conv -> banded matmul weight wcm[j*64 + c, (dh+1)*16 + j16]
  wk = np.asarray(params["conv_w"], np.float32)[0].transpose(1, 2, 0)  # (3,3,64)
  wcm_np = np.zeros((16, 64, 3, 16), np.float32)
  for j16 in range(16):
    for dh in range(3):
      for dw in range(3):
        j = j16 + dw - 1
        if 0 <= j < 16:
          wcm_np[j, :, dh, j16] = wk[dh, dw, :]
  wcm = jnp.asarray(wcm_np.reshape(16 * 64, 3 * 16))            # (1024, 48)
  bc = params["conv_b"].astype(f32).reshape(1, 1)
  return dict(w1n=w1n, w1c=w1c, b1=b1, wd1=wd1, bd1=bd1, g1=g1, be1=be1,
              wd2=wd2, bd2=bd2, g2=g2, be2=be2, wcm=wcm, bc=bc)


# ---------------------------------------------------------------------------
# Forward wrapper: single pallas_call, everything VMEM resident
# ---------------------------------------------------------------------------
def generator_forward(noise, cls_embedding, ops):
  assert noise.shape[1] == INPUT_SIZE
  B = noise.shape[0]
  noise = noise.astype(jnp.float32)
  clsp = jnp.pad(cls_embedding.astype(jnp.float32),
                 ((0, 0), (0, 16 - cls_embedding.shape[1])))    # (B, 16)

  def full(shape):
    return pl.BlockSpec(shape, lambda: (0,) * len(shape))

  in_arrays = [noise, clsp, ops["w1n"], ops["w1c"], ops["b1"],
               ops["wd1"], ops["bd1"], ops["g1"], ops["be1"],
               ops["wd2"], ops["bd2"], ops["g2"], ops["be2"],
               ops["wcm"], ops["bc"]]

  out = pl.pallas_call(
      functools.partial(_generator_kernel, batch=B),
      out_shape=jax.ShapeDtypeStruct((16 * B, 16), jnp.float32),
      in_specs=[full(a.shape) for a in in_arrays],
      out_specs=full((16 * B, 16)),
      scratch_shapes=[
          pltpu.VMEM((4 * B, 1024), jnp.float32),    # a1 : 4x4 stage
          pltpu.VMEM((8 * B, 1024), jnp.float32),    # a2 : 8x8 stage (pre-BN1)
          pltpu.VMEM((16 * B, 1024), jnp.float32),   # y3 : 16x16 stage
          pltpu.VMEM((16 * B + 2, 1024), jnp.float32),  # img + halo rows
      ],
      compiler_params=pltpu.CompilerParams(vmem_limit_bytes=32 * 1024 * 1024),
  )(*in_arrays)
  return out.reshape(B, 1, 16, 16)                              # free reshape


# ---------------------------------------------------------------------------
# Pure-JAX reference (mirrors the PyTorch module, NCHW) for validation
# ---------------------------------------------------------------------------
def reference_forward(noise, cls_embedding, params):
  B = noise.shape[0]
  x = jnp.concatenate([noise, cls_embedding], axis=1)
  h = jnp.maximum(x @ params["lin_w"].T + params["lin_b"], 0.0)
  h = h.reshape(B, 256, 4, 4)

  def deconv2x2(x, w, b):                     # w: (Cin, Cout, 2, 2)
    y = jnp.einsum("bchw,cokl->bohwkl", x, w)
    Bn, Co, H, W, _, _ = y.shape
    y = y.transpose(0, 1, 2, 4, 3, 5).reshape(Bn, Co, 2 * H, 2 * W)
    return y + b[None, :, None, None]

  def bn(x, g, bta):                          # training-mode batch stats
    mean = x.mean(axis=(0, 2, 3), keepdims=True)
    var = ((x - mean) ** 2).mean(axis=(0, 2, 3), keepdims=True)
    return (x - mean) * lax.rsqrt(var + 1e-5) * g[None, :, None, None] \
        + bta[None, :, None, None]

  h = jnp.maximum(bn(deconv2x2(h, params["d1_w"], params["d1_b"]),
                     params["bn1_g"], params["bn1_b"]), 0.0)
  h = jnp.maximum(bn(deconv2x2(h, params["d2_w"], params["d2_b"]),
                     params["bn2_g"], params["bn2_b"]), 0.0)
  hp = jnp.pad(h, ((0, 0), (0, 0), (1, 1), (1, 1)))
  w = params["conv_w"]
  out = jnp.zeros((B, 16, 16), jnp.float32)
  for kh in range(3):
    for kw in range(3):
      out = out + jnp.einsum("bchw,c->bhw",
                             hp[:, :, kh:kh + 16, kw:kw + 16], w[0, :, kh, kw])
  return jnp.tanh(out + params["conv_b"][0]).reshape(B, 1, 16, 16)


# ---------------------------------------------------------------------------
# Driver
# ---------------------------------------------------------------------------
if __name__ == "__main__":
  key = jax.random.PRNGKey(0)
  k_param, k_noise, k_cls = jax.random.split(key, 3)

  params = init_params(k_param)
  ops = prepare_operands(params)

  B = 2
  noise = jax.random.normal(k_noise, (B, INPUT_SIZE), jnp.float32)
  cls_embedding = jax.random.normal(k_cls, (B, 10), jnp.float32)

  fwd = jax.jit(lambda n, c: generator_forward(n, c, ops))
  out = fwd(noise, cls_embedding)
  jax.block_until_ready(out)

  assert out.shape == (B, 1, 16, 16), out.shape
  assert bool(jnp.all(jnp.isfinite(out)))
  assert bool(jnp.all(jnp.abs(out) <= 1.0))      # tanh range

  with jax.default_matmul_precision("highest"):
    ref = reference_forward(noise, cls_embedding, params)
  assert bool(jnp.allclose(out, ref, atol=2e-3, rtol=2e-3)), (
      float(jnp.max(jnp.abs(out - ref))))

  print("KERNEL_OK")
</pallas_src>

<mosaic_0001>
module attributes {stable_mosaic.version = 11 : i64} {
  func.func @_generator_kernel(%arg0: memref<2x128xf32, #tpu.memory_space<vmem>>, %arg1: memref<2x16xf32, #tpu.memory_space<vmem>>, %arg2: memref<128x4096xf32, #tpu.memory_space<vmem>>, %arg3: memref<16x4096xf32, #tpu.memory_space<vmem>>, %arg4: memref<1x4096xf32, #tpu.memory_space<vmem>>, %arg5: memref<256x512xf32, #tpu.memory_space<vmem>>, %arg6: memref<1x512xf32, #tpu.memory_space<vmem>>, %arg7: memref<1x128xf32, #tpu.memory_space<vmem>>, %arg8: memref<1x128xf32, #tpu.memory_space<vmem>>, %arg9: memref<128x256xf32, #tpu.memory_space<vmem>>, %arg10: memref<1x256xf32, #tpu.memory_space<vmem>>, %arg11: memref<1x64xf32, #tpu.memory_space<vmem>>, %arg12: memref<1x64xf32, #tpu.memory_space<vmem>>, %arg13: memref<1024x48xf32, #tpu.memory_space<vmem>>, %arg14: memref<1x1xf32, #tpu.memory_space<vmem>>, %arg15: memref<32x16xf32, #tpu.memory_space<vmem>>, %arg16: memref<8x1024xf32, #tpu.memory_space<vmem>>, %arg17: memref<16x1024xf32, #tpu.memory_space<vmem>>, %arg18: memref<32x1024xf32, #tpu.memory_space<vmem>>, %arg19: memref<34x1024xf32, #tpu.memory_space<vmem>>) attributes {dimension_semantics = [], scalar_prefetch = 0 : i64, scratch_operands = 4 : i64, tpu.core_type = #tpu.core_type<tc>} {
    %c0 = arith.constant 0 : index
    %c0_0 = arith.constant 0 : index
    %0 = vector.load %arg0[%c0, %c0_0] : memref<2x128xf32, #tpu.memory_space<vmem>>, vector<2x128xf32>
    %c0_1 = arith.constant 0 : index
    %c0_2 = arith.constant 0 : index
    %1 = vector.load %arg2[%c0_1, %c0_2] : memref<128x4096xf32, #tpu.memory_space<vmem>>, vector<128x4096xf32>
    %cst = arith.constant dense<0.000000e+00> : vector<2x4096xf32>
    %2 = tpu.matmul %0, %1, %cst {dimension_numbers = #tpu.dot_dimension_numbers<[1], [0], [0], [1], [0, 0, 1, 1], [], []>} : vector<2x128xf32>, vector<128x4096xf32>, vector<2x4096xf32> -> vector<2x4096xf32>
    %c0_3 = arith.constant 0 : index
    %c0_4 = arith.constant 0 : index
    %3 = vector.load %arg1[%c0_3, %c0_4] : memref<2x16xf32, #tpu.memory_space<vmem>>, vector<2x16xf32>
    %c0_5 = arith.constant 0 : index
    %c0_6 = arith.constant 0 : index
    %4 = vector.load %arg3[%c0_5, %c0_6] : memref<16x4096xf32, #tpu.memory_space<vmem>>, vector<16x4096xf32>
    %cst_7 = arith.constant dense<0.000000e+00> : vector<2x4096xf32>
    %5 = tpu.matmul %3, %4, %cst_7 {dimension_numbers = #tpu.dot_dimension_numbers<[1], [0], [0], [1], [0, 0, 1, 1], [], []>} : vector<2x16xf32>, vector<16x4096xf32>, vector<2x4096xf32> -> vector<2x4096xf32>
    %6 = arith.addf %2, %5 : vector<2x4096xf32>
    %c0_8 = arith.constant 0 : index
    %c0_9 = arith.constant 0 : index
    %7 = vector.load %arg4[%c0_8, %c0_9] : memref<1x4096xf32, #tpu.memory_space<vmem>>, vector<1x4096xf32>
    %8 = vector.broadcast %7 : vector<1x4096xf32> to vector<2x4096xf32>
    %9 = arith.addf %6, %8 : vector<2x4096xf32>
    %cst_10 = arith.constant 0.000000e+00 : f32
    %10 = vector.broadcast %cst_10 : f32 to vector<2x4096xf32>
    %11 = arith.maximumf %9, %10 : vector<2x4096xf32>
    %12 = vector.extract_strided_slice %11 {offsets = [0, 0], sizes = [2, 1024], strides = [1, 1]} : vector<2x4096xf32> to vector<2x1024xf32>
    %c0_11 = arith.constant 0 : index
    %c0_12 = arith.constant 0 : index
    %13 = vector.load %arg16[%c0_11, %c0_12] : memref<8x1024xf32, #tpu.memory_space<vmem>>, vector<2x1024xf32>
    tpu.vector_store %arg16[%c0_11, %c0_12], %12 {strides = array<i32>} : memref<8x1024xf32, #tpu.memory_space<vmem>>, vector<2x1024xf32>,
    %14 = vector.extract_strided_slice %11 {offsets = [0, 1024], sizes = [2, 1024], strides = [1, 1]} : vector<2x4096xf32> to vector<2x1024xf32>
    %c2 = arith.constant 2 : index
    %c0_13 = arith.constant 0 : index
    %15 = vector.load %arg16[%c2, %c0_13] : memref<8x1024xf32, #tpu.memory_space<vmem>>, vector<2x1024xf32>
    tpu.vector_store %arg16[%c2, %c0_13], %14 {strides = array<i32>} : memref<8x1024xf32, #tpu.memory_space<vmem>>, vector<2x1024xf32>,
    %16 = vector.extract_strided_slice %11 {offsets = [0, 2048], sizes = [2, 1024], strides = [1, 1]} : vector<2x4096xf32> to vector<2x1024xf32>
    %c4 = arith.constant 4 : index
    %c0_14 = arith.constant 0 : index
    %17 = vector.load %arg16[%c4, %c0_14] : memref<8x1024xf32, #tpu.memory_space<vmem>>, vector<2x1024xf32>
    tpu.vector_store %arg16[%c4, %c0_14], %16 {strides = array<i32>} : memref<8x1024xf32, #tpu.memory_space<vmem>>, vector<2x1024xf32>,
    %18 = vector.extract_strided_slice %11 {offsets = [0, 3072], sizes = [2, 1024], strides = [1, 1]} : vector<2x4096xf32> to vector<2x1024xf32>
    %c6 = arith.constant 6 : index
    %c0_15 = arith.constant 0 : index
    %19 = vector.load %arg16[%c6, %c0_15] : memref<8x1024xf32, #tpu.memory_space<vmem>>, vector<2x1024xf32>
    tpu.vector_store %arg16[%c6, %c0_15], %18 {strides = array<i32>} : memref<8x1024xf32, #tpu.memory_space<vmem>>, vector<2x1024xf32>,
    %c0_16 = arith.constant 0 : index
    %c0_17 = arith.constant 0 : index
    %20 = vector.load %arg5[%c0_16, %c0_17] : memref<256x512xf32, #tpu.memory_space<vmem>>, vector<256x512xf32>
    %c0_18 = arith.constant 0 : index
    %c0_19 = arith.constant 0 : index
    %21 = vector.load %arg6[%c0_18, %c0_19] : memref<1x512xf32, #tpu.memory_space<vmem>>, vector<1x512xf32>
    %c0_20 = arith.constant 0 : index
    %c0_21 = arith.constant 0 : index
    %22 = vector.load %arg16[%c0_20, %c0_21] : memref<8x1024xf32, #tpu.memory_space<vmem>>, vector<8x256xf32>
    %cst_22 = arith.constant dense<0.000000e+00> : vector<8x512xf32>
    %23 = tpu.matmul %22, %20, %cst_22 {dimension_numbers = #tpu.dot_dimension_numbers<[1], [0], [0], [1], [0, 0, 1, 1], [], []>} : vector<8x256xf32>, vector<256x512xf32>, vector<8x512xf32> -> vector<8x512xf32>
    %24 = vector.broadcast %21 : vector<1x512xf32> to vector<8x512xf32>
    %25 = arith.addf %23, %24 : vector<8x512xf32>
    %26 = vector.extract_strided_slice %25 {offsets = [0, 0], sizes = [8, 256], strides = [1, 1]} : vector<8x512xf32> to vector<8x256xf32>
    %c0_23 = arith.constant 0 : index
    %c0_24 = arith.constant 0 : index
    %27 = vector.load %arg17[%c0_23, %c0_24] : memref<16x1024xf32, #tpu.memory_space<vmem>>, vector<8x256xf32>
    tpu.vector_store %arg17[%c0_23, %c0_24], %26 {strides = array<i32>} : memref<16x1024xf32, #tpu.memory_space<vmem>>, vector<8x256xf32>,
    %28 = vector.extract_strided_slice %25 {offsets = [0, 256], sizes = [8, 256], strides = [1, 1]} : vector<8x512xf32> to vector<8x256xf32>
    %c8 = arith.constant 8 : index
    %c0_25 = arith.constant 0 : index
    %29 = vector.load %arg17[%c8, %c0_25] : memref<16x1024xf32, #tpu.memory_space<vmem>>, vector<8x256xf32>
    tpu.vector_store %arg17[%c8, %c0_25], %28 {strides = array<i32>} : memref<16x1024xf32, #tpu.memory_space<vmem>>, vector<8x256xf32>,
    %c0_26 = arith.constant 0 : index
    %c256 = arith.constant 256 : index
    %30 = vector.load %arg16[%c0_26, %c256] : memref<8x1024xf32, #tpu.memory_space<vmem>>, vector<8x256xf32>
    %cst_27 = arith.constant dense<0.000000e+00> : vector<8x512xf32>
    %31 = tpu.matmul %30, %20, %cst_27 {dimension_numbers = #tpu.dot_dimension_numbers<[1], [0], [0], [1], [0, 0, 1, 1], [], []>} : vector<8x256xf32>, vector<256x512xf32>, vector<8x512xf32> -> vector<8x512xf32>
    %32 = vector.broadcast %21 : vector<1x512xf32> to vector<8x512xf32>
    %33 = arith.addf %31, %32 : vector<8x512xf32>
    %34 = vector.extract_strided_slice %33 {offsets = [0, 0], sizes = [8, 256], strides = [1, 1]} : vector<8x512xf32> to vector<8x256xf32>
    %c0_28 = arith.constant 0 : index
    %c256_29 = arith.constant 256 : index
    %35 = vector.load %arg17[%c0_28, %c256_29] : memref<16x1024xf32, #tpu.memory_space<vmem>>, vector<8x256xf32>
    tpu.vector_store %arg17[%c0_28, %c256_29], %34 {strides = array<i32>} : memref<16x1024xf32, #tpu.memory_space<vmem>>, vector<8x256xf32>,
    %36 = vector.extract_strided_slice %33 {offsets = [0, 256], sizes = [8, 256], strides = [1, 1]} : vector<8x512xf32> to vector<8x256xf32>
    %c8_30 = arith.constant 8 : index
    %c256_31 = arith.constant 256 : index
    %37 = vector.load %arg17[%c8_30, %c256_31] : memref<16x1024xf32, #tpu.memory_space<vmem>>, vector<8x256xf32>
    tpu.vector_store %arg17[%c8_30, %c256_31], %36 {strides = array<i32>} : memref<16x1024xf32, #tpu.memory_space<vmem>>, vector<8x256xf32>,
    %c0_32 = arith.constant 0 : index
    %c512 = arith.constant 512 : index
    %38 = vector.load %arg16[%c0_32, %c512] : memref<8x1024xf32, #tpu.memory_space<vmem>>, vector<8x256xf32>
    %cst_33 = arith.constant dense<0.000000e+00> : vector<8x512xf32>
    %39 = tpu.matmul %38, %20, %cst_33 {dimension_numbers = #tpu.dot_dimension_numbers<[1], [0], [0], [1], [0, 0, 1, 1], [], []>} : vector<8x256xf32>, vector<256x512xf32>, vector<8x512xf32> -> vector<8x512xf32>
    %40 = vector.broadcast %21 : vector<1x512xf32> to vector<8x512xf32>
    %41 = arith.addf %39, %40 : vector<8x512xf32>
    %42 = vector.extract_strided_slice %41 {offsets = [0, 0], sizes = [8, 256], strides = [1, 1]} : vector<8x512xf32> to vector<8x256xf32>
    %c0_34 = arith.constant 0 : index
    %c512_35 = arith.constant 512 : index
    %43 = vector.load %arg17[%c0_34, %c512_35] : memref<16x1024xf32, #tpu.memory_space<vmem>>, vector<8x256xf32>
    tpu.vector_store %arg17[%c0_34, %c512_35], %42 {strides = array<i32>} : memref<16x1024xf32, #tpu.memory_space<vmem>>, vector<8x256xf32>,
    %44 = vector.extract_strided_slice %41 {offsets = [0, 256], sizes = [8, 256], strides = [1, 1]} : vector<8x512xf32> to vector<8x256xf32>
    %c8_36 = arith.constant 8 : index
    %c512_37 = arith.constant 512 : index
    %45 = vector.load %arg17[%c8_36, %c512_37] : memref<16x1024xf32, #tpu.memory_space<vmem>>, vector<8x256xf32>
    tpu.vector_store %arg17[%c8_36, %c512_37], %44 {strides = array<i32>} : memref<16x1024xf32, #tpu.memory_space<vmem>>, vector<8x256xf32>,
    %c0_38 = arith.constant 0 : index
    %c768 = arith.constant 768 : index
    %46 = vector.load %arg16[%c0_38, %c768] : memref<8x1024xf32, #tpu.memory_space<vmem>>, vector<8x256xf32>
    %cst_39 = arith.constant dense<0.000000e+00> : vector<8x512xf32>
    %47 = tpu.matmul %46, %20, %cst_39 {dimension_numbers = #tpu.dot_dimension_numbers<[1], [0], [0], [1], [0, 0, 1, 1], [], []>} : vector<8x256xf32>, vector<256x512xf32>, vector<8x512xf32> -> vector<8x512xf32>
    %48 = vector.broadcast %21 : vector<1x512xf32> to vector<8x512xf32>
    %49 = arith.addf %47, %48 : vector<8x512xf32>
    %50 = vector.extract_strided_slice %49 {offsets = [0, 0], sizes = [8, 256], strides = [1, 1]} : vector<8x512xf32> to vector<8x256xf32>
    %c0_40 = arith.constant 0 : index
    %c768_41 = arith.constant 768 : index
    %51 = vector.load %arg17[%c0_40, %c768_41] : memref<16x1024xf32, #tpu.memory_space<vmem>>, vector<8x256xf32>
    tpu.vector_store %arg17[%c0_40, %c768_41], %50 {strides = array<i32>} : memref<16x1024xf32, #tpu.memory_space<vmem>>, vector<8x256xf32>,
    %52 = vector.extract_strided_slice %49 {offsets = [0, 256], sizes = [8, 256], strides = [1, 1]} : vector<8x512xf32> to vector<8x256xf32>
    %c8_42 = arith.constant 8 : index
    %c768_43 = arith.constant 768 : index
    %53 = vector.load %arg17[%c8_42, %c768_43] : memref<16x1024xf32, #tpu.memory_space<vmem>>, vector<8x256xf32>
    tpu.vector_store %arg17[%c8_42, %c768_43], %52 {strides = array<i32>} : memref<16x1024xf32, #tpu.memory_space<vmem>>, vector<8x256xf32>,
    %c0_44 = arith.constant 0 : index
    %c0_45 = arith.constant 0 : index
    %54 = vector.load %arg17[%c0_44, %c0_45] : memref<16x1024xf32, #tpu.memory_space<vmem>>, vector<16x1024xf32>
    %cst_46 = arith.constant dense<0.000000e+00> : vector<1024xf32>
    %55 = vector.multi_reduction <add>, %54, %cst_46 [0] : vector<16x1024xf32> to vector<1024xf32>
    %56 = vector.shape_cast %55 : vector<1024xf32> to vector<1x1024xf32>
    %57 = arith.mulf %54, %54 : vector<16x1024xf32>
    %cst_47 = arith.constant dense<0.000000e+00> : vector<1024xf32>
    %58 = vector.multi_reduction <add>, %57, %cst_47 [0] : vector<16x1024xf32> to vector<1024xf32>
    %59 = vector.shape_cast %58 : vector<1024xf32> to vector<1x1024xf32>
    %60 = vector.extract_strided_slice %56 {offsets = [0, 0], sizes = [1, 128], strides = [1, 1]} : vector<1x1024xf32> to vector<1x128xf32>
    %61 = vector.extract_strided_slice %59 {offsets = [0, 0], sizes = [1, 128], strides = [1, 1]} : vector<1x1024xf32> to vector<1x128xf32>
    %62 = vector.extract_strided_slice %56 {offsets = [0, 128], sizes = [1, 128], strides = [1, 1]} : vector<1x1024xf32> to vector<1x128xf32>
    %63 = arith.addf %60, %62 : vector<1x128xf32>
    %64 = vector.extract_strided_slice %59 {offsets = [0, 128], sizes = [1, 128], strides = [1, 1]} : vector<1x1024xf32> to vector<1x128xf32>
    %65 = arith.addf %61, %64 : vector<1x128xf32>
    %66 = vector.extract_strided_slice %56 {offsets = [0, 256], sizes = [1, 128], strides = [1, 1]} : vector<1x1024xf32> to vector<1x128xf32>
    %67 = arith.addf %63, %66 : vector<1x128xf32>
    %68 = vector.extract_strided_slice %59 {offsets = [0, 256], sizes = [1, 128], strides = [1, 1]} : vector<1x1024xf32> to vector<1x128xf32>
    %69 = arith.addf %65, %68 : vector<1x128xf32>
    %70 = vector.extract_strided_slice %56 {offsets = [0, 384], sizes = [1, 128], strides = [1, 1]} : vector<1x1024xf32> to vector<1x128xf32>
    %71 = arith.addf %67, %70 : vector<1x128xf32>
    %72 = vector.extract_strided_slice %59 {offsets = [0, 384], sizes = [1, 128], strides = [1, 1]} : vector<1x1024xf32> to vector<1x128xf32>
    %73 = arith.addf %69, %72 : vector<1x128xf32>
    %74 = vector.extract_strided_slice %56 {offsets = [0, 512], sizes = [1, 128], strides = [1, 1]} : vector<1x1024xf32> to vector<1x128xf32>
    %75 = arith.addf %71, %74 : vector<1x128xf32>
    %76 = vector.extract_strided_slice %59 {offsets = [0, 512], sizes = [1, 128], strides = [1, 1]} : vector<1x1024xf32> to vector<1x128xf32>
    %77 = arith.addf %73, %76 : vector<1x128xf32>
    %78 = vector.extract_strided_slice %56 {offsets = [0, 640], sizes = [1, 128], strides = [1, 1]} : vector<1x1024xf32> to vector<1x128xf32>
    %79 = arith.addf %75, %78 : vector<1x128xf32>
    %80 = vector.extract_strided_slice %59 {offsets = [0, 640], sizes = [1, 128], strides = [1, 1]} : vector<1x1024xf32> to vector<1x128xf32>
    %81 = arith.addf %77, %80 : vector<1x128xf32>
    %82 = vector.extract_strided_slice %56 {offsets = [0, 768], sizes = [1, 128], strides = [1, 1]} : vector<1x1024xf32> to vector<1x128xf32>
    %83 = arith.addf %79, %82 : vector<1x128xf32>
    %84 = vector.extract_strided_slice %59 {offsets = [0, 768], sizes = [1, 128], strides = [1, 1]} : vector<1x1024xf32> to vector<1x128xf32>
    %85 = arith.addf %81, %84 : vector<1x128xf32>
    %86 = vector.extract_strided_slice %56 {offsets = [0, 896], sizes = [1, 128], strides = [1, 1]} : vector<1x1024xf32> to vector<1x128xf32>
    %87 = arith.addf %83, %86 : vector<1x128xf32>
    %88 = vector.extract_strided_slice %59 {offsets = [0, 896], sizes = [1, 128], strides = [1, 1]} : vector<1x1024xf32> to vector<1x128xf32>
    %89 = arith.addf %85, %88 : vector<1x128xf32>
    %cst_48 = arith.constant 1.280000e+02 : f32
    %90 = vector.broadcast %cst_48 : f32 to vector<1x128xf32>
    %91 = arith.divf %87, %90 : vector<1x128xf32>
    %cst_49 = arith.constant 1.280000e+02 : f32
    %92 = vector.broadcast %cst_49 : f32 to vector<1x128xf32>
    %93 = arith.divf %89, %92 : vector<1x128xf32>
    %94 = arith.mulf %91, %91 : vector<1x128xf32>
    %95 = arith.subf %93, %94 : vector<1x128xf32>
    %cst_50 = arith.constant 9.99999974E-6 : f32
    %96 = vector.broadcast %cst_50 : f32 to vector<1x128xf32>
    %97 = arith.addf %95, %96 : vector<1x128xf32>
    %98 = math.rsqrt %97 : vector<1x128xf32>
    %c0_51 = arith.constant 0 : index
    %c0_52 = arith.constant 0 : index
    %99 = vector.load %arg7[%c0_51, %c0_52] : memref<1x128xf32, #tpu.memory_space<vmem>>, vector<1x128xf32>
    %100 = arith.mulf %98, %99 : vector<1x128xf32>
    %c0_53 = arith.constant 0 : index
    %c0_54 = arith.constant 0 : index
    %101 = vector.load %arg8[%c0_53, %c0_54] : memref<1x128xf32, #tpu.memory_space<vmem>>, vector<1x128xf32>
    %102 = arith.mulf %91, %100 : vector<1x128xf32>
    %103 = arith.subf %101, %102 : vector<1x128xf32>
    %c0_55 = arith.constant 0 : index
    %c0_56 = arith.constant 0 : index
    %104 = vector.load %arg9[%c0_55, %c0_56] : memref<128x256xf32, #tpu.memory_space<vmem>>, vector<128x256xf32>
    %c0_57 = arith.constant 0 : index
    %c0_58 = arith.constant 0 : index
    %105 = vector.load %arg10[%c0_57, %c0_58] : memref<1x256xf32, #tpu.memory_space<vmem>>, vector<1x256xf32>
    %c0_59 = arith.constant 0 : index
    %c0_60 = arith.constant 0 : index
    %106 = vector.load %arg17[%c0_59, %c0_60] : memref<16x1024xf32, #tpu.memory_space<vmem>>, vector<16x128xf32>
    %107 = vector.broadcast %100 : vector<1x128xf32> to vector<16x128xf32>
    %108 = arith.mulf %106, %107 : vector<16x128xf32>
    %109 = vector.broadcast %103 : vector<1x128xf32> to vector<16x128xf32>
    %110 = arith.addf %108, %109 : vector<16x128xf32>
    %cst_61 = arith.constant 0.000000e+00 : f32
    %111 = vector.broadcast %cst_61 : f32 to vector<16x128xf32>
    %112 = arith.maximumf %110, %111 : vector<16x128xf32>
    %cst_62 = arith.constant dense<0.000000e+00> : vector<16x256xf32>
    %113 = tpu.matmul %112, %104, %cst_62 {dimension_numbers = #tpu.dot_dimension_numbers<[1], [0], [0], [1], [0, 0, 1, 1], [], []>} : vector<16x128xf32>, vector<128x256xf32>, vector<16x256xf32> -> vector<16x256xf32>
    %114 = vector.broadcast %105 : vector<1x256xf32> to vector<16x256xf32>
    %115 = arith.addf %113, %114 : vector<16x256xf32>
    %116 = vector.extract_strided_slice %115 {offsets = [0, 0], sizes = [16, 128], strides = [1, 1]} : vector<16x256xf32> to vector<16x128xf32>
    %c0_63 = arith.constant 0 : index
    %c0_64 = arith.constant 0 : index
    %117 = vector.load %arg18[%c0_63, %c0_64] : memref<32x1024xf32, #tpu.memory_space<vmem>>, vector<16x128xf32>
    tpu.vector_store %arg18[%c0_63, %c0_64], %116 {strides = array<i32>} : memref<32x1024xf32, #tpu.memory_space<vmem>>, vector<16x128xf32>,
    %118 = vector.extract_strided_slice %115 {offsets = [0, 128], sizes = [16, 128], strides = [1, 1]} : vector<16x256xf32> to vector<16x128xf32>
    %c16 = arith.constant 16 : index
    %c0_65 = arith.constant 0 : index
    %119 = vector.load %arg18[%c16, %c0_65] : memref<32x1024xf32, #tpu.memory_space<vmem>>, vector<16x128xf32>
    tpu.vector_store %arg18[%c16, %c0_65], %118 {strides = array<i32>} : memref<32x1024xf32, #tpu.memory_space<vmem>>, vector<16x128xf32>,
    %c0_66 = arith.constant 0 : index
    %c128 = arith.constant 128 : index
    %120 = vector.load %arg17[%c0_66, %c128] : memref<16x1024xf32, #tpu.memory_space<vmem>>, vector<16x128xf32>
    %121 = vector.broadcast %100 : vector<1x128xf32> to vector<16x128xf32>
    %122 = arith.mulf %120, %121 : vector<16x128xf32>
    %123 = vector.broadcast %103 : vector<1x128xf32> to vector<16x128xf32>
    %124 = arith.addf %122, %123 : vector<16x128xf32>
    %cst_67 = arith.constant 0.000000e+00 : f32
    %125 = vector.broadcast %cst_67 : f32 to vector<16x128xf32>
    %126 = arith.maximumf %124, %125 : vector<16x128xf32>
    %cst_68 = arith.constant dense<0.000000e+00> : vector<16x256xf32>
    %127 = tpu.matmul %126, %104, %cst_68 {dimension_numbers = #tpu.dot_dimension_numbers<[1], [0], [0], [1], [0, 0, 1, 1], [], []>} : vector<16x128xf32>, vector<128x256xf32>, vector<16x256xf32> -> vector<16x256xf32>
    %128 = vector.broadcast %105 : vector<1x256xf32> to vector<16x256xf32>
    %129 = arith.addf %127, %128 : vector<16x256xf32>
    %130 = vector.extract_strided_slice %129 {offsets = [0, 0], sizes = [16, 128], strides = [1, 1]} : vector<16x256xf32> to vector<16x128xf32>
    %c0_69 = arith.constant 0 : index
    %c128_70 = arith.constant 128 : index
    %131 = vector.load %arg18[%c0_69, %c128_70] : memref<32x1024xf32, #tpu.memory_space<vmem>>, vector<16x128xf32>
    tpu.vector_store %arg18[%c0_69, %c128_70], %130 {strides = array<i32>} : memref<32x1024xf32, #tpu.memory_space<vmem>>, vector<16x128xf32>,
    %132 = vector.extract_strided_slice %129 {offsets = [0, 128], sizes = [16, 128], strides = [1, 1]} : vector<16x256xf32> to vector<16x128xf32>
    %c16_71 = arith.constant 16 : index
    %c128_72 = arith.constant 128 : index
    %133 = vector.load %arg18[%c16_71, %c128_72] : memref<32x1024xf32, #tpu.memory_space<vmem>>, vector<16x128xf32>
    tpu.vector_store %arg18[%c16_71, %c128_72], %132 {strides = array<i32>} : memref<32x1024xf32, #tpu.memory_space<vmem>>, vector<16x128xf32>,
    %c0_73 = arith.constant 0 : index
    %c256_74 = arith.constant 256 : index
    %134 = vector.load %arg17[%c0_73, %c256_74] : memref<16x1024xf32, #tpu.memory_space<vmem>>, vector<16x128xf32>
    %135 = vector.broadcast %100 : vector<1x128xf32> to vector<16x128xf32>
    %136 = arith.mulf %134, %135 : vector<16x128xf32>
    %137 = vector.broadcast %103 : vector<1x128xf32> to vector<16x128xf32>
    %138 = arith.addf %136, %137 : vector<16x128xf32>
    %cst_75 = arith.constant 0.000000e+00 : f32
    %139 = vector.broadcast %cst_75 : f32 to vector<16x128xf32>
    %140 = arith.maximumf %138, %139 : vector<16x128xf32>
    %cst_76 = arith.constant dense<0.000000e+00> : vector<16x256xf32>
    %141 = tpu.matmul %140, %104, %cst_76 {dimension_numbers = #tpu.dot_dimension_numbers<[1], [0], [0], [1], [0, 0, 1, 1], [], []>} : vector<16x128xf32>, vector<128x256xf32>, vector<16x256xf32> -> vector<16x256xf32>
    %142 = vector.broadcast %105 : vector<1x256xf32> to vector<16x256xf32>
    %143 = arith.addf %141, %142 : vector<16x256xf32>
    %144 = vector.extract_strided_slice %143 {offsets = [0, 0], sizes = [16, 128], strides = [1, 1]} : vector<16x256xf32> to vector<16x128xf32>
    %c0_77 = arith.constant 0 : index
    %c256_78 = arith.constant 256 : index
    %145 = vector.load %arg18[%c0_77, %c256_78] : memref<32x1024xf32, #tpu.memory_space<vmem>>, vector<16x128xf32>
    tpu.vector_store %arg18[%c0_77, %c256_78], %144 {strides = array<i32>} : memref<32x1024xf32, #tpu.memory_space<vmem>>, vector<16x128xf32>,
    %146 = vector.extract_strided_slice %143 {offsets = [0, 128], sizes = [16, 128], strides = [1, 1]} : vector<16x256xf32> to vector<16x128xf32>
    %c16_79 = arith.constant 16 : index
    %c256_80 = arith.constant 256 : index
    %147 = vector.load %arg18[%c16_79, %c256_80] : memref<32x1024xf32, #tpu.memory_space<vmem>>, vector<16x128xf32>
    tpu.vector_store %arg18[%c16_79, %c256_80], %146 {strides = array<i32>} : memref<32x1024xf32, #tpu.memory_space<vmem>>, vector<16x128xf32>,
    %c0_81 = arith.constant 0 : index
    %c384 = arith.constant 384 : index
    %148 = vector.load %arg17[%c0_81, %c384] : memref<16x1024xf32, #tpu.memory_space<vmem>>, vector<16x128xf32>
    %149 = vector.broadcast %100 : vector<1x128xf32> to vector<16x128xf32>
    %150 = arith.mulf %148, %149 : vector<16x128xf32>
    %151 = vector.broadcast %103 : vector<1x128xf32> to vector<16x128xf32>
    %152 = arith.addf %150, %151 : vector<16x128xf32>
    %cst_82 = arith.constant 0.000000e+00 : f32
    %153 = vector.broadcast %cst_82 : f32 to vector<16x128xf32>
    %154 = arith.maximumf %152, %153 : vector<16x128xf32>
    %cst_83 = arith.constant dense<0.000000e+00> : vector<16x256xf32>
    %155 = tpu.matmul %154, %104, %cst_83 {dimension_numbers = #tpu.dot_dimension_numbers<[1], [0], [0], [1], [0, 0, 1, 1], [], []>} : vector<16x128xf32>, vector<128x256xf32>, vector<16x256xf32> -> vector<16x256xf32>
    %156 = vector.broadcast %105 : vector<1x256xf32> to vector<16x256xf32>
    %157 = arith.addf %155, %156 : vector<16x256xf32>
    %158 = vector.extract_strided_slice %157 {offsets = [0, 0], sizes = [16, 128], strides = [1, 1]} : vector<16x256xf32> to vector<16x128xf32>
    %c0_84 = arith.constant 0 : index
    %c384_85 = arith.constant 384 : index
    %159 = vector.load %arg18[%c0_84, %c384_85] : memref<32x1024xf32, #tpu.memory_space<vmem>>, vector<16x128xf32>
    tpu.vector_store %arg18[%c0_84, %c384_85], %158 {strides = array<i32>} : memref<32x1024xf32, #tpu.memory_space<vmem>>, vector<16x128xf32>,
    %160 = vector.extract_strided_slice %157 {offsets = [0, 128], sizes = [16, 128], strides = [1, 1]} : vector<16x256xf32> to vector<16x128xf32>
    %c16_86 = arith.constant 16 : index
    %c384_87 = arith.constant 384 : index
    %161 = vector.load %arg18[%c16_86, %c384_87] : memref<32x1024xf32, #tpu.memory_space<vmem>>, vector<16x128xf32>
    tpu.vector_store %arg18[%c16_86, %c384_87], %160 {strides = array<i32>} : memref<32x1024xf32, #tpu.memory_space<vmem>>, vector<16x128xf32>,
    %c0_88 = arith.constant 0 : index
    %c512_89 = arith.constant 512 : index
    %162 = vector.load %arg17[%c0_88, %c512_89] : memref<16x1024xf32, #tpu.memory_space<vmem>>, vector<16x128xf32>
    %163 = vector.broadcast %100 : vector<1x128xf32> to vector<16x128xf32>
    %164 = arith.mulf %162, %163 : vector<16x128xf32>
    %165 = vector.broadcast %103 : vector<1x128xf32> to vector<16x128xf32>
    %166 = arith.addf %164, %165 : vector<16x128xf32>
    %cst_90 = arith.constant 0.000000e+00 : f32
    %167 = vector.broadcast %cst_90 : f32 to vector<16x128xf32>
    %168 = arith.maximumf %166, %167 : vector<16x128xf32>
    %cst_91 = arith.constant dense<0.000000e+00> : vector<16x256xf32>
    %169 = tpu.matmul %168, %104, %cst_91 {dimension_numbers = #tpu.dot_dimension_numbers<[1], [0], [0], [1], [0, 0, 1, 1], [], []>} : vector<16x128xf32>, vector<128x256xf32>, vector<16x256xf32> -> vector<16x256xf32>
    %170 = vector.broadcast %105 : vector<1x256xf32> to vector<16x256xf32>
    %171 = arith.addf %169, %170 : vector<16x256xf32>
    %172 = vector.extract_strided_slice %171 {offsets = [0, 0], sizes = [16, 128], strides = [1, 1]} : vector<16x256xf32> to vector<16x128xf32>
    %c0_92 = arith.constant 0 : index
    %c512_93 = arith.constant 512 : index
    %173 = vector.load %arg18[%c0_92, %c512_93] : memref<32x1024xf32, #tpu.memory_space<vmem>>, vector<16x128xf32>
    tpu.vector_store %arg18[%c0_92, %c512_93], %172 {strides = array<i32>} : memref<32x1024xf32, #tpu.memory_space<vmem>>, vector<16x128xf32>,
    %174 = vector.extract_strided_slice %171 {offsets = [0, 128], sizes = [16, 128], strides = [1, 1]} : vector<16x256xf32> to vector<16x128xf32>
    %c16_94 = arith.constant 16 : index
    %c512_95 = arith.constant 512 : index
    %175 = vector.load %arg18[%c16_94, %c512_95] : memref<32x1024xf32, #tpu.memory_space<vmem>>, vector<16x128xf32>
    tpu.vector_store %arg18[%c16_94, %c512_95], %174 {strides = array<i32>} : memref<32x1024xf32, #tpu.memory_space<vmem>>, vector<16x128xf32>,
    %c0_96 = arith.constant 0 : index
    %c640 = arith.constant 640 : index
    %176 = vector.load %arg17[%c0_96, %c640] : memref<16x1024xf32, #tpu.memory_space<vmem>>, vector<16x128xf32>
    %177 = vector.broadcast %100 : vector<1x128xf32> to vector<16x128xf32>
    %178 = arith.mulf %176, %177 : vector<16x128xf32>
    %179 = vector.broadcast %103 : vector<1x128xf32> to vector<16x128xf32>
    %180 = arith.addf %178, %179 : vector<16x128xf32>
    %cst_97 = arith.constant 0.000000e+00 : f32
    %181 = vector.broadcast %cst_97 : f32 to vector<16x128xf32>
    %182 = arith.maximumf %180, %181 : vector<16x128xf32>
    %cst_98 = arith.constant dense<0.000000e+00> : vector<16x256xf32>
    %183 = tpu.matmul %182, %104, %cst_98 {dimension_numbers = #tpu.dot_dimension_numbers<[1], [0], [0], [1], [0, 0, 1, 1], [], []>} : vector<16x128xf32>, vector<128x256xf32>, vector<16x256xf32> -> vector<16x256xf32>
    %184 = vector.broadcast %105 : vector<1x256xf32> to vector<16x256xf32>
    %185 = arith.addf %183, %184 : vector<16x256xf32>
    %186 = vector.extract_strided_slice %185 {offsets = [0, 0], sizes = [16, 128], strides = [1, 1]} : vector<16x256xf32> to vector<16x128xf32>
    %c0_99 = arith.constant 0 : index
    %c640_100 = arith.constant 640 : index
    %187 = vector.load %arg18[%c0_99, %c640_100] : memref<32x1024xf32, #tpu.memory_space<vmem>>, vector<16x128xf32>
    tpu.vector_store %arg18[%c0_99, %c640_100], %186 {strides = array<i32>} : memref<32x1024xf32, #tpu.memory_space<vmem>>, vector<16x128xf32>,
    %188 = vector.extract_strided_slice %185 {offsets = [0, 128], sizes = [16, 128], strides = [1, 1]} : vector<16x256xf32> to vector<16x128xf32>
    %c16_101 = arith.constant 16 : index
    %c640_102 = arith.constant 640 : index
    %189 = vector.load %arg18[%c16_101, %c640_102] : memref<32x1024xf32, #tpu.memory_space<vmem>>, vector<16x128xf32>
    tpu.vector_store %arg18[%c16_101, %c640_102], %188 {strides = array<i32>} : memref<32x1024xf32, #tpu.memory_space<vmem>>, vector<16x128xf32>,
    %c0_103 = arith.constant 0 : index
    %c768_104 = arith.constant 768 : index
    %190 = vector.load %arg17[%c0_103, %c768_104] : memref<16x1024xf32, #tpu.memory_space<vmem>>, vector<16x128xf32>
    %191 = vector.broadcast %100 : vector<1x128xf32> to vector<16x128xf32>
    %192 = arith.mulf %190, %191 : vector<16x128xf32>
    %193 = vector.broadcast %103 : vector<1x128xf32> to vector<16x128xf32>
    %194 = arith.addf %192, %193 : vector<16x128xf32>
    %cst_105 = arith.constant 0.000000e+00 : f32
    %195 = vector.broadcast %cst_105 : f32 to vector<16x128xf32>
    %196 = arith.maximumf %194, %195 : vector<16x128xf32>
    %cst_106 = arith.constant dense<0.000000e+00> : vector<16x256xf32>
    %197 = tpu.matmul %196, %104, %cst_106 {dimension_numbers = #tpu.dot_dimension_numbers<[1], [0], [0], [1], [0, 0, 1, 1], [], []>} : vector<16x128xf32>, vector<128x256xf32>, vector<16x256xf32> -> vector<16x256xf32>
    %198 = vector.broadcast %105 : vector<1x256xf32> to vector<16x256xf32>
    %199 = arith.addf %197, %198 : vector<16x256xf32>
    %200 = vector.extract_strided_slice %199 {offsets = [0, 0], sizes = [16, 128], strides = [1, 1]} : vector<16x256xf32> to vector<16x128xf32>
    %c0_107 = arith.constant 0 : index
    %c768_108 = arith.constant 768 : index
    %201 = vector.load %arg18[%c0_107, %c768_108] : memref<32x1024xf32, #tpu.memory_space<vmem>>, vector<16x128xf32>
    tpu.vector_store %arg18[%c0_107, %c768_108], %200 {strides = array<i32>} : memref<32x1024xf32, #tpu.memory_space<vmem>>, vector<16x128xf32>,
    %202 = vector.extract_strided_slice %199 {offsets = [0, 128], sizes = [16, 128], strides = [1, 1]} : vector<16x256xf32> to vector<16x128xf32>
    %c16_109 = arith.constant 16 : index
    %c768_110 = arith.constant 768 : index
    %203 = vector.load %arg18[%c16_109, %c768_110] : memref<32x1024xf32, #tpu.memory_space<vmem>>, vector<16x128xf32>
    tpu.vector_store %arg18[%c16_109, %c768_110], %202 {strides = array<i32>} : memref<32x1024xf32, #tpu.memory_space<vmem>>, vector<16x128xf32>,
    %c0_111 = arith.constant 0 : index
    %c896 = arith.constant 896 : index
    %204 = vector.load %arg17[%c0_111, %c896] : memref<16x1024xf32, #tpu.memory_space<vmem>>, vector<16x128xf32>
    %205 = vector.broadcast %100 : vector<1x128xf32> to vector<16x128xf32>
    %206 = arith.mulf %204, %205 : vector<16x128xf32>
    %207 = vector.broadcast %103 : vector<1x128xf32> to vector<16x128xf32>
    %208 = arith.addf %206, %207 : vector<16x128xf32>
    %cst_112 = arith.constant 0.000000e+00 : f32
    %209 = vector.broadcast %cst_112 : f32 to vector<16x128xf32>
    %210 = arith.maximumf %208, %209 : vector<16x128xf32>
    %cst_113 = arith.constant dense<0.000000e+00> : vector<16x256xf32>
    %211 = tpu.matmul %210, %104, %cst_113 {dimension_numbers = #tpu.dot_dimension_numbers<[1], [0], [0], [1], [0, 0, 1, 1], [], []>} : vector<16x128xf32>, vector<128x256xf32>, vector<16x256xf32> -> vector<16x256xf32>
    %212 = vector.broadcast %105 : vector<1x256xf32> to vector<16x256xf32>
    %213 = arith.addf %211, %212 : vector<16x256xf32>
    %214 = vector.extract_strided_slice %213 {offsets = [0, 0], sizes = [16, 128], strides = [1, 1]} : vector<16x256xf32> to vector<16x128xf32>
    %c0_114 = arith.constant 0 : index
    %c896_115 = arith.constant 896 : index
    %215 = vector.load %arg18[%c0_114, %c896_115] : memref<32x1024xf32, #tpu.memory_space<vmem>>, vector<16x128xf32>
    tpu.vector_store %arg18[%c0_114, %c896_115], %214 {strides = array<i32>} : memref<32x1024xf32, #tpu.memory_space<vmem>>, vector<16x128xf32>,
    %216 = vector.extract_strided_slice %213 {offsets = [0, 128], sizes = [16, 128], strides = [1, 1]} : vector<16x256xf32> to vector<16x128xf32>
    %c16_116 = arith.constant 16 : index
    %c896_117 = arith.constant 896 : index
    %217 = vector.load %arg18[%c16_116, %c896_117] : memref<32x1024xf32, #tpu.memory_space<vmem>>, vector<16x128xf32>
    tpu.vector_store %arg18[%c16_116, %c896_117], %216 {strides = array<i32>} : memref<32x1024xf32, #tpu.memory_space<vmem>>, vector<16x128xf32>,
    %c0_118 = arith.constant 0 : index
    %c0_119 = arith.constant 0 : index
    %218 = vector.load %arg18[%c0_118, %c0_119] : memref<32x1024xf32, #tpu.memory_space<vmem>>, vector<32x1024xf32>
    %cst_120 = arith.constant dense<0.000000e+00> : vector<1024xf32>
    %219 = vector.multi_reduction <add>, %218, %cst_120 [0] : vector<32x1024xf32> to vector<1024xf32>
    %220 = vector.shape_cast %219 : vector<1024xf32> to vector<1x1024xf32>
    %221 = arith.mulf %218, %218 : vector<32x1024xf32>
    %cst_121 = arith.constant dense<0.000000e+00> : vector<1024xf32>
    %222 = vector.multi_reduction <add>, %221, %cst_121 [0] : vector<32x1024xf32> to vector<1024xf32>
    %223 = vector.shape_cast %222 : vector<1024xf32> to vector<1x1024xf32>
    %224 = vector.extract_strided_slice %220 {offsets = [0, 0], sizes = [1, 64], strides = [1, 1]} : vector<1x1024xf32> to vector<1x64xf32>
    %225 = vector.extract_strided_slice %223 {offsets = [0, 0], sizes = [1, 64], strides = [1, 1]} : vector<1x1024xf32> to vector<1x64xf32>
    %226 = vector.extract_strided_slice %220 {offsets = [0, 64], sizes = [1, 64], strides = [1, 1]} : vector<1x1024xf32> to vector<1x64xf32>
    %227 = arith.addf %224, %226 : vector<1x64xf32>
    %228 = vector.extract_strided_slice %223 {offsets = [0, 64], sizes = [1, 64], strides = [1, 1]} : vector<1x1024xf32> to vector<1x64xf32>
    %229 = arith.addf %225, %228 : vector<1x64xf32>
    %230 = vector.extract_strided_slice %220 {offsets = [0, 128], sizes = [1, 64], strides = [1, 1]} : vector<1x1024xf32> to vector<1x64xf32>
    %231 = arith.addf %227, %230 : vector<1x64xf32>
    %232 = vector.extract_strided_slice %223 {offsets = [0, 128], sizes = [1, 64], strides = [1, 1]} : vector<1x1024xf32> to vector<1x64xf32>
    %233 = arith.addf %229, %232 : vector<1x64xf32>
    %234 = vector.extract_strided_slice %220 {offsets = [0, 192], sizes = [1, 64], strides = [1, 1]} : vector<1x1024xf32> to vector<1x64xf32>
    %235 = arith.addf %231, %234 : vector<1x64xf32>
    %236 = vector.extract_strided_slice %223 {offsets = [0, 192], sizes = [1, 64], strides = [1, 1]} : vector<1x1024xf32> to vector<1x64xf32>
    %237 = arith.addf %233, %236 : vector<1x64xf32>
    %238 = vector.extract_strided_slice %220 {offsets = [0, 256], sizes = [1, 64], strides = [1, 1]} : vector<1x1024xf32> to vector<1x64xf32>
    %239 = arith.addf %235, %238 : vector<1x64xf32>
    %240 = vector.extract_strided_slice %223 {offsets = [0, 256], sizes = [1, 64], strides = [1, 1]} : vector<1x1024xf32> to vector<1x64xf32>
    %241 = arith.addf %237, %240 : vector<1x64xf32>
    %242 = vector.extract_strided_slice %220 {offsets = [0, 320], sizes = [1, 64], strides = [1, 1]} : vector<1x1024xf32> to vector<1x64xf32>
    %243 = arith.addf %239, %242 : vector<1x64xf32>
    %244 = vector.extract_strided_slice %223 {offsets = [0, 320], sizes = [1, 64], strides = [1, 1]} : vector<1x1024xf32> to vector<1x64xf32>
    %245 = arith.addf %241, %244 : vector<1x64xf32>
    %246 = vector.extract_strided_slice %220 {offsets = [0, 384], sizes = [1, 64], strides = [1, 1]} : vector<1x1024xf32> to vector<1x64xf32>
    %247 = arith.addf %243, %246 : vector<1x64xf32>
    %248 = vector.extract_strided_slice %223 {offsets = [0, 384], sizes = [1, 64], strides = [1, 1]} : vector<1x1024xf32> to vector<1x64xf32>
    %249 = arith.addf %245, %248 : vector<1x64xf32>
    %250 = vector.extract_strided_slice %220 {offsets = [0, 448], sizes = [1, 64], strides = [1, 1]} : vector<1x1024xf32> to vector<1x64xf32>
    %251 = arith.addf %247, %250 : vector<1x64xf32>
    %252 = vector.extract_strided_slice %223 {offsets = [0, 448], sizes = [1, 64], strides = [1, 1]} : vector<1x1024xf32> to vector<1x64xf32>
    %253 = arith.addf %249, %252 : vector<1x64xf32>
    %254 = vector.extract_strided_slice %220 {offsets = [0, 512], sizes = [1, 64], strides = [1, 1]} : vector<1x1024xf32> to vector<1x64xf32>
    %255 = arith.addf %251, %254 : vector<1x64xf32>
    %256 = vector.extract_strided_slice %223 {offsets = [0, 512], sizes = [1, 64], strides = [1, 1]} : vector<1x1024xf32> to vector<1x64xf32>
    %257 = arith.addf %253, %256 : vector<1x64xf32>
    %258 = vector.extract_strided_slice %220 {offsets = [0, 576], sizes = [1, 64], strides = [1, 1]} : vector<1x1024xf32> to vector<1x64xf32>
    %259 = arith.addf %255, %258 : vector<1x64xf32>
    %260 = vector.extract_strided_slice %223 {offsets = [0, 576], sizes = [1, 64], strides = [1, 1]} : vector<1x1024xf32> to vector<1x64xf32>
    %261 = arith.addf %257, %260 : vector<1x64xf32>
    %262 = vector.extract_strided_slice %220 {offsets = [0, 640], sizes = [1, 64], strides = [1, 1]} : vector<1x1024xf32> to vector<1x64xf32>
    %263 = arith.addf %259, %262 : vector<1x64xf32>
    %264 = vector.extract_strided_slice %223 {offsets = [0, 640], sizes = [1, 64], strides = [1, 1]} : vector<1x1024xf32> to vector<1x64xf32>
    %265 = arith.addf %261, %264 : vector<1x64xf32>
    %266 = vector.extract_strided_slice %220 {offsets = [0, 704], sizes = [1, 64], strides = [1, 1]} : vector<1x1024xf32> to vector<1x64xf32>
    %267 = arith.addf %263, %266 : vector<1x64xf32>
    %268 = vector.extract_strided_slice %223 {offsets = [0, 704], sizes = [1, 64], strides = [1, 1]} : vector<1x1024xf32> to vector<1x64xf32>
    %269 = arith.addf %265, %268 : vector<1x64xf32>
    %270 = vector.extract_strided_slice %220 {offsets = [0, 768], sizes = [1, 64], strides = [1, 1]} : vector<1x1024xf32> to vector<1x64xf32>
    %271 = arith.addf %267, %270 : vector<1x64xf32>
    %272 = vector.extract_strided_slice %223 {offsets = [0, 768], sizes = [1, 64], strides = [1, 1]} : vector<1x1024xf32> to vector<1x64xf32>
    %273 = arith.addf %269, %272 : vector<1x64xf32>
    %274 = vector.extract_strided_slice %220 {offsets = [0, 832], sizes = [1, 64], strides = [1, 1]} : vector<1x1024xf32> to vector<1x64xf32>
    %275 = arith.addf %271, %274 : vector<1x64xf32>
    %276 = vector.extract_strided_slice %223 {offsets = [0, 832], sizes = [1, 64], strides = [1, 1]} : vector<1x1024xf32> to vector<1x64xf32>
    %277 = arith.addf %273, %276 : vector<1x64xf32>
    %278 = vector.extract_strided_slice %220 {offsets = [0, 896], sizes = [1, 64], strides = [1, 1]} : vector<1x1024xf32> to vector<1x64xf32>
    %279 = arith.addf %275, %278 : vector<1x64xf32>
    %280 = vector.extract_strided_slice %223 {offsets = [0, 896], sizes = [1, 64], strides = [1, 1]} : vector<1x1024xf32> to vector<1x64xf32>
    %281 = arith.addf %277, %280 : vector<1x64xf32>
    %282 = vector.extract_strided_slice %220 {offsets = [0, 960], sizes = [1, 64], strides = [1, 1]} : vector<1x1024xf32> to vector<1x64xf32>
    %283 = arith.addf %279, %282 : vector<1x64xf32>
    %284 = vector.extract_strided_slice %223 {offsets = [0, 960], sizes = [1, 64], strides = [1, 1]} : vector<1x1024xf32> to vector<1x64xf32>
    %285 = arith.addf %281, %284 : vector<1x64xf32>
    %cst_122 = arith.constant 5.120000e+02 : f32
    %286 = vector.broadcast %cst_122 : f32 to vector<1x64xf32>
    %287 = arith.divf %283, %286 : vector<1x64xf32>
    %cst_123 = arith.constant 5.120000e+02 : f32
    %288 = vector.broadcast %cst_123 : f32 to vector<1x64xf32>
    %289 = arith.divf %285, %288 : vector<1x64xf32>
    %290 = arith.mulf %287, %287 : vector<1x64xf32>
    %291 = arith.subf %289, %290 : vector<1x64xf32>
    %cst_124 = arith.constant 9.99999974E-6 : f32
    %292 = vector.broadcast %cst_124 : f32 to vector<1x64xf32>
    %293 = arith.addf %291, %292 : vector<1x64xf32>
    %294 = math.rsqrt %293 : vector<1x64xf32>
    %c0_125 = arith.constant 0 : index
    %c0_126 = arith.constant 0 : index
    %295 = vector.load %arg11[%c0_125, %c0_126] : memref<1x64xf32, #tpu.memory_space<vmem>>, vector<1x64xf32>
    %296 = arith.mulf %294, %295 : vector<1x64xf32>
    %c0_127 = arith.constant 0 : index
    %c0_128 = arith.constant 0 : index
    %297 = vector.load %arg12[%c0_127, %c0_128] : memref<1x64xf32, #tpu.memory_space<vmem>>, vector<1x64xf32>
    %298 = arith.mulf %287, %296 : vector<1x64xf32>
    %299 = arith.subf %297, %298 : vector<1x64xf32>
    %c0_129 = arith.constant 0 : index
    %c0_130 = arith.constant 0 : index
    %300 = vector.load %arg18[%c0_129, %c0_130] : memref<32x1024xf32, #tpu.memory_space<vmem>>, vector<32x64xf32>
    %301 = vector.broadcast %296 : vector<1x64xf32> to vector<32x64xf32>
    %302 = arith.mulf %300, %301 : vector<32x64xf32>
    %303 = vector.broadcast %299 : vector<1x64xf32> to vector<32x64xf32>
    %304 = arith.addf %302, %303 : vector<32x64xf32>
    %cst_131 = arith.constant 0.000000e+00 : f32
    %305 = vector.broadcast %cst_131 : f32 to vector<32x64xf32>
    %306 = arith.maximumf %304, %305 : vector<32x64xf32>
    %c0_132 = arith.constant 0 : index
    %c0_133 = arith.constant 0 : index
    %307 = vector.load %arg18[%c0_132, %c0_133] : memref<32x1024xf32, #tpu.memory_space<vmem>>, vector<32x64xf32>
    tpu.vector_store %arg18[%c0_132, %c0_133], %306 {strides = array<i32>} : memref<32x1024xf32, #tpu.memory_space<vmem>>, vector<32x64xf32>,
    %c0_134 = arith.constant 0 : index
    %c64 = arith.constant 64 : index
    %308 = vector.load %arg18[%c0_134, %c64] : memref<32x1024xf32, #tpu.memory_space<vmem>>, vector<32x64xf32>
    %309 = vector.broadcast %296 : vector<1x64xf32> to vector<32x64xf32>
    %310 = arith.mulf %308, %309 : vector<32x64xf32>
    %311 = vector.broadcast %299 : vector<1x64xf32> to vector<32x64xf32>
    %312 = arith.addf %310, %311 : vector<32x64xf32>
    %cst_135 = arith.constant 0.000000e+00 : f32
    %313 = vector.broadcast %cst_135 : f32 to vector<32x64xf32>
    %314 = arith.maximumf %312, %313 : vector<32x64xf32>
    %c0_136 = arith.constant 0 : index
    %c64_137 = arith.constant 64 : index
    %315 = vector.load %arg18[%c0_136, %c64_137] : memref<32x1024xf32, #tpu.memory_space<vmem>>, vector<32x64xf32>
    tpu.vector_store %arg18[%c0_136, %c64_137], %314 {strides = array<i32>} : memref<32x1024xf32, #tpu.memory_space<vmem>>, vector<32x64xf32>,
    %c0_138 = arith.constant 0 : index
    %c128_139 = arith.constant 128 : index
    %316 = vector.load %arg18[%c0_138, %c128_139] : memref<32x1024xf32, #tpu.memory_space<vmem>>, vector<32x64xf32>
    %317 = vector.broadcast %296 : vector<1x64xf32> to vector<32x64xf32>
    %318 = arith.mulf %316, %317 : vector<32x64xf32>
    %319 = vector.broadcast %299 : vector<1x64xf32> to vector<32x64xf32>
    %320 = arith.addf %318, %319 : vector<32x64xf32>
    %cst_140 = arith.constant 0.000000e+00 : f32
    %321 = vector.broadcast %cst_140 : f32 to vector<32x64xf32>
    %322 = arith.maximumf %320, %321 : vector<32x64xf32>
    %c0_141 = arith.constant 0 : index
    %c128_142 = arith.constant 128 : index
    %323 = vector.load %arg18[%c0_141, %c128_142] : memref<32x1024xf32, #tpu.memory_space<vmem>>, vector<32x64xf32>
    tpu.vector_store %arg18[%c0_141, %c128_142], %322 {strides = array<i32>} : memref<32x1024xf32, #tpu.memory_space<vmem>>, vector<32x64xf32>,
    %c0_143 = arith.constant 0 : index
    %c192 = arith.constant 192 : index
    %324 = vector.load %arg18[%c0_143, %c192] : memref<32x1024xf32, #tpu.memory_space<vmem>>, vector<32x64xf32>
    %325 = vector.broadcast %296 : vector<1x64xf32> to vector<32x64xf32>
    %326 = arith.mulf %324, %325 : vector<32x64xf32>
    %327 = vector.broadcast %299 : vector<1x64xf32> to vector<32x64xf32>
    %328 = arith.addf %326, %327 : vector<32x64xf32>
    %cst_144 = arith.constant 0.000000e+00 : f32
    %329 = vector.broadcast %cst_144 : f32 to vector<32x64xf32>
    %330 = arith.maximumf %328, %329 : vector<32x64xf32>
    %c0_145 = arith.constant 0 : index
    %c192_146 = arith.constant 192 : index
    %331 = vector.load %arg18[%c0_145, %c192_146] : memref<32x1024xf32, #tpu.memory_space<vmem>>, vector<32x64xf32>
    tpu.vector_store %arg18[%c0_145, %c192_146], %330 {strides = array<i32>} : memref<32x1024xf32, #tpu.memory_space<vmem>>, vector<32x64xf32>,
    %c0_147 = arith.constant 0 : index
    %c256_148 = arith.constant 256 : index
    %332 = vector.load %arg18[%c0_147, %c256_148] : memref<32x1024xf32, #tpu.memory_space<vmem>>, vector<32x64xf32>
    %333 = vector.broadcast %296 : vector<1x64xf32> to vector<32x64xf32>
    %334 = arith.mulf %332, %333 : vector<32x64xf32>
    %335 = vector.broadcast %299 : vector<1x64xf32> to vector<32x64xf32>
    %336 = arith.addf %334, %335 : vector<32x64xf32>
    %cst_149 = arith.constant 0.000000e+00 : f32
    %337 = vector.broadcast %cst_149 : f32 to vector<32x64xf32>
    %338 = arith.maximumf %336, %337 : vector<32x64xf32>
    %c0_150 = arith.constant 0 : index
    %c256_151 = arith.constant 256 : index
    %339 = vector.load %arg18[%c0_150, %c256_151] : memref<32x1024xf32, #tpu.memory_space<vmem>>, vector<32x64xf32>
    tpu.vector_store %arg18[%c0_150, %c256_151], %338 {strides = array<i32>} : memref<32x1024xf32, #tpu.memory_space<vmem>>, vector<32x64xf32>,
    %c0_152 = arith.constant 0 : index
    %c320 = arith.constant 320 : index
    %340 = vector.load %arg18[%c0_152, %c320] : memref<32x1024xf32, #tpu.memory_space<vmem>>, vector<32x64xf32>
    %341 = vector.broadcast %296 : vector<1x64xf32> to vector<32x64xf32>
    %342 = arith.mulf %340, %341 : vector<32x64xf32>
    %343 = vector.broadcast %299 : vector<1x64xf32> to vector<32x64xf32>
    %344 = arith.addf %342, %343 : vector<32x64xf32>
    %cst_153 = arith.constant 0.000000e+00 : f32
    %345 = vector.broadcast %cst_153 : f32 to vector<32x64xf32>
    %346 = arith.maximumf %344, %345 : vector<32x64xf32>
    %c0_154 = arith.constant 0 : index
    %c320_155 = arith.constant 320 : index
    %347 = vector.load %arg18[%c0_154, %c320_155] : memref<32x1024xf32, #tpu.memory_space<vmem>>, vector<32x64xf32>
    tpu.vector_store %arg18[%c0_154, %c320_155], %346 {strides = array<i32>} : memref<32x1024xf32, #tpu.memory_space<vmem>>, vector<32x64xf32>,
    %c0_156 = arith.constant 0 : index
    %c384_157 = arith.constant 384 : index
    %348 = vector.load %arg18[%c0_156, %c384_157] : memref<32x1024xf32, #tpu.memory_space<vmem>>, vector<32x64xf32>
    %349 = vector.broadcast %296 : vector<1x64xf32> to vector<32x64xf32>
    %350 = arith.mulf %348, %349 : vector<32x64xf32>
    %351 = vector.broadcast %299 : vector<1x64xf32> to vector<32x64xf32>
    %352 = arith.addf %350, %351 : vector<32x64xf32>
    %cst_158 = arith.constant 0.000000e+00 : f32
    %353 = vector.broadcast %cst_158 : f32 to vector<32x64xf32>
    %354 = arith.maximumf %352, %353 : vector<32x64xf32>
    %c0_159 = arith.constant 0 : index
    %c384_160 = arith.constant 384 : index
    %355 = vector.load %arg18[%c0_159, %c384_160] : memref<32x1024xf32, #tpu.memory_space<vmem>>, vector<32x64xf32>
    tpu.vector_store %arg18[%c0_159, %c384_160], %354 {strides = array<i32>} : memref<32x1024xf32, #tpu.memory_space<vmem>>, vector<32x64xf32>,
    %c0_161 = arith.constant 0 : index
    %c448 = arith.constant 448 : index
    %356 = vector.load %arg18[%c0_161, %c448] : memref<32x1024xf32, #tpu.memory_space<vmem>>, vector<32x64xf32>
    %357 = vector.broadcast %296 : vector<1x64xf32> to vector<32x64xf32>
    %358 = arith.mulf %356, %357 : vector<32x64xf32>
    %359 = vector.broadcast %299 : vector<1x64xf32> to vector<32x64xf32>
    %360 = arith.addf %358, %359 : vector<32x64xf32>
    %cst_162 = arith.constant 0.000000e+00 : f32
    %361 = vector.broadcast %cst_162 : f32 to vector<32x64xf32>
    %362 = arith.maximumf %360, %361 : vector<32x64xf32>
    %c0_163 = arith.constant 0 : index
    %c448_164 = arith.constant 448 : index
    %363 = vector.load %arg18[%c0_163, %c448_164] : memref<32x1024xf32, #tpu.memory_space<vmem>>, vector<32x64xf32>
    tpu.vector_store %arg18[%c0_163, %c448_164], %362 {strides = array<i32>} : memref<32x1024xf32, #tpu.memory_space<vmem>>, vector<32x64xf32>,
    %c0_165 = arith.constant 0 : index
    %c512_166 = arith.constant 512 : index
    %364 = vector.load %arg18[%c0_165, %c512_166] : memref<32x1024xf32, #tpu.memory_space<vmem>>, vector<32x64xf32>
    %365 = vector.broadcast %296 : vector<1x64xf32> to vector<32x64xf32>
    %366 = arith.mulf %364, %365 : vector<32x64xf32>
    %367 = vector.broadcast %299 : vector<1x64xf32> to vector<32x64xf32>
    %368 = arith.addf %366, %367 : vector<32x64xf32>
    %cst_167 = arith.constant 0.000000e+00 : f32
    %369 = vector.broadcast %cst_167 : f32 to vector<32x64xf32>
    %370 = arith.maximumf %368, %369 : vector<32x64xf32>
    %c0_168 = arith.constant 0 : index
    %c512_169 = arith.constant 512 : index
    %371 = vector.load %arg18[%c0_168, %c512_169] : memref<32x1024xf32, #tpu.memory_space<vmem>>, vector<32x64xf32>
    tpu.vector_store %arg18[%c0_168, %c512_169], %370 {strides = array<i32>} : memref<32x1024xf32, #tpu.memory_space<vmem>>, vector<32x64xf32>,
    %c0_170 = arith.constant 0 : index
    %c576 = arith.constant 576 : index
    %372 = vector.load %arg18[%c0_170, %c576] : memref<32x1024xf32, #tpu.memory_space<vmem>>, vector<32x64xf32>
    %373 = vector.broadcast %296 : vector<1x64xf32> to vector<32x64xf32>
    %374 = arith.mulf %372, %373 : vector<32x64xf32>
    %375 = vector.broadcast %299 : vector<1x64xf32> to vector<32x64xf32>
    %376 = arith.addf %374, %375 : vector<32x64xf32>
    %cst_171 = arith.constant 0.000000e+00 : f32
    %377 = vector.broadcast %cst_171 : f32 to vector<32x64xf32>
    %378 = arith.maximumf %376, %377 : vector<32x64xf32>
    %c0_172 = arith.constant 0 : index
    %c576_173 = arith.constant 576 : index
    %379 = vector.load %arg18[%c0_172, %c576_173] : memref<32x1024xf32, #tpu.memory_space<vmem>>, vector<32x64xf32>
    tpu.vector_store %arg18[%c0_172, %c576_173], %378 {strides = array<i32>} : memref<32x1024xf32, #tpu.memory_space<vmem>>, vector<32x64xf32>,
    %c0_174 = arith.constant 0 : index
    %c640_175 = arith.constant 640 : index
    %380 = vector.load %arg18[%c0_174, %c640_175] : memref<32x1024xf32, #tpu.memory_space<vmem>>, vector<32x64xf32>
    %381 = vector.broadcast %296 : vector<1x64xf32> to vector<32x64xf32>
    %382 = arith.mulf %380, %381 : vector<32x64xf32>
    %383 = vector.broadcast %299 : vector<1x64xf32> to vector<32x64xf32>
    %384 = arith.addf %382, %383 : vector<32x64xf32>
    %cst_176 = arith.constant 0.000000e+00 : f32
    %385 = vector.broadcast %cst_176 : f32 to vector<32x64xf32>
    %386 = arith.maximumf %384, %385 : vector<32x64xf32>
    %c0_177 = arith.constant 0 : index
    %c640_178 = arith.constant 640 : index
    %387 = vector.load %arg18[%c0_177, %c640_178] : memref<32x1024xf32, #tpu.memory_space<vmem>>, vector<32x64xf32>
    tpu.vector_store %arg18[%c0_177, %c640_178], %386 {strides = array<i32>} : memref<32x1024xf32, #tpu.memory_space<vmem>>, vector<32x64xf32>,
    %c0_179 = arith.constant 0 : index
    %c704 = arith.constant 704 : index
    %388 = vector.load %arg18[%c0_179, %c704] : memref<32x1024xf32, #tpu.memory_space<vmem>>, vector<32x64xf32>
    %389 = vector.broadcast %296 : vector<1x64xf32> to vector<32x64xf32>
    %390 = arith.mulf %388, %389 : vector<32x64xf32>
    %391 = vector.broadcast %299 : vector<1x64xf32> to vector<32x64xf32>
    %392 = arith.addf %390, %391 : vector<32x64xf32>
    %cst_180 = arith.constant 0.000000e+00 : f32
    %393 = vector.broadcast %cst_180 : f32 to vector<32x64xf32>
    %394 = arith.maximumf %392, %393 : vector<32x64xf32>
    %c0_181 = arith.constant 0 : index
    %c704_182 = arith.constant 704 : index
    %395 = vector.load %arg18[%c0_181, %c704_182] : memref<32x1024xf32, #tpu.memory_space<vmem>>, vector<32x64xf32>
    tpu.vector_store %arg18[%c0_181, %c704_182], %394 {strides = array<i32>} : memref<32x1024xf32, #tpu.memory_space<vmem>>, vector<32x64xf32>,
    %c0_183 = arith.constant 0 : index
    %c768_184 = arith.constant 768 : index
    %396 = vector.load %arg18[%c0_183, %c768_184] : memref<32x1024xf32, #tpu.memory_space<vmem>>, vector<32x64xf32>
    %397 = vector.broadcast %296 : vector<1x64xf32> to vector<32x64xf32>
    %398 = arith.mulf %396, %397 : vector<32x64xf32>
    %399 = vector.broadcast %299 : vector<1x64xf32> to vector<32x64xf32>
    %400 = arith.addf %398, %399 : vector<32x64xf32>
    %cst_185 = arith.constant 0.000000e+00 : f32
    %401 = vector.broadcast %cst_185 : f32 to vector<32x64xf32>
    %402 = arith.maximumf %400, %401 : vector<32x64xf32>
    %c0_186 = arith.constant 0 : index
    %c768_187 = arith.constant 768 : index
    %403 = vector.load %arg18[%c0_186, %c768_187] : memref<32x1024xf32, #tpu.memory_space<vmem>>, vector<32x64xf32>
    tpu.vector_store %arg18[%c0_186, %c768_187], %402 {strides = array<i32>} : memref<32x1024xf32, #tpu.memory_space<vmem>>, vector<32x64xf32>,
    %c0_188 = arith.constant 0 : index
    %c832 = arith.constant 832 : index
    %404 = vector.load %arg18[%c0_188, %c832] : memref<32x1024xf32, #tpu.memory_space<vmem>>, vector<32x64xf32>
    %405 = vector.broadcast %296 : vector<1x64xf32> to vector<32x64xf32>
    %406 = arith.mulf %404, %405 : vector<32x64xf32>
    %407 = vector.broadcast %299 : vector<1x64xf32> to vector<32x64xf32>
    %408 = arith.addf %406, %407 : vector<32x64xf32>
    %cst_189 = arith.constant 0.000000e+00 : f32
    %409 = vector.broadcast %cst_189 : f32 to vector<32x64xf32>
    %410 = arith.maximumf %408, %409 : vector<32x64xf32>
    %c0_190 = arith.constant 0 : index
    %c832_191 = arith.constant 832 : index
    %411 = vector.load %arg18[%c0_190, %c832_191] : memref<32x1024xf32, #tpu.memory_space<vmem>>, vector<32x64xf32>
    tpu.vector_store %arg18[%c0_190, %c832_191], %410 {strides = array<i32>} : memref<32x1024xf32, #tpu.memory_space<vmem>>, vector<32x64xf32>,
    %c0_192 = arith.constant 0 : index
    %c896_193 = arith.constant 896 : index
    %412 = vector.load %arg18[%c0_192, %c896_193] : memref<32x1024xf32, #tpu.memory_space<vmem>>, vector<32x64xf32>
    %413 = vector.broadcast %296 : vector<1x64xf32> to vector<32x64xf32>
    %414 = arith.mulf %412, %413 : vector<32x64xf32>
    %415 = vector.broadcast %299 : vector<1x64xf32> to vector<32x64xf32>
    %416 = arith.addf %414, %415 : vector<32x64xf32>
    %cst_194 = arith.constant 0.000000e+00 : f32
    %417 = vector.broadcast %cst_194 : f32 to vector<32x64xf32>
    %418 = arith.maximumf %416, %417 : vector<32x64xf32>
    %c0_195 = arith.constant 0 : index
    %c896_196 = arith.constant 896 : index
    %419 = vector.load %arg18[%c0_195, %c896_196] : memref<32x1024xf32, #tpu.memory_space<vmem>>, vector<32x64xf32>
    tpu.vector_store %arg18[%c0_195, %c896_196], %418 {strides = array<i32>} : memref<32x1024xf32, #tpu.memory_space<vmem>>, vector<32x64xf32>,
    %c0_197 = arith.constant 0 : index
    %c960 = arith.constant 960 : index
    %420 = vector.load %arg18[%c0_197, %c960] : memref<32x1024xf32, #tpu.memory_space<vmem>>, vector<32x64xf32>
    %421 = vector.broadcast %296 : vector<1x64xf32> to vector<32x64xf32>
    %422 = arith.mulf %420, %421 : vector<32x64xf32>
    %423 = vector.broadcast %299 : vector<1x64xf32> to vector<32x64xf32>
    %424 = arith.addf %422, %423 : vector<32x64xf32>
    %cst_198 = arith.constant 0.000000e+00 : f32
    %425 = vector.broadcast %cst_198 : f32 to vector<32x64xf32>
    %426 = arith.maximumf %424, %425 : vector<32x64xf32>
    %c0_199 = arith.constant 0 : index
    %c960_200 = arith.constant 960 : index
    %427 = vector.load %arg18[%c0_199, %c960_200] : memref<32x1024xf32, #tpu.memory_space<vmem>>, vector<32x64xf32>
    tpu.vector_store %arg18[%c0_199, %c960_200], %426 {strides = array<i32>} : memref<32x1024xf32, #tpu.memory_space<vmem>>, vector<32x64xf32>,
    %cst_201 = arith.constant 0.000000e+00 : f32
    %428 = vector.broadcast %cst_201 : f32 to vector<1x1024xf32>
    %c0_202 = arith.constant 0 : index
    %c0_203 = arith.constant 0 : index
    %429 = vector.load %arg19[%c0_202, %c0_203] : memref<34x1024xf32, #tpu.memory_space<vmem>>, vector<1x1024xf32>
    tpu.vector_store %arg19[%c0_202, %c0_203], %428 {strides = array<i32>} : memref<34x1024xf32, #tpu.memory_space<vmem>>, vector<1x1024xf32>,
    %cst_204 = arith.constant 0.000000e+00 : f32
    %430 = vector.broadcast %cst_204 : f32 to vector<1x1024xf32>
    %c33 = arith.constant 33 : index
    %c0_205 = arith.constant 0 : index
    %431 = vector.load %arg19[%c33, %c0_205] : memref<34x1024xf32, #tpu.memory_space<vmem>>, vector<1x1024xf32>
    tpu.vector_store %arg19[%c33, %c0_205], %430 {strides = array<i32>} : memref<34x1024xf32, #tpu.memory_space<vmem>>, vector<1x1024xf32>,
    %c0_206 = arith.constant 0 : index
    %c0_207 = arith.constant 0 : index
    %432 = vector.load %arg18[%c0_206, %c0_207] : memref<32x1024xf32, #tpu.memory_space<vmem>>, vector<1x1024xf32>
    %c1 = arith.constant 1 : index
    %c0_208 = arith.constant 0 : index
    %433 = vector.load %arg19[%c1, %c0_208] : memref<34x1024xf32, #tpu.memory_space<vmem>>, vector<1x1024xf32>
    tpu.vector_store %arg19[%c1, %c0_208], %432 {strides = array<i32>} : memref<34x1024xf32, #tpu.memory_space<vmem>>, vector<1x1024xf32>,
    %c16_209 = arith.constant 16 : index
    %c0_210 = arith.constant 0 : index
    %434 = vector.load %arg18[%c16_209, %c0_210] : memref<32x1024xf32, #tpu.memory_space<vmem>>, vector<1x1024xf32>
    %c2_211 = arith.constant 2 : index
    %c0_212 = arith.constant 0 : index
    %435 = vector.load %arg19[%c2_211, %c0_212] : memref<34x1024xf32, #tpu.memory_space<vmem>>, vector<1x1024xf32>
    tpu.vector_store %arg19[%c2_211, %c0_212], %434 {strides = array<i32>} : memref<34x1024xf32, #tpu.memory_space<vmem>>, vector<1x1024xf32>,
    %c8_213 = arith.constant 8 : index
    %c0_214 = arith.constant 0 : index
    %436 = vector.load %arg18[%c8_213, %c0_214] : memref<32x1024xf32, #tpu.memory_space<vmem>>, vector<1x1024xf32>
    %c3 = arith.constant 3 : index
    %c0_215 = arith.constant 0 : index
    %437 = vector.load %arg19[%c3, %c0_215] : memref<34x1024xf32, #tpu.memory_space<vmem>>, vector<1x1024xf32>
    tpu.vector_store %arg19[%c3, %c0_215], %436 {strides = array<i32>} : memref<34x1024xf32, #tpu.memory_space<vmem>>, vector<1x1024xf32>,
    %c24 = arith.constant 24 : index
    %c0_216 = arith.constant 0 : index
    %438 = vector.load %arg18[%c24, %c0_216] : memref<32x1024xf32, #tpu.memory_space<vmem>>, vector<1x1024xf32>
    %c4_217 = arith.constant 4 : index
    %c0_218 = arith.constant 0 : index
    %439 = vector.load %arg19[%c4_217, %c0_218] : memref<34x1024xf32, #tpu.memory_space<vmem>>, vector<1x1024xf32>
    tpu.vector_store %arg19[%c4_217, %c0_218], %438 {strides = array<i32>} : memref<34x1024xf32, #tpu.memory_space<vmem>>, vector<1x1024xf32>,
    %c2_219 = arith.constant 2 : index
    %c0_220 = arith.constant 0 : index
    %440 = vector.load %arg18[%c2_219, %c0_220] : memref<32x1024xf32, #tpu.memory_space<vmem>>, vector<1x1024xf32>
    %c5 = arith.constant 5 : index
    %c0_221 = arith.constant 0 : index
    %441 = vector.load %arg19[%c5, %c0_221] : memref<34x1024xf32, #tpu.memory_space<vmem>>, vector<1x1024xf32>
    tpu.vector_store %arg19[%c5, %c0_221], %440 {strides = array<i32>} : memref<34x1024xf32, #tpu.memory_space<vmem>>, vector<1x1024xf32>,
    %c18 = arith.constant 18 : index
    %c0_222 = arith.constant 0 : index
    %442 = vector.load %arg18[%c18, %c0_222] : memref<32x1024xf32, #tpu.memory_space<vmem>>, vector<1x1024xf32>
    %c6_223 = arith.constant 6 : index
    %c0_224 = arith.constant 0 : index
    %443 = vector.load %arg19[%c6_223, %c0_224] : memref<34x1024xf32, #tpu.memory_space<vmem>>, vector<1x1024xf32>
    tpu.vector_store %arg19[%c6_223, %c0_224], %442 {strides = array<i32>} : memref<34x1024xf32, #tpu.memory_space<vmem>>, vector<1x1024xf32>,
    %c10 = arith.constant 10 : index
    %c0_225 = arith.constant 0 : index
    %444 = vector.load %arg18[%c10, %c0_225] : memref<32x1024xf32, #tpu.memory_space<vmem>>, vector<1x1024xf32>
    %c7 = arith.constant 7 : index
    %c0_226 = arith.constant 0 : index
    %445 = vector.load %arg19[%c7, %c0_226] : memref<34x1024xf32, #tpu.memory_space<vmem>>, vector<1x1024xf32>
    tpu.vector_store %arg19[%c7, %c0_226], %444 {strides = array<i32>} : memref<34x1024xf32, #tpu.memory_space<vmem>>, vector<1x1024xf32>,
    %c26 = arith.constant 26 : index
    %c0_227 = arith.constant 0 : index
    %446 = vector.load %arg18[%c26, %c0_227] : memref<32x1024xf32, #tpu.memory_space<vmem>>, vector<1x1024xf32>
    %c8_228 = arith.constant 8 : index
    %c0_229 = arith.constant 0 : index
    %447 = vector.load %arg19[%c8_228, %c0_229] : memref<34x1024xf32, #tpu.memory_space<vmem>>, vector<1x1024xf32>
    tpu.vector_store %arg19[%c8_228, %c0_229], %446 {strides = array<i32>} : memref<34x1024xf32, #tpu.memory_space<vmem>>, vector<1x1024xf32>,
    %c4_230 = arith.constant 4 : index
    %c0_231 = arith.constant 0 : index
    %448 = vector.load %arg18[%c4_230, %c0_231] : memref<32x1024xf32, #tpu.memory_space<vmem>>, vector<1x1024xf32>
    %c9 = arith.constant 9 : index
    %c0_232 = arith.constant 0 : index
    %449 = vector.load %arg19[%c9, %c0_232] : memref<34x1024xf32, #tpu.memory_space<vmem>>, vector<1x1024xf32>
    tpu.vector_store %arg19[%c9, %c0_232], %448 {strides = array<i32>} : memref<34x1024xf32, #tpu.memory_space<vmem>>, vector<1x1024xf32>,
    %c20 = arith.constant 20 : index
    %c0_233 = arith.constant 0 : index
    %450 = vector.load %arg18[%c20, %c0_233] : memref<32x1024xf32, #tpu.memory_space<vmem>>, vector<1x1024xf32>
    %c10_234 = arith.constant 10 : index
    %c0_235 = arith.constant 0 : index
    %451 = vector.load %arg19[%c10_234, %c0_235] : memref<34x1024xf32, #tpu.memory_space<vmem>>, vector<1x1024xf32>
    tpu.vector_store %arg19[%c10_234, %c0_235], %450 {strides = array<i32>} : memref<34x1024xf32, #tpu.memory_space<vmem>>, vector<1x1024xf32>,
    %c12 = arith.constant 12 : index
    %c0_236 = arith.constant 0 : index
    %452 = vector.load %arg18[%c12, %c0_236] : memref<32x1024xf32, #tpu.memory_space<vmem>>, vector<1x1024xf32>
    %c11 = arith.constant 11 : index
    %c0_237 = arith.constant 0 : index
    %453 = vector.load %arg19[%c11, %c0_237] : memref<34x1024xf32, #tpu.memory_space<vmem>>, vector<1x1024xf32>
    tpu.vector_store %arg19[%c11, %c0_237], %452 {strides = array<i32>} : memref<34x1024xf32, #tpu.memory_space<vmem>>, vector<1x1024xf32>,
    %c28 = arith.constant 28 : index
    %c0_238 = arith.constant 0 : index
    %454 = vector.load %arg18[%c28, %c0_238] : memref<32x1024xf32, #tpu.memory_space<vmem>>, vector<1x1024xf32>
    %c12_239 = arith.constant 12 : index
    %c0_240 = arith.constant 0 : index
    %455 = vector.load %arg19[%c12_239, %c0_240] : memref<34x1024xf32, #tpu.memory_space<vmem>>, vector<1x1024xf32>
    tpu.vector_store %arg19[%c12_239, %c0_240], %454 {strides = array<i32>} : memref<34x1024xf32, #tpu.memory_space<vmem>>, vector<1x1024xf32>,
    %c6_241 = arith.constant 6 : index
    %c0_242 = arith.constant 0 : index
    %456 = vector.load %arg18[%c6_241, %c0_242] : memref<32x1024xf32, #tpu.memory_space<vmem>>, vector<1x1024xf32>
    %c13 = arith.constant 13 : index
    %c0_243 = arith.constant 0 : index
    %457 = vector.load %arg19[%c13, %c0_243] : memref<34x1024xf32, #tpu.memory_space<vmem>>, vector<1x1024xf32>
    tpu.vector_store %arg19[%c13, %c0_243], %456 {strides = array<i32>} : memref<34x1024xf32, #tpu.memory_space<vmem>>, vector<1x1024xf32>,
    %c22 = arith.constant 22 : index
    %c0_244 = arith.constant 0 : index
    %458 = vector.load %arg18[%c22, %c0_244] : memref<32x1024xf32, #tpu.memory_space<vmem>>, vector<1x1024xf32>
    %c14 = arith.constant 14 : index
    %c0_245 = arith.constant 0 : index
    %459 = vector.load %arg19[%c14, %c0_245] : memref<34x1024xf32, #tpu.memory_space<vmem>>, vector<1x1024xf32>
    tpu.vector_store %arg19[%c14, %c0_245], %458 {strides = array<i32>} : memref<34x1024xf32, #tpu.memory_space<vmem>>, vector<1x1024xf32>,
    %c14_246 = arith.constant 14 : index
    %c0_247 = arith.constant 0 : index
    %460 = vector.load %arg18[%c14_246, %c0_247] : memref<32x1024xf32, #tpu.memory_space<vmem>>, vector<1x1024xf32>
    %c15 = arith.constant 15 : index
    %c0_248 = arith.constant 0 : index
    %461 = vector.load %arg19[%c15, %c0_248] : memref<34x1024xf32, #tpu.memory_space<vmem>>, vector<1x1024xf32>
    tpu.vector_store %arg19[%c15, %c0_248], %460 {strides = array<i32>} : memref<34x1024xf32, #tpu.memory_space<vmem>>, vector<1x1024xf32>,
    %c30 = arith.constant 30 : index
    %c0_249 = arith.constant 0 : index
    %462 = vector.load %arg18[%c30, %c0_249] : memref<32x1024xf32, #tpu.memory_space<vmem>>, vector<1x1024xf32>
    %c16_250 = arith.constant 16 : index
    %c0_251 = arith.constant 0 : index
    %463 = vector.load %arg19[%c16_250, %c0_251] : memref<34x1024xf32, #tpu.memory_space<vmem>>, vector<1x1024xf32>
    tpu.vector_store %arg19[%c16_250, %c0_251], %462 {strides = array<i32>} : memref<34x1024xf32, #tpu.memory_space<vmem>>, vector<1x1024xf32>,
    %c1_252 = arith.constant 1 : index
    %c0_253 = arith.constant 0 : index
    %464 = vector.load %arg18[%c1_252, %c0_253] : memref<32x1024xf32, #tpu.memory_space<vmem>>, vector<1x1024xf32>
    %c17 = arith.constant 17 : index
    %c0_254 = arith.constant 0 : index
    %465 = vector.load %arg19[%c17, %c0_254] : memref<34x1024xf32, #tpu.memory_space<vmem>>, vector<1x1024xf32>
    tpu.vector_store %arg19[%c17, %c0_254], %464 {strides = array<i32>} : memref<34x1024xf32, #tpu.memory_space<vmem>>, vector<1x1024xf32>,
    %c17_255 = arith.constant 17 : index
    %c0_256 = arith.constant 0 : index
    %466 = vector.load %arg18[%c17_255, %c0_256] : memref<32x1024xf32, #tpu.memory_space<vmem>>, vector<1x1024xf32>
    %c18_257 = arith.constant 18 : index
    %c0_258 = arith.constant 0 : index
    %467 = vector.load %arg19[%c18_257, %c0_258] : memref<34x1024xf32, #tpu.memory_space<vmem>>, vector<1x1024xf32>
    tpu.vector_store %arg19[%c18_257, %c0_258], %466 {strides = array<i32>} : memref<34x1024xf32, #tpu.memory_space<vmem>>, vector<1x1024xf32>,
    %c9_259 = arith.constant 9 : index
    %c0_260 = arith.constant 0 : index
    %468 = vector.load %arg18[%c9_259, %c0_260] : memref<32x1024xf32, #tpu.memory_space<vmem>>, vector<1x1024xf32>
    %c19 = arith.constant 19 : index
    %c0_261 = arith.constant 0 : index
    %469 = vector.load %arg19[%c19, %c0_261] : memref<34x1024xf32, #tpu.memory_space<vmem>>, vector<1x1024xf32>
    tpu.vector_store %arg19[%c19, %c0_261], %468 {strides = array<i32>} : memref<34x1024xf32, #tpu.memory_space<vmem>>, vector<1x1024xf32>,
    %c25 = arith.constant 25 : index
    %c0_262 = arith.constant 0 : index
    %470 = vector.load %arg18[%c25, %c0_262] : memref<32x1024xf32, #tpu.memory_space<vmem>>, vector<1x1024xf32>
    %c20_263 = arith.constant 20 : index
    %c0_264 = arith.constant 0 : index
    %471 = vector.load %arg19[%c20_263, %c0_264] : memref<34x1024xf32, #tpu.memory_space<vmem>>, vector<1x1024xf32>
    tpu.vector_store %arg19[%c20_263, %c0_264], %470 {strides = array<i32>} : memref<34x1024xf32, #tpu.memory_space<vmem>>, vector<1x1024xf32>,
    %c3_265 = arith.constant 3 : index
    %c0_266 = arith.constant 0 : index
    %472 = vector.load %arg18[%c3_265, %c0_266] : memref<32x1024xf32, #tpu.memory_space<vmem>>, vector<1x1024xf32>
    %c21 = arith.constant 21 : index
    %c0_267 = arith.constant 0 : index
    %473 = vector.load %arg19[%c21, %c0_267] : memref<34x1024xf32, #tpu.memory_space<vmem>>, vector<1x1024xf32>
    tpu.vector_store %arg19[%c21, %c0_267], %472 {strides = array<i32>} : memref<34x1024xf32, #tpu.memory_space<vmem>>, vector<1x1024xf32>,
    %c19_268 = arith.constant 19 : index
    %c0_269 = arith.constant 0 : index
    %474 = vector.load %arg18[%c19_268, %c0_269] : memref<32x1024xf32, #tpu.memory_space<vmem>>, vector<1x1024xf32>
    %c22_270 = arith.constant 22 : index
    %c0_271 = arith.constant 0 : index
    %475 = vector.load %arg19[%c22_270, %c0_271] : memref<34x1024xf32, #tpu.memory_space<vmem>>, vector<1x1024xf32>
    tpu.vector_store %arg19[%c22_270, %c0_271], %474 {strides = array<i32>} : memref<34x1024xf32, #tpu.memory_space<vmem>>, vector<1x1024xf32>,
    %c11_272 = arith.constant 11 : index
    %c0_273 = arith.constant 0 : index
    %476 = vector.load %arg18[%c11_272, %c0_273] : memref<32x1024xf32, #tpu.memory_space<vmem>>, vector<1x1024xf32>
    %c23 = arith.constant 23 : index
    %c0_274 = arith.constant 0 : index
    %477 = vector.load %arg19[%c23, %c0_274] : memref<34x1024xf32, #tpu.memory_space<vmem>>, vector<1x1024xf32>
    tpu.vector_store %arg19[%c23, %c0_274], %476 {strides = array<i32>} : memref<34x1024xf32, #tpu.memory_space<vmem>>, vector<1x1024xf32>,
    %c27 = arith.constant 27 : index
    %c0_275 = arith.constant 0 : index
    %478 = vector.load %arg18[%c27, %c0_275] : memref<32x1024xf32, #tpu.memory_space<vmem>>, vector<1x1024xf32>
    %c24_276 = arith.constant 24 : index
    %c0_277 = arith.constant 0 : index
    %479 = vector.load %arg19[%c24_276, %c0_277] : memref<34x1024xf32, #tpu.memory_space<vmem>>, vector<1x1024xf32>
    tpu.vector_store %arg19[%c24_276, %c0_277], %478 {strides = array<i32>} : memref<34x1024xf32, #tpu.memory_space<vmem>>, vector<1x1024xf32>,
    %c5_278 = arith.constant 5 : index
    %c0_279 = arith.constant 0 : index
    %480 = vector.load %arg18[%c5_278, %c0_279] : memref<32x1024xf32, #tpu.memory_space<vmem>>, vector<1x1024xf32>
    %c25_280 = arith.constant 25 : index
    %c0_281 = arith.constant 0 : index
    %481 = vector.load %arg19[%c25_280, %c0_281] : memref<34x1024xf32, #tpu.memory_space<vmem>>, vector<1x1024xf32>
    tpu.vector_store %arg19[%c25_280, %c0_281], %480 {strides = array<i32>} : memref<34x1024xf32, #tpu.memory_space<vmem>>, vector<1x1024xf32>,
    %c21_282 = arith.constant 21 : index
    %c0_283 = arith.constant 0 : index
    %482 = vector.load %arg18[%c21_282, %c0_283] : memref<32x1024xf32, #tpu.memory_space<vmem>>, vector<1x1024xf32>
    %c26_284 = arith.constant 26 : index
    %c0_285 = arith.constant 0 : index
    %483 = vector.load %arg19[%c26_284, %c0_285] : memref<34x1024xf32, #tpu.memory_space<vmem>>, vector<1x1024xf32>
    tpu.vector_store %arg19[%c26_284, %c0_285], %482 {strides = array<i32>} : memref<34x1024xf32, #tpu.memory_space<vmem>>, vector<1x1024xf32>,
    %c13_286 = arith.constant 13 : index
    %c0_287 = arith.constant 0 : index
    %484 = vector.load %arg18[%c13_286, %c0_287] : memref<32x1024xf32, #tpu.memory_space<vmem>>, vector<1x1024xf32>
    %c27_288 = arith.constant 27 : index
    %c0_289 = arith.constant 0 : index
    %485 = vector.load %arg19[%c27_288, %c0_289] : memref<34x1024xf32, #tpu.memory_space<vmem>>, vector<1x1024xf32>
    tpu.vector_store %arg19[%c27_288, %c0_289], %484 {strides = array<i32>} : memref<34x1024xf32, #tpu.memory_space<vmem>>, vector<1x1024xf32>,
    %c29 = arith.constant 29 : index
    %c0_290 = arith.constant 0 : index
    %486 = vector.load %arg18[%c29, %c0_290] : memref<32x1024xf32, #tpu.memory_space<vmem>>, vector<1x1024xf32>
    %c28_291 = arith.constant 28 : index
    %c0_292 = arith.constant 0 : index
    %487 = vector.load %arg19[%c28_291, %c0_292] : memref<34x1024xf32, #tpu.memory_space<vmem>>, vector<1x1024xf32>
    tpu.vector_store %arg19[%c28_291, %c0_292], %486 {strides = array<i32>} : memref<34x1024xf32, #tpu.memory_space<vmem>>, vector<1x1024xf32>,
    %c7_293 = arith.constant 7 : index
    %c0_294 = arith.constant 0 : index
    %488 = vector.load %arg18[%c7_293, %c0_294] : memref<32x1024xf32, #tpu.memory_space<vmem>>, vector<1x1024xf32>
    %c29_295 = arith.constant 29 : index
    %c0_296 = arith.constant 0 : index
    %489 = vector.load %arg19[%c29_295, %c0_296] : memref<34x1024xf32, #tpu.memory_space<vmem>>, vector<1x1024xf32>
    tpu.vector_store %arg19[%c29_295, %c0_296], %488 {strides = array<i32>} : memref<34x1024xf32, #tpu.memory_space<vmem>>, vector<1x1024xf32>,
    %c23_297 = arith.constant 23 : index
    %c0_298 = arith.constant 0 : index
    %490 = vector.load %arg18[%c23_297, %c0_298] : memref<32x1024xf32, #tpu.memory_space<vmem>>, vector<1x1024xf32>
    %c30_299 = arith.constant 30 : index
    %c0_300 = arith.constant 0 : index
    %491 = vector.load %arg19[%c30_299, %c0_300] : memref<34x1024xf32, #tpu.memory_space<vmem>>, vector<1x1024xf32>
    tpu.vector_store %arg19[%c30_299, %c0_300], %490 {strides = array<i32>} : memref<34x1024xf32, #tpu.memory_space<vmem>>, vector<1x1024xf32>,
    %c15_301 = arith.constant 15 : index
    %c0_302 = arith.constant 0 : index
    %492 = vector.load %arg18[%c15_301, %c0_302] : memref<32x1024xf32, #tpu.memory_space<vmem>>, vector<1x1024xf32>
    %c31 = arith.constant 31 : index
    %c0_303 = arith.constant 0 : index
    %493 = vector.load %arg19[%c31, %c0_303] : memref<34x1024xf32, #tpu.memory_space<vmem>>, vector<1x1024xf32>
    tpu.vector_store %arg19[%c31, %c0_303], %492 {strides = array<i32>} : memref<34x1024xf32, #tpu.memory_space<vmem>>, vector<1x1024xf32>,
    %c31_304 = arith.constant 31 : index
    %c0_305 = arith.constant 0 : index
    %494 = vector.load %arg18[%c31_304, %c0_305] : memref<32x1024xf32, #tpu.memory_space<vmem>>, vector<1x1024xf32>
    %c32 = arith.constant 32 : index
    %c0_306 = arith.constant 0 : index
    %495 = vector.load %arg19[%c32, %c0_306] : memref<34x1024xf32, #tpu.memory_space<vmem>>, vector<1x1024xf32>
    tpu.vector_store %arg19[%c32, %c0_306], %494 {strides = array<i32>} : memref<34x1024xf32, #tpu.memory_space<vmem>>, vector<1x1024xf32>,
    %496 = tpu.iota {dimensions = array<i32: 0>} : vector<32x1xi32>
    %c16_i32 = arith.constant 16 : i32
    %c0_i32 = arith.constant 0 : i32
    %497 = arith.cmpi eq, %c16_i32, %c0_i32 : i32
    %c1_i32 = arith.constant 1 : i32
    %498 = arith.select %497, %c1_i32, %c16_i32 : i32
    %499 = vector.broadcast %498 : i32 to vector<32x1xi32>
    %500 = arith.remsi %496, %499 : vector<32x1xi32>
    %c0_i32_307 = arith.constant 0 : i32
    %501 = vector.broadcast %c0_i32_307 : i32 to vector<32x1xi32>
    %502 = arith.cmpi ne, %500, %501 : vector<32x1xi32>
    %c0_i32_308 = arith.constant 0 : i32
    %503 = vector.broadcast %c0_i32_308 : i32 to vector<32x1xi32>
    %504 = arith.cmpi slt, %500, %503 : vector<32x1xi32>
    %c0_i32_309 = arith.constant 0 : i32
    %505 = arith.cmpi slt, %498, %c0_i32_309 : i32
    %506 = vector.broadcast %505 : i1 to vector<32x1xi1>
    %507 = vector.broadcast %506 : vector<32x1xi1> to vector<32x1xi1>
    %508 = arith.xori %504, %507 : vector<32x1xi1>
    %509 = arith.andi %508, %502 : vector<32x1xi1>
    %510 = vector.broadcast %498 : i32 to vector<32x1xi32>
    %511 = arith.addi %500, %510 : vector<32x1xi32>
    %512 = arith.select %509, %511, %500 : vector<32x1xi1>, vector<32x1xi32>
    %cst_310 = arith.constant 0.000000e+00 : f32
    %513 = vector.broadcast %cst_310 : f32 to vector<32x16xf32>
    %c0_311 = arith.constant 0 : index
    %c0_312 = arith.constant 0 : index
    %514 = vector.load %arg14[%c0_311, %c0_312] : memref<1x1xf32, #tpu.memory_space<vmem>>, vector<1x1xf32>
    %515 = vector.broadcast %514 : vector<1x1xf32> to vector<32x16xf32>
    %516 = arith.addf %513, %515 : vector<32x16xf32>
    %c0_313 = arith.constant 0 : index
    %c0_314 = arith.constant 0 : index
    %517 = vector.load %arg19[%c0_313, %c0_314] : memref<34x1024xf32, #tpu.memory_space<vmem>>, vector<32x1024xf32>
    %c-1_i32 = arith.constant -1 : i32
    %518 = vector.broadcast %c-1_i32 : i32 to vector<32x1xi32>
    %519 = arith.addi %512, %518 : vector<32x1xi32>
    %c0_i32_315 = arith.constant 0 : i32
    %520 = vector.broadcast %c0_i32_315 : i32 to vector<32x1xi32>
    %521 = arith.cmpi sge, %519, %520 : vector<32x1xi32>
    %c-1_i32_316 = arith.constant -1 : i32
    %522 = vector.broadcast %c-1_i32_316 : i32 to vector<32x1xi32>
    %523 = arith.addi %512, %522 : vector<32x1xi32>
    %c15_i32 = arith.constant 15 : i32
    %524 = vector.broadcast %c15_i32 : i32 to vector<32x1xi32>
    %525 = arith.cmpi sle, %523, %524 : vector<32x1xi32>
    %526 = arith.andi %521, %525 : vector<32x1xi1>
    %cst_317 = arith.constant 0.000000e+00 : f32
    %527 = vector.shape_cast %526 : vector<32x1xi1> to vector<32x1xi1>
    %528 = vector.broadcast %527 : vector<32x1xi1> to vector<32x1024xi1>
    %529 = vector.broadcast %cst_317 : f32 to vector<32x1024xf32>
    %530 = arith.select %528, %517, %529 : vector<32x1024xi1>, vector<32x1024xf32>
    %c0_318 = arith.constant 0 : index
    %c0_319 = arith.constant 0 : index
    %531 = vector.load %arg13[%c0_318, %c0_319] : memref<1024x48xf32, #tpu.memory_space<vmem>>, vector<1024x16xf32>
    %cst_320 = arith.constant dense<0.000000e+00> : vector<32x16xf32>
    %532 = tpu.matmul %530, %531, %cst_320 {dimension_numbers = #tpu.dot_dimension_numbers<[1], [0], [0], [1], [0, 0, 1, 1], [], []>} : vector<32x1024xf32>, vector<1024x16xf32>, vector<32x16xf32> -> vector<32x16xf32>
    %533 = arith.addf %516, %532 : vector<32x16xf32>
    %c1_321 = arith.constant 1 : index
    %c0_322 = arith.constant 0 : index
    %534 = vector.load %arg19[%c1_321, %c0_322] : memref<34x1024xf32, #tpu.memory_space<vmem>>, vector<32x1024xf32>
    %c0_323 = arith.constant 0 : index
    %c16_324 = arith.constant 16 : index
    %535 = vector.load %arg13[%c0_323, %c16_324] : memref<1024x48xf32, #tpu.memory_space<vmem>>, vector<1024x16xf32>
    %cst_325 = arith.constant dense<0.000000e+00> : vector<32x16xf32>
    %536 = tpu.matmul %534, %535, %cst_325 {dimension_numbers = #tpu.dot_dimension_numbers<[1], [0], [0], [1], [0, 0, 1, 1], [], []>} : vector<32x1024xf32>, vector<1024x16xf32>, vector<32x16xf32> -> vector<32x16xf32>
    %537 = arith.addf %533, %536 : vector<32x16xf32>
    %c2_326 = arith.constant 2 : index
    %c0_327 = arith.constant 0 : index
    %538 = vector.load %arg19[%c2_326, %c0_327] : memref<34x1024xf32, #tpu.memory_space<vmem>>, vector<32x1024xf32>
    %c1_i32_328 = arith.constant 1 : i32
    %539 = vector.broadcast %c1_i32_328 : i32 to vector<32x1xi32>
    %540 = arith.addi %512, %539 : vector<32x1xi32>
    %c0_i32_329 = arith.constant 0 : i32
    %541 = vector.broadcast %c0_i32_329 : i32 to vector<32x1xi32>
    %542 = arith.cmpi sge, %540, %541 : vector<32x1xi32>
    %c1_i32_330 = arith.constant 1 : i32
    %543 = vector.broadcast %c1_i32_330 : i32 to vector<32x1xi32>
    %544 = arith.addi %512, %543 : vector<32x1xi32>
    %c15_i32_331 = arith.constant 15 : i32
    %545 = vector.broadcast %c15_i32_331 : i32 to vector<32x1xi32>
    %546 = arith.cmpi sle, %544, %545 : vector<32x1xi32>
    %547 = arith.andi %542, %546 : vector<32x1xi1>
    %cst_332 = arith.constant 0.000000e+00 : f32
    %548 = vector.shape_cast %547 : vector<32x1xi1> to vector<32x1xi1>
    %549 = vector.broadcast %548 : vector<32x1xi1> to vector<32x1024xi1>
    %550 = vector.broadcast %cst_332 : f32 to vector<32x1024xf32>
    %551 = arith.select %549, %538, %550 : vector<32x1024xi1>, vector<32x1024xf32>
    %c0_333 = arith.constant 0 : index
    %c32_334 = arith.constant 32 : index
    %552 = vector.load %arg13[%c0_333, %c32_334] : memref<1024x48xf32, #tpu.memory_space<vmem>>, vector<1024x16xf32>
    %cst_335 = arith.constant dense<0.000000e+00> : vector<32x16xf32>
    %553 = tpu.matmul %551, %552, %cst_335 {dimension_numbers = #tpu.dot_dimension_numbers<[1], [0], [0], [1], [0, 0, 1, 1], [], []>} : vector<32x1024xf32>, vector<1024x16xf32>, vector<32x16xf32> -> vector<32x16xf32>
    %554 = arith.addf %537, %553 : vector<32x16xf32>
    %555 = math.tanh %554 : vector<32x16xf32>
    %c0_336 = arith.constant 0 : index
    %c0_337 = arith.constant 0 : index
    %556 = vector.load %arg15[%c0_336, %c0_337] : memref<32x16xf32, #tpu.memory_space<vmem>>, vector<32x16xf32>
    tpu.vector_store %arg15[%c0_336, %c0_337], %555 {strides = array<i32>} : memref<32x16xf32, #tpu.memory_space<vmem>>, vector<32x16xf32>,
    return
  }
}

</mosaic_0001>

<llo_original>
// kernel: _lambda_.1
$region0: #{_lambda_.1}
  #allocation0 [shape = 'u32[]', space=smem, size = 0x4, offset = 0x4, fixed_abs, tag = 'smem constant byte address 0x4 - core index']
  #allocation1 [shape = 'u32[72,128]{1,0:T(1,128)}', space=vmem, size = 0x9000, scoped, tag = 'internal scratch']
  #allocation2 [shape = 'f32[8,1024]{1,0:T(8,128)}', space=vmem, size = 0x8000, scoped, tag = 'scratch operand']
  #allocation3 [shape = 'f32[16,1024]{1,0:T(8,128)}', space=vmem, size = 0x10000, scoped, tag = 'scratch operand']
  #allocation4 [shape = 'f32[32,1024]{1,0:T(8,128)}', space=vmem, size = 0x20000, scoped, tag = 'scratch operand']
  #allocation5 [shape = 'f32[34,1024]{1,0:T(8,128)}', space=vmem, size = 0x28000, scoped, tag = 'scratch operand']
  #allocation6 [shape = 'f32[1,1]{1,0:T(1,128)S(1)}', space=vmem, size = 0x200, scoped, tag = 'scoped memory for _lambda_.1']
  %s0 = inlined_call_operand.hbm [shape: f32[2,128], index: 0, kind: input, shape index: {}]
  %s1 = inlined_call_operand.vmem [shape: f32[2,16], index: 1, kind: input, shape index: {}]
  %s2 = inlined_call_operand.hbm [shape: f32[128,4096], index: 2, kind: input, shape index: {}]
  %s3 = inlined_call_operand.hbm [shape: f32[16,4096], index: 3, kind: input, shape index: {}]
  %s4 = inlined_call_operand.hbm [shape: f32[1,4096], index: 4, kind: input, shape index: {}]
  %s5 = inlined_call_operand.hbm [shape: f32[256,512], index: 5, kind: input, shape index: {}]
  %s6 = inlined_call_operand.hbm [shape: f32[1,512], index: 6, kind: input, shape index: {}]
  %s7 = inlined_call_operand.vmem [shape: f32[1,128], index: 7, kind: input, shape index: {}]
  %s8 = inlined_call_operand.vmem [shape: f32[1,128], index: 8, kind: input, shape index: {}]
  %s9 = inlined_call_operand.hbm [shape: f32[128,256], index: 9, kind: input, shape index: {}]
  %s10 = inlined_call_operand.hbm [shape: f32[1,256], index: 10, kind: input, shape index: {}]
  %s11 = inlined_call_operand.vmem [shape: f32[1,64], index: 11, kind: input, shape index: {}]
  %s12 = inlined_call_operand.vmem [shape: f32[1,64], index: 12, kind: input, shape index: {}]
  %s13 = inlined_call_operand.hbm [shape: f32[1024,48], index: 13, kind: input, shape index: {}]
  %s14 = inlined_call_operand.<no memory space> [shape: f32[1,1], index: 14, kind: input, shape index: {}]
  %s15 = inlined_call_operand.hbm [shape: f32[32,16], index: 15, kind: output, shape index: {}]
  %s16 = sld [smem:[#allocation0]]
  $region106: #{_lambda_.1} parent=0
    _
  %s18 = ssub.s32 1, %s16
  %s19 = scalar_select 0, %s18, %s16
  %v20 = vstv %s14
  %21 = vst [vmem:[#allocation6] sm:$0x1] %v20
  $region1: #{_lambda_.1} parent=0
    #allocation7 [shape = 'u8[1024]{0}', space=vmem, size = 0x400, scoped, tag = 'input window, operand 0, single buffered']
    #allocation8 [shape = 's32[1]{0}', space=sflag, size = 0x4, scoped, tag = 'scoped memory for _lambda_.1']
    #allocation9 [shape = 's32[1]{0}', space=sflag, size = 0x4, scoped, tag = 'scoped memory for _lambda_.1']
    #allocation10 [shape = 'u8[2097152]{0}', space=vmem, size = 0x200000, scoped, tag = 'input window, operand 2, single buffered']
    #allocation11 [shape = 's32[1]{0}', space=sflag, size = 0x4, scoped, tag = 'scoped memory for _lambda_.1']
    #allocation12 [shape = 'u8[262144]{0}', space=vmem, size = 0x40000, scoped, tag = 'input window, operand 3, single buffered']
    #allocation13 [shape = 'u8[16384]{0}', space=vmem, size = 0x4000, scoped, tag = 'input window, operand 4, single buffered']
    #allocation14 [shape = 's32[1]{0}', space=sflag, size = 0x4, scoped, tag = 'scoped memory for _lambda_.1']
    #allocation15 [shape = 'u8[524288]{0}', space=vmem, size = 0x80000, scoped, tag = 'input window, operand 5, single buffered']
    #allocation16 [shape = 'u8[2048]{0}', space=vmem, size = 0x800, scoped, tag = 'input window, operand 6, single buffered']
    #allocation17 [shape = 's32[1]{0}', space=sflag, size = 0x4, scoped, tag = 'scoped memory for _lambda_.1']
    #allocation18 [shape = 'u8[131072]{0}', space=vmem, size = 0x20000, scoped, tag = 'input window, operand 9, single buffered']
    #allocation19 [shape = 'u8[1024]{0}', space=vmem, size = 0x400, scoped, tag = 'input window, operand 10, single buffered']
    #allocation20 [shape = 's32[1]{0}', space=sflag, size = 0x4, scoped, tag = 'scoped memory for _lambda_.1']
    #allocation21 [shape = 'u8[524288]{0}', space=vmem, size = 0x80000, scoped, tag = 'input window, operand 13, single buffered']
    #allocation22 [shape = 'u8[16384]{0}', space=vmem, size = 0x4000, scoped, tag = 'output window, operand 0, single buffered']
    %22 = vsyncpa [#allocation8], 0
    %23 = vsyncpa [#allocation11], 0
    %24 = vsyncpa [#allocation14], 0
    %25 = vsyncpa [#allocation17], 0
    %26 = vsyncpa [#allocation20], 0
    %27 = vsyncpa [#allocation9], 0
    // Predicated region
    $region2: #{_lambda_.1} parent=1 // pred_check
      _
    $region3: #{_lambda_.1} parent=1 // pred_check_branch
      %29 = sbr.rel (0) target = $region5
    $region4: #{_lambda_.1} parent=1 // pred_region
      %31 = vsyncadd [#allocation8], 0
      %s33 = sshll.u32 %s0, 4
      %s34 = int_to_ptr.hbm [resolvable:$true] %s33
      %s35 = sshll.u32 [#allocation7], 4
      %s36 = int_to_ptr.vmem [resolvable:$true] %s35
      %38 = dma.hbm_to_vmem [thread:$0]  %s34, 32, %s36, [#allocation8]
    $region5: #{_lambda_.1} parent=1 // pred_fallthru
      _
    // Predicated region
    $region6: #{_lambda_.1} parent=1 // pred_check
      _
    $region7: #{_lambda_.1} parent=1 // pred_check_branch
      %40 = sbr.rel (0) target = $region9
    $region8: #{_lambda_.1} parent=1 // pred_region
      _
    $region9: #{_lambda_.1} parent=1 // pred_fallthru
      _
    // Predicated region
    $region10: #{_lambda_.1} parent=1 // pred_check
      _
    $region11: #{_lambda_.1} parent=1 // pred_check_branch
      %42 = sbr.rel (0) target = $region13
    $region12: #{_lambda_.1} parent=1 // pred_region
      %44 = vsyncadd [#allocation11], 0
      %s45 = sshll.u32 %s2, 4
      %s46 = int_to_ptr.hbm [resolvable:$true] %s45
      %s47 = sshll.u32 [#allocation10], 4
      %s48 = int_to_ptr.vmem [resolvable:$true] %s47
      %53 = dma.hbm_to_vmem [thread:$0]  %s46, 65536, %s48, [#allocation11], 4096, 4096, 256
    $region13: #{_lambda_.1} parent=1 // pred_fallthru
      _
    // Predicated region
    $region14: #{_lambda_.1} parent=1 // pred_check
      _
    $region15: #{_lambda_.1} parent=1 // pred_check_branch
      %55 = sbr.rel (0) target = $region17
    $region16: #{_lambda_.1} parent=1 // pred_region
      %57 = vsyncadd [#allocation11], 0
      %s58 = sshll.u32 %s3, 4
      %s59 = int_to_ptr.hbm [resolvable:$true] %s58
      %s60 = sshll.u32 [#allocation12], 4
      %s61 = int_to_ptr.vmem [resolvable:$true] %s60
      %66 = dma.hbm_to_vmem [thread:$0]  %s59, 8192, %s61, [#allocation11], 4096, 4096, 256
    $region17: #{_lambda_.1} parent=1 // pred_fallthru
      _
    // Predicated region
    $region18: #{_lambda_.1} parent=1 // pred_check
      _
    $region19: #{_lambda_.1} parent=1 // pred_check_branch
      %68 = sbr.rel (0) target = $region21
    $region20: #{_lambda_.1} parent=1 // pred_region
      %70 = vsyncadd [#allocation14], 0
      %s72 = sshll.u32 %s4, 4
      %s73 = int_to_ptr.hbm [resolvable:$true] %s72
      %s74 = sshll.u32 [#allocation13], 4
      %s75 = int_to_ptr.vmem [resolvable:$true] %s74
      %77 = dma.hbm_to_vmem [thread:$0]  %s73, 512, %s75, [#allocation14]
    $region21: #{_lambda_.1} parent=1 // pred_fallthru
      _
    // Predicated region
    $region22: #{_lambda_.1} parent=1 // pred_check
      _
    $region23: #{_lambda_.1} parent=1 // pred_check_branch
      %79 = sbr.rel (0) target = $region25
    $region24: #{_lambda_.1} parent=1 // pred_region
      %81 = vsyncadd [#allocation14], 0
      %s82 = sshll.u32 %s5, 4
      %s83 = int_to_ptr.hbm [resolvable:$true] %s82
      %s84 = sshll.u32 [#allocation15], 4
      %s85 = int_to_ptr.vmem [resolvable:$true] %s84
      %90 = dma.hbm_to_vmem [thread:$0]  %s83, 16384, %s85, [#allocation14], 512, 512, 32
    $region25: #{_lambda_.1} parent=1 // pred_fallthru
      _
    // Predicated region
    $region26: #{_lambda_.1} parent=1 // pred_check
      _
    $region27: #{_lambda_.1} parent=1 // pred_check_branch
      %92 = sbr.rel (0) target = $region29
    $region28: #{_lambda_.1} parent=1 // pred_region
      %94 = vsyncadd [#allocation17], 0
      %s96 = sshll.u32 %s6, 4
      %s97 = int_to_ptr.hbm [resolvable:$true] %s96
      %s98 = sshll.u32 [#allocation16], 4
      %s99 = int_to_ptr.vmem [resolvable:$true] %s98
      %101 = dma.hbm_to_vmem [thread:$0]  %s97, 64, %s99, [#allocation17]
    $region29: #{_lambda_.1} parent=1 // pred_fallthru
      _
    // Predicated region
    $region30: #{_lambda_.1} parent=1 // pred_check
      _
    $region31: #{_lambda_.1} parent=1 // pred_check_branch
      %103 = sbr.rel (0) target = $region33
    $region32: #{_lambda_.1} parent=1 // pred_region
      _
    $region33: #{_lambda_.1} parent=1 // pred_fallthru
      _
    // Predicated region
    $region34: #{_lambda_.1} parent=1 // pred_check
      _
    $region35: #{_lambda_.1} parent=1 // pred_check_branch
      %105 = sbr.rel (0) target = $region37
    $region36: #{_lambda_.1} parent=1 // pred_region
      _
    $region37: #{_lambda_.1} parent=1 // pred_fallthru
      _
    // Predicated region
    $region38: #{_lambda_.1} parent=1 // pred_check
      _
    $region39: #{_lambda_.1} parent=1 // pred_check_branch
      %107 = sbr.rel (0) target = $region41
    $region40: #{_lambda_.1} parent=1 // pred_region
      %109 = vsyncadd [#allocation17], 0
      %s110 = sshll.u32 %s9, 4
      %s111 = int_to_ptr.hbm [resolvable:$true] %s110
      %s112 = sshll.u32 [#allocation18], 4
      %s113 = int_to_ptr.vmem [resolvable:$true] %s112
      %118 = dma.hbm_to_vmem [thread:$0]  %s111, 4096, %s113, [#allocation17], 256, 256, 16
    $region41: #{_lambda_.1} parent=1 // pred_fallthru
      _
    // Predicated region
    $region42: #{_lambda_.1} parent=1 // pred_check
      _
    $region43: #{_lambda_.1} parent=1 // pred_check_branch
      %120 = sbr.rel (0) target = $region45
    $region44: #{_lambda_.1} parent=1 // pred_region
      %122 = vsyncadd [#allocation20], 0
      %s124 = sshll.u32 %s10, 4
      %s125 = int_to_ptr.hbm [resolvable:$true] %s124
      %s126 = sshll.u32 [#allocation19], 4
      %s127 = int_to_ptr.vmem [resolvable:$true] %s126
      %129 = dma.hbm_to_vmem [thread:$0]  %s125, 32, %s127, [#allocation20]
    $region45: #{_lambda_.1} parent=1 // pred_fallthru
      _
    // Predicated region
    $region46: #{_lambda_.1} parent=1 // pred_check
      _
    $region47: #{_lambda_.1} parent=1 // pred_check_branch
      %131 = sbr.rel (0) target = $region49
    $region48: #{_lambda_.1} parent=1 // pred_region
      _
    $region49: #{_lambda_.1} parent=1 // pred_fallthru
      _
    // Predicated region
    $region50: #{_lambda_.1} parent=1 // pred_check
      _
    $region51: #{_lambda_.1} parent=1 // pred_check_branch
      %133 = sbr.rel (0) target = $region53
    $region52: #{_lambda_.1} parent=1 // pred_region
      _
    $region53: #{_lambda_.1} parent=1 // pred_fallthru
      _
    // Predicated region
    $region54: #{_lambda_.1} parent=1 // pred_check
      _
    $region55: #{_lambda_.1} parent=1 // pred_check_branch
      %135 = sbr.rel (0) target = $region57
    $region56: #{_lambda_.1} parent=1 // pred_region
      %137 = vsyncadd [#allocation20], 0
      %s138 = sshll.u32 %s13, 4
      %s139 = int_to_ptr.hbm [resolvable:$true] %s138
      %s140 = sshll.u32 [#allocation21], 4
      %s141 = int_to_ptr.vmem [resolvable:$true] %s140
      %146 = dma.hbm_to_vmem [thread:$0]  %s139, 16384, %s141, [#allocation20], 128, 128, 8
    $region57: #{_lambda_.1} parent=1 // pred_fallthru
      _
    // Predicated region
    $region58: #{_lambda_.1} parent=1 // pred_check
      _
    $region59: #{_lambda_.1} parent=1 // pred_check_branch
      %148 = sbr.rel (0) target = $region61
    $region60: #{_lambda_.1} parent=1 // pred_region
      _
    $region61: #{_lambda_.1} parent=1 // pred_fallthru
      _
    // Predicated region
    $region62: #{_lambda_.1} parent=1 // pred_check
      _
    $region63: #{_lambda_.1} parent=1 // pred_check_branch
      %150 = sbr.rel (0) target = $region65
    $region64: #{_lambda_.1} parent=1 // pred_region
      %152 = dma.done [#allocation8], 32
    $region65: #{_lambda_.1} parent=1 // pred_fallthru
      _
    // Predicated region
    $region66: #{_lambda_.1} parent=1 // pred_check
      _
    $region67: #{_lambda_.1} parent=1 // pred_check_branch
      %154 = sbr.rel (0) target = $region69
    $region68: #{_lambda_.1} parent=1 // pred_region
      %156 = dma.done [#allocation11], 65536
    $region69: #{_lambda_.1} parent=1 // pred_fallthru
      _
    // Predicated region
    $region70: #{_lambda_.1} parent=1 // pred_check
      _
    $region71: #{_lambda_.1} parent=1 // pred_check_branch
      %158 = sbr.rel (0) target = $region73
    $region72: #{_lambda_.1} parent=1 // pred_region
      %160 = dma.done [#allocation11], 8192
    $region73: #{_lambda_.1} parent=1 // pred_fallthru
      _
    // Predicated region
    $region74: #{_lambda_.1} parent=1 // pred_check
      _
    $region75: #{_lambda_.1} parent=1 // pred_check_branch
      %162 = sbr.rel (0) target = $region77
    $region76: #{_lambda_.1} parent=1 // pred_region
      %164 = dma.done [#allocation14], 512
    $region77: #{_lambda_.1} parent=1 // pred_fallthru
      _
    // Predicated region
    $region78: #{_lambda_.1} parent=1 // pred_check
      _
    $region79: #{_lambda_.1} parent=1 // pred_check_branch
      %166 = sbr.rel (0) target = $region81
    $region80: #{_lambda_.1} parent=1 // pred_region
      %168 = dma.done [#allocation14], 16384
    $region81: #{_lambda_.1} parent=1 // pred_fallthru
      _
    // Predicated region
    $region82: #{_lambda_.1} parent=1 // pred_check
      _
    $region83: #{_lambda_.1} parent=1 // pred_check_branch
      %170 = sbr.rel (0) target = $region85
    $region84: #{_lambda_.1} parent=1 // pred_region
      %172 = dma.done [#allocation17], 64
    $region85: #{_lambda_.1} parent=1 // pred_fallthru
      _
    // Predicated region
    $region86: #{_lambda_.1} parent=1 // pred_check
      _
    $region87: #{_lambda_.1} parent=1 // pred_check_branch
      %174 = sbr.rel (0) target = $region89
    $region88: #{_lambda_.1} parent=1 // pred_region
      %176 = dma.done [#allocation17], 4096
    $region89: #{_lambda_.1} parent=1 // pred_fallthru
      _
    // Predicated region
    $region90: #{_lambda_.1} parent=1 // pred_check
      _
    $region91: #{_lambda_.1} parent=1 // pred_check_branch
      %178 = sbr.rel (0) target = $region93
    $region92: #{_lambda_.1} parent=1 // pred_region
      %180 = dma.done [#allocation20], 32
    $region93: #{_lambda_.1} parent=1 // pred_fallthru
      _
    // Predicated region
    $region94: #{_lambda_.1} parent=1 // pred_check
      _
    $region95: #{_lambda_.1} parent=1 // pred_check_branch
      %182 = sbr.rel (0) target = $region97
    $region96: #{_lambda_.1} parent=1 // pred_region
      %184 = dma.done [#allocation20], 16384
    $region97: #{_lambda_.1} parent=1 // pred_fallthru
      _
    %v185 = vld [vmem:[#allocation7] sm:$0x3]
    %v186 = vld [vmem:[#allocation10] sm:$0xff]
    %v187 = vld [vmem:[#allocation10 + $0x8] sm:$0xff]
    %v188 = vld [vmem:[#allocation10 + $0x10] sm:$0xff]
    %v189 = vld [vmem:[#allocation10 + $0x18] sm:$0xff]
    %v190 = vld [vmem:[#allocation10 + $0x20] sm:$0xff]
    %v191 = vld [vmem:[#allocation10 + $0x28] sm:$0xff]
    %v192 = vld [vmem:[#allocation10 + $0x30] sm:$0xff]
    %v193 = vld [vmem:[#allocation10 + $0x38] sm:$0xff]
    %v194 = vld [vmem:[#allocation10 + $0x40] sm:$0xff]
    %v195 = vld [vmem:[#allocation10 + $0x48] sm:$0xff]
    %v196 = vld [vmem:[#allocation10 + $0x50] sm:$0xff]
    %v197 = vld [vmem:[#allocation10 + $0x58] sm:$0xff]
    %v198 = vld [vmem:[#allocation10 + $0x60] sm:$0xff]
    %v199 = vld [vmem:[#allocation10 + $0x68] sm:$0xff]
    %v200 = vld [vmem:[#allocation10 + $0x70] sm:$0xff]
    %v201 = vld [vmem:[#allocation10 + $0x78] sm:$0xff]
    %v202 = vld [vmem:[#allocation10 + $0x80] sm:$0xff]
    %v203 = vld [vmem:[#allocation10 + $0x88] sm:$0xff]
    %v204 = vld [vmem:[#allocation10 + $0x90] sm:$0xff]
    %v205 = vld [vmem:[#allocation10 + $0x98] sm:$0xff]
    %v206 = vld [vmem:[#allocation10 + $0xa0] sm:$0xff]
    %v207 = vld [vmem:[#allocation10 + $0xa8] sm:$0xff]
    %v208 = vld [vmem:[#allocation10 + $0xb0] sm:$0xff]
    %v209 = vld [vmem:[#allocation10 + $0xb8] sm:$0xff]
    %v210 = vld [vmem:[#allocation10 + $0xc0] sm:$0xff]
    %v211 = vld [vmem:[#allocation10 + $0xc8] sm:$0xff]
    %v212 = vld [vmem:[#allocation10 + $0xd0] sm:$0xff]
    %v213 = vld [vmem:[#allocation10 + $0xd8] sm:$0xff]
    %v214 = vld [vmem:[#allocation10 + $0xe0] sm:$0xff]
    %v215 = vld [vmem:[#allocation10 + $0xe8] sm:$0xff]
    %v216 = vld [vmem:[#allocation10 + $0xf0] sm:$0xff]
    %v217 = vld [vmem:[#allocation10 + $0xf8] sm:$0xff]
    %v218 = vld [vmem:[#allocation10 + $0x100] sm:$0xff]
    %v219 = vld [vmem:[#allocation10 + $0x108] sm:$0xff]
    %v220 = vld [vmem:[#allocation10 + $0x110] sm:$0xff]
    %v221 = vld [vmem:[#allocation10 + $0x118] sm:$0xff]
    %v222 = vld [vmem:[#allocation10 + $0x120] sm:$0xff]
    %v223 = vld [vmem:[#allocation10 + $0x128] sm:$0xff]
    %v224 = vld [vmem:[#allocation10 + $0x130] sm:$0xff]
    %v225 = vld [vmem:[#allocation10 + $0x138] sm:$0xff]
    %v226 = vld [vmem:[#allocation10 + $0x140] sm:$0xff]
    %v227 = vld [vmem:[#allocation10 + $0x148] sm:$0xff]
    %v228 = vld [vmem:[#allocation10 + $0x150] sm:$0xff]
    %v229 = vld [vmem:[#allocation10 + $0x158] sm:$0xff]
    %v230 = vld [vmem:[#allocation10 + $0x160] sm:$0xff]
    %v231 = vld [vmem:[#allocation10 + $0x168] sm:$0xff]
    %v232 = vld [vmem:[#allocation10 + $0x170] sm:$0xff]
    %v233 = vld [vmem:[#allocation10 + $0x178] sm:$0xff]
    %v234 = vld [vmem:[#allocation10 + $0x180] sm:$0xff]
    %v235 = vld [vmem:[#allocation10 + $0x188] sm:$0xff]
    %v236 = vld [vmem:[#allocation10 + $0x190] sm:$0xff]
    %v237 = vld [vmem:[#allocation10 + $0x198] sm:$0xff]
    %v238 = vld [vmem:[#allocation10 + $0x1a0] sm:$0xff]
    %v239 = vld [vmem:[#allocation10 + $0x1a8] sm:$0xff]
    %v240 = vld [vmem:[#allocation10 + $0x1b0] sm:$0xff]
    %v241 = vld [vmem:[#allocation10 + $0x1b8] sm:$0xff]
    %v242 = vld [vmem:[#allocation10 + $0x1c0] sm:$0xff]
    %v243 = vld [vmem:[#allocation10 + $0x1c8] sm:$0xff]
    %v244 = vld [vmem:[#allocation10 + $0x1d0] sm:$0xff]
    %v245 = vld [vmem:[#allocation10 + $0x1d8] sm:$0xff]
    %v246 = vld [vmem:[#allocation10 + $0x1e0] sm:$0xff]
    %v247 = vld [vmem:[#allocation10 + $0x1e8] sm:$0xff]
    %v248 = vld [vmem:[#allocation10 + $0x1f0] sm:$0xff]
    %v249 = vld [vmem:[#allocation10 + $0x1f8] sm:$0xff]
    %v250 = vld [vmem:[#allocation10 + $0x200] sm:$0xff]
    %v251 = vld [vmem:[#allocation10 + $0x208] sm:$0xff]
    %v252 = vld [vmem:[#allocation10 + $0x210] sm:$0xff]
    %v253 = vld [vmem:[#allocation10 + $0x218] sm:$0xff]
    %v254 = vld [vmem:[#allocation10 + $0x220] sm:$0xff]
    %v255 = vld [vmem:[#allocation10 + $0x228] sm:$0xff]
    %v256 = vld [vmem:[#allocation10 + $0x230] sm:$0xff]
    %v257 = vld [vmem:[#allocation10 + $0x238] sm:$0xff]
    %v258 = vld [vmem:[#allocation10 + $0x240] sm:$0xff]
    %v259 = vld [vmem:[#allocation10 + $0x248] sm:$0xff]
    %v260 = vld [vmem:[#allocation10 + $0x250] sm:$0xff]
    %v261 = vld [vmem:[#allocation10 + $0x258] sm:$0xff]
    %v262 = vld [vmem:[#allocation10 + $0x260] sm:$0xff]
    %v263 = vld [vmem:[#allocation10 + $0x268] sm:$0xff]
    %v264 = vld [vmem:[#allocation10 + $0x270] sm:$0xff]
    %v265 = vld [vmem:[#allocation10 + $0x278] sm:$0xff]
    %v266 = vld [vmem:[#allocation10 + $0x280] sm:$0xff]
    %v267 = vld [vmem:[#allocation10 + $0x288] sm:$0xff]
    %v268 = vld [vmem:[#allocation10 + $0x290] sm:$0xff]
    %v269 = vld [vmem:[#allocation10 + $0x298] sm:$0xff]
    %v270 = vld [vmem:[#allocation10 + $0x2a0] sm:$0xff]
    %v271 = vld [vmem:[#allocation10 + $0x2a8] sm:$0xff]
    %v272 = vld [vmem:[#allocation10 + $0x2b0] sm:$0xff]
    %v273 = vld [vmem:[#allocation10 + $0x2b8] sm:$0xff]
    %v274 = vld [vmem:[#allocation10 + $0x2c0] sm:$0xff]
    %v275 = vld [vmem:[#allocation10 + $0x2c8] sm:$0xff]
    %v276 = vld [vmem:[#allocation10 + $0x2d0] sm:$0xff]
    %v277 = vld [vmem:[#allocation10 + $0x2d8] sm:$0xff]
    %v278 = vld [vmem:[#allocation10 + $0x2e0] sm:$0xff]
    %v279 = vld [vmem:[#allocation10 + $0x2e8] sm:$0xff]
    %v280 = vld [vmem:[#allocation10 + $0x2f0] sm:$0xff]
    %v281 = vld [vmem:[#allocation10 + $0x2f8] sm:$0xff]
    %v282 = vld [vmem:[#allocation10 + $0x300] sm:$0xff]
    %v283 = vld [vmem:[#allocation10 + $0x308] sm:$0xff]
    %v284 = vld [vmem:[#allocation10 + $0x310] sm:$0xff]
    %v285 = vld [vmem:[#allocation10 + $0x318] sm:$0xff]
    %v286 = vld [vmem:[#allocation10 + $0x320] sm:$0xff]
    %v287 = vld [vmem:[#allocation10 + $0x328] sm:$0xff]
    %v288 = vld [vmem:[#allocation10 + $0x330] sm:$0xff]
    %v289 = vld [vmem:[#allocation10 + $0x338] sm:$0xff]
    %v290 = vld [vmem:[#allocation10 + $0x340] sm:$0xff]
    %v291 = vld [vmem:[#allocation10 + $0x348] sm:$0xff]
    %v292 = vld [vmem:[#allocation10 + $0x350] sm:$0xff]
    %v293 = vld [vmem:[#allocation10 + $0x358] sm:$0xff]
    %v294 = vld [vmem:[#allocation10 + $0x360] sm:$0xff]
    %v295 = vld [vmem:[#allocation10 + $0x368] sm:$0xff]
    %v296 = vld [vmem:[#allocation10 + $0x370] sm:$0xff]
    %v297 = vld [vmem:[#allocation10 + $0x378] sm:$0xff]
    %v298 = vld [vmem:[#allocation10 + $0x380] sm:$0xff]
    %v299 = vld [vmem:[#allocation10 + $0x388] sm:$0xff]
    %v300 = vld [vmem:[#allocation10 + $0x390] sm:$0xff]
    %v301 = vld [vmem:[#allocation10 + $0x398] sm:$0xff]
    %v302 = vld [vmem:[#allocation10 + $0x3a0] sm:$0xff]
    %v303 = vld [vmem:[#allocation10 + $0x3a8] sm:$0xff]
    %v304 = vld [vmem:[#allocation10 + $0x3b0] sm:$0xff]
    %v305 = vld [vmem:[#allocation10 + $0x3b8] sm:$0xff]
    %v306 = vld [vmem:[#allocation10 + $0x3c0] sm:$0xff]
    %v307 = vld [vmem:[#allocation10 + $0x3c8] sm:$0xff]
    %v308 = vld [vmem:[#allocation10 + $0x3d0] sm:$0xff]
    %v309 = vld [vmem:[#allocation10 + $0x3d8] sm:$0xff]
    %v310 = vld [vmem:[#allocation10 + $0x3e0] sm:$0xff]
    %v311 = vld [vmem:[#allocation10 + $0x3e8] sm:$0xff]
    %v312 = vld [vmem:[#allocation10 + $0x3f0] sm:$0xff]
    %v313 = vld [vmem:[#allocation10 + $0x3f8] sm:$0xff]
    %v314 = vld [vmem:[#allocation10 + $0x400] sm:$0xff]
    %v315 = vld [vmem:[#allocation10 + $0x408] sm:$0xff]
    %v316 = vld [vmem:[#allocation10 + $0x410] sm:$0xff]
    %v317 = vld [vmem:[#allocation10 + $0x418] sm:$0xff]
    %v318 = vld [vmem:[#allocation10 + $0x420] sm:$0xff]
    %v319 = vld [vmem:[#allocation10 + $0x428] sm:$0xff]
    %v320 = vld [vmem:[#allocation10 + $0x430] sm:$0xff]
    %v321 = vld [vmem:[#allocation10 + $0x438] sm:$0xff]
    %v322 = vld [vmem:[#allocation10 + $0x440] sm:$0xff]
    %v323 = vld [vmem:[#allocation10 + $0x448] sm:$0xff]
    %v324 = vld [vmem:[#allocation10 + $0x450] sm:$0xff]
    %v325 = vld [vmem:[#allocation10 + $0x458] sm:$0xff]
    %v326 = vld [vmem:[#allocation10 + $0x460] sm:$0xff]
    %v327 = vld [vmem:[#allocation10 + $0x468] sm:$0xff]
    %v328 = vld [vmem:[#allocation10 + $0x470] sm:$0xff]
    %v329 = vld [vmem:[#allocation10 + $0x478] sm:$0xff]
    %v330 = vld [vmem:[#allocation10 + $0x480] sm:$0xff]
    %v331 = vld [vmem:[#allocation10 + $0x488] sm:$0xff]
    %v332 = vld [vmem:[#allocation10 + $0x490] sm:$0xff]
    %v333 = vld [vmem:[#allocation10 + $0x498] sm:$0xff]
    %v334 = vld [vmem:[#allocation10 + $0x4a0] sm:$0xff]
    %v335 = vld [vmem:[#allocation10 + $0x4a8] sm:$0xff]
    %v336 = vld [vmem:[#allocation10 + $0x4b0] sm:$0xff]
    %v337 = vld [vmem:[#allocation10 + $0x4b8] sm:$0xff]
    %v338 = vld [vmem:[#allocation10 + $0x4c0] sm:$0xff]
    %v339 = vld [vmem:[#allocation10 + $0x4c8] sm:$0xff]
    %v340 = vld [vmem:[#allocation10 + $0x4d0] sm:$0xff]
    %v341 = vld [vmem:[#allocation10 + $0x4d8] sm:$0xff]
    %v342 = vld [vmem:[#allocation10 + $0x4e0] sm:$0xff]
    %v343 = vld [vmem:[#allocation10 + $0x4e8] sm:$0xff]
    %v344 = vld [vmem:[#allocation10 + $0x4f0] sm:$0xff]
    %v345 = vld [vmem:[#allocation10 + $0x4f8] sm:$0xff]
    %v346 = vld [vmem:[#allocation10 + $0x500] sm:$0xff]
    %v347 = vld [vmem:[#allocation10 + $0x508] sm:$0xff]
    %v348 = vld [vmem:[#allocation10 + $0x510] sm:$0xff]
    %v349 = vld [vmem:[#allocation10 + $0x518] sm:$0xff]
    %v350 = vld [vmem:[#allocation10 + $0x520] sm:$0xff]
    %v351 = vld [vmem:[#allocation10 + $0x528] sm:$0xff]
    %v352 = vld [vmem:[#allocation10 + $0x530] sm:$0xff]
    %v353 = vld [vmem:[#allocation10 + $0x538] sm:$0xff]
    %v354 = vld [vmem:[#allocation10 + $0x540] sm:$0xff]
    %v355 = vld [vmem:[#allocation10 + $0x548] sm:$0xff]
    %v356 = vld [vmem:[#allocation10 + $0x550] sm:$0xff]
    %v357 = vld [vmem:[#allocation10 + $0x558] sm:$0xff]
    %v358 = vld [vmem:[#allocation10 + $0x560] sm:$0xff]
    %v359 = vld [vmem:[#allocation10 + $0x568] sm:$0xff]
    %v360 = vld [vmem:[#allocation10 + $0x570] sm:$0xff]
    %v361 = vld [vmem:[#allocation10 + $0x578] sm:$0xff]
    %v362 = vld [vmem:[#allocation10 + $0x580] sm:$0xff]
    %v363 = vld [vmem:[#allocation10 + $0x588] sm:$0xff]
    %v364 = vld [vmem:[#allocation10 + $0x590] sm:$0xff]
    %v365 = vld [vmem:[#allocation10 + $0x598] sm:$0xff]
    %v366 = vld [vmem:[#allocation10 + $0x5a0] sm:$0xff]
    %v367 = vld [vmem:[#allocation10 + $0x5a8] sm:$0xff]
    %v368 = vld [vmem:[#allocation10 + $0x5b0] sm:$0xff]
    %v369 = vld [vmem:[#allocation10 + $0x5b8] sm:$0xff]
    %v370 = vld [vmem:[#allocation10 + $0x5c0] sm:$0xff]
    %v371 = vld [vmem:[#allocation10 + $0x5c8] sm:$0xff]
    %v372 = vld [vmem:[#allocation10 + $0x5d0] sm:$0xff]
    %v373 = vld [vmem:[#allocation10 + $0x5d8] sm:$0xff]
    %v374 = vld [vmem:[#allocation10 + $0x5e0] sm:$0xff]
    %v375 = vld [vmem:[#allocation10 + $0x5e8] sm:$0xff]
    %v376 = vld [vmem:[#allocation10 + $0x5f0] sm:$0xff]
    %v377 = vld [vmem:[#allocation10 + $0x5f8] sm:$0xff]
    %v378 = vld [vmem:[#allocation10 + $0x600] sm:$0xff]
    %v379 = vld [vmem:[#allocation10 + $0x608] sm:$0xff]
    %v380 = vld [vmem:[#allocation10 + $0x610] sm:$0xff]
    %v381 = vld [vmem:[#allocation10 + $0x618] sm:$0xff]
    %v382 = vld [vmem:[#allocation10 + $0x620] sm:$0xff]
    %v383 = vld [vmem:[#allocation10 + $0x628] sm:$0xff]
    %v384 = vld [vmem:[#allocation10 + $0x630] sm:$0xff]
    %v385 = vld [vmem:[#allocation10 + $0x638] sm:$0xff]
    %v386 = vld [vmem:[#allocation10 + $0x640] sm:$0xff]
    %v387 = vld [vmem:[#allocation10 + $0x648] sm:$0xff]
    %v388 = vld [vmem:[#allocation10 + $0x650] sm:$0xff]
    %v389 = vld [vmem:[#allocation10 + $0x658] sm:$0xff]
    %v390 = vld [vmem:[#allocation10 + $0x660] sm:$0xff]
    %v391 = vld [vmem:[#allocation10 + $0x668] sm:$0xff]
    %v392 = vld [vmem:[#allocation10 + $0x670] sm:$0xff]
    %v393 = vld [vmem:[#allocation10 + $0x678] sm:$0xff]
    %v394 = vld [vmem:[#allocation10 + $0x680] sm:$0xff]
    %v395 = vld [vmem:[#allocation10 + $0x688] sm:$0xff]
    %v396 = vld [vmem:[#allocation10 + $0x690] sm:$0xff]
    %v397 = vld [vmem:[#allocation10 + $0x698] sm:$0xff]
    %v398 = vld [vmem:[#allocation10 + $0x6a0] sm:$0xff]
    %v399 = vld [vmem:[#allocation10 + $0x6a8] sm:$0xff]
    %v400 = vld [vmem:[#allocation10 + $0x6b0] sm:$0xff]
    %v401 = vld [vmem:[#allocation10 + $0x6b8] sm:$0xff]
    %v402 = vld [vmem:[#allocation10 + $0x6c0] sm:$0xff]
    %v403 = vld [vmem:[#allocation10 + $0x6c8] sm:$0xff]
    %v404 = vld [vmem:[#allocation10 + $0x6d0] sm:$0xff]
    %v405 = vld [vmem:[#allocation10 + $0x6d8] sm:$0xff]
    %v406 = vld [vmem:[#allocation10 + $0x6e0] sm:$0xff]
    %v407 = vld [vmem:[#allocation10 + $0x6e8] sm:$0xff]
    %v408 = vld [vmem:[#allocation10 + $0x6f0] sm:$0xff]
    %v409 = vld [vmem:[#allocation10 + $0x6f8] sm:$0xff]
    %v410 = vld [vmem:[#allocation10 + $0x700] sm:$0xff]
    %v411 = vld [vmem:[#allocation10 + $0x708] sm:$0xff]
    %v412 = vld [vmem:[#allocation10 + $0x710] sm:$0xff]
    %v413 = vld [vmem:[#allocation10 + $0x718] sm:$0xff]
    %v414 = vld [vmem:[#allocation10 + $0x720] sm:$0xff]
    %v415 = vld [vmem:[#allocation10 + $0x728] sm:$0xff]
    %v416 = vld [vmem:[#allocation10 + $0x730] sm:$0xff]
    %v417 = vld [vmem:[#allocation10 + $0x738] sm:$0xff]
    %v418 = vld [vmem:[#allocation10 + $0x740] sm:$0xff]
    %v419 = vld [vmem:[#allocation10 + $0x748] sm:$0xff]
    %v420 = vld [vmem:[#allocation10 + $0x750] sm:$0xff]
    %v421 = vld [vmem:[#allocation10 + $0x758] sm:$0xff]
    %v422 = vld [vmem:[#allocation10 + $0x760] sm:$0xff]
    %v423 = vld [vmem:[#allocation10 + $0x768] sm:$0xff]
    %v424 = vld [vmem:[#allocation10 + $0x770] sm:$0xff]
    %v425 = vld [vmem:[#allocation10 + $0x778] sm:$0xff]
    %v426 = vld [vmem:[#allocation10 + $0x780] sm:$0xff]
    %v427 = vld [vmem:[#allocation10 + $0x788] sm:$0xff]
    %v428 = vld [vmem:[#allocation10 + $0x790] sm:$0xff]
    %v429 = vld [vmem:[#allocation10 + $0x798] sm:$0xff]
    %v430 = vld [vmem:[#allocation10 + $0x7a0] sm:$0xff]
    %v431 = vld [vmem:[#allocation10 + $0x7a8] sm:$0xff]
    %v432 = vld [vmem:[#allocation10 + $0x7b0] sm:$0xff]
    %v433 = vld [vmem:[#allocation10 + $0x7b8] sm:$0xff]
    %v434 = vld [vmem:[#allocation10 + $0x7c0] sm:$0xff]
    %v435 = vld [vmem:[#allocation10 + $0x7c8] sm:$0xff]
    %v436 = vld [vmem:[#allocation10 + $0x7d0] sm:$0xff]
    %v437 = vld [vmem:[#allocation10 + $0x7d8] sm:$0xff]
    %v438 = vld [vmem:[#allocation10 + $0x7e0] sm:$0xff]
    %v439 = vld [vmem:[#allocation10 + $0x7e8] sm:$0xff]
    %v440 = vld [vmem:[#allocation10 + $0x7f0] sm:$0xff]
    %v441 = vld [vmem:[#allocation10 + $0x7f8] sm:$0xff]
    %v442 = vld [vmem:[#allocation10 + $0x800] sm:$0xff]
    %v443 = vld [vmem:[#allocation10 + $0x808] sm:$0xff]
    %v444 = vld [vmem:[#allocation10 + $0x810] sm:$0xff]
    %v445 = vld [vmem:[#allocation10 + $0x818] sm:$0xff]
    %v446 = vld [vmem:[#allocation10 + $0x820] sm:$0xff]
    %v447 = vld [vmem:[#allocation10 + $0x828] sm:$0xff]
    %v448 = vld [vmem:[#allocation10 + $0x830] sm:$0xff]
    %v449 = vld [vmem:[#allocation10 + $0x838] sm:$0xff]
    %v450 = vld [vmem:[#allocation10 + $0x840] sm:$0xff]
    %v451 = vld [vmem:[#allocation10 + $0x848] sm:$0xff]
    %v452 = vld [vmem:[#allocation10 + $0x850] sm:$0xff]
    %v453 = vld [vmem:[#allocation10 + $0x858] sm:$0xff]
    %v454 = vld [vmem:[#allocation10 + $0x860] sm:$0xff]
    %v455 = vld [vmem:[#allocation10 + $0x868] sm:$0xff]
    %v456 = vld [vmem:[#allocation10 + $0x870] sm:$0xff]
    %v457 = vld [vmem:[#allocation10 + $0x878] sm:$0xff]
    %v458 = vld [vmem:[#allocation10 + $0x880] sm:$0xff]
    %v459 = vld [vmem:[#allocation10 + $0x888] sm:$0xff]
    %v460 = vld [vmem:[#allocation10 + $0x890] sm:$0xff]
    %v461 = vld [vmem:[#allocation10 + $0x898] sm:$0xff]
    %v462 = vld [vmem:[#allocation10 + $0x8a0] sm:$0xff]
    %v463 = vld [vmem:[#allocation10 + $0x8a8] sm:$0xff]
    %v464 = vld [vmem:[#allocation10 + $0x8b0] sm:$0xff]
    %v465 = vld [vmem:[#allocation10 + $0x8b8] sm:$0xff]
    %v466 = vld [vmem:[#allocation10 + $0x8c0] sm:$0xff]
    %v467 = vld [vmem:[#allocation10 + $0x8c8] sm:$0xff]
    %v468 = vld [vmem:[#allocation10 + $0x8d0] sm:$0xff]
    %v469 = vld [vmem:[#allocation10 + $0x8d8] sm:$0xff]
    %v470 = vld [vmem:[#allocation10 + $0x8e0] sm:$0xff]
    %v471 = vld [vmem:[#allocation10 + $0x8e8] sm:$0xff]
    %v472 = vld [vmem:[#allocation10 + $0x8f0] sm:$0xff]
    %v473 = vld [vmem:[#allocation10 + $0x8f8] sm:$0xff]
    %v474 = vld [vmem:[#allocation10 + $0x900] sm:$0xff]
    %v475 = vld [vmem:[#allocation10 + $0x908] sm:$0xff]
    %v476 = vld [vmem:[#allocation10 + $0x910] sm:$0xff]
    %v477 = vld [vmem:[#allocation10 + $0x918] sm:$0xff]
    %v478 = vld [vmem:[#allocation10 + $0x920] sm:$0xff]
    %v479 = vld [vmem:[#allocation10 + $0x928] sm:$0xff]
    %v480 = vld [vmem:[#allocation10 + $0x930] sm:$0xff]
    %v481 = vld [vmem:[#allocation10 + $0x938] sm:$0xff]
    %v482 = vld [vmem:[#allocation10 + $0x940] sm:$0xff]
    %v483 = vld [vmem:[#allocation10 + $0x948] sm:$0xff]
    %v484 = vld [vmem:[#allocation10 + $0x950] sm:$0xff]
    %v485 = vld [vmem:[#allocation10 + $0x958] sm:$0xff]
    %v486 = vld [vmem:[#allocation10 + $0x960] sm:$0xff]
    %v487 = vld [vmem:[#allocation10 + $0x968] sm:$0xff]
    %v488 = vld [vmem:[#allocation10 + $0x970] sm:$0xff]
    %v489 = vld [vmem:[#allocation10 + $0x978] sm:$0xff]
    %v490 = vld [vmem:[#allocation10 + $0x980] sm:$0xff]
    %v491 = vld [vmem:[#allocation10 + $0x988] sm:$0xff]
    %v492 = vld [vmem:[#allocation10 + $0x990] sm:$0xff]
    %v493 = vld [vmem:[#allocation10 + $0x998] sm:$0xff]
    %v494 = vld [vmem:[#allocation10 + $0x9a0] sm:$0xff]
    %v495 = vld [vmem:[#allocation10 + $0x9a8] sm:$0xff]
    %v496 = vld [vmem:[#allocation10 + $0x9b0] sm:$0xff]
    %v497 = vld [vmem:[#allocation10 + $0x9b8] sm:$0xff]
    %v498 = vld [vmem:[#allocation10 + $0x9c0] sm:$0xff]
    %v499 = vld [vmem:[#allocation10 + $0x9c8] sm:$0xff]
    %v500 = vld [vmem:[#allocation10 + $0x9d0] sm:$0xff]
    %v501 = vld [vmem:[#allocation10 + $0x9d8] sm:$0xff]
    %v502 = vld [vmem:[#allocation10 + $0x9e0] sm:$0xff]
    %v503 = vld [vmem:[#allocation10 + $0x9e8] sm:$0xff]
    %v504 = vld [vmem:[#allocation10 + $0x9f0] sm:$0xff]
    %v505 = vld [vmem:[#allocation10 + $0x9f8] sm:$0xff]
    %v506 = vld [vmem:[#allocation10 + $0xa00] sm:$0xff]
    %v507 = vld [vmem:[#allocation10 + $0xa08] sm:$0xff]
    %v508 = vld [vmem:[#allocation10 + $0xa10] sm:$0xff]
    %v509 = vld [vmem:[#allocation10 + $0xa18] sm:$0xff]
    %v510 = vld [vmem:[#allocation10 + $0xa20] sm:$0xff]
    %v511 = vld [vmem:[#allocation10 + $0xa28] sm:$0xff]
    %v512 = vld [vmem:[#allocation10 + $0xa30] sm:$0xff]
    %v513 = vld [vmem:[#allocation10 + $0xa38] sm:$0xff]
    %v514 = vld [vmem:[#allocation10 + $0xa40] sm:$0xff]
    %v515 = vld [vmem:[#allocation10 + $0xa48] sm:$0xff]
    %v516 = vld [vmem:[#allocation10 + $0xa50] sm:$0xff]
    %v517 = vld [vmem:[#allocation10 + $0xa58] sm:$0xff]
    %v518 = vld [vmem:[#allocation10 + $0xa60] sm:$0xff]
    %v519 = vld [vmem:[#allocation10 + $0xa68] sm:$0xff]
    %v520 = vld [vmem:[#allocation10 + $0xa70] sm:$0xff]
    %v521 = vld [vmem:[#allocation10 + $0xa78] sm:$0xff]
    %v522 = vld [vmem:[#allocation10 + $0xa80] sm:$0xff]
    %v523 = vld [vmem:[#allocation10 + $0xa88] sm:$0xff]
    %v524 = vld [vmem:[#allocation10 + $0xa90] sm:$0xff]
    %v525 = vld [vmem:[#allocation10 + $0xa98] sm:$0xff]
    %v526 = vld [vmem:[#allocation10 + $0xaa0] sm:$0xff]
    %v527 = vld [vmem:[#allocation10 + $0xaa8] sm:$0xff]
    %v528 = vld [vmem:[#allocation10 + $0xab0] sm:$0xff]
    %v529 = vld [vmem:[#allocation10 + $0xab8] sm:$0xff]
    %v530 = vld [vmem:[#allocation10 + $0xac0] sm:$0xff]
    %v531 = vld [vmem:[#allocation10 + $0xac8] sm:$0xff]
    %v532 = vld [vmem:[#allocation10 + $0xad0] sm:$0xff]
    %v533 = vld [vmem:[#allocation10 + $0xad8] sm:$0xff]
    %v534 = vld [vmem:[#allocation10 + $0xae0] sm:$0xff]
    %v535 = vld [vmem:[#allocation10 + $0xae8] sm:$0xff]
    %v536 = vld [vmem:[#allocation10 + $0xaf0] sm:$0xff]
    %v537 = vld [vmem:[#allocation10 + $0xaf8] sm:$0xff]
    %v538 = vld [vmem:[#allocation10 + $0xb00] sm:$0xff]
    %v539 = vld [vmem:[#allocation10 + $0xb08] sm:$0xff]
    %v540 = vld [vmem:[#allocation10 + $0xb10] sm:$0xff]
    %v541 = vld [vmem:[#allocation10 + $0xb18] sm:$0xff]
    %v542 = vld [vmem:[#allocation10 + $0xb20] sm:$0xff]
    %v543 = vld [vmem:[#allocation10 + $0xb28] sm:$0xff]
    %v544 = vld [vmem:[#allocation10 + $0xb30] sm:$0xff]
    %v545 = vld [vmem:[#allocation10 + $0xb38] sm:$0xff]
    %v546 = vld [vmem:[#allocation10 + $0xb40] sm:$0xff]
    %v547 = vld [vmem:[#allocation10 + $0xb48] sm:$0xff]
    %v548 = vld [vmem:[#allocation10 + $0xb50] sm:$0xff]
    %v549 = vld [vmem:[#allocation10 + $0xb58] sm:$0xff]
    %v550 = vld [vmem:[#allocation10 + $0xb60] sm:$0xff]
    %v551 = vld [vmem:[#allocation10 + $0xb68] sm:$0xff]
    %v552 = vld [vmem:[#allocation10 + $0xb70] sm:$0xff]
    %v553 = vld [vmem:[#allocation10 + $0xb78] sm:$0xff]
    %v554 = vld [vmem:[#allocation10 + $0xb80] sm:$0xff]
    %v555 = vld [vmem:[#allocation10 + $0xb88] sm:$0xff]
    %v556 = vld [vmem:[#allocation10 + $0xb90] sm:$0xff]
    %v557 = vld [vmem:[#allocation10 + $0xb98] sm:$0xff]
    %v558 = vld [vmem:[#allocation10 + $0xba0] sm:$0xff]
    %v559 = vld [vmem:[#allocation10 + $0xba8] sm:$0xff]
    %v560 = vld [vmem:[#allocation10 + $0xbb0] sm:$0xff]
    %v561 = vld [vmem:[#allocation10 + $0xbb8] sm:$0xff]
    %v562 = vld [vmem:[#allocation10 + $0xbc0] sm:$0xff]
    %v563 = vld [vmem:[#allocation10 + $0xbc8] sm:$0xff]
    %v564 = vld [vmem:[#allocation10 + $0xbd0] sm:$0xff]
    %v565 = vld [vmem:[#allocation10 + $0xbd8] sm:$0xff]
    %v566 = vld [vmem:[#allocation10 + $0xbe0] sm:$0xff]
    %v567 = vld [vmem:[#allocation10 + $0xbe8] sm:$0xff]
    %v568 = vld [vmem:[#allocation10 + $0xbf0] sm:$0xff]
    %v569 = vld [vmem:[#allocation10 + $0xbf8] sm:$0xff]
    %v570 = vld [vmem:[#allocation10 + $0xc00] sm:$0xff]
    %v571 = vld [vmem:[#allocation10 + $0xc08] sm:$0xff]
    %v572 = vld [vmem:[#allocation10 + $0xc10] sm:$0xff]
    %v573 = vld [vmem:[#allocation10 + $0xc18] sm:$0xff]
    %v574 = vld [vmem:[#allocation10 + $0xc20] sm:$0xff]
    %v575 = vld [vmem:[#allocation10 + $0xc28] sm:$0xff]
    %v576 = vld [vmem:[#allocation10 + $0xc30] sm:$0xff]
    %v577 = vld [vmem:[#allocation10 + $0xc38] sm:$0xff]
    %v578 = vld [vmem:[#allocation10 + $0xc40] sm:$0xff]
    %v579 = vld [vmem:[#allocation10 + $0xc48] sm:$0xff]
    %v580 = vld [vmem:[#allocation10 + $0xc50] sm:$0xff]
    %v581 = vld [vmem:[#allocation10 + $0xc58] sm:$0xff]
    %v582 = vld [vmem:[#allocation10 + $0xc60] sm:$0xff]
    %v583 = vld [vmem:[#allocation10 + $0xc68] sm:$0xff]
    %v584 = vld [vmem:[#allocation10 + $0xc70] sm:$0xff]
    %v585 = vld [vmem:[#allocation10 + $0xc78] sm:$0xff]
    %v586 = vld [vmem:[#allocation10 + $0xc80] sm:$0xff]
    %v587 = vld [vmem:[#allocation10 + $0xc88] sm:$0xff]
    %v588 = vld [vmem:[#allocation10 + $0xc90] sm:$0xff]
    %v589 = vld [vmem:[#allocation10 + $0xc98] sm:$0xff]
    %v590 = vld [vmem:[#allocation10 + $0xca0] sm:$0xff]
    %v591 = vld [vmem:[#allocation10 + $0xca8] sm:$0xff]
    %v592 = vld [vmem:[#allocation10 + $0xcb0] sm:$0xff]
    %v593 = vld [vmem:[#allocation10 + $0xcb8] sm:$0xff]
    %v594 = vld [vmem:[#allocation10 + $0xcc0] sm:$0xff]
    %v595 = vld [vmem:[#allocation10 + $0xcc8] sm:$0xff]
    %v596 = vld [vmem:[#allocation10 + $0xcd0] sm:$0xff]
    %v597 = vld [vmem:[#allocation10 + $0xcd8] sm:$0xff]
    %v598 = vld [vmem:[#allocation10 + $0xce0] sm:$0xff]
    %v599 = vld [vmem:[#allocation10 + $0xce8] sm:$0xff]
    %v600 = vld [vmem:[#allocation10 + $0xcf0] sm:$0xff]
    %v601 = vld [vmem:[#allocation10 + $0xcf8] sm:$0xff]
    %v602 = vld [vmem:[#allocation10 + $0xd00] sm:$0xff]
    %v603 = vld [vmem:[#allocation10 + $0xd08] sm:$0xff]
    %v604 = vld [vmem:[#allocation10 + $0xd10] sm:$0xff]
    %v605 = vld [vmem:[#allocation10 + $0xd18] sm:$0xff]
    %v606 = vld [vmem:[#allocation10 + $0xd20] sm:$0xff]
    %v607 = vld [vmem:[#allocation10 + $0xd28] sm:$0xff]
    %v608 = vld [vmem:[#allocation10 + $0xd30] sm:$0xff]
    %v609 = vld [vmem:[#allocation10 + $0xd38] sm:$0xff]
    %v610 = vld [vmem:[#allocation10 + $0xd40] sm:$0xff]
    %v611 = vld [vmem:[#allocation10 + $0xd48] sm:$0xff]
    %v612 = vld [vmem:[#allocation10 + $0xd50] sm:$0xff]
    %v613 = vld [vmem:[#allocation10 + $0xd58] sm:$0xff]
    %v614 = vld [vmem:[#allocation10 + $0xd60] sm:$0xff]
    %v615 = vld [vmem:[#allocation10 + $0xd68] sm:$0xff]
    %v616 = vld [vmem:[#allocation10 + $0xd70] sm:$0xff]
    %v617 = vld [vmem:[#allocation10 + $0xd78] sm:$0xff]
    %v618 = vld [vmem:[#allocation10 + $0xd80] sm:$0xff]
    %v619 = vld [vmem:[#allocation10 + $0xd88] sm:$0xff]
    %v620 = vld [vmem:[#allocation10 + $0xd90] sm:$0xff]
    %v621 = vld [vmem:[#allocation10 + $0xd98] sm:$0xff]
    %v622 = vld [vmem:[#allocation10 + $0xda0] sm:$0xff]
    %v623 = vld [vmem:[#allocation10 + $0xda8] sm:$0xff]
    %v624 = vld [vmem:[#allocation10 + $0xdb0] sm:$0xff]
    %v625 = vld [vmem:[#allocation10 + $0xdb8] sm:$0xff]
    %v626 = vld [vmem:[#allocation10 + $0xdc0] sm:$0xff]
    %v627 = vld [vmem:[#allocation10 + $0xdc8] sm:$0xff]
    %v628 = vld [vmem:[#allocation10 + $0xdd0] sm:$0xff]
    %v629 = vld [vmem:[#allocation10 + $0xdd8] sm:$0xff]
    %v630 = vld [vmem:[#allocation10 + $0xde0] sm:$0xff]
    %v631 = vld [vmem:[#allocation10 + $0xde8] sm:$0xff]
    %v632 = vld [vmem:[#allocation10 + $0xdf0] sm:$0xff]
    %v633 = vld [vmem:[#allocation10 + $0xdf8] sm:$0xff]
    %v634 = vld [vmem:[#allocation10 + $0xe00] sm:$0xff]
    %v635 = vld [vmem:[#allocation10 + $0xe08] sm:$0xff]
    %v636 = vld [vmem:[#allocation10 + $0xe10] sm:$0xff]
    %v637 = vld [vmem:[#allocation10 + $0xe18] sm:$0xff]
    %v638 = vld [vmem:[#allocation10 + $0xe20] sm:$0xff]
    %v639 = vld [vmem:[#allocation10 + $0xe28] sm:$0xff]
    %v640 = vld [vmem:[#allocation10 + $0xe30] sm:$0xff]
    %v641 = vld [vmem:[#allocation10 + $0xe38] sm:$0xff]
    %v642 = vld [vmem:[#allocation10 + $0xe40] sm:$0xff]
    %v643 = vld [vmem:[#allocation10 + $0xe48] sm:$0xff]
    %v644 = vld [vmem:[#allocation10 + $0xe50] sm:$0xff]
    %v645 = vld [vmem:[#allocation10 + $0xe58] sm:$0xff]
    %v646 = vld [vmem:[#allocation10 + $0xe60] sm:$0xff]
    %v647 = vld [vmem:[#allocation10 + $0xe68] sm:$0xff]
    %v648 = vld [vmem:[#allocation10 + $0xe70] sm:$0xff]
    %v649 = vld [vmem:[#allocation10 + $0xe78] sm:$0xff]
    %v650 = vld [vmem:[#allocation10 + $0xe80] sm:$0xff]
    %v651 = vld [vmem:[#allocation10 + $0xe88] sm:$0xff]
    %v652 = vld [vmem:[#allocation10 + $0xe90] sm:$0xff]
    %v653 = vld [vmem:[#allocation10 + $0xe98] sm:$0xff]
    %v654 = vld [vmem:[#allocation10 + $0xea0] sm:$0xff]
    %v655 = vld [vmem:[#allocation10 + $0xea8] sm:$0xff]
    %v656 = vld [vmem:[#allocation10 + $0xeb0] sm:$0xff]
    %v657 = vld [vmem:[#allocation10 + $0xeb8] sm:$0xff]
    %v658 = vld [vmem:[#allocation10 + $0xec0] sm:$0xff]
    %v659 = vld [vmem:[#allocation10 + $0xec8] sm:$0xff]
    %v660 = vld [vmem:[#allocation10 + $0xed0] sm:$0xff]
    %v661 = vld [vmem:[#allocation10 + $0xed8] sm:$0xff]
    %v662 = vld [vmem:[#allocation10 + $0xee0] sm:$0xff]
    %v663 = vld [vmem:[#allocation10 + $0xee8] sm:$0xff]
    %v664 = vld [vmem:[#allocation10 + $0xef0] sm:$0xff]
    %v665 = vld [vmem:[#allocation10 + $0xef8] sm:$0xff]
    %v666 = vld [vmem:[#allocation10 + $0xf00] sm:$0xff]
    %v667 = vld [vmem:[#allocation10 + $0xf08] sm:$0xff]
    %v668 = vld [vmem:[#allocation10 + $0xf10] sm:$0xff]
    %v669 = vld [vmem:[#allocation10 + $0xf18] sm:$0xff]
    %v670 = vld [vmem:[#allocation10 + $0xf20] sm:$0xff]
    %v671 = vld [vmem:[#allocation10 + $0xf28] sm:$0xff]
    %v672 = vld [vmem:[#allocation10 + $0xf30] sm:$0xff]
    %v673 = vld [vmem:[#allocation10 + $0xf38] sm:$0xff]
    %v674 = vld [vmem:[#allocation10 + $0xf40] sm:$0xff]
    %v675 = vld [vmem:[#allocation10 + $0xf48] sm:$0xff]
    %v676 = vld [vmem:[#allocation10 + $0xf50] sm:$0xff]
    %v677 = vld [vmem:[#allocation10 + $0xf58] sm:$0xff]
    %v678 = vld [vmem:[#allocation10 + $0xf60] sm:$0xff]
    %v679 = vld [vmem:[#allocation10 + $0xf68] sm:$0xff]
    %v680 = vld [vmem:[#allocation10 + $0xf70] sm:$0xff]
    %v681 = vld [vmem:[#allocation10 + $0xf78] sm:$0xff]
    %v682 = vld [vmem:[#allocation10 + $0xf80] sm:$0xff]
    %v683 = vld [vmem:[#allocation10 + $0xf88] sm:$0xff]
    %v684 = vld [vmem:[#allocation10 + $0xf90] sm:$0xff]
    %v685 = vld [vmem:[#allocation10 + $0xf98] sm:$0xff]
    %v686 = vld [vmem:[#allocation10 + $0xfa0] sm:$0xff]
    %v687 = vld [vmem:[#allocation10 + $0xfa8] sm:$0xff]
    %v688 = vld [vmem:[#allocation10 + $0xfb0] sm:$0xff]
    %v689 = vld [vmem:[#allocation10 + $0xfb8] sm:$0xff]
    %v690 = vld [vmem:[#allocation10 + $0xfc0] sm:$0xff]
    %v691 = vld [vmem:[#allocation10 + $0xfc8] sm:$0xff]
    %v692 = vld [vmem:[#allocation10 + $0xfd0] sm:$0xff]
    %v693 = vld [vmem:[#allocation10 + $0xfd8] sm:$0xff]
    %v694 = vld [vmem:[#allocation10 + $0xfe0] sm:$0xff]
    %v695 = vld [vmem:[#allocation10 + $0xfe8] sm:$0xff]
    %v696 = vld [vmem:[#allocation10 + $0xff0] sm:$0xff]
    %v697 = vld [vmem:[#allocation10 + $0xff8] sm:$0xff]
    %v698 = vld [vmem:[%s1] sm:$0x3]
    %v699 = vld [vmem:[#allocation12] sm:$0xff]
    %v700 = vld [vmem:[#allocation12 + $0x8] sm:$0xff]
    %v701 = vld [vmem:[#allocation12 + $0x10] sm:$0xff]
    %v702 = vld [vmem:[#allocation12 + $0x18] sm:$0xff]
    %v703 = vld [vmem:[#allocation12 + $0x20] sm:$0xff]
    %v704 = vld [vmem:[#allocation12 + $0x28] sm:$0xff]
    %v705 = vld [vmem:[#allocation12 + $0x30] sm:$0xff]
    %v706 = vld [vmem:[#allocation12 + $0x38] sm:$0xff]
    %v707 = vld [vmem:[#allocation12 + $0x40] sm:$0xff]
    %v708 = vld [vmem:[#allocation12 + $0x48] sm:$0xff]
    %v709 = vld [vmem:[#allocation12 + $0x50] sm:$0xff]
    %v710 = vld [vmem:[#allocation12 + $0x58] sm:$0xff]
    %v711 = vld [vmem:[#allocation12 + $0x60] sm:$0xff]
    %v712 = vld [vmem:[#allocation12 + $0x68] sm:$0xff]
    %v713 = vld [vmem:[#allocation12 + $0x70] sm:$0xff]
    %v714 = vld [vmem:[#allocation12 + $0x78] sm:$0xff]
    %v715 = vld [vmem:[#allocation12 + $0x80] sm:$0xff]
    %v716 = vld [vmem:[#allocation12 + $0x88] sm:$0xff]
    %v717 = vld [vmem:[#allocation12 + $0x90] sm:$0xff]
    %v718 = vld [vmem:[#allocation12 + $0x98] sm:$0xff]
    %v719 = vld [vmem:[#allocation12 + $0xa0] sm:$0xff]
    %v720 = vld [vmem:[#allocation12 + $0xa8] sm:$0xff]
    %v721 = vld [vmem:[#allocation12 + $0xb0] sm:$0xff]
    %v722 = vld [vmem:[#allocation12 + $0xb8] sm:$0xff]
    %v723 = vld [vmem:[#allocation12 + $0xc0] sm:$0xff]
    %v724 = vld [vmem:[#allocation12 + $0xc8] sm:$0xff]
    %v725 = vld [vmem:[#allocation12 + $0xd0] sm:$0xff]
    %v726 = vld [vmem:[#allocation12 + $0xd8] sm:$0xff]
    %v727 = vld [vmem:[#allocation12 + $0xe0] sm:$0xff]
    %v728 = vld [vmem:[#allocation12 + $0xe8] sm:$0xff]
    %v729 = vld [vmem:[#allocation12 + $0xf0] sm:$0xff]
    %v730 = vld [vmem:[#allocation12 + $0xf8] sm:$0xff]
    %v731 = vld [vmem:[#allocation12 + $0x100] sm:$0xff]
    %v732 = vld [vmem:[#allocation12 + $0x108] sm:$0xff]
    %v733 = vld [vmem:[#allocation12 + $0x110] sm:$0xff]
    %v734 = vld [vmem:[#allocation12 + $0x118] sm:$0xff]
    %v735 = vld [vmem:[#allocation12 + $0x120] sm:$0xff]
    %v736 = vld [vmem:[#allocation12 + $0x128] sm:$0xff]
    %v737 = vld [vmem:[#allocation12 + $0x130] sm:$0xff]
    %v738 = vld [vmem:[#allocation12 + $0x138] sm:$0xff]
    %v739 = vld [vmem:[#allocation12 + $0x140] sm:$0xff]
    %v740 = vld [vmem:[#allocation12 + $0x148] sm:$0xff]
    %v741 = vld [vmem:[#allocation12 + $0x150] sm:$0xff]
    %v742 = vld [vmem:[#allocation12 + $0x158] sm:$0xff]
    %v743 = vld [vmem:[#allocation12 + $0x160] sm:$0xff]
    %v744 = vld [vmem:[#allocation12 + $0x168] sm:$0xff]
    %v745 = vld [vmem:[#allocation12 + $0x170] sm:$0xff]
    %v746 = vld [vmem:[#allocation12 + $0x178] sm:$0xff]
    %v747 = vld [vmem:[#allocation12 + $0x180] sm:$0xff]
    %v748 = vld [vmem:[#allocation12 + $0x188] sm:$0xff]
    %v749 = vld [vmem:[#allocation12 + $0x190] sm:$0xff]
    %v750 = vld [vmem:[#allocation12 + $0x198] sm:$0xff]
    %v751 = vld [vmem:[#allocation12 + $0x1a0] sm:$0xff]
    %v752 = vld [vmem:[#allocation12 + $0x1a8] sm:$0xff]
    %v753 = vld [vmem:[#allocation12 + $0x1b0] sm:$0xff]
    %v754 = vld [vmem:[#allocation12 + $0x1b8] sm:$0xff]
    %v755 = vld [vmem:[#allocation12 + $0x1c0] sm:$0xff]
    %v756 = vld [vmem:[#allocation12 + $0x1c8] sm:$0xff]
    %v757 = vld [vmem:[#allocation12 + $0x1d0] sm:$0xff]
    %v758 = vld [vmem:[#allocation12 + $0x1d8] sm:$0xff]
    %v759 = vld [vmem:[#allocation12 + $0x1e0] sm:$0xff]
    %v760 = vld [vmem:[#allocation12 + $0x1e8] sm:$0xff]
    %v761 = vld [vmem:[#allocation12 + $0x1f0] sm:$0xff]
    %v762 = vld [vmem:[#allocation12 + $0x1f8] sm:$0xff]
    %vm763 = vcmask 130048
    %v765 = vsel %vm763, %v698, 0
    %767 = vmatpush.msra.mxu0 0.0
    %768 = vmatpush.msra.mxu0 0.0
    %769 = vmatpush.msra.mxu0 0.0
    %770 = vmatpush.msra.mxu0 0.0
    %771 = vmatpush.msra.mxu0 0.0
    %772 = vmatpush.msra.mxu0 0.0
    %773 = vmatpush.msra.mxu0 0.0
    %774 = vmatpush.msra.mxu0 0.0
    %775 = vmatpush.msra.mxu0 0.0
    %776 = vmatpush.msra.mxu0 0.0
    %777 = vmatpush.msra.mxu0 0.0
    %778 = vmatpush.msra.mxu0 0.0
    %779 = vmatpush.msra.mxu0 0.0
    %780 = vmatpush.msra.mxu0 0.0
    %781 = vmatpush.msra.mxu0 %v731
    %782 = vmatpush.msra.mxu0 %v699
    %783 = vmatmul.f32.gmra.mxu0 %v765
    %v784 = vpop.f32.mrf.mxu0
    %v785 = vadd.f32 0.0, %v784
    %786 = vdwg.mxu0
    %787 = vmatpush.msra.mxu0 0.0
    %788 = vmatpush.msra.mxu0 0.0
    %789 = vmatpush.msra.mxu0 0.0
    %790 = vmatpush.msra.mxu0 0.0
    %791 = vmatpush.msra.mxu0 0.0
    %792 = vmatpush.msra.mxu0 0.0
    %793 = vmatpush.msra.mxu0 0.0
    %794 = vmatpush.msra.mxu0 0.0
    %795 = vmatpush.msra.mxu0 0.0
    %796 = vmatpush.msra.mxu0 0.0
    %797 = vmatpush.msra.mxu0 0.0
    %798 = vmatpush.msra.mxu0 0.0
    %799 = vmatpush.msra.mxu0 0.0
    %800 = vmatpush.msra.mxu0 0.0
    %801 = vmatpush.msra.mxu0 %v732
    %802 = vmatpush.msra.mxu0 %v700
    %803 = vmatmul.f32.gmra.mxu0 %v765
    %v804 = vpop.f32.mrf.mxu0
    %v805 = vadd.f32 0.0, %v804
    %806 = vdwg.mxu0
    %807 = vmatpush.msra.mxu0 0.0
    %808 = vmatpush.msra.mxu0 0.0
    %809 = vmatpush.msra.mxu0 0.0
    %810 = vmatpush.msra.mxu0 0.0
    %811 = vmatpush.msra.mxu0 0.0
    %812 = vmatpush.msra.mxu0 0.0
    %813 = vmatpush.msra.mxu0 0.0
    %814 = vmatpush.msra.mxu0 0.0
    %815 = vmatpush.msra.mxu0 0.0
    %816 = vmatpush.msra.mxu0 0.0
    %817 = vmatpush.msra.mxu0 0.0
    %818 = vmatpush.msra.mxu0 0.0
    %819 = vmatpush.msra.mxu0 0.0
    %820 = vmatpush.msra.mxu0 0.0
    %821 = vmatpush.msra.mxu0 %v733
    %822 = vmatpush.msra.mxu0 %v701
    %823 = vmatmul.f32.gmra.mxu0 %v765
    %v824 = vpop.f32.mrf.mxu0
    %v825 = vadd.f32 0.0, %v824
    %826 = vdwg.mxu0
    %827 = vmatpush.msra.mxu0 0.0
    %828 = vmatpush.msra.mxu0 0.0
    %829 = vmatpush.msra.mxu0 0.0
    %830 = vmatpush.msra.mxu0 0.0
    %831 = vmatpush.msra.mxu0 0.0
    %832 = vmatpush.msra.mxu0 0.0
    %833 = vmatpush.msra.mxu0 0.0
    %834 = vmatpush.msra.mxu0 0.0
    %835 = vmatpush.msra.mxu0 0.0
    %836 = vmatpush.msra.mxu0 0.0
    %837 = vmatpush.msra.mxu0 0.0
    %838 = vmatpush.msra.mxu0 0.0
    %839 = vmatpush.msra.mxu0 0.0
    %840 = vmatpush.msra.mxu0 0.0
    %841 = vmatpush.msra.mxu0 %v734
    %842 = vmatpush.msra.mxu0 %v702
    %843 = vmatmul.f32.gmra.mxu0 %v765
    %v844 = vpop.f32.mrf.mxu0
    %v845 = vadd.f32 0.0, %v844
    %846 = vdwg.mxu0
    %847 = vmatpush.msra.mxu0 0.0
    %848 = vmatpush.msra.mxu0 0.0
    %849 = vmatpush.msra.mxu0 0.0
    %850 = vmatpush.msra.mxu0 0.0
    %851 = vmatpush.msra.mxu0 0.0
    %852 = vmatpush.msra.mxu0 0.0
    %853 = vmatpush.msra.mxu0 0.0
    %854 = vmatpush.msra.mxu0 0.0
    %855 = vmatpush.msra.mxu0 0.0
    %856 = vmatpush.msra.mxu0 0.0
    %857 = vmatpush.msra.mxu0 0.0
    %858 = vmatpush.msra.mxu0 0.0
    %859 = vmatpush.msra.mxu0 0.0
    %860 = vmatpush.msra.mxu0 0.0
    %861 = vmatpush.msra.mxu0 %v735
    %862 = vmatpush.msra.mxu0 %v703
    %863 = vmatmul.f32.gmra.mxu0 %v765
    %v864 = vpop.f32.mrf.mxu0
    %v865 = vadd.f32 0.0, %v864
    %866 = vdwg.mxu0
    %867 = vmatpush.msra.mxu0 0.0
    %868 = vmatpush.msra.mxu0 0.0
    %869 = vmatpush.msra.mxu0 0.0
    %870 = vmatpush.msra.mxu0 0.0
    %871 = vmatpush.msra.mxu0 0.0
    %872 = vmatpush.msra.mxu0 0.0
    %873 = vmatpush.msra.mxu0 0.0
    %874 = vmatpush.msra.mxu0 0.0
    %875 = vmatpush.msra.mxu0 0.0
    %876 = vmatpush.msra.mxu0 0.0
    %877 = vmatpush.msra.mxu0 0.0
    %878 = vmatpush.msra.mxu0 0.0
    %879 = vmatpush.msra.mxu0 0.0
    %880 = vmatpush.msra.mxu0 0.0
    %881 = vmatpush.msra.mxu0 %v736
    %882 = vmatpush.msra.mxu0 %v704
    %883 = vmatmul.f32.gmra.mxu0 %v765
    %v884 = vpop.f32.mrf.mxu0
    %v885 = vadd.f32 0.0, %v884
    %886 = vdwg.mxu0
    %887 = vmatpush.msra.mxu0 0.0
    %888 = vmatpush.msra.mxu0 0.0
    %889 = vmatpush.msra.mxu0 0.0
    %890 = vmatpush.msra.mxu0 0.0
    %891 = vmatpush.msra.mxu0 0.0
    %892 = vmatpush.msra.mxu0 0.0
    %893 = vmatpush.msra.mxu0 0.0
    %894 = vmatpush.msra.mxu0 0.0
    %895 = vmatpush.msra.mxu0 0.0
    %896 = vmatpush.msra.mxu0 0.0
    %897 = vmatpush.msra.mxu0 0.0
    %898 = vmatpush.msra.mxu0 0.0
    %899 = vmatpush.msra.mxu0 0.0
    %900 = vmatpush.msra.mxu0 0.0
    %901 = vmatpush.msra.mxu0 %v737
    %902 = vmatpush.msra.mxu0 %v705
    %903 = vmatmul.f32.gmra.mxu0 %v765
    %v904 = vpop.f32.mrf.mxu0
    %v905 = vadd.f32 0.0, %v904
    %906 = vdwg.mxu0
    %907 = vmatpush.msra.mxu0 0.0
    %908 = vmatpush.msra.mxu0 0.0
    %909 = vmatpush.msra.mxu0 0.0
    %910 = vmatpush.msra.mxu0 0.0
    %911 = vmatpush.msra.mxu0 0.0
    %912 = vmatpush.msra.mxu0 0.0
    %913 = vmatpush.msra.mxu0 0.0
    %914 = vmatpush.msra.mxu0 0.0
    %915 = vmatpush.msra.mxu0 0.0
    %916 = vmatpush.msra.mxu0 0.0
    %917 = vmatpush.msra.mxu0 0.0
    %918 = vmatpush.msra.mxu0 0.0
    %919 = vmatpush.msra.mxu0 0.0
    %920 = vmatpush.msra.mxu0 0.0
    %921 = vmatpush.msra.mxu0 %v738
    %922 = vmatpush.msra.mxu0 %v706
    %923 = vmatmul.f32.gmra.mxu0 %v765
    %v924 = vpop.f32.mrf.mxu0
    %v925 = vadd.f32 0.0, %v924
    %926 = vdwg.mxu0
    %927 = vmatpush.msra.mxu0 0.0
    %928 = vmatpush.msra.mxu0 0.0
    %929 = vmatpush.msra.mxu0 0.0
    %930 = vmatpush.msra.mxu0 0.0
    %931 = vmatpush.msra.mxu0 0.0
    %932 = vmatpush.msra.mxu0 0.0
    %933 = vmatpush.msra.mxu0 0.0
    %934 = vmatpush.msra.mxu0 0.0
    %935 = vmatpush.msra.mxu0 0.0
    %936 = vmatpush.msra.mxu0 0.0
    %937 = vmatpush.msra.mxu0 0.0
    %938 = vmatpush.msra.mxu0 0.0
    %939 = vmatpush.msra.mxu0 0.0
    %940 = vmatpush.msra.mxu0 0.0
    %941 = vmatpush.msra.mxu0 %v739
    %942 = vmatpush.msra.mxu0 %v707
    %943 = vmatmul.f32.gmra.mxu0 %v765
    %v944 = vpop.f32.mrf.mxu0
    %v945 = vadd.f32 0.0, %v944
    %946 = vdwg.mxu0
    %947 = vmatpush.msra.mxu0 0.0
    %948 = vmatpush.msra.mxu0 0.0
    %949 = vmatpush.msra.mxu0 0.0
    %950 = vmatpush.msra.mxu0 0.0
    %951 = vmatpush.msra.mxu0 0.0
    %952 = vmatpush.msra.mxu0 0.0
    %953 = vmatpush.msra.mxu0 0.0
    %954 = vmatpush.msra.mxu0 0.0
    %955 = vmatpush.msra.mxu0 0.0
    %956 = vmatpush.msra.mxu0 0.0
    %957 = vmatpush.msra.mxu0 0.0
    %958 = vmatpush.msra.mxu0 0.0
    %959 = vmatpush.msra.mxu0 0.0
    %960 = vmatpush.msra.mxu0 0.0
    %961 = vmatpush.msra.mxu0 %v740
    %962 = vmatpush.msra.mxu0 %v708
    %963 = vmatmul.f32.gmra.mxu0 %v765
    %v964 = vpop.f32.mrf.mxu0
    %v965 = vadd.f32 0.0, %v964
    %966 = vdwg.mxu0
    %967 = vmatpush.msra.mxu0 0.0
    %968 = vmatpush.msra.mxu0 0.0
    %969 = vmatpush.msra.mxu0 0.0
    %970 = vmatpush.msra.mxu0 0.0
    %971 = vmatpush.msra.mxu0 0.0
    %972 = vmatpush.msra.mxu0 0.0
    %973 = vmatpush.msra.mxu0 0.0
    %974 = vmatpush.msra.mxu0 0.0
    %975 = vmatpush.msra.mxu0 0.0
    %976 = vmatpush.msra.mxu0 0.0
    %977 = vmatpush.msra.mxu0 0.0
    %978 = vmatpush.msra.mxu0 0.0
    %979 = vmatpush.msra.mxu0 0.0
    %980 = vmatpush.msra.mxu0 0.0
    %981 = vmatpush.msra.mxu0 %v741
    %982 = vmatpush.msra.mxu0 %v709
    %983 = vmatmul.f32.gmra.mxu0 %v765
    %v984 = vpop.f32.mrf.mxu0
    %v985 = vadd.f32 0.0, %v984
    %986 = vdwg.mxu0
    %987 = vmatpush.msra.mxu0 0.0
    %988 = vmatpush.msra.mxu0 0.0
    %989 = vmatpush.msra.mxu0 0.0
    %990 = vmatpush.msra.mxu0 0.0
    %991 = vmatpush.msra.mxu0 0.0
    %992 = vmatpush.msra.mxu0 0.0
    %993 = vmatpush.msra.mxu0 0.0
    %994 = vmatpush.msra.mxu0 0.0
    %995 = vmatpush.msra.mxu0 0.0
    %996 = vmatpush.msra.mxu0 0.0
    %997 = vmatpush.msra.mxu0 0.0
    %998 = vmatpush.msra.mxu0 0.0
    %999 = vmatpush.msra.mxu0 0.0
    %1000 = vmatpush.msra.mxu0 0.0
    %1001 = vmatpush.msra.mxu0 %v742
    %1002 = vmatpush.msra.mxu0 %v710
    %1003 = vmatmul.f32.gmra.mxu0 %v765
    %v1004 = vpop.f32.mrf.mxu0
    %v1005 = vadd.f32 0.0, %v1004
    %1006 = vdwg.mxu0
    %1007 = vmatpush.msra.mxu0 0.0
    %1008 = vmatpush.msra.mxu0 0.0
    %1009 = vmatpush.msra.mxu0 0.0
    %1010 = vmatpush.msra.mxu0 0.0
    %1011 = vmatpush.msra.mxu0 0.0
    %1012 = vmatpush.msra.mxu0 0.0
    %1013 = vmatpush.msra.mxu0 0.0
    %1014 = vmatpush.msra.mxu0 0.0
    %1015 = vmatpush.msra.mxu0 0.0
    %1016 = vmatpush.msra.mxu0 0.0
    %1017 = vmatpush.msra.mxu0 0.0
    %1018 = vmatpush.msra.mxu0 0.0
    %1019 = vmatpush.msra.mxu0 0.0
    %1020 = vmatpush.msra.mxu0 0.0
    %1021 = vmatpush.msra.mxu0 %v743
    %1022 = vmatpush.msra.mxu0 %v711
    %1023 = vmatmul.f32.gmra.mxu0 %v765
    %v1024 = vpop.f32.mrf.mxu0
    %v1025 = vadd.f32 0.0, %v1024
    %1026 = vdwg.mxu0
    %1027 = vmatpush.msra.mxu0 0.0
    %1028 = vmatpush.msra.mxu0 0.0
    %1029 = vmatpush.msra.mxu0 0.0
    %1030 = vmatpush.msra.mxu0 0.0
    %1031 = vmatpush.msra.mxu0 0.0
    %1032 = vmatpush.msra.mxu0 0.0
    %1033 = vmatpush.msra.mxu0 0.0
    %1034 = vmatpush.msra.mxu0 0.0
    %1035 = vmatpush.msra.mxu0 0.0
    %1036 = vmatpush.msra.mxu0 0.0
    %1037 = vmatpush.msra.mxu0 0.0
    %1038 = vmatpush.msra.mxu0 0.0
    %1039 = vmatpush.msra.mxu0 0.0
    %1040 = vmatpush.msra.mxu0 0.0
    %1041 = vmatpush.msra.mxu0 %v744
    %1042 = vmatpush.msra.mxu0 %v712
    %1043 = vmatmul.f32.gmra.mxu0 %v765
    %v1044 = vpop.f32.mrf.mxu0
    %v1045 = vadd.f32 0.0, %v1044
    %1046 = vdwg.mxu0
    %1047 = vmatpush.msra.mxu0 0.0
    %1048 = vmatpush.msra.mxu0 0.0
    %1049 = vmatpush.msra.mxu0 0.0
    %1050 = vmatpush.msra.mxu0 0.0
    %1051 = vmatpush.msra.mxu0 0.0
    %1052 = vmatpush.msra.mxu0 0.0
    %1053 = vmatpush.msra.mxu0 0.0
    %1054 = vmatpush.msra.mxu0 0.0
    %1055 = vmatpush.msra.mxu0 0.0
    %1056 = vmatpush.msra.mxu0 0.0
    %1057 = vmatpush.msra.mxu0 0.0
    %1058 = vmatpush.msra.mxu0 0.0
    %1059 = vmatpush.msra.mxu0 0.0
    %1060 = vmatpush.msra.mxu0 0.0
    %1061 = vmatpush.msra.mxu0 %v745
    %1062 = vmatpush.msra.mxu0 %v713
    %1063 = vmatmul.f32.gmra.mxu0 %v765
    %v1064 = vpop.f32.mrf.mxu0
    %v1065 = vadd.f32 0.0, %v1064
    %1066 = vdwg.mxu0
    %1067 = vmatpush.msra.mxu0 0.0
    %1068 = vmatpush.msra.mxu0 0.0
    %1069 = vmatpush.msra.mxu0 0.0
    %1070 = vmatpush.msra.mxu0 0.0
    %1071 = vmatpush.msra.mxu0 0.0
    %1072 = vmatpush.msra.mxu0 0.0
    %1073 = vmatpush.msra.mxu0 0.0
    %1074 = vmatpush.msra.mxu0 0.0
    %1075 = vmatpush.msra.mxu0 0.0
    %1076 = vmatpush.msra.mxu0 0.0
    %1077 = vmatpush.msra.mxu0 0.0
    %1078 = vmatpush.msra.mxu0 0.0
    %1079 = vmatpush.msra.mxu0 0.0
    %1080 = vmatpush.msra.mxu0 0.0
    %1081 = vmatpush.msra.mxu0 %v746
    %1082 = vmatpush.msra.mxu0 %v714
    %1083 = vmatmul.f32.gmra.mxu0 %v765
    %v1084 = vpop.f32.mrf.mxu0
    %v1085 = vadd.f32 0.0, %v1084
    %1086 = vdwg.mxu0
    %1087 = vmatpush.msra.mxu0 0.0
    %1088 = vmatpush.msra.mxu0 0.0
    %1089 = vmatpush.msra.mxu0 0.0
    %1090 = vmatpush.msra.mxu0 0.0
    %1091 = vmatpush.msra.mxu0 0.0
    %1092 = vmatpush.msra.mxu0 0.0
    %1093 = vmatpush.msra.mxu0 0.0
    %1094 = vmatpush.msra.mxu0 0.0
    %1095 = vmatpush.msra.mxu0 0.0
    %1096 = vmatpush.msra.mxu0 0.0
    %1097 = vmatpush.msra.mxu0 0.0
    %1098 = vmatpush.msra.mxu0 0.0
    %1099 = vmatpush.msra.mxu0 0.0
    %1100 = vmatpush.msra.mxu0 0.0
    %1101 = vmatpush.msra.mxu0 %v747
    %1102 = vmatpush.msra.mxu0 %v715
    %1103 = vmatmul.f32.gmra.mxu0 %v765
    %v1104 = vpop.f32.mrf.mxu0
    %v1105 = vadd.f32 0.0, %v1104
    %1106 = vdwg.mxu0
    %1107 = vmatpush.msra.mxu0 0.0
    %1108 = vmatpush.msra.mxu0 0.0
    %1109 = vmatpush.msra.mxu0 0.0
    %1110 = vmatpush.msra.mxu0 0.0
    %1111 = vmatpush.msra.mxu0 0.0
    %1112 = vmatpush.msra.mxu0 0.0
    %1113 = vmatpush.msra.mxu0 0.0
    %1114 = vmatpush.msra.mxu0 0.0
    %1115 = vmatpush.msra.mxu0 0.0
    %1116 = vmatpush.msra.mxu0 0.0
    %1117 = vmatpush.msra.mxu0 0.0
    %1118 = vmatpush.msra.mxu0 0.0
    %1119 = vmatpush.msra.mxu0 0.0
    %1120 = vmatpush.msra.mxu0 0.0
    %1121 = vmatpush.msra.mxu0 %v748
    %1122 = vmatpush.msra.mxu0 %v716
    %1123 = vmatmul.f32.gmra.mxu0 %v765
    %v1124 = vpop.f32.mrf.mxu0
    %v1125 = vadd.f32 0.0, %v1124
    %1126 = vdwg.mxu0
    %1127 = vmatpush.msra.mxu0 0.0
    %1128 = vmatpush.msra.mxu0 0.0
    %1129 = vmatpush.msra.mxu0 0.0
    %1130 = vmatpush.msra.mxu0 0.0
    %1131 = vmatpush.msra.mxu0 0.0
    %1132 = vmatpush.msra.mxu0 0.0
    %1133 = vmatpush.msra.mxu0 0.0
    %1134 = vmatpush.msra.mxu0 0.0
    %1135 = vmatpush.msra.mxu0 0.0
    %1136 = vmatpush.msra.mxu0 0.0
    %1137 = vmatpush.msra.mxu0 0.0
    %1138 = vmatpush.msra.mxu0 0.0
    %1139 = vmatpush.msra.mxu0 0.0
    %1140 = vmatpush.msra.mxu0 0.0
    %1141 = vmatpush.msra.mxu0 %v749
    %1142 = vmatpush.msra.mxu0 %v717
    %1143 = vmatmul.f32.gmra.mxu0 %v765
    %v1144 = vpop.f32.mrf.mxu0
    %v1145 = vadd.f32 0.0, %v1144
    %1146 = vdwg.mxu0
    %1147 = vmatpush.msra.mxu0 0.0
    %1148 = vmatpush.msra.mxu0 0.0
    %1149 = vmatpush.msra.mxu0 0.0
    %1150 = vmatpush.msra.mxu0 0.0
    %1151 = vmatpush.msra.mxu0 0.0
    %1152 = vmatpush.msra.mxu0 0.0
    %1153 = vmatpush.msra.mxu0 0.0
    %1154 = vmatpush.msra.mxu0 0.0
    %1155 = vmatpush.msra.mxu0 0.0
    %1156 = vmatpush.msra.mxu0 0.0
    %1157 = vmatpush.msra.mxu0 0.0
    %1158 = vmatpush.msra.mxu0 0.0
    %1159 = vmatpush.msra.mxu0 0.0
    %1160 = vmatpush.msra.mxu0 0.0
    %1161 = vmatpush.msra.mxu0 %v750
    %1162 = vmatpush.msra.mxu0 %v718
    %1163 = vmatmul.f32.gmra.mxu0 %v765
    %v1164 = vpop.f32.mrf.mxu0
    %v1165 = vadd.f32 0.0, %v1164
    %1166 = vdwg.mxu0
    %1167 = vmatpush.msra.mxu0 0.0
    %1168 = vmatpush.msra.mxu0 0.0
    %1169 = vmatpush.msra.mxu0 0.0
    %1170 = vmatpush.msra.mxu0 0.0
    %1171 = vmatpush.msra.mxu0 0.0
    %1172 = vmatpush.msra.mxu0 0.0
    %1173 = vmatpush.msra.mxu0 0.0
    %1174 = vmatpush.msra.mxu0 0.0
    %1175 = vmatpush.msra.mxu0 0.0
    %1176 = vmatpush.msra.mxu0 0.0
    %1177 = vmatpush.msra.mxu0 0.0
    %1178 = vmatpush.msra.mxu0 0.0
    %1179 = vmatpush.msra.mxu0 0.0
    %1180 = vmatpush.msra.mxu0 0.0
    %1181 = vmatpush.msra.mxu0 %v751
    %1182 = vmatpush.msra.mxu0 %v719
    %1183 = vmatmul.f32.gmra.mxu0 %v765
    %v1184 = vpop.f32.mrf.mxu0
    %v1185 = vadd.f32 0.0, %v1184
    %1186 = vdwg.mxu0
    %1187 = vmatpush.msra.mxu0 0.0
    %1188 = vmatpush.msra.mxu0 0.0
    %1189 = vmatpush.msra.mxu0 0.0
    %1190 = vmatpush.msra.mxu0 0.0
    %1191 = vmatpush.msra.mxu0 0.0
    %1192 = vmatpush.msra.mxu0 0.0
    %1193 = vmatpush.msra.mxu0 0.0
    %1194 = vmatpush.msra.mxu0 0.0
    %1195 = vmatpush.msra.mxu0 0.0
    %1196 = vmatpush.msra.mxu0 0.0
    %1197 = vmatpush.msra.mxu0 0.0
    %1198 = vmatpush.msra.mxu0 0.0
    %1199 = vmatpush.msra.mxu0 0.0
    %1200 = vmatpush.msra.mxu0 0.0
    %1201 = vmatpush.msra.mxu0 %v752
    %1202 = vmatpush.msra.mxu0 %v720
    %1203 = vmatmul.f32.gmra.mxu0 %v765
    %v1204 = vpop.f32.mrf.mxu0
    %v1205 = vadd.f32 0.0, %v1204
    %1206 = vdwg.mxu0
    %1207 = vmatpush.msra.mxu0 0.0
    %1208 = vmatpush.msra.mxu0 0.0
    %1209 = vmatpush.msra.mxu0 0.0
    %1210 = vmatpush.msra.mxu0 0.0
    %1211 = vmatpush.msra.mxu0 0.0
    %1212 = vmatpush.msra.mxu0 0.0
    %1213 = vmatpush.msra.mxu0 0.0
    %1214 = vmatpush.msra.mxu0 0.0
    %1215 = vmatpush.msra.mxu0 0.0
    %1216 = vmatpush.msra.mxu0 0.0
    %1217 = vmatpush.msra.mxu0 0.0
    %1218 = vmatpush.msra.mxu0 0.0
    %1219 = vmatpush.msra.mxu0 0.0
    %1220 = vmatpush.msra.mxu0 0.0
    %1221 = vmatpush.msra.mxu0 %v753
    %1222 = vmatpush.msra.mxu0 %v721
    %1223 = vmatmul.f32.gmra.mxu0 %v765
    %v1224 = vpop.f32.mrf.mxu0
    %v1225 = vadd.f32 0.0, %v1224
    %1226 = vdwg.mxu0
    %1227 = vmatpush.msra.mxu0 0.0
    %1228 = vmatpush.msra.mxu0 0.0
    %1229 = vmatpush.msra.mxu0 0.0
    %1230 = vmatpush.msra.mxu0 0.0
    %1231 = vmatpush.msra.mxu0 0.0
    %1232 = vmatpush.msra.mxu0 0.0
    %1233 = vmatpush.msra.mxu0 0.0
    %1234 = vmatpush.msra.mxu0 0.0
    %1235 = vmatpush.msra.mxu0 0.0
    %1236 = vmatpush.msra.mxu0 0.0
    %1237 = vmatpush.msra.mxu0 0.0
    %1238 = vmatpush.msra.mxu0 0.0
    %1239 = vmatpush.msra.mxu0 0.0
    %1240 = vmatpush.msra.mxu0 0.0
    %1241 = vmatpush.msra.mxu0 %v754
    %1242 = vmatpush.msra.mxu0 %v722
    %1243 = vmatmul.f32.gmra.mxu0 %v765
    %v1244 = vpop.f32.mrf.mxu0
    %v1245 = vadd.f32 0.0, %v1244
    %1246 = vdwg.mxu0
    %1247 = vmatpush.msra.mxu0 0.0
    %1248 = vmatpush.msra.mxu0 0.0
    %1249 = vmatpush.msra.mxu0 0.0
    %1250 = vmatpush.msra.mxu0 0.0
    %1251 = vmatpush.msra.mxu0 0.0
    %1252 = vmatpush.msra.mxu0 0.0
    %1253 = vmatpush.msra.mxu0 0.0
    %1254 = vmatpush.msra.mxu0 0.0
    %1255 = vmatpush.msra.mxu0 0.0
    %1256 = vmatpush.msra.mxu0 0.0
    %1257 = vmatpush.msra.mxu0 0.0
    %1258 = vmatpush.msra.mxu0 0.0
    %1259 = vmatpush.msra.mxu0 0.0
    %1260 = vmatpush.msra.mxu0 0.0
    %1261 = vmatpush.msra.mxu0 %v755
    %1262 = vmatpush.msra.mxu0 %v723
    %1263 = vmatmul.f32.gmra.mxu0 %v765
    %v1264 = vpop.f32.mrf.mxu0
    %v1265 = vadd.f32 0.0, %v1264
    %1266 = vdwg.mxu0
    %1267 = vmatpush.msra.mxu0 0.0
    %1268 = vmatpush.msra.mxu0 0.0
    %1269 = vmatpush.msra.mxu0 0.0
    %1270 = vmatpush.msra.mxu0 0.0
    %1271 = vmatpush.msra.mxu0 0.0
    %1272 = vmatpush.msra.mxu0 0.0
    %1273 = vmatpush.msra.mxu0 0.0
    %1274 = vmatpush.msra.mxu0 0.0
    %1275 = vmatpush.msra.mxu0 0.0
    %1276 = vmatpush.msra.mxu0 0.0
    %1277 = vmatpush.msra.mxu0 0.0
    %1278 = vmatpush.msra.mxu0 0.0
    %1279 = vmatpush.msra.mxu0 0.0
    %1280 = vmatpush.msra.mxu0 0.0
    %1281 = vmatpush.msra.mxu0 %v756
    %1282 = vmatpush.msra.mxu0 %v724
    %1283 = vmatmul.f32.gmra.mxu0 %v765
    %v1284 = vpop.f32.mrf.mxu0
    %v1285 = vadd.f32 0.0, %v1284
    %1286 = vdwg.mxu0
    %1287 = vmatpush.msra.mxu0 0.0
    %1288 = vmatpush.msra.mxu0 0.0
    %1289 = vmatpush.msra.mxu0 0.0
    %1290 = vmatpush.msra.mxu0 0.0
    %1291 = vmatpush.msra.mxu0 0.0
    %1292 = vmatpush.msra.mxu0 0.0
    %1293 = vmatpush.msra.mxu0 0.0
    %1294 = vmatpush.msra.mxu0 0.0
    %1295 = vmatpush.msra.mxu0 0.0
    %1296 = vmatpush.msra.mxu0 0.0
    %1297 = vmatpush.msra.mxu0 0.0
    %1298 = vmatpush.msra.mxu0 0.0
    %1299 = vmatpush.msra.mxu0 0.0
    %1300 = vmatpush.msra.mxu0 0.0
    %1301 = vmatpush.msra.mxu0 %v757
    %1302 = vmatpush.msra.mxu0 %v725
    %1303 = vmatmul.f32.gmra.mxu0 %v765
    %v1304 = vpop.f32.mrf.mxu0
    %v1305 = vadd.f32 0.0, %v1304
    %1306 = vdwg.mxu0
    %1307 = vmatpush.msra.mxu0 0.0
    %1308 = vmatpush.msra.mxu0 0.0
    %1309 = vmatpush.msra.mxu0 0.0
    %1310 = vmatpush.msra.mxu0 0.0
    %1311 = vmatpush.msra.mxu0 0.0
    %1312 = vmatpush.msra.mxu0 0.0
    %1313 = vmatpush.msra.mxu0 0.0
    %1314 = vmatpush.msra.mxu0 0.0
    %1315 = vmatpush.msra.mxu0 0.0
    %1316 = vmatpush.msra.mxu0 0.0
    %1317 = vmatpush.msra.mxu0 0.0
    %1318 = vmatpush.msra.mxu0 0.0
    %1319 = vmatpush.msra.mxu0 0.0
    %1320 = vmatpush.msra.mxu0 0.0
    %1321 = vmatpush.msra.mxu0 %v758
    %1322 = vmatpush.msra.mxu0 %v726
    %1323 = vmatmul.f32.gmra.mxu0 %v765
    %v1324 = vpop.f32.mrf.mxu0
    %v1325 = vadd.f32 0.0, %v1324
    %1326 = vdwg.mxu0
    %1327 = vmatpush.msra.mxu0 0.0
    %1328 = vmatpush.msra.mxu0 0.0
    %1329 = vmatpush.msra.mxu0 0.0
    %1330 = vmatpush.msra.mxu0 0.0
    %1331 = vmatpush.msra.mxu0 0.0
    %1332 = vmatpush.msra.mxu0 0.0
    %1333 = vmatpush.msra.mxu0 0.0
    %1334 = vmatpush.msra.mxu0 0.0
    %1335 = vmatpush.msra.mxu0 0.0
    %1336 = vmatpush.msra.mxu0 0.0
    %1337 = vmatpush.msra.mxu0 0.0
    %1338 = vmatpush.msra.mxu0 0.0
    %1339 = vmatpush.msra.mxu0 0.0
    %1340 = vmatpush.msra.mxu0 0.0
    %1341 = vmatpush.msra.mxu0 %v759
    %1342 = vmatpush.msra.mxu0 %v727
    %1343 = vmatmul.f32.gmra.mxu0 %v765
    %v1344 = vpop.f32.mrf.mxu0
    %v1345 = vadd.f32 0.0, %v1344
    %1346 = vdwg.mxu0
    %1347 = vmatpush.msra.mxu0 0.0
    %1348 = vmatpush.msra.mxu0 0.0
    %1349 = vmatpush.msra.mxu0 0.0
    %1350 = vmatpush.msra.mxu0 0.0
    %1351 = vmatpush.msra.mxu0 0.0
    %1352 = vmatpush.msra.mxu0 0.0
    %1353 = vmatpush.msra.mxu0 0.0
    %1354 = vmatpush.msra.mxu0 0.0
    %1355 = vmatpush.msra.mxu0 0.0
    %1356 = vmatpush.msra.mxu0 0.0
    %1357 = vmatpush.msra.mxu0 0.0
    %1358 = vmatpush.msra.mxu0 0.0
    %1359 = vmatpush.msra.mxu0 0.0
    %1360 = vmatpush.msra.mxu0 0.0
    %1361 = vmatpush.msra.mxu0 %v760
    %1362 = vmatpush.msra.mxu0 %v728
    %1363 = vmatmul.f32.gmra.mxu0 %v765
    %v1364 = vpop.f32.mrf.mxu0
    %v1365 = vadd.f32 0.0, %v1364
    %1366 = vdwg.mxu0
    %1367 = vmatpush.msra.mxu0 0.0
    %1368 = vmatpush.msra.mxu0 0.0
    %1369 = vmatpush.msra.mxu0 0.0
    %1370 = vmatpush.msra.mxu0 0.0
    %1371 = vmatpush.msra.mxu0 0.0
    %1372 = vmatpush.msra.mxu0 0.0
    %1373 = vmatpush.msra.mxu0 0.0
    %1374 = vmatpush.msra.mxu0 0.0
    %1375 = vmatpush.msra.mxu0 0.0
    %1376 = vmatpush.msra.mxu0 0.0
    %1377 = vmatpush.msra.mxu0 0.0
    %1378 = vmatpush.msra.mxu0 0.0
    %1379 = vmatpush.msra.mxu0 0.0
    %1380 = vmatpush.msra.mxu0 0.0
    %1381 = vmatpush.msra.mxu0 %v761
    %1382 = vmatpush.msra.mxu0 %v729
    %1383 = vmatmul.f32.gmra.mxu0 %v765
    %v1384 = vpop.f32.mrf.mxu0
    %v1385 = vadd.f32 0.0, %v1384
    %1386 = vdwg.mxu0
    %1387 = vmatpush.msra.mxu0 0.0
    %1388 = vmatpush.msra.mxu0 0.0
    %1389 = vmatpush.msra.mxu0 0.0
    %1390 = vmatpush.msra.mxu0 0.0
    %1391 = vmatpush.msra.mxu0 0.0
    %1392 = vmatpush.msra.mxu0 0.0
    %1393 = vmatpush.msra.mxu0 0.0
    %1394 = vmatpush.msra.mxu0 0.0
    %1395 = vmatpush.msra.mxu0 0.0
    %1396 = vmatpush.msra.mxu0 0.0
    %1397 = vmatpush.msra.mxu0 0.0
    %1398 = vmatpush.msra.mxu0 0.0
    %1399 = vmatpush.msra.mxu0 0.0
    %1400 = vmatpush.msra.mxu0 0.0
    %1401 = vmatpush.msra.mxu0 %v762
    %1402 = vmatpush.msra.mxu0 %v730
    %1403 = vmatmul.f32.gmra.mxu0 %v765
    %v1404 = vpop.f32.mrf.mxu0
    %v1405 = vadd.f32 0.0, %v1404
    %1406 = vdwg.mxu0
    %1407 = vmatpush.msra.mxu0 %v666
    %1408 = vmatpush.msra.mxu0 %v634
    %1409 = vmatpush.msra.mxu0 %v602
    %1410 = vmatpush.msra.mxu0 %v570
    %1411 = vmatpush.msra.mxu0 %v538
    %1412 = vmatpush.msra.mxu0 %v506
    %1413 = vmatpush.msra.mxu0 %v474
    %1414 = vmatpush.msra.mxu0 %v442
    %1415 = vmatpush.msra.mxu0 %v410
    %1416 = vmatpush.msra.mxu0 %v378
    %1417 = vmatpush.msra.mxu0 %v346
    %1418 = vmatpush.msra.mxu0 %v314
    %1419 = vmatpush.msra.mxu0 %v282
    %1420 = vmatpush.msra.mxu0 %v250
    %1421 = vmatpush.msra.mxu0 %v218
    %1422 = vmatpush.msra.mxu0 %v186
    %1423 = vmatmul.f32.gmra.mxu0 %v185
    %v1424 = vpop.f32.mrf.mxu0
    %v1425 = vadd.f32 %v785, %v1424
    %1426 = vdwg.mxu0
    %1427 = vmatpush.msra.mxu0 %v667
    %1428 = vmatpush.msra.mxu0 %v635
    %1429 = vmatpush.msra.mxu0 %v603
    %1430 = vmatpush.msra.mxu0 %v571
    %1431 = vmatpush.msra.mxu0 %v539
    %1432 = vmatpush.msra.mxu0 %v507
    %1433 = vmatpush.msra.mxu0 %v475
    %1434 = vmatpush.msra.mxu0 %v443
    %1435 = vmatpush.msra.mxu0 %v411
    %1436 = vmatpush.msra.mxu0 %v379
    %1437 = vmatpush.msra.mxu0 %v347
    %1438 = vmatpush.msra.mxu0 %v315
    %1439 = vmatpush.msra.mxu0 %v283
    %1440 = vmatpush.msra.mxu0 %v251
    %1441 = vmatpush.msra.mxu0 %v219
    %1442 = vmatpush.msra.mxu0 %v187
    %1443 = vmatmul.f32.gmra.mxu0 %v185
    %v1444 = vpop.f32.mrf.mxu0
    %v1445 = vadd.f32 %v805, %v1444
    %1446 = vdwg.mxu0
    %1447 = vmatpush.msra.mxu0 %v668
    %1448 = vmatpush.msra.mxu0 %v636
    %1449 = vmatpush.msra.mxu0 %v604
    %1450 = vmatpush.msra.mxu0 %v572
    %1451 = vmatpush.msra.mxu0 %v540
    %1452 = vmatpush.msra.mxu0 %v508
    %1453 = vmatpush.msra.mxu0 %v476
    %1454 = vmatpush.msra.mxu0 %v444
    %1455 = vmatpush.msra.mxu0 %v412
    %1456 = vmatpush.msra.mxu0 %v380
    %1457 = vmatpush.msra.mxu0 %v348
    %1458 = vmatpush.msra.mxu0 %v316
    %1459 = vmatpush.msra.mxu0 %v284
    %1460 = vmatpush.msra.mxu0 %v252
    %1461 = vmatpush.msra.mxu0 %v220
    %1462 = vmatpush.msra.mxu0 %v188
    %1463 = vmatmul.f32.gmra.mxu0 %v185
    %v1464 = vpop.f32.mrf.mxu0
    %v1465 = vadd.f32 %v825, %v1464
    %1466 = vdwg.mxu0
    %1467 = vmatpush.msra.mxu0 %v669
    %1468 = vmatpush.msra.mxu0 %v637
    %1469 = vmatpush.msra.mxu0 %v605
    %1470 = vmatpush.msra.mxu0 %v573
    %1471 = vmatpush.msra.mxu0 %v541
    %1472 = vmatpush.msra.mxu0 %v509
    %1473 = vmatpush.msra.mxu0 %v477
    %1474 = vmatpush.msra.mxu0 %v445
    %1475 = vmatpush.msra.mxu0 %v413
    %1476 = vmatpush.msra.mxu0 %v381
    %1477 = vmatpush.msra.mxu0 %v349
    %1478 = vmatpush.msra.mxu0 %v317
    %1479 = vmatpush.msra.mxu0 %v285
    %1480 = vmatpush.msra.mxu0 %v253
    %1481 = vmatpush.msra.mxu0 %v221
    %1482 = vmatpush.msra.mxu0 %v189
    %1483 = vmatmul.f32.gmra.mxu0 %v185
    %v1484 = vpop.f32.mrf.mxu0
    %v1485 = vadd.f32 %v845, %v1484
    %1486 = vdwg.mxu0
    %1487 = vmatpush.msra.mxu0 %v670
    %1488 = vmatpush.msra.mxu0 %v638
    %1489 = vmatpush.msra.mxu0 %v606
    %1490 = vmatpush.msra.mxu0 %v574
    %1491 = vmatpush.msra.mxu0 %v542
    %1492 = vmatpush.msra.mxu0 %v510
    %1493 = vmatpush.msra.mxu0 %v478
    %1494 = vmatpush.msra.mxu0 %v446
    %1495 = vmatpush.msra.mxu0 %v414
    %1496 = vmatpush.msra.mxu0 %v382
    %1497 = vmatpush.msra.mxu0 %v350
    %1498 = vmatpush.msra.mxu0 %v318
    %1499 = vmatpush.msra.mxu0 %v286
    %1500 = vmatpush.msra.mxu0 %v254
    %1501 = vmatpush.msra.mxu0 %v222
    %1502 = vmatpush.msra.mxu0 %v190
    %1503 = vmatmul.f32.gmra.mxu0 %v185
    %v1504 = vpop.f32.mrf.mxu0
    %v1505 = vadd.f32 %v865, %v1504
    %1506 = vdwg.mxu0
    %1507 = vmatpush.msra.mxu0 %v671
    %1508 = vmatpush.msra.mxu0 %v639
    %1509 = vmatpush.msra.mxu0 %v607
    %1510 = vmatpush.msra.mxu0 %v575
    %1511 = vmatpush.msra.mxu0 %v543
    %1512 = vmatpush.msra.mxu0 %v511
    %1513 = vmatpush.msra.mxu0 %v479
    %1514 = vmatpush.msra.mxu0 %v447
    %1515 = vmatpush.msra.mxu0 %v415
    %1516 = vmatpush.msra.mxu0 %v383
    %1517 = vmatpush.msra.mxu0 %v351
    %1518 = vmatpush.msra.mxu0 %v319
    %1519 = vmatpush.msra.mxu0 %v287
    %1520 = vmatpush.msra.mxu0 %v255
    %1521 = vmatpush.msra.mxu0 %v223
    %1522 = vmatpush.msra.mxu0 %v191
    %1523 = vmatmul.f32.gmra.mxu0 %v185
    %v1524 = vpop.f32.mrf.mxu0
    %v1525 = vadd.f32 %v885, %v1524
    %1526 = vdwg.mxu0
    %1527 = vmatpush.msra.mxu0 %v672
    %1528 = vmatpush.msra.mxu0 %v640
    %1529 = vmatpush.msra.mxu0 %v608
    %1530 = vmatpush.msra.mxu0 %v576
    %1531 = vmatpush.msra.mxu0 %v544
    %1532 = vmatpush.msra.mxu0 %v512
    %1533 = vmatpush.msra.mxu0 %v480
    %1534 = vmatpush.msra.mxu0 %v448
    %1535 = vmatpush.msra.mxu0 %v416
    %1536 = vmatpush.msra.mxu0 %v384
    %1537 = vmatpush.msra.mxu0 %v352
    %1538 = vmatpush.msra.mxu0 %v320
    %1539 = vmatpush.msra.mxu0 %v288
    %1540 = vmatpush.msra.mxu0 %v256
    %1541 = vmatpush.msra.mxu0 %v224
    %1542 = vmatpush.msra.mxu0 %v192
    %1543 = vmatmul.f32.gmra.mxu0 %v185
    %v1544 = vpop.f32.mrf.mxu0
    %v1545 = vadd.f32 %v905, %v1544
    %1546 = vdwg.mxu0
    %1547 = vmatpush.msra.mxu0 %v673
    %1548 = vmatpush.msra.mxu0 %v641
    %1549 = vmatpush.msra.mxu0 %v609
    %1550 = vmatpush.msra.mxu0 %v577
    %1551 = vmatpush.msra.mxu0 %v545
    %1552 = vmatpush.msra.mxu0 %v513
    %1553 = vmatpush.msra.mxu0 %v481
    %1554 = vmatpush.msra.mxu0 %v449
    %1555 = vmatpush.msra.mxu0 %v417
    %1556 = vmatpush.msra.mxu0 %v385
    %1557 = vmatpush.msra.mxu0 %v353
    %1558 = vmatpush.msra.mxu0 %v321
    %1559 = vmatpush.msra.mxu0 %v289
    %1560 = vmatpush.msra.mxu0 %v257
    %1561 = vmatpush.msra.mxu0 %v225
    %1562 = vmatpush.msra.mxu0 %v193
    %1563 = vmatmul.f32.gmra.mxu0 %v185
    %v1564 = vpop.f32.mrf.mxu0
    %v1565 = vadd.f32 %v925, %v1564
    %1566 = vdwg.mxu0
    %1567 = vmatpush.msra.mxu0 %v674
    %1568 = vmatpush.msra.mxu0 %v642
    %1569 = vmatpush.msra.mxu0 %v610
    %1570 = vmatpush.msra.mxu0 %v578
    %1571 = vmatpush.msra.mxu0 %v546
    %1572 = vmatpush.msra.mxu0 %v514
    %1573 = vmatpush.msra.mxu0 %v482
    %1574 = vmatpush.msra.mxu0 %v450
    %1575 = vmatpush.msra.mxu0 %v418
    %1576 = vmatpush.msra.mxu0 %v386
    %1577 = vmatpush.msra.mxu0 %v354
    %1578 = vmatpush.msra.mxu0 %v322
    %1579 = vmatpush.msra.mxu0 %v290
    %1580 = vmatpush.msra.mxu0 %v258
    %1581 = vmatpush.msra.mxu0 %v226
    %1582 = vmatpush.msra.mxu0 %v194
    %1583 = vmatmul.f32.gmra.mxu0 %v185
    %v1584 = vpop.f32.mrf.mxu0
    %v1585 = vadd.f32 %v945, %v1584
    %1586 = vdwg.mxu0
    %1587 = vmatpush.msra.mxu0 %v675
    %1588 = vmatpush.msra.mxu0 %v643
    %1589 = vmatpush.msra.mxu0 %v611
    %1590 = vmatpush.msra.mxu0 %v579
    %1591 = vmatpush.msra.mxu0 %v547
    %1592 = vmatpush.msra.mxu0 %v515
    %1593 = vmatpush.msra.mxu0 %v483
    %1594 = vmatpush.msra.mxu0 %v451
    %1595 = vmatpush.msra.mxu0 %v419
    %1596 = vmatpush.msra.mxu0 %v387
    %1597 = vmatpush.msra.mxu0 %v355
    %1598 = vmatpush.msra.mxu0 %v323
    %1599 = vmatpush.msra.mxu0 %v291
    %1600 = vmatpush.msra.mxu0 %v259
    %1601 = vmatpush.msra.mxu0 %v227
    %1602 = vmatpush.msra.mxu0 %v195
    %1603 = vmatmul.f32.gmra.mxu0 %v185
    %v1604 = vpop.f32.mrf.mxu0
    %v1605 = vadd.f32 %v965, %v1604
    %1606 = vdwg.mxu0
    %1607 = vmatpush.msra.mxu0 %v676
    %1608 = vmatpush.msra.mxu0 %v644
    %1609 = vmatpush.msra.mxu0 %v612
    %1610 = vmatpush.msra.mxu0 %v580
    %1611 = vmatpush.msra.mxu0 %v548
    %1612 = vmatpush.msra.mxu0 %v516
    %1613 = vmatpush.msra.mxu0 %v484
    %1614 = vmatpush.msra.mxu0 %v452
    %1615 = vmatpush.msra.mxu0 %v420
    %1616 = vmatpush.msra.mxu0 %v388
    %1617 = vmatpush.msra.mxu0 %v356
    %1618 = vmatpush.msra.mxu0 %v324
    %1619 = vmatpush.msra.mxu0 %v292
    %1620 = vmatpush.msra.mxu0 %v260
    %1621 = vmatpush.msra.mxu0 %v228
    %1622 = vmatpush.msra.mxu0 %v196
    %1623 = vmatmul.f32.gmra.mxu0 %v185
    %v1624 = vpop.f32.mrf.mxu0
    %v1625 = vadd.f32 %v985, %v1624
    %1626 = vdwg.mxu0
    %1627 = vmatpush.msra.mxu0 %v677
    %1628 = vmatpush.msra.mxu0 %v645
    %1629 = vmatpush.msra.mxu0 %v613
    %1630 = vmatpush.msra.mxu0 %v581
    %1631 = vmatpush.msra.mxu0 %v549
    %1632 = vmatpush.msra.mxu0 %v517
    %1633 = vmatpush.msra.mxu0 %v485
    %1634 = vmatpush.msra.mxu0 %v453
    %1635 = vmatpush.msra.mxu0 %v421
    %1636 = vmatpush.msra.mxu0 %v389
    %1637 = vmatpush.msra.mxu0 %v357
    %1638 = vmatpush.msra.mxu0 %v325
    %1639 = vmatpush.msra.mxu0 %v293
    %1640 = vmatpush.msra.mxu0 %v261
    %1641 = vmatpush.msra.mxu0 %v229
    %1642 = vmatpush.msra.mxu0 %v197
    %1643 = vmatmul.f32.gmra.mxu0 %v185
    %v1644 = vpop.f32.mrf.mxu0
    %v1645 = vadd.f32 %v1005, %v1644
    %1646 = vdwg.mxu0
    %1647 = vmatpush.msra.mxu0 %v678
    %1648 = vmatpush.msra.mxu0 %v646
    %1649 = vmatpush.msra.mxu0 %v614
    %1650 = vmatpush.msra.mxu0 %v582
    %1651 = vmatpush.msra.mxu0 %v550
    %1652 = vmatpush.msra.mxu0 %v518
    %1653 = vmatpush.msra.mxu0 %v486
    %1654 = vmatpush.msra.mxu0 %v454
    %1655 = vmatpush.msra.mxu0 %v422
    %1656 = vmatpush.msra.mxu0 %v390
    %1657 = vmatpush.msra.mxu0 %v358
    %1658 = vmatpush.msra.mxu0 %v326
    %1659 = vmatpush.msra.mxu0 %v294
    %1660 = vmatpush.msra.mxu0 %v262
    %1661 = vmatpush.msra.mxu0 %v230
    %1662 = vmatpush.msra.mxu0 %v198
    %1663 = vmatmul.f32.gmra.mxu0 %v185
    %v1664 = vpop.f32.mrf.mxu0
    %v1665 = vadd.f32 %v1025, %v1664
    %1666 = vdwg.mxu0
    %1667 = vmatpush.msra.mxu0 %v679
    %1668 = vmatpush.msra.mxu0 %v647
    %1669 = vmatpush.msra.mxu0 %v615
    %1670 = vmatpush.msra.mxu0 %v583
    %1671 = vmatpush.msra.mxu0 %v551
    %1672 = vmatpush.msra.mxu0 %v519
    %1673 = vmatpush.msra.mxu0 %v487
    %1674 = vmatpush.msra.mxu0 %v455
    %1675 = vmatpush.msra.mxu0 %v423
    %1676 = vmatpush.msra.mxu0 %v391
    %1677 = vmatpush.msra.mxu0 %v359
    %1678 = vmatpush.msra.mxu0 %v327
    %1679 = vmatpush.msra.mxu0 %v295
    %1680 = vmatpush.msra.mxu0 %v263
    %1681 = vmatpush.msra.mxu0 %v231
    %1682 = vmatpush.msra.mxu0 %v199
    %1683 = vmatmul.f32.gmra.mxu0 %v185
    %v1684 = vpop.f32.mrf.mxu0
    %v1685 = vadd.f32 %v1045, %v1684
    %1686 = vdwg.mxu0
    %1687 = vmatpush.msra.mxu0 %v680
    %1688 = vmatpush.msra.mxu0 %v648
    %1689 = vmatpush.msra.mxu0 %v616
    %1690 = vmatpush.msra.mxu0 %v584
    %1691 = vmatpush.msra.mxu0 %v552
    %1692 = vmatpush.msra.mxu0 %v520
    %1693 = vmatpush.msra.mxu0 %v488
    %1694 = vmatpush.msra.mxu0 %v456
    %1695 = vmatpush.msra.mxu0 %v424
    %1696 = vmatpush.msra.mxu0 %v392
    %1697 = vmatpush.msra.mxu0 %v360
    %1698 = vmatpush.msra.mxu0 %v328
    %1699 = vmatpush.msra.mxu0 %v296
    %1700 = vmatpush.msra.mxu0 %v264
    %1701 = vmatpush.msra.mxu0 %v232
    %1702 = vmatpush.msra.mxu0 %v200
    %1703 = vmatmul.f32.gmra.mxu0 %v185
    %v1704 = vpop.f32.mrf.mxu0
    %v1705 = vadd.f32 %v1065, %v1704
    %1706 = vdwg.mxu0
    %1707 = vmatpush.msra.mxu0 %v681
    %1708 = vmatpush.msra.mxu0 %v649
    %1709 = vmatpush.msra.mxu0 %v617
    %1710 = vmatpush.msra.mxu0 %v585
    %1711 = vmatpush.msra.mxu0 %v553
    %1712 = vmatpush.msra.mxu0 %v521
    %1713 = vmatpush.msra.mxu0 %v489
    %1714 = vmatpush.msra.mxu0 %v457
    %1715 = vmatpush.msra.mxu0 %v425
    %1716 = vmatpush.msra.mxu0 %v393
    %1717 = vmatpush.msra.mxu0 %v361
    %1718 = vmatpush.msra.mxu0 %v329
    %1719 = vmatpush.msra.mxu0 %v297
    %1720 = vmatpush.msra.mxu0 %v265
    %1721 = vmatpush.msra.mxu0 %v233
    %1722 = vmatpush.msra.mxu0 %v201
    %1723 = vmatmul.f32.gmra.mxu0 %v185
    %v1724 = vpop.f32.mrf.mxu0
    %v1725 = vadd.f32 %v1085, %v1724
    %1726 = vdwg.mxu0
    %1727 = vmatpush.msra.mxu0 %v682
    %1728 = vmatpush.msra.mxu0 %v650
    %1729 = vmatpush.msra.mxu0 %v618
    %1730 = vmatpush.msra.mxu0 %v586
    %1731 = vmatpush.msra.mxu0 %v554
    %1732 = vmatpush.msra.mxu0 %v522
    %1733 = vmatpush.msra.mxu0 %v490
    %1734 = vmatpush.msra.mxu0 %v458
    %1735 = vmatpush.msra.mxu0 %v426
    %1736 = vmatpush.msra.mxu0 %v394
    %1737 = vmatpush.msra.mxu0 %v362
    %1738 = vmatpush.msra.mxu0 %v330
    %1739 = vmatpush.msra.mxu0 %v298
    %1740 = vmatpush.msra.mxu0 %v266
    %1741 = vmatpush.msra.mxu0 %v234
    %1742 = vmatpush.msra.mxu0 %v202
    %1743 = vmatmul.f32.gmra.mxu0 %v185
    %v1744 = vpop.f32.mrf.mxu0
    %v1745 = vadd.f32 %v1105, %v1744
    %1746 = vdwg.mxu0
    %1747 = vmatpush.msra.mxu0 %v683
    %1748 = vmatpush.msra.mxu0 %v651
    %1749 = vmatpush.msra.mxu0 %v619
    %1750 = vmatpush.msra.mxu0 %v587
    %1751 = vmatpush.msra.mxu0 %v555
    %1752 = vmatpush.msra.mxu0 %v523
    %1753 = vmatpush.msra.mxu0 %v491
    %1754 = vmatpush.msra.mxu0 %v459
    %1755 = vmatpush.msra.mxu0 %v427
    %1756 = vmatpush.msra.mxu0 %v395
    %1757 = vmatpush.msra.mxu0 %v363
    %1758 = vmatpush.msra.mxu0 %v331
    %1759 = vmatpush.msra.mxu0 %v299
    %1760 = vmatpush.msra.mxu0 %v267
    %1761 = vmatpush.msra.mxu0 %v235
    %1762 = vmatpush.msra.mxu0 %v203
    %1763 = vmatmul.f32.gmra.mxu0 %v185
    %v1764 = vpop.f32.mrf.mxu0
    %v1765 = vadd.f32 %v1125, %v1764
    %1766 = vdwg.mxu0
    %1767 = vmatpush.msra.mxu0 %v684
    %1768 = vmatpush.msra.mxu0 %v652
    %1769 = vmatpush.msra.mxu0 %v620
    %1770 = vmatpush.msra.mxu0 %v588
    %1771 = vmatpush.msra.mxu0 %v556
    %1772 = vmatpush.msra.mxu0 %v524
    %1773 = vmatpush.msra.mxu0 %v492
    %1774 = vmatpush.msra.mxu0 %v460
    %1775 = vmatpush.msra.mxu0 %v428
    %1776 = vmatpush.msra.mxu0 %v396
    %1777 = vmatpush.msra.mxu0 %v364
    %1778 = vmatpush.msra.mxu0 %v332
    %1779 = vmatpush.msra.mxu0 %v300
    %1780 = vmatpush.msra.mxu0 %v268
    %1781 = vmatpush.msra.mxu0 %v236
    %1782 = vmatpush.msra.mxu0 %v204
    %1783 = vmatmul.f32.gmra.mxu0 %v185
    %v1784 = vpop.f32.mrf.mxu0
    %v1785 = vadd.f32 %v1145, %v1784
    %1786 = vdwg.mxu0
    %1787 = vmatpush.msra.mxu0 %v685
    %1788 = vmatpush.msra.mxu0 %v653
    %1789 = vmatpush.msra.mxu0 %v621
    %1790 = vmatpush.msra.mxu0 %v589
    %1791 = vmatpush.msra.mxu0 %v557
    %1792 = vmatpush.msra.mxu0 %v525
    %1793 = vmatpush.msra.mxu0 %v493
    %1794 = vmatpush.msra.mxu0 %v461
    %1795 = vmatpush.msra.mxu0 %v429
    %1796 = vmatpush.msra.mxu0 %v397
    %1797 = vmatpush.msra.mxu0 %v365
    %1798 = vmatpush.msra.mxu0 %v333
    %1799 = vmatpush.msra.mxu0 %v301
    %1800 = vmatpush.msra.mxu0 %v269
    %1801 = vmatpush.msra.mxu0 %v237
    %1802 = vmatpush.msra.mxu0 %v205
    %1803 = vmatmul.f32.gmra.mxu0 %v185
    %v1804 = vpop.f32.mrf.mxu0
    %v1805 = vadd.f32 %v1165, %v1804
    %1806 = vdwg.mxu0
    %1807 = vmatpush.msra.mxu0 %v686
    %1808 = vmatpush.msra.mxu0 %v654
    %1809 = vmatpush.msra.mxu0 %v622
    %1810 = vmatpush.msra.mxu0 %v590
    %1811 = vmatpush.msra.mxu0 %v558
    %1812 = vmatpush.msra.mxu0 %v526
    %1813 = vmatpush.msra.mxu0 %v494
    %1814 = vmatpush.msra.mxu0 %v462
    %1815 = vmatpush.msra.mxu0 %v430
    %1816 = vmatpush.msra.mxu0 %v398
    %1817 = vmatpush.msra.mxu0 %v366
    %1818 = vmatpush.msra.mxu0 %v334
    %1819 = vmatpush.msra.mxu0 %v302
    %1820 = vmatpush.msra.mxu0 %v270
    %1821 = vmatpush.msra.mxu0 %v238
    %1822 = vmatpush.msra.mxu0 %v206
    %1823 = vmatmul.f32.gmra.mxu0 %v185
    %v1824 = vpop.f32.mrf.mxu0
    %v1825 = vadd.f32 %v1185, %v1824
    %1826 = vdwg.mxu0
    %1827 = vmatpush.msra.mxu0 %v687
    %1828 = vmatpush.msra.mxu0 %v655
    %1829 = vmatpush.msra.mxu0 %v623
    %1830 = vmatpush.msra.mxu0 %v591
    %1831 = vmatpush.msra.mxu0 %v559
    %1832 = vmatpush.msra.mxu0 %v527
    %1833 = vmatpush.msra.mxu0 %v495
    %1834 = vmatpush.msra.mxu0 %v463
    %1835 = vmatpush.msra.mxu0 %v431
    %1836 = vmatpush.msra.mxu0 %v399
    %1837 = vmatpush.msra.mxu0 %v367
    %1838 = vmatpush.msra.mxu0 %v335
    %1839 = vmatpush.msra.mxu0 %v303
    %1840 = vmatpush.msra.mxu0 %v271
    %1841 = vmatpush.msra.mxu0 %v239
    %1842 = vmatpush.msra.mxu0 %v207
    %1843 = vmatmul.f32.gmra.mxu0 %v185
    %v1844 = vpop.f32.mrf.mxu0
    %v1845 = vadd.f32 %v1205, %v1844
    %1846 = vdwg.mxu0
    %1847 = vmatpush.msra.mxu0 %v688
    %1848 = vmatpush.msra.mxu0 %v656
    %1849 = vmatpush.msra.mxu0 %v624
    %1850 = vmatpush.msra.mxu0 %v592
    %1851 = vmatpush.msra.mxu0 %v560
    %1852 = vmatpush.msra.mxu0 %v528
    %1853 = vmatpush.msra.mxu0 %v496
    %1854 = vmatpush.msra.mxu0 %v464
    %1855 = vmatpush.msra.mxu0 %v432
    %1856 = vmatpush.msra.mxu0 %v400
    %1857 = vmatpush.msra.mxu0 %v368
    %1858 = vmatpush.msra.mxu0 %v336
    %1859 = vmatpush.msra.mxu0 %v304
    %1860 = vmatpush.msra.mxu0 %v272
    %1861 = vmatpush.msra.mxu0 %v240
    %1862 = vmatpush.msra.mxu0 %v208
    %1863 = vmatmul.f32.gmra.mxu0 %v185
    %v1864 = vpop.f32.mrf.mxu0
    %v1865 = vadd.f32 %v1225, %v1864
    %1866 = vdwg.mxu0
    %1867 = vmatpush.msra.mxu0 %v689
    %1868 = vmatpush.msra.mxu0 %v657
    %1869 = vmatpush.msra.mxu0 %v625
    %1870 = vmatpush.msra.mxu0 %v593
    %1871 = vmatpush.msra.mxu0 %v561
    %1872 = vmatpush.msra.mxu0 %v529
    %1873 = vmatpush.msra.mxu0 %v497
    %1874 = vmatpush.msra.mxu0 %v465
    %1875 = vmatpush.msra.mxu0 %v433
    %1876 = vmatpush.msra.mxu0 %v401
    %1877 = vmatpush.msra.mxu0 %v369
    %1878 = vmatpush.msra.mxu0 %v337
    %1879 = vmatpush.msra.mxu0 %v305
    %1880 = vmatpush.msra.mxu0 %v273
    %1881 = vmatpush.msra.mxu0 %v241
    %1882 = vmatpush.msra.mxu0 %v209
    %1883 = vmatmul.f32.gmra.mxu0 %v185
    %v1884 = vpop.f32.mrf.mxu0
    %v1885 = vadd.f32 %v1245, %v1884
    %1886 = vdwg.mxu0
    %1887 = vmatpush.msra.mxu0 %v690
    %1888 = vmatpush.msra.mxu0 %v658
    %1889 = vmatpush.msra.mxu0 %v626
    %1890 = vmatpush.msra.mxu0 %v594
    %1891 = vmatpush.msra.mxu0 %v562
    %1892 = vmatpush.msra.mxu0 %v530
    %1893 = vmatpush.msra.mxu0 %v498
    %1894 = vmatpush.msra.mxu0 %v466
    %1895 = vmatpush.msra.mxu0 %v434
    %1896 = vmatpush.msra.mxu0 %v402
    %1897 = vmatpush.msra.mxu0 %v370
    %1898 = vmatpush.msra.mxu0 %v338
    %1899 = vmatpush.msra.mxu0 %v306
    %1900 = vmatpush.msra.mxu0 %v274
    %1901 = vmatpush.msra.mxu0 %v242
    %1902 = vmatpush.msra.mxu0 %v210
    %1903 = vmatmul.f32.gmra.mxu0 %v185
    %v1904 = vpop.f32.mrf.mxu0
    %v1905 = vadd.f32 %v1265, %v1904
    %1906 = vdwg.mxu0
    %1907 = vmatpush.msra.mxu0 %v691
    %1908 = vmatpush.msra.mxu0 %v659
    %1909 = vmatpush.msra.mxu0 %v627
    %1910 = vmatpush.msra.mxu0 %v595
    %1911 = vmatpush.msra.mxu0 %v563
    %1912 = vmatpush.msra.mxu0 %v531
    %1913 = vmatpush.msra.mxu0 %v499
    %1914 = vmatpush.msra.mxu0 %v467
    %1915 = vmatpush.msra.mxu0 %v435
    %1916 = vmatpush.msra.mxu0 %v403
    %1917 = vmatpush.msra.mxu0 %v371
    %1918 = vmatpush.msra.mxu0 %v339
    %1919 = vmatpush.msra.mxu0 %v307
    %1920 = vmatpush.msra.mxu0 %v275
    %1921 = vmatpush.msra.mxu0 %v243
    %1922 = vmatpush.msra.mxu0 %v211
    %1923 = vmatmul.f32.gmra.mxu0 %v185
    %v1924 = vpop.f32.mrf.mxu0
    %v1925 = vadd.f32 %v1285, %v1924
    %1926 = vdwg.mxu0
    %1927 = vmatpush.msra.mxu0 %v692
    %1928 = vmatpush.msra.mxu0 %v660
    %1929 = vmatpush.msra.mxu0 %v628
    %1930 = vmatpush.msra.mxu0 %v596
    %1931 = vmatpush.msra.mxu0 %v564
    %1932 = vmatpush.msra.mxu0 %v532
    %1933 = vmatpush.msra.mxu0 %v500
    %1934 = vmatpush.msra.mxu0 %v468
    %1935 = vmatpush.msra.mxu0 %v436
    %1936 = vmatpush.msra.mxu0 %v404
    %1937 = vmatpush.msra.mxu0 %v372
    %1938 = vmatpush.msra.mxu0 %v340
    %1939 = vmatpush.msra.mxu0 %v308
    %1940 = vmatpush.msra.mxu0 %v276
    %1941 = vmatpush.msra.mxu0 %v244
    %1942 = vmatpush.msra.mxu0 %v212
    %1943 = vmatmul.f32.gmra.mxu0 %v185
    %v1944 = vpop.f32.mrf.mxu0
    %v1945 = vadd.f32 %v1305, %v1944
    %1946 = vdwg.mxu0
    %1947 = vmatpush.msra.mxu0 %v693
    %1948 = vmatpush.msra.mxu0 %v661
    %1949 = vmatpush.msra.mxu0 %v629
    %1950 = vmatpush.msra.mxu0 %v597
    %1951 = vmatpush.msra.mxu0 %v565
    %1952 = vmatpush.msra.mxu0 %v533
    %1953 = vmatpush.msra.mxu0 %v501
    %1954 = vmatpush.msra.mxu0 %v469
    %1955 = vmatpush.msra.mxu0 %v437
    %1956 = vmatpush.msra.mxu0 %v405
    %1957 = vmatpush.msra.mxu0 %v373
    %1958 = vmatpush.msra.mxu0 %v341
    %1959 = vmatpush.msra.mxu0 %v309
    %1960 = vmatpush.msra.mxu0 %v277
    %1961 = vmatpush.msra.mxu0 %v245
    %1962 = vmatpush.msra.mxu0 %v213
    %1963 = vmatmul.f32.gmra.mxu0 %v185
    %v1964 = vpop.f32.mrf.mxu0
    %v1965 = vadd.f32 %v1325, %v1964
    %1966 = vdwg.mxu0
    %1967 = vmatpush.msra.mxu0 %v694
    %1968 = vmatpush.msra.mxu0 %v662
    %1969 = vmatpush.msra.mxu0 %v630
    %1970 = vmatpush.msra.mxu0 %v598
    %1971 = vmatpush.msra.mxu0 %v566
    %1972 = vmatpush.msra.mxu0 %v534
    %1973 = vmatpush.msra.mxu0 %v502
    %1974 = vmatpush.msra.mxu0 %v470
    %1975 = vmatpush.msra.mxu0 %v438
    %1976 = vmatpush.msra.mxu0 %v406
    %1977 = vmatpush.msra.mxu0 %v374
    %1978 = vmatpush.msra.mxu0 %v342
    %1979 = vmatpush.msra.mxu0 %v310
    %1980 = vmatpush.msra.mxu0 %v278
    %1981 = vmatpush.msra.mxu0 %v246
    %1982 = vmatpush.msra.mxu0 %v214
    %1983 = vmatmul.f32.gmra.mxu0 %v185
    %v1984 = vpop.f32.mrf.mxu0
    %v1985 = vadd.f32 %v1345, %v1984
    %1986 = vdwg.mxu0
    %1987 = vmatpush.msra.mxu0 %v695
    %1988 = vmatpush.msra.mxu0 %v663
    %1989 = vmatpush.msra.mxu0 %v631
    %1990 = vmatpush.msra.mxu0 %v599
    %1991 = vmatpush.msra.mxu0 %v567
    %1992 = vmatpush.msra.mxu0 %v535
    %1993 = vmatpush.msra.mxu0 %v503
    %1994 = vmatpush.msra.mxu0 %v471
    %1995 = vmatpush.msra.mxu0 %v439
    %1996 = vmatpush.msra.mxu0 %v407
    %1997 = vmatpush.msra.mxu0 %v375
    %1998 = vmatpush.msra.mxu0 %v343
    %1999 = vmatpush.msra.mxu0 %v311
    %2000 = vmatpush.msra.mxu0 %v279
    %2001 = vmatpush.msra.mxu0 %v247
    %2002 = vmatpush.msra.mxu0 %v215
    %2003 = vmatmul.f32.gmra.mxu0 %v185
    %v2004 = vpop.f32.mrf.mxu0
    %v2005 = vadd.f32 %v1365, %v2004
    %2006 = vdwg.mxu0
    %2007 = vmatpush.msra.mxu0 %v696
    %2008 = vmatpush.msra.mxu0 %v664
    %2009 = vmatpush.msra.mxu0 %v632
    %2010 = vmatpush.msra.mxu0 %v600
    %2011 = vmatpush.msra.mxu0 %v568
    %2012 = vmatpush.msra.mxu0 %v536
    %2013 = vmatpush.msra.mxu0 %v504
    %2014 = vmatpush.msra.mxu0 %v472
    %2015 = vmatpush.msra.mxu0 %v440
    %2016 = vmatpush.msra.mxu0 %v408
    %2017 = vmatpush.msra.mxu0 %v376
    %2018 = vmatpush.msra.mxu0 %v344
    %2019 = vmatpush.msra.mxu0 %v312
    %2020 = vmatpush.msra.mxu0 %v280
    %2021 = vmatpush.msra.mxu0 %v248
    %2022 = vmatpush.msra.mxu0 %v216
    %2023 = vmatmul.f32.gmra.mxu0 %v185
    %v2024 = vpop.f32.mrf.mxu0
    %v2025 = vadd.f32 %v1385, %v2024
    %2026 = vdwg.mxu0
    %2027 = vmatpush.msra.mxu0 %v697
    %2028 = vmatpush.msra.mxu0 %v665
    %2029 = vmatpush.msra.mxu0 %v633
    %2030 = vmatpush.msra.mxu0 %v601
    %2031 = vmatpush.msra.mxu0 %v569
    %2032 = vmatpush.msra.mxu0 %v537
    %2033 = vmatpush.msra.mxu0 %v505
    %2034 = vmatpush.msra.mxu0 %v473
    %2035 = vmatpush.msra.mxu0 %v441
    %2036 = vmatpush.msra.mxu0 %v409
    %2037 = vmatpush.msra.mxu0 %v377
    %2038 = vmatpush.msra.mxu0 %v345
    %2039 = vmatpush.msra.mxu0 %v313
    %2040 = vmatpush.msra.mxu0 %v281
    %2041 = vmatpush.msra.mxu0 %v249
    %2042 = vmatpush.msra.mxu0 %v217
    %2043 = vmatmul.f32.gmra.mxu0 %v185
    %v2044 = vpop.f32.mrf.mxu0
    %v2045 = vadd.f32 %v1405, %v2044
    %2046 = vdwg.mxu0
    %v2047 = vld [vmem:[#allocation13] sm:$0xff]
    %v2048 = vld [vmem:[#allocation13 + $0x8] sm:$0xff]
    %v2049 = vld [vmem:[#allocation13 + $0x10] sm:$0xff]
    %v2050 = vld [vmem:[#allocation13 + $0x18] sm:$0xff]
    %v2055 = vperm.slane %v2047, 0
    %v2056 = vperm.slane %v2047, 1
    %v2057 = vperm.slane %v2047, 2
    %v2058 = vperm.slane %v2047, 3
    %v2059 = vperm.slane %v2047, 4
    %v2060 = vperm.slane %v2047, 5
    %v2061 = vperm.slane %v2047, 6
    %v2062 = vperm.slane %v2047, 7
    %v2063 = vperm.slane %v2048, 0
    %v2064 = vperm.slane %v2048, 1
    %v2065 = vperm.slane %v2048, 2
    %v2066 = vperm.slane %v2048, 3
    %v2067 = vperm.slane %v2048, 4
    %v2068 = vperm.slane %v2048, 5
    %v2069 = vperm.slane %v2048, 6
    %v2070 = vperm.slane %v2048, 7
    %v2071 = vperm.slane %v2049, 0
    %v2072 = vperm.slane %v2049, 1
    %v2073 = vperm.slane %v2049, 2
    %v2074 = vperm.slane %v2049, 3
    %v2075 = vperm.slane %v2049, 4
    %v2076 = vperm.slane %v2049, 5
    %v2077 = vperm.slane %v2049, 6
    %v2078 = vperm.slane %v2049, 7
    %v2079 = vperm.slane %v2050, 0
    %v2080 = vperm.slane %v2050, 1
    %v2081 = vperm.slane %v2050, 2
    %v2082 = vperm.slane %v2050, 3
    %v2083 = vperm.slane %v2050, 4
    %v2084 = vperm.slane %v2050, 5
    %v2085 = vperm.slane %v2050, 6
    %v2086 = vperm.slane %v2050, 7
    %v2119 = vadd.f32 %v1425, %v2055
    %v2120 = vadd.f32 %v1445, %v2056
    %v2121 = vadd.f32 %v1465, %v2057
    %v2122 = vadd.f32 %v1485, %v2058
    %v2123 = vadd.f32 %v1505, %v2059
    %v2124 = vadd.f32 %v1525, %v2060
    %v2125 = vadd.f32 %v1545, %v2061
    %v2126 = vadd.f32 %v1565, %v2062
    %v2127 = vadd.f32 %v1585, %v2063
    %v2128 = vadd.f32 %v1605, %v2064
    %v2129 = vadd.f32 %v1625, %v2065
    %v2130 = vadd.f32 %v1645, %v2066
    %v2131 = vadd.f32 %v1665, %v2067
    %v2132 = vadd.f32 %v1685, %v2068
    %v2133 = vadd.f32 %v1705, %v2069
    %v2134 = vadd.f32 %v1725, %v2070
    %v2135 = vadd.f32 %v1745, %v2071
    %v2136 = vadd.f32 %v1765, %v2072
    %v2137 = vadd.f32 %v1785, %v2073
    %v2138 = vadd.f32 %v1805, %v2074
    %v2139 = vadd.f32 %v1825, %v2075
    %v2140 = vadd.f32 %v1845, %v2076
    %v2141 = vadd.f32 %v1865, %v2077
    %v2142 = vadd.f32 %v1885, %v2078
    %v2143 = vadd.f32 %v1905, %v2079
    %v2144 = vadd.f32 %v1925, %v2080
    %v2145 = vadd.f32 %v1945, %v2081
    %v2146 = vadd.f32 %v1965, %v2082
    %v2147 = vadd.f32 %v1985, %v2083
    %v2148 = vadd.f32 %v2005, %v2084
    %v2149 = vadd.f32 %v2025, %v2085
    %v2150 = vadd.f32 %v2045, %v2086
    %v2151 = vmax.f32 %v2119, 0.0
    %v2152 = vmax.f32 %v2120, 0.0
    %v2153 = vmax.f32 %v2121, 0.0
    %v2154 = vmax.f32 %v2122, 0.0
    %v2155 = vmax.f32 %v2123, 0.0
    %v2156 = vmax.f32 %v2124, 0.0
    %v2157 = vmax.f32 %v2125, 0.0
    %v2158 = vmax.f32 %v2126, 0.0
    %v2159 = vmax.f32 %v2127, 0.0
    %v2160 = vmax.f32 %v2128, 0.0
    %v2161 = vmax.f32 %v2129, 0.0
    %v2162 = vmax.f32 %v2130, 0.0
    %v2163 = vmax.f32 %v2131, 0.0
    %v2164 = vmax.f32 %v2132, 0.0
    %v2165 = vmax.f32 %v2133, 0.0
    %v2166 = vmax.f32 %v2134, 0.0
    %v2167 = vmax.f32 %v2135, 0.0
    %v2168 = vmax.f32 %v2136, 0.0
    %v2169 = vmax.f32 %v2137, 0.0
    %v2170 = vmax.f32 %v2138, 0.0
    %v2171 = vmax.f32 %v2139, 0.0
    %v2172 = vmax.f32 %v2140, 0.0
    %v2173 = vmax.f32 %v2141, 0.0
    %v2174 = vmax.f32 %v2142, 0.0
    %v2175 = vmax.f32 %v2143, 0.0
    %v2176 = vmax.f32 %v2144, 0.0
    %v2177 = vmax.f32 %v2145, 0.0
    %v2178 = vmax.f32 %v2146, 0.0
    %v2179 = vmax.f32 %v2147, 0.0
    %v2180 = vmax.f32 %v2148, 0.0
    %v2181 = vmax.f32 %v2149, 0.0
    %v2182 = vmax.f32 %v2150, 0.0
    %2183 = vst [vmem:[#allocation2] sm:$0x3] %v2151
    %2184 = vst [vmem:[#allocation2 + $0x8] sm:$0x3] %v2152
    %2185 = vst [vmem:[#allocation2 + $0x10] sm:$0x3] %v2153
    %2186 = vst [vmem:[#allocation2 + $0x18] sm:$0x3] %v2154
    %2187 = vst [vmem:[#allocation2 + $0x20] sm:$0x3] %v2155
    %2188 = vst [vmem:[#allocation2 + $0x28] sm:$0x3] %v2156
    %2189 = vst [vmem:[#allocation2 + $0x30] sm:$0x3] %v2157
    %2190 = vst [vmem:[#allocation2 + $0x38] sm:$0x3] %v2158
    %v2199 = vrot.slane %v2159, 6
    %v2200 = vrot.slane %v2160, 6
    %v2201 = vrot.slane %v2161, 6
    %v2202 = vrot.slane %v2162, 6
    %v2203 = vrot.slane %v2163, 6
    %v2204 = vrot.slane %v2164, 6
    %v2205 = vrot.slane %v2165, 6
    %v2206 = vrot.slane %v2166, 6
    %2215 = vst [vmem:[#allocation2] sm:$0xc] %v2199
    %2216 = vst [vmem:[#allocation2 + $0x8] sm:$0xc] %v2200
    %2217 = vst [vmem:[#allocation2 + $0x10] sm:$0xc] %v2201
    %2218 = vst [vmem:[#allocation2 + $0x18] sm:$0xc] %v2202
    %2219 = vst [vmem:[#allocation2 + $0x20] sm:$0xc] %v2203
    %2220 = vst [vmem:[#allocation2 + $0x28] sm:$0xc] %v2204
    %2221 = vst [vmem:[#allocation2 + $0x30] sm:$0xc] %v2205
    %2222 = vst [vmem:[#allocation2 + $0x38] sm:$0xc] %v2206
    %v2231 = vrot.slane %v2167, 4
    %v2232 = vrot.slane %v2168, 4
    %v2233 = vrot.slane %v2169, 4
    %v2234 = vrot.slane %v2170, 4
    %v2235 = vrot.slane %v2171, 4
    %v2236 = vrot.slane %v2172, 4
    %v2237 = vrot.slane %v2173, 4
    %v2238 = vrot.slane %v2174, 4
    %2247 = vst [vmem:[#allocation2] sm:$0x30] %v2231
    %2248 = vst [vmem:[#allocation2 + $0x8] sm:$0x30] %v2232
    %2249 = vst [vmem:[#allocation2 + $0x10] sm:$0x30] %v2233
    %2250 = vst [vmem:[#allocation2 + $0x18] sm:$0x30] %v2234
    %2251 = vst [vmem:[#allocation2 + $0x20] sm:$0x30] %v2235
    %2252 = vst [vmem:[#allocation2 + $0x28] sm:$0x30] %v2236
    %2253 = vst [vmem:[#allocation2 + $0x30] sm:$0x30] %v2237
    %2254 = vst [vmem:[#allocation2 + $0x38] sm:$0x30] %v2238
    %v2263 = vrot.slane %v2175, 2
    %v2264 = vrot.slane %v2176, 2
    %v2265 = vrot.slane %v2177, 2
    %v2266 = vrot.slane %v2178, 2
    %v2267 = vrot.slane %v2179, 2
    %v2268 = vrot.slane %v2180, 2
    %v2269 = vrot.slane %v2181, 2
    %v2270 = vrot.slane %v2182, 2
    %2279 = vst [vmem:[#allocation2] sm:$0xc0] %v2263
    %2280 = vst [vmem:[#allocation2 + $0x8] sm:$0xc0] %v2264
    %2281 = vst [vmem:[#allocation2 + $0x10] sm:$0xc0] %v2265
    %2282 = vst [vmem:[#allocation2 + $0x18] sm:$0xc0] %v2266
    %2283 = vst [vmem:[#allocation2 + $0x20] sm:$0xc0] %v2267
    %2284 = vst [vmem:[#allocation2 + $0x28] sm:$0xc0] %v2268
    %2285 = vst [vmem:[#allocation2 + $0x30] sm:$0xc0] %v2269
    %2286 = vst [vmem:[#allocation2 + $0x38] sm:$0xc0] %v2270
    %v2287 = vld [vmem:[#allocation15] sm:$0xff]
    %v2288 = vld [vmem:[#allocation15 + $0x8] sm:$0xff]
    %v2289 = vld [vmem:[#allocation15 + $0x10] sm:$0xff]
    %v2290 = vld [vmem:[#allocation15 + $0x18] sm:$0xff]
    %v2291 = vld [vmem:[#allocation15 + $0x20] sm:$0xff]
    %v2292 = vld [vmem:[#allocation15 + $0x28] sm:$0xff]
    %v2293 = vld [vmem:[#allocation15 + $0x30] sm:$0xff]
    %v2294 = vld [vmem:[#allocation15 + $0x38] sm:$0xff]
    %v2295 = vld [vmem:[#allocation15 + $0x40] sm:$0xff]
    %v2296 = vld [vmem:[#allocation15 + $0x48] sm:$0xff]
    %v2297 = vld [vmem:[#allocation15 + $0x50] sm:$0xff]
    %v2298 = vld [vmem:[#allocation15 + $0x58] sm:$0xff]
    %v2299 = vld [vmem:[#allocation15 + $0x60] sm:$0xff]
    %v2300 = vld [vmem:[#allocation15 + $0x68] sm:$0xff]
    %v2301 = vld [vmem:[#allocation15 + $0x70] sm:$0xff]
    %v2302 = vld [vmem:[#allocation15 + $0x78] sm:$0xff]
    %v2303 = vld [vmem:[#allocation15 + $0x80] sm:$0xff]
    %v2304 = vld [vmem:[#allocation15 + $0x88] sm:$0xff]
    %v2305 = vld [vmem:[#allocation15 + $0x90] sm:$0xff]
    %v2306 = vld [vmem:[#allocation15 + $0x98] sm:$0xff]
    %v2307 = vld [vmem:[#allocation15 + $0xa0] sm:$0xff]
    %v2308 = vld [vmem:[#allocation15 + $0xa8] sm:$0xff]
    %v2309 = vld [vmem:[#allocation15 + $0xb0] sm:$0xff]
    %v2310 = vld [vmem:[#allocation15 + $0xb8] sm:$0xff]
    %v2311 = vld [vmem:[#allocation15 + $0xc0] sm:$0xff]
    %v2312 = vld [vmem:[#allocation15 + $0xc8] sm:$0xff]
    %v2313 = vld [vmem:[#allocation15 + $0xd0] sm:$0xff]
    %v2314 = vld [vmem:[#allocation15 + $0xd8] sm:$0xff]
    %v2315 = vld [vmem:[#allocation15 + $0xe0] sm:$0xff]
    %v2316 = vld [vmem:[#allocation15 + $0xe8] sm:$0xff]
    %v2317 = vld [vmem:[#allocation15 + $0xf0] sm:$0xff]
    %v2318 = vld [vmem:[#allocation15 + $0xf8] sm:$0xff]
    %v2319 = vld [vmem:[#allocation15 + $0x100] sm:$0xff]
    %v2320 = vld [vmem:[#allocation15 + $0x108] sm:$0xff]
    %v2321 = vld [vmem:[#allocation15 + $0x110] sm:$0xff]
    %v2322 = vld [vmem:[#allocation15 + $0x118] sm:$0xff]
    %v2323 = vld [vmem:[#allocation15 + $0x120] sm:$0xff]
    %v2324 = vld [vmem:[#allocation15 + $0x128] sm:$0xff]
    %v2325 = vld [vmem:[#allocation15 + $0x130] sm:$0xff]
    %v2326 = vld [vmem:[#allocation15 + $0x138] sm:$0xff]
    %v2327 = vld [vmem:[#allocation15 + $0x140] sm:$0xff]
    %v2328 = vld [vmem:[#allocation15 + $0x148] sm:$0xff]
    %v2329 = vld [vmem:[#allocation15 + $0x150] sm:$0xff]
    %v2330 = vld [vmem:[#allocation15 + $0x158] sm:$0xff]
    %v2331 = vld [vmem:[#allocation15 + $0x160] sm:$0xff]
    %v2332 = vld [vmem:[#allocation15 + $0x168] sm:$0xff]
    %v2333 = vld [vmem:[#allocation15 + $0x170] sm:$0xff]
    %v2334 = vld [vmem:[#allocation15 + $0x178] sm:$0xff]
    %v2335 = vld [vmem:[#allocation15 + $0x180] sm:$0xff]
    %v2336 = vld [vmem:[#allocation15 + $0x188] sm:$0xff]
    %v2337 = vld [vmem:[#allocation15 + $0x190] sm:$0xff]
    %v2338 = vld [vmem:[#allocation15 + $0x198] sm:$0xff]
    %v2339 = vld [vmem:[#allocation15 + $0x1a0] sm:$0xff]
    %v2340 = vld [vmem:[#allocation15 + $0x1a8] sm:$0xff]
    %v2341 = vld [vmem:[#allocation15 + $0x1b0] sm:$0xff]
    %v2342 = vld [vmem:[#allocation15 + $0x1b8] sm:$0xff]
    %v2343 = vld [vmem:[#allocation15 + $0x1c0] sm:$0xff]
    %v2344 = vld [vmem:[#allocation15 + $0x1c8] sm:$0xff]
    %v2345 = vld [vmem:[#allocation15 + $0x1d0] sm:$0xff]
    %v2346 = vld [vmem:[#allocation15 + $0x1d8] sm:$0xff]
    %v2347 = vld [vmem:[#allocation15 + $0x1e0] sm:$0xff]
    %v2348 = vld [vmem:[#allocation15 + $0x1e8] sm:$0xff]
    %v2349 = vld [vmem:[#allocation15 + $0x1f0] sm:$0xff]
    %v2350 = vld [vmem:[#allocation15 + $0x1f8] sm:$0xff]
    %v2351 = vld [vmem:[#allocation15 + $0x200] sm:$0xff]
    %v2352 = vld [vmem:[#allocation15 + $0x208] sm:$0xff]
    %v2353 = vld [vmem:[#allocation15 + $0x210] sm:$0xff]
    %v2354 = vld [vmem:[#allocation15 + $0x218] sm:$0xff]
    %v2355 = vld [vmem:[#allocation15 + $0x220] sm:$0xff]
    %v2356 = vld [vmem:[#allocation15 + $0x228] sm:$0xff]
    %v2357 = vld [vmem:[#allocation15 + $0x230] sm:$0xff]
    %v2358 = vld [vmem:[#allocation15 + $0x238] sm:$0xff]
    %v2359 = vld [vmem:[#allocation15 + $0x240] sm:$0xff]
    %v2360 = vld [vmem:[#allocation15 + $0x248] sm:$0xff]
    %v2361 = vld [vmem:[#allocation15 + $0x250] sm:$0xff]
    %v2362 = vld [vmem:[#allocation15 + $0x258] sm:$0xff]
    %v2363 = vld [vmem:[#allocation15 + $0x260] sm:$0xff]
    %v2364 = vld [vmem:[#allocation15 + $0x268] sm:$0xff]
    %v2365 = vld [vmem:[#allocation15 + $0x270] sm:$0xff]
    %v2366 = vld [vmem:[#allocation15 + $0x278] sm:$0xff]
    %v2367 = vld [vmem:[#allocation15 + $0x280] sm:$0xff]
    %v2368 = vld [vmem:[#allocation15 + $0x288] sm:$0xff]
    %v2369 = vld [vmem:[#allocation15 + $0x290] sm:$0xff]
    %v2370 = vld [vmem:[#allocation15 + $0x298] sm:$0xff]
    %v2371 = vld [vmem:[#allocation15 + $0x2a0] sm:$0xff]
    %v2372 = vld [vmem:[#allocation15 + $0x2a8] sm:$0xff]
    %v2373 = vld [vmem:[#allocation15 + $0x2b0] sm:$0xff]
    %v2374 = vld [vmem:[#allocation15 + $0x2b8] sm:$0xff]
    %v2375 = vld [vmem:[#allocation15 + $0x2c0] sm:$0xff]
    %v2376 = vld [vmem:[#allocation15 + $0x2c8] sm:$0xff]
    %v2377 = vld [vmem:[#allocation15 + $0x2d0] sm:$0xff]
    %v2378 = vld [vmem:[#allocation15 + $0x2d8] sm:$0xff]
    %v2379 = vld [vmem:[#allocation15 + $0x2e0] sm:$0xff]
    %v2380 = vld [vmem:[#allocation15 + $0x2e8] sm:$0xff]
    %v2381 = vld [vmem:[#allocation15 + $0x2f0] sm:$0xff]
    %v2382 = vld [vmem:[#allocation15 + $0x2f8] sm:$0xff]
    %v2383 = vld [vmem:[#allocation15 + $0x300] sm:$0xff]
    %v2384 = vld [vmem:[#allocation15 + $0x308] sm:$0xff]
    %v2385 = vld [vmem:[#allocation15 + $0x310] sm:$0xff]
    %v2386 = vld [vmem:[#allocation15 + $0x318] sm:$0xff]
    %v2387 = vld [vmem:[#allocation15 + $0x320] sm:$0xff]
    %v2388 = vld [vmem:[#allocation15 + $0x328] sm:$0xff]
    %v2389 = vld [vmem:[#allocation15 + $0x330] sm:$0xff]
    %v2390 = vld [vmem:[#allocation15 + $0x338] sm:$0xff]
    %v2391 = vld [vmem:[#allocation15 + $0x340] sm:$0xff]
    %v2392 = vld [vmem:[#allocation15 + $0x348] sm:$0xff]
    %v2393 = vld [vmem:[#allocation15 + $0x350] sm:$0xff]
    %v2394 = vld [vmem:[#allocation15 + $0x358] sm:$0xff]
    %v2395 = vld [vmem:[#allocation15 + $0x360] sm:$0xff]
    %v2396 = vld [vmem:[#allocation15 + $0x368] sm:$0xff]
    %v2397 = vld [vmem:[#allocation15 + $0x370] sm:$0xff]
    %v2398 = vld [vmem:[#allocation15 + $0x378] sm:$0xff]
    %v2399 = vld [vmem:[#allocation15 + $0x380] sm:$0xff]
    %v2400 = vld [vmem:[#allocation15 + $0x388] sm:$0xff]
    %v2401 = vld [vmem:[#allocation15 + $0x390] sm:$0xff]
    %v2402 = vld [vmem:[#allocation15 + $0x398] sm:$0xff]
    %v2403 = vld [vmem:[#allocation15 + $0x3a0] sm:$0xff]
    %v2404 = vld [vmem:[#allocation15 + $0x3a8] sm:$0xff]
    %v2405 = vld [vmem:[#allocation15 + $0x3b0] sm:$0xff]
    %v2406 = vld [vmem:[#allocation15 + $0x3b8] sm:$0xff]
    %v2407 = vld [vmem:[#allocation15 + $0x3c0] sm:$0xff]
    %v2408 = vld [vmem:[#allocation15 + $0x3c8] sm:$0xff]
    %v2409 = vld [vmem:[#allocation15 + $0x3d0] sm:$0xff]
    %v2410 = vld [vmem:[#allocation15 + $0x3d8] sm:$0xff]
    %v2411 = vld [vmem:[#allocation15 + $0x3e0] sm:$0xff]
    %v2412 = vld [vmem:[#allocation15 + $0x3e8] sm:$0xff]
    %v2413 = vld [vmem:[#allocation15 + $0x3f0] sm:$0xff]
    %v2414 = vld [vmem:[#allocation15 + $0x3f8] sm:$0xff]
    %v2415 = vld [vmem:[#allocation16] sm:$0xf]
    %v2416 = vld [vmem:[#allocation2] sm:$0xff]
    %v2417 = vld [vmem:[#allocation2 + $0x8] sm:$0xff]
    %v2419 = vperm.slane %v2415, 0
    %v2420 = vperm.slane %v2415, 1
    %v2421 = vperm.slane %v2415, 2
    %v2422 = vperm.slane %v2415, 3
    %2427 = vmatpush.msra.mxu0 %v2347
    %2428 = vmatpush.msra.mxu0 %v2343
    %2429 = vmatpush.msra.mxu0 %v2339
    %2430 = vmatpush.msra.mxu0 %v2335
    %2431 = vmatpush.msra.mxu0 %v2331
    %2432 = vmatpush.msra.mxu0 %v2327
    %2433 = vmatpush.msra.mxu0 %v2323
    %2434 = vmatpush.msra.mxu0 %v2319
    %2435 = vmatpush.msra.mxu0 %v2315
    %2436 = vmatpush.msra.mxu0 %v2311
    %2437 = vmatpush.msra.mxu0 %v2307
    %2438 = vmatpush.msra.mxu0 %v2303
    %2439 = vmatpush.msra.mxu0 %v2299
    %2440 = vmatpush.msra.mxu0 %v2295
    %2441 = vmatpush.msra.mxu0 %v2291
    %2442 = vmatpush.msra.mxu0 %v2287
    %2443 = vmatmul.f32.gmra.mxu0 %v2416
    %v2444 = vpop.f32.mrf.mxu0
    %v2445 = vadd.f32 %v2419, %v2444
    %2446 = vdwg.mxu0
    %2447 = vmatpush.msra.mxu0 %v2411
    %2448 = vmatpush.msra.mxu0 %v2407
    %2449 = vmatpush.msra.mxu0 %v2403
    %2450 = vmatpush.msra.mxu0 %v2399
    %2451 = vmatpush.msra.mxu0 %v2395
    %2452 = vmatpush.msra.mxu0 %v2391
    %2453 = vmatpush.msra.mxu0 %v2387
    %2454 = vmatpush.msra.mxu0 %v2383
    %2455 = vmatpush.msra.mxu0 %v2379
    %2456 = vmatpush.msra.mxu0 %v2375
    %2457 = vmatpush.msra.mxu0 %v2371
    %2458 = vmatpush.msra.mxu0 %v2367
    %2459 = vmatpush.msra.mxu0 %v2363
    %2460 = vmatpush.msra.mxu0 %v2359
    %2461 = vmatpush.msra.mxu0 %v2355
    %2462 = vmatpush.msra.mxu0 %v2351
    %2463 = vmatmul.f32.gmra.mxu0 %v2417
    %v2464 = vpop.f32.mrf.mxu0
    %v2465 = vadd.f32 %v2445, %v2464
    %2466 = vdwg.mxu0
    %2467 = vmatpush.msra.mxu0 %v2348
    %2468 = vmatpush.msra.mxu0 %v2344
    %2469 = vmatpush.msra.mxu0 %v2340
    %2470 = vmatpush.msra.mxu0 %v2336
    %2471 = vmatpush.msra.mxu0 %v2332
    %2472 = vmatpush.msra.mxu0 %v2328
    %2473 = vmatpush.msra.mxu0 %v2324
    %2474 = vmatpush.msra.mxu0 %v2320
    %2475 = vmatpush.msra.mxu0 %v2316
    %2476 = vmatpush.msra.mxu0 %v2312
    %2477 = vmatpush.msra.mxu0 %v2308
    %2478 = vmatpush.msra.mxu0 %v2304
    %2479 = vmatpush.msra.mxu0 %v2300
    %2480 = vmatpush.msra.mxu0 %v2296
    %2481 = vmatpush.msra.mxu0 %v2292
    %2482 = vmatpush.msra.mxu0 %v2288
    %2483 = vmatmul.f32.gmra.mxu0 %v2416
    %v2484 = vpop.f32.mrf.mxu0
    %v2485 = vadd.f32 %v2420, %v2484
    %2486 = vdwg.mxu0
    %2487 = vmatpush.msra.mxu0 %v2412
    %2488 = vmatpush.msra.mxu0 %v2408
    %2489 = vmatpush.msra.mxu0 %v2404
    %2490 = vmatpush.msra.mxu0 %v2400
    %2491 = vmatpush.msra.mxu0 %v2396
    %2492 = vmatpush.msra.mxu0 %v2392
    %2493 = vmatpush.msra.mxu0 %v2388
    %2494 = vmatpush.msra.mxu0 %v2384
    %2495 = vmatpush.msra.mxu0 %v2380
    %2496 = vmatpush.msra.mxu0 %v2376
    %2497 = vmatpush.msra.mxu0 %v2372
    %2498 = vmatpush.msra.mxu0 %v2368
    %2499 = vmatpush.msra.mxu0 %v2364
    %2500 = vmatpush.msra.mxu0 %v2360
    %2501 = vmatpush.msra.mxu0 %v2356
    %2502 = vmatpush.msra.mxu0 %v2352
    %2503 = vmatmul.f32.gmra.mxu0 %v2417
    %v2504 = vpop.f32.mrf.mxu0
    %v2505 = vadd.f32 %v2485, %v2504
    %2506 = vdwg.mxu0
    %2507 = vmatpush.msra.mxu0 %v2349
    %2508 = vmatpush.msra.mxu0 %v2345
    %2509 = vmatpush.msra.mxu0 %v2341
    %2510 = vmatpush.msra.mxu0 %v2337
    %2511 = vmatpush.msra.mxu0 %v2333
    %2512 = vmatpush.msra.mxu0 %v2329
    %2513 = vmatpush.msra.mxu0 %v2325
    %2514 = vmatpush.msra.mxu0 %v2321
    %2515 = vmatpush.msra.mxu0 %v2317
    %2516 = vmatpush.msra.mxu0 %v2313
    %2517 = vmatpush.msra.mxu0 %v2309
    %2518 = vmatpush.msra.mxu0 %v2305
    %2519 = vmatpush.msra.mxu0 %v2301
    %2520 = vmatpush.msra.mxu0 %v2297
    %2521 = vmatpush.msra.mxu0 %v2293
    %2522 = vmatpush.msra.mxu0 %v2289
    %2523 = vmatmul.f32.gmra.mxu0 %v2416
    %v2524 = vpop.f32.mrf.mxu0
    %v2525 = vadd.f32 %v2421, %v2524
    %2526 = vdwg.mxu0
    %2527 = vmatpush.msra.mxu0 %v2413
    %2528 = vmatpush.msra.mxu0 %v2409
    %2529 = vmatpush.msra.mxu0 %v2405
    %2530 = vmatpush.msra.mxu0 %v2401
    %2531 = vmatpush.msra.mxu0 %v2397
    %2532 = vmatpush.msra.mxu0 %v2393
    %2533 = vmatpush.msra.mxu0 %v2389
    %2534 = vmatpush.msra.mxu0 %v2385
    %2535 = vmatpush.msra.mxu0 %v2381
    %2536 = vmatpush.msra.mxu0 %v2377
    %2537 = vmatpush.msra.mxu0 %v2373
    %2538 = vmatpush.msra.mxu0 %v2369
    %2539 = vmatpush.msra.mxu0 %v2365
    %2540 = vmatpush.msra.mxu0 %v2361
    %2541 = vmatpush.msra.mxu0 %v2357
    %2542 = vmatpush.msra.mxu0 %v2353
    %2543 = vmatmul.f32.gmra.mxu0 %v2417
    %v2544 = vpop.f32.mrf.mxu0
    %v2545 = vadd.f32 %v2525, %v2544
    %2546 = vdwg.mxu0
    %2547 = vmatpush.msra.mxu0 %v2350
    %2548 = vmatpush.msra.mxu0 %v2346
    %2549 = vmatpush.msra.mxu0 %v2342
    %2550 = vmatpush.msra.mxu0 %v2338
    %2551 = vmatpush.msra.mxu0 %v2334
    %2552 = vmatpush.msra.mxu0 %v2330
    %2553 = vmatpush.msra.mxu0 %v2326
    %2554 = vmatpush.msra.mxu0 %v2322
    %2555 = vmatpush.msra.mxu0 %v2318
    %2556 = vmatpush.msra.mxu0 %v2314
    %2557 = vmatpush.msra.mxu0 %v2310
    %2558 = vmatpush.msra.mxu0 %v2306
    %2559 = vmatpush.msra.mxu0 %v2302
    %2560 = vmatpush.msra.mxu0 %v2298
    %2561 = vmatpush.msra.mxu0 %v2294
    %2562 = vmatpush.msra.mxu0 %v2290
    %2563 = vmatmul.f32.gmra.mxu0 %v2416
    %v2564 = vpop.f32.mrf.mxu0
    %v2565 = vadd.f32 %v2422, %v2564
    %2566 = vdwg.mxu0
    %2567 = vmatpush.msra.mxu0 %v2414
    %2568 = vmatpush.msra.mxu0 %v2410
    %2569 = vmatpush.msra.mxu0 %v2406
    %2570 = vmatpush.msra.mxu0 %v2402
    %2571 = vmatpush.msra.mxu0 %v2398
    %2572 = vmatpush.msra.mxu0 %v2394
    %2573 = vmatpush.msra.mxu0 %v2390
    %2574 = vmatpush.msra.mxu0 %v2386
    %2575 = vmatpush.msra.mxu0 %v2382
    %2576 = vmatpush.msra.mxu0 %v2378
    %2577 = vmatpush.msra.mxu0 %v2374
    %2578 = vmatpush.msra.mxu0 %v2370
    %2579 = vmatpush.msra.mxu0 %v2366
    %2580 = vmatpush.msra.mxu0 %v2362
    %2581 = vmatpush.msra.mxu0 %v2358
    %2582 = vmatpush.msra.mxu0 %v2354
    %2583 = vmatmul.f32.gmra.mxu0 %v2417
    %v2584 = vpop.f32.mrf.mxu0
    %v2585 = vadd.f32 %v2565, %v2584
    %2586 = vdwg.mxu0
    %2587 = vst [vmem:[#allocation3] sm:$0xff] %v2465
    %2588 = vst [vmem:[#allocation3 + $0x8] sm:$0xff] %v2505
    %2589 = vst [vmem:[#allocation3 + $0x40] sm:$0xff] %v2545
    %2590 = vst [vmem:[#allocation3 + $0x48] sm:$0xff] %v2585
    %v2591 = vld [vmem:[#allocation2 + $0x10] sm:$0xff]
    %v2592 = vld [vmem:[#allocation2 + $0x18] sm:$0xff]
    %2593 = vmatpush.msra.mxu0 %v2347
    %2594 = vmatpush.msra.mxu0 %v2343
    %2595 = vmatpush.msra.mxu0 %v2339
    %2596 = vmatpush.msra.mxu0 %v2335
    %2597 = vmatpush.msra.mxu0 %v2331
    %2598 = vmatpush.msra.mxu0 %v2327
    %2599 = vmatpush.msra.mxu0 %v2323
    %2600 = vmatpush.msra.mxu0 %v2319
    %2601 = vmatpush.msra.mxu0 %v2315
    %2602 = vmatpush.msra.mxu0 %v2311
    %2603 = vmatpush.msra.mxu0 %v2307
    %2604 = vmatpush.msra.mxu0 %v2303
    %2605 = vmatpush.msra.mxu0 %v2299
    %2606 = vmatpush.msra.mxu0 %v2295
    %2607 = vmatpush.msra.mxu0 %v2291
    %2608 = vmatpush.msra.mxu0 %v2287
    %2609 = vmatmul.f32.gmra.mxu0 %v2591
    %v2610 = vpop.f32.mrf.mxu0
    %v2611 = vadd.f32 %v2419, %v2610
    %2612 = vdwg.mxu0
    %2613 = vmatpush.msra.mxu0 %v2411
    %2614 = vmatpush.msra.mxu0 %v2407
    %2615 = vmatpush.msra.mxu0 %v2403
    %2616 = vmatpush.msra.mxu0 %v2399
    %2617 = vmatpush.msra.mxu0 %v2395
    %2618 = vmatpush.msra.mxu0 %v2391
    %2619 = vmatpush.msra.mxu0 %v2387
    %2620 = vmatpush.msra.mxu0 %v2383
    %2621 = vmatpush.msra.mxu0 %v2379
    %2622 = vmatpush.msra.mxu0 %v2375
    %2623 = vmatpush.msra.mxu0 %v2371
    %2624 = vmatpush.msra.mxu0 %v2367
    %2625 = vmatpush.msra.mxu0 %v2363
    %2626 = vmatpush.msra.mxu0 %v2359
    %2627 = vmatpush.msra.mxu0 %v2355
    %2628 = vmatpush.msra.mxu0 %v2351
    %2629 = vmatmul.f32.gmra.mxu0 %v2592
    %v2630 = vpop.f32.mrf.mxu0
    %v2631 = vadd.f32 %v2611, %v2630
    %2632 = vdwg.mxu0
    %2633 = vmatpush.msra.mxu0 %v2348
    %2634 = vmatpush.msra.mxu0 %v2344
    %2635 = vmatpush.msra.mxu0 %v2340
    %2636 = vmatpush.msra.mxu0 %v2336
    %2637 = vmatpush.msra.mxu0 %v2332
    %2638 = vmatpush.msra.mxu0 %v2328
    %2639 = vmatpush.msra.mxu0 %v2324
    %2640 = vmatpush.msra.mxu0 %v2320
    %2641 = vmatpush.msra.mxu0 %v2316
    %2642 = vmatpush.msra.mxu0 %v2312
    %2643 = vmatpush.msra.mxu0 %v2308
    %2644 = vmatpush.msra.mxu0 %v2304
    %2645 = vmatpush.msra.mxu0 %v2300
    %2646 = vmatpush.msra.mxu0 %v2296
    %2647 = vmatpush.msra.mxu0 %v2292
    %2648 = vmatpush.msra.mxu0 %v2288
    %2649 = vmatmul.f32.gmra.mxu0 %v2591
    %v2650 = vpop.f32.mrf.mxu0
    %v2651 = vadd.f32 %v2420, %v2650
    %2652 = vdwg.mxu0
    %2653 = vmatpush.msra.mxu0 %v2412
    %2654 = vmatpush.msra.mxu0 %v2408
    %2655 = vmatpush.msra.mxu0 %v2404
    %2656 = vmatpush.msra.mxu0 %v2400
    %2657 = vmatpush.msra.mxu0 %v2396
    %2658 = vmatpush.msra.mxu0 %v2392
    %2659 = vmatpush.msra.mxu0 %v2388
    %2660 = vmatpush.msra.mxu0 %v2384
    %2661 = vmatpush.msra.mxu0 %v2380
    %2662 = vmatpush.msra.mxu0 %v2376
    %2663 = vmatpush.msra.mxu0 %v2372
    %2664 = vmatpush.msra.mxu0 %v2368
    %2665 = vmatpush.msra.mxu0 %v2364
    %2666 = vmatpush.msra.mxu0 %v2360
    %2667 = vmatpush.msra.mxu0 %v2356
    %2668 = vmatpush.msra.mxu0 %v2352
    %2669 = vmatmul.f32.gmra.mxu0 %v2592
    %v2670 = vpop.f32.mrf.mxu0
    %v2671 = vadd.f32 %v2651, %v2670
    %2672 = vdwg.mxu0
    %2673 = vmatpush.msra.mxu0 %v2349
    %2674 = vmatpush.msra.mxu0 %v2345
    %2675 = vmatpush.msra.mxu0 %v2341
    %2676 = vmatpush.msra.mxu0 %v2337
    %2677 = vmatpush.msra.mxu0 %v2333
    %2678 = vmatpush.msra.mxu0 %v2329
    %2679 = vmatpush.msra.mxu0 %v2325
    %2680 = vmatpush.msra.mxu0 %v2321
    %2681 = vmatpush.msra.mxu0 %v2317
    %2682 = vmatpush.msra.mxu0 %v2313
    %2683 = vmatpush.msra.mxu0 %v2309
    %2684 = vmatpush.msra.mxu0 %v2305
    %2685 = vmatpush.msra.mxu0 %v2301
    %2686 = vmatpush.msra.mxu0 %v2297
    %2687 = vmatpush.msra.mxu0 %v2293
    %2688 = vmatpush.msra.mxu0 %v2289
    %2689 = vmatmul.f32.gmra.mxu0 %v2591
    %v2690 = vpop.f32.mrf.mxu0
    %v2691 = vadd.f32 %v2421, %v2690
    %2692 = vdwg.mxu0
    %2693 = vmatpush.msra.mxu0 %v2413
    %2694 = vmatpush.msra.mxu0 %v2409
    %2695 = vmatpush.msra.mxu0 %v2405
    %2696 = vmatpush.msra.mxu0 %v2401
    %2697 = vmatpush.msra.mxu0 %v2397
    %2698 = vmatpush.msra.mxu0 %v2393
    %2699 = vmatpush.msra.mxu0 %v2389
    %2700 = vmatpush.msra.mxu0 %v2385
    %2701 = vmatpush.msra.mxu0 %v2381
    %2702 = vmatpush.msra.mxu0 %v2377
    %2703 = vmatpush.msra.mxu0 %v2373
    %2704 = vmatpush.msra.mxu0 %v2369
    %2705 = vmatpush.msra.mxu0 %v2365
    %2706 = vmatpush.msra.mxu0 %v2361
    %2707 = vmatpush.msra.mxu0 %v2357
    %2708 = vmatpush.msra.mxu0 %v2353
    %2709 = vmatmul.f32.gmra.mxu0 %v2592
    %v2710 = vpop.f32.mrf.mxu0
    %v2711 = vadd.f32 %v2691, %v2710
    %2712 = vdwg.mxu0
    %2713 = vmatpush.msra.mxu0 %v2350
    %2714 = vmatpush.msra.mxu0 %v2346
    %2715 = vmatpush.msra.mxu0 %v2342
    %2716 = vmatpush.msra.mxu0 %v2338
    %2717 = vmatpush.msra.mxu0 %v2334
    %2718 = vmatpush.msra.mxu0 %v2330
    %2719 = vmatpush.msra.mxu0 %v2326
    %2720 = vmatpush.msra.mxu0 %v2322
    %2721 = vmatpush.msra.mxu0 %v2318
    %2722 = vmatpush.msra.mxu0 %v2314
    %2723 = vmatpush.msra.mxu0 %v2310
    %2724 = vmatpush.msra.mxu0 %v2306
    %2725 = vmatpush.msra.mxu0 %v2302
    %2726 = vmatpush.msra.mxu0 %v2298
    %2727 = vmatpush.msra.mxu0 %v2294
    %2728 = vmatpush.msra.mxu0 %v2290
    %2729 = vmatmul.f32.gmra.mxu0 %v2591
    %v2730 = vpop.f32.mrf.mxu0
    %v2731 = vadd.f32 %v2422, %v2730
    %2732 = vdwg.mxu0
    %2733 = vmatpush.msra.mxu0 %v2414
    %2734 = vmatpush.msra.mxu0 %v2410
    %2735 = vmatpush.msra.mxu0 %v2406
    %2736 = vmatpush.msra.mxu0 %v2402
    %2737 = vmatpush.msra.mxu0 %v2398
    %2738 = vmatpush.msra.mxu0 %v2394
    %2739 = vmatpush.msra.mxu0 %v2390
    %2740 = vmatpush.msra.mxu0 %v2386
    %2741 = vmatpush.msra.mxu0 %v2382
    %2742 = vmatpush.msra.mxu0 %v2378
    %2743 = vmatpush.msra.mxu0 %v2374
    %2744 = vmatpush.msra.mxu0 %v2370
    %2745 = vmatpush.msra.mxu0 %v2366
    %2746 = vmatpush.msra.mxu0 %v2362
    %2747 = vmatpush.msra.mxu0 %v2358
    %2748 = vmatpush.msra.mxu0 %v2354
    %2749 = vmatmul.f32.gmra.mxu0 %v2592
    %v2750 = vpop.f32.mrf.mxu0
    %v2751 = vadd.f32 %v2731, %v2750
    %2752 = vdwg.mxu0
    %2753 = vst [vmem:[#allocation3 + $0x10] sm:$0xff] %v2631
    %2754 = vst [vmem:[#allocation3 + $0x18] sm:$0xff] %v2671
    %2755 = vst [vmem:[#allocation3 + $0x50] sm:$0xff] %v2711
    %2756 = vst [vmem:[#allocation3 + $0x58] sm:$0xff] %v2751
    %v2757 = vld [vmem:[#allocation2 + $0x20] sm:$0xff]
    %v2758 = vld [vmem:[#allocation2 + $0x28] sm:$0xff]
    %2759 = vmatpush.msra.mxu0 %v2347
    %2760 = vmatpush.msra.mxu0 %v2343
    %2761 = vmatpush.msra.mxu0 %v2339
    %2762 = vmatpush.msra.mxu0 %v2335
    %2763 = vmatpush.msra.mxu0 %v2331
    %2764 = vmatpush.msra.mxu0 %v2327
    %2765 = vmatpush.msra.mxu0 %v2323
    %2766 = vmatpush.msra.mxu0 %v2319
    %2767 = vmatpush.msra.mxu0 %v2315
    %2768 = vmatpush.msra.mxu0 %v2311
    %2769 = vmatpush.msra.mxu0 %v2307
    %2770 = vmatpush.msra.mxu0 %v2303
    %2771 = vmatpush.msra.mxu0 %v2299
    %2772 = vmatpush.msra.mxu0 %v2295
    %2773 = vmatpush.msra.mxu0 %v2291
    %2774 = vmatpush.msra.mxu0 %v2287
    %2775 = vmatmul.f32.gmra.mxu0 %v2757
    %v2776 = vpop.f32.mrf.mxu0
    %v2777 = vadd.f32 %v2419, %v2776
    %2778 = vdwg.mxu0
    %2779 = vmatpush.msra.mxu0 %v2411
    %2780 = vmatpush.msra.mxu0 %v2407
    %2781 = vmatpush.msra.mxu0 %v2403
    %2782 = vmatpush.msra.mxu0 %v2399
    %2783 = vmatpush.msra.mxu0 %v2395
    %2784 = vmatpush.msra.mxu0 %v2391
    %2785 = vmatpush.msra.mxu0 %v2387
    %2786 = vmatpush.msra.mxu0 %v2383
    %2787 = vmatpush.msra.mxu0 %v2379
    %2788 = vmatpush.msra.mxu0 %v2375
    %2789 = vmatpush.msra.mxu0 %v2371
    %2790 = vmatpush.msra.mxu0 %v2367
    %2791 = vmatpush.msra.mxu0 %v2363
    %2792 = vmatpush.msra.mxu0 %v2359
    %2793 = vmatpush.msra.mxu0 %v2355
    %2794 = vmatpush.msra.mxu0 %v2351
    %2795 = vmatmul.f32.gmra.mxu0 %v2758
    %v2796 = vpop.f32.mrf.mxu0
    %v2797 = vadd.f32 %v2777, %v2796
    %2798 = vdwg.mxu0
    %2799 = vmatpush.msra.mxu0 %v2348
    %2800 = vmatpush.msra.mxu0 %v2344
    %2801 = vmatpush.msra.mxu0 %v2340
    %2802 = vmatpush.msra.mxu0 %v2336
    %2803 = vmatpush.msra.mxu0 %v2332
    %2804 = vmatpush.msra.mxu0 %v2328
    %2805 = vmatpush.msra.mxu0 %v2324
    %2806 = vmatpush.msra.mxu0 %v2320
    %2807 = vmatpush.msra.mxu0 %v2316
    %2808 = vmatpush.msra.mxu0 %v2312
    %2809 = vmatpush.msra.mxu0 %v2308
    %2810 = vmatpush.msra.mxu0 %v2304
    %2811 = vmatpush.msra.mxu0 %v2300
    %2812 = vmatpush.msra.mxu0 %v2296
    %2813 = vmatpush.msra.mxu0 %v2292
    %2814 = vmatpush.msra.mxu0 %v2288
    %2815 = vmatmul.f32.gmra.mxu0 %v2757
    %v2816 = vpop.f32.mrf.mxu0
    %v2817 = vadd.f32 %v2420, %v2816
    %2818 = vdwg.mxu0
    %2819 = vmatpush.msra.mxu0 %v2412
    %2820 = vmatpush.msra.mxu0 %v2408
    %2821 = vmatpush.msra.mxu0 %v2404
    %2822 = vmatpush.msra.mxu0 %v2400
    %2823 = vmatpush.msra.mxu0 %v2396
    %2824 = vmatpush.msra.mxu0 %v2392
    %2825 = vmatpush.msra.mxu0 %v2388
    %2826 = vmatpush.msra.mxu0 %v2384
    %2827 = vmatpush.msra.mxu0 %v2380
    %2828 = vmatpush.msra.mxu0 %v2376
    %2829 = vmatpush.msra.mxu0 %v2372
    %2830 = vmatpush.msra.mxu0 %v2368
    %2831 = vmatpush.msra.mxu0 %v2364
    %2832 = vmatpush.msra.mxu0 %v2360
    %2833 = vmatpush.msra.mxu0 %v2356
    %2834 = vmatpush.msra.mxu0 %v2352
    %2835 = vmatmul.f32.gmra.mxu0 %v2758
    %v2836 = vpop.f32.mrf.mxu0
    %v2837 = vadd.f32 %v2817, %v2836
    %2838 = vdwg.mxu0
    %2839 = vmatpush.msra.mxu0 %v2349
    %2840 = vmatpush.msra.mxu0 %v2345
    %2841 = vmatpush.msra.mxu0 %v2341
    %2842 = vmatpush.msra.mxu0 %v2337
    %2843 = vmatpush.msra.mxu0 %v2333
    %2844 = vmatpush.msra.mxu0 %v2329
    %2845 = vmatpush.msra.mxu0 %v2325
    %2846 = vmatpush.msra.mxu0 %v2321
    %2847 = vmatpush.msra.mxu0 %v2317
    %2848 = vmatpush.msra.mxu0 %v2313
    %2849 = vmatpush.msra.mxu0 %v2309
    %2850 = vmatpush.msra.mxu0 %v2305
    %2851 = vmatpush.msra.mxu0 %v2301
    %2852 = vmatpush.msra.mxu0 %v2297
    %2853 = vmatpush.msra.mxu0 %v2293
    %2854 = vmatpush.msra.mxu0 %v2289
    %2855 = vmatmul.f32.gmra.mxu0 %v2757
    %v2856 = vpop.f32.mrf.mxu0
    %v2857 = vadd.f32 %v2421, %v2856
    %2858 = vdwg.mxu0
    %2859 = vmatpush.msra.mxu0 %v2413
    %2860 = vmatpush.msra.mxu0 %v2409
    %2861 = vmatpush.msra.mxu0 %v2405
    %2862 = vmatpush.msra.mxu0 %v2401
    %2863 = vmatpush.msra.mxu0 %v2397
    %2864 = vmatpush.msra.mxu0 %v2393
    %2865 = vmatpush.msra.mxu0 %v2389
    %2866 = vmatpush.msra.mxu0 %v2385
    %2867 = vmatpush.msra.mxu0 %v2381
    %2868 = vmatpush.msra.mxu0 %v2377
    %2869 = vmatpush.msra.mxu0 %v2373
    %2870 = vmatpush.msra.mxu0 %v2369
    %2871 = vmatpush.msra.mxu0 %v2365
    %2872 = vmatpush.msra.mxu0 %v2361
    %2873 = vmatpush.msra.mxu0 %v2357
    %2874 = vmatpush.msra.mxu0 %v2353
    %2875 = vmatmul.f32.gmra.mxu0 %v2758
    %v2876 = vpop.f32.mrf.mxu0
    %v2877 = vadd.f32 %v2857, %v2876
    %2878 = vdwg.mxu0
    %2879 = vmatpush.msra.mxu0 %v2350
    %2880 = vmatpush.msra.mxu0 %v2346
    %2881 = vmatpush.msra.mxu0 %v2342
    %2882 = vmatpush.msra.mxu0 %v2338
    %2883 = vmatpush.msra.mxu0 %v2334
    %2884 = vmatpush.msra.mxu0 %v2330
    %2885 = vmatpush.msra.mxu0 %v2326
    %2886 = vmatpush.msra.mxu0 %v2322
    %2887 = vmatpush.msra.mxu0 %v2318
    %2888 = vmatpush.msra.mxu0 %v2314
    %2889 = vmatpush.msra.mxu0 %v2310
    %2890 = vmatpush.msra.mxu0 %v2306
    %2891 = vmatpush.msra.mxu0 %v2302
    %2892 = vmatpush.msra.mxu0 %v2298
    %2893 = vmatpush.msra.mxu0 %v2294
    %2894 = vmatpush.msra.mxu0 %v2290
    %2895 = vmatmul.f32.gmra.mxu0 %v2757
    %v2896 = vpop.f32.mrf.mxu0
    %v2897 = vadd.f32 %v2422, %v2896
    %2898 = vdwg.mxu0
    %2899 = vmatpush.msra.mxu0 %v2414
    %2900 = vmatpush.msra.mxu0 %v2410
    %2901 = vmatpush.msra.mxu0 %v2406
    %2902 = vmatpush.msra.mxu0 %v2402
    %2903 = vmatpush.msra.mxu0 %v2398
    %2904 = vmatpush.msra.mxu0 %v2394
    %2905 = vmatpush.msra.mxu0 %v2390
    %2906 = vmatpush.msra.mxu0 %v2386
    %2907 = vmatpush.msra.mxu0 %v2382
    %2908 = vmatpush.msra.mxu0 %v2378
    %2909 = vmatpush.msra.mxu0 %v2374
    %2910 = vmatpush.msra.mxu0 %v2370
    %2911 = vmatpush.msra.mxu0 %v2366
    %2912 = vmatpush.msra.mxu0 %v2362
    %2913 = vmatpush.msra.mxu0 %v2358
    %2914 = vmatpush.msra.mxu0 %v2354
    %2915 = vmatmul.f32.gmra.mxu0 %v2758
    %v2916 = vpop.f32.mrf.mxu0
    %v2917 = vadd.f32 %v2897, %v2916
    %2918 = vdwg.mxu0
    %2919 = vst [vmem:[#allocation3 + $0x20] sm:$0xff] %v2797
    %2920 = vst [vmem:[#allocation3 + $0x28] sm:$0xff] %v2837
    %2921 = vst [vmem:[#allocation3 + $0x60] sm:$0xff] %v2877
    %2922 = vst [vmem:[#allocation3 + $0x68] sm:$0xff] %v2917
    %v2923 = vld [vmem:[#allocation2 + $0x30] sm:$0xff]
    %v2924 = vld [vmem:[#allocation2 + $0x38] sm:$0xff]
    %2925 = vmatpush.msra.mxu0 %v2347
    %2926 = vmatpush.msra.mxu0 %v2343
    %2927 = vmatpush.msra.mxu0 %v2339
    %2928 = vmatpush.msra.mxu0 %v2335
    %2929 = vmatpush.msra.mxu0 %v2331
    %2930 = vmatpush.msra.mxu0 %v2327
    %2931 = vmatpush.msra.mxu0 %v2323
    %2932 = vmatpush.msra.mxu0 %v2319
    %2933 = vmatpush.msra.mxu0 %v2315
    %2934 = vmatpush.msra.mxu0 %v2311
    %2935 = vmatpush.msra.mxu0 %v2307
    %2936 = vmatpush.msra.mxu0 %v2303
    %2937 = vmatpush.msra.mxu0 %v2299
    %2938 = vmatpush.msra.mxu0 %v2295
    %2939 = vmatpush.msra.mxu0 %v2291
    %2940 = vmatpush.msra.mxu0 %v2287
    %2941 = vmatmul.f32.gmra.mxu0 %v2923
    %v2942 = vpop.f32.mrf.mxu0
    %v2943 = vadd.f32 %v2419, %v2942
    %2944 = vdwg.mxu0
    %2945 = vmatpush.msra.mxu0 %v2411
    %2946 = vmatpush.msra.mxu0 %v2407
    %2947 = vmatpush.msra.mxu0 %v2403
    %2948 = vmatpush.msra.mxu0 %v2399
    %2949 = vmatpush.msra.mxu0 %v2395
    %2950 = vmatpush.msra.mxu0 %v2391
    %2951 = vmatpush.msra.mxu0 %v2387
    %2952 = vmatpush.msra.mxu0 %v2383
    %2953 = vmatpush.msra.mxu0 %v2379
    %2954 = vmatpush.msra.mxu0 %v2375
    %2955 = vmatpush.msra.mxu0 %v2371
    %2956 = vmatpush.msra.mxu0 %v2367
    %2957 = vmatpush.msra.mxu0 %v2363
    %2958 = vmatpush.msra.mxu0 %v2359
    %2959 = vmatpush.msra.mxu0 %v2355
    %2960 = vmatpush.msra.mxu0 %v2351
    %2961 = vmatmul.f32.gmra.mxu0 %v2924
    %v2962 = vpop.f32.mrf.mxu0
    %v2963 = vadd.f32 %v2943, %v2962
    %2964 = vdwg.mxu0
    %2965 = vmatpush.msra.mxu0 %v2348
    %2966 = vmatpush.msra.mxu0 %v2344
    %2967 = vmatpush.msra.mxu0 %v2340
    %2968 = vmatpush.msra.mxu0 %v2336
    %2969 = vmatpush.msra.mxu0 %v2332
    %2970 = vmatpush.msra.mxu0 %v2328
    %2971 = vmatpush.msra.mxu0 %v2324
    %2972 = vmatpush.msra.mxu0 %v2320
    %2973 = vmatpush.msra.mxu0 %v2316
    %2974 = vmatpush.msra.mxu0 %v2312
    %2975 = vmatpush.msra.mxu0 %v2308
    %2976 = vmatpush.msra.mxu0 %v2304
    %2977 = vmatpush.msra.mxu0 %v2300
    %2978 = vmatpush.msra.mxu0 %v2296
    %2979 = vmatpush.msra.mxu0 %v2292
    %2980 = vmatpush.msra.mxu0 %v2288
    %2981 = vmatmul.f32.gmra.mxu0 %v2923
    %v2982 = vpop.f32.mrf.mxu0
    %v2983 = vadd.f32 %v2420, %v2982
    %2984 = vdwg.mxu0
    %2985 = vmatpush.msra.mxu0 %v2412
    %2986 = vmatpush.msra.mxu0 %v2408
    %2987 = vmatpush.msra.mxu0 %v2404
    %2988 = vmatpush.msra.mxu0 %v2400
    %2989 = vmatpush.msra.mxu0 %v2396
    %2990 = vmatpush.msra.mxu0 %v2392
    %2991 = vmatpush.msra.mxu0 %v2388
    %2992 = vmatpush.msra.mxu0 %v2384
    %2993 = vmatpush.msra.mxu0 %v2380
    %2994 = vmatpush.msra.mxu0 %v2376
    %2995 = vmatpush.msra.mxu0 %v2372
    %2996 = vmatpush.msra.mxu0 %v2368
    %2997 = vmatpush.msra.mxu0 %v2364
    %2998 = vmatpush.msra.mxu0 %v2360
    %2999 = vmatpush.msra.mxu0 %v2356
    %3000 = vmatpush.msra.mxu0 %v2352
    %3001 = vmatmul.f32.gmra.mxu0 %v2924
    %v3002 = vpop.f32.mrf.mxu0
    %v3003 = vadd.f32 %v2983, %v3002
    %3004 = vdwg.mxu0
    %3005 = vmatpush.msra.mxu0 %v2349
    %3006 = vmatpush.msra.mxu0 %v2345
    %3007 = vmatpush.msra.mxu0 %v2341
    %3008 = vmatpush.msra.mxu0 %v2337
    %3009 = vmatpush.msra.mxu0 %v2333
    %3010 = vmatpush.msra.mxu0 %v2329
    %3011 = vmatpush.msra.mxu0 %v2325
    %3012 = vmatpush.msra.mxu0 %v2321
    %3013 = vmatpush.msra.mxu0 %v2317
    %3014 = vmatpush.msra.mxu0 %v2313
    %3015 = vmatpush.msra.mxu0 %v2309
    %3016 = vmatpush.msra.mxu0 %v2305
    %3017 = vmatpush.msra.mxu0 %v2301
    %3018 = vmatpush.msra.mxu0 %v2297
    %3019 = vmatpush.msra.mxu0 %v2293
    %3020 = vmatpush.msra.mxu0 %v2289
    %3021 = vmatmul.f32.gmra.mxu0 %v2923
    %v3022 = vpop.f32.mrf.mxu0
    %v3023 = vadd.f32 %v2421, %v3022
    %3024 = vdwg.mxu0
    %3025 = vmatpush.msra.mxu0 %v2413
    %3026 = vmatpush.msra.mxu0 %v2409
    %3027 = vmatpush.msra.mxu0 %v2405
    %3028 = vmatpush.msra.mxu0 %v2401
    %3029 = vmatpush.msra.mxu0 %v2397
    %3030 = vmatpush.msra.mxu0 %v2393
    %3031 = vmatpush.msra.mxu0 %v2389
    %3032 = vmatpush.msra.mxu0 %v2385
    %3033 = vmatpush.msra.mxu0 %v2381
    %3034 = vmatpush.msra.mxu0 %v2377
    %3035 = vmatpush.msra.mxu0 %v2373
    %3036 = vmatpush.msra.mxu0 %v2369
    %3037 = vmatpush.msra.mxu0 %v2365
    %3038 = vmatpush.msra.mxu0 %v2361
    %3039 = vmatpush.msra.mxu0 %v2357
    %3040 = vmatpush.msra.mxu0 %v2353
    %3041 = vmatmul.f32.gmra.mxu0 %v2924
    %v3042 = vpop.f32.mrf.mxu0
    %v3043 = vadd.f32 %v3023, %v3042
    %3044 = vdwg.mxu0
    %3045 = vmatpush.msra.mxu0 %v2350
    %3046 = vmatpush.msra.mxu0 %v2346
    %3047 = vmatpush.msra.mxu0 %v2342
    %3048 = vmatpush.msra.mxu0 %v2338
    %3049 = vmatpush.msra.mxu0 %v2334
    %3050 = vmatpush.msra.mxu0 %v2330
    %3051 = vmatpush.msra.mxu0 %v2326
    %3052 = vmatpush.msra.mxu0 %v2322
    %3053 = vmatpush.msra.mxu0 %v2318
    %3054 = vmatpush.msra.mxu0 %v2314
    %3055 = vmatpush.msra.mxu0 %v2310
    %3056 = vmatpush.msra.mxu0 %v2306
    %3057 = vmatpush.msra.mxu0 %v2302
    %3058 = vmatpush.msra.mxu0 %v2298
    %3059 = vmatpush.msra.mxu0 %v2294
    %3060 = vmatpush.msra.mxu0 %v2290
    %3061 = vmatmul.f32.gmra.mxu0 %v2923
    %v3062 = vpop.f32.mrf.mxu0
    %v3063 = vadd.f32 %v2422, %v3062
    %3064 = vdwg.mxu0
    %3065 = vmatpush.msra.mxu0 %v2414
    %3066 = vmatpush.msra.mxu0 %v2410
    %3067 = vmatpush.msra.mxu0 %v2406
    %3068 = vmatpush.msra.mxu0 %v2402
    %3069 = vmatpush.msra.mxu0 %v2398
    %3070 = vmatpush.msra.mxu0 %v2394
    %3071 = vmatpush.msra.mxu0 %v2390
    %3072 = vmatpush.msra.mxu0 %v2386
    %3073 = vmatpush.msra.mxu0 %v2382
    %3074 = vmatpush.msra.mxu0 %v2378
    %3075 = vmatpush.msra.mxu0 %v2374
    %3076 = vmatpush.msra.mxu0 %v2370
    %3077 = vmatpush.msra.mxu0 %v2366
    %3078 = vmatpush.msra.mxu0 %v2362
    %3079 = vmatpush.msra.mxu0 %v2358
    %3080 = vmatpush.msra.mxu0 %v2354
    %3081 = vmatmul.f32.gmra.mxu0 %v2924
    %v3082 = vpop.f32.mrf.mxu0
    %v3083 = vadd.f32 %v3063, %v3082
    %3084 = vdwg.mxu0
    %3085 = vst [vmem:[#allocation3 + $0x30] sm:$0xff] %v2963
    %3086 = vst [vmem:[#allocation3 + $0x38] sm:$0xff] %v3003
    %3087 = vst [vmem:[#allocation3 + $0x70] sm:$0xff] %v3043
    %3088 = vst [vmem:[#allocation3 + $0x78] sm:$0xff] %v3083
    %v3089 = vld [vmem:[#allocation3] sm:$0xff]
    %v3090 = vld [vmem:[#allocation3 + $0x8] sm:$0xff]
    %v3091 = vld [vmem:[#allocation3 + $0x10] sm:$0xff]
    %v3092 = vld [vmem:[#allocation3 + $0x18] sm:$0xff]
    %v3093 = vld [vmem:[#allocation3 + $0x20] sm:$0xff]
    %v3094 = vld [vmem:[#allocation3 + $0x28] sm:$0xff]
    %v3095 = vld [vmem:[#allocation3 + $0x30] sm:$0xff]
    %v3096 = vld [vmem:[#allocation3 + $0x38] sm:$0xff]
    %v3097 = vld [vmem:[#allocation3 + $0x40] sm:$0xff]
    %v3098 = vld [vmem:[#allocation3 + $0x48] sm:$0xff]
    %v3099 = vld [vmem:[#allocation3 + $0x50] sm:$0xff]
    %v3100 = vld [vmem:[#allocation3 + $0x58] sm:$0xff]
    %v3101 = vld [vmem:[#allocation3 + $0x60] sm:$0xff]
    %v3102 = vld [vmem:[#allocation3 + $0x68] sm:$0xff]
    %v3103 = vld [vmem:[#allocation3 + $0x70] sm:$0xff]
    %v3104 = vld [vmem:[#allocation3 + $0x78] sm:$0xff]
    %v3105 = vadd.f32 %v3089, %v3097
    %v3106 = vrot.slane %v3105, 4
    %v3107 = vadd.f32 %v3105, %v3106
    %v3108 = vrot.slane %v3107, 2
    %v3109 = vadd.f32 %v3107, %v3108
    %v3110 = vrot.slane %v3109, 1
    %v3111 = vadd.f32 %v3109, %v3110
    %v3112 = vadd.f32 %v3090, %v3098
    %v3113 = vrot.slane %v3112, 4
    %v3114 = vadd.f32 %v3112, %v3113
    %v3115 = vrot.slane %v3114, 2
    %v3116 = vadd.f32 %v3114, %v3115
    %v3117 = vrot.slane %v3116, 1
    %v3118 = vadd.f32 %v3116, %v3117
    %v3119 = vadd.f32 %v3091, %v3099
    %v3120 = vrot.slane %v3119, 4
    %v3121 = vadd.f32 %v3119, %v3120
    %v3122 = vrot.slane %v3121, 2
    %v3123 = vadd.f32 %v3121, %v3122
    %v3124 = vrot.slane %v3123, 1
    %v3125 = vadd.f32 %v3123, %v3124
    %v3126 = vadd.f32 %v3092, %v3100
    %v3127 = vrot.slane %v3126, 4
    %v3128 = vadd.f32 %v3126, %v3127
    %v3129 = vrot.slane %v3128, 2
    %v3130 = vadd.f32 %v3128, %v3129
    %v3131 = vrot.slane %v3130, 1
    %v3132 = vadd.f32 %v3130, %v3131
    %v3133 = vadd.f32 %v3093, %v3101
    %v3134 = vrot.slane %v3133, 4
    %v3135 = vadd.f32 %v3133, %v3134
    %v3136 = vrot.slane %v3135, 2
    %v3137 = vadd.f32 %v3135, %v3136
    %v3138 = vrot.slane %v3137, 1
    %v3139 = vadd.f32 %v3137, %v3138
    %v3140 = vadd.f32 %v3094, %v3102
    %v3141 = vrot.slane %v3140, 4
    %v3142 = vadd.f32 %v3140, %v3141
    %v3143 = vrot.slane %v3142, 2
    %v3144 = vadd.f32 %v3142, %v3143
    %v3145 = vrot.slane %v3144, 1
    %v3146 = vadd.f32 %v3144, %v3145
    %v3147 = vadd.f32 %v3095, %v3103
    %v3148 = vrot.slane %v3147, 4
    %v3149 = vadd.f32 %v3147, %v3148
    %v3150 = vrot.slane %v3149, 2
    %v3151 = vadd.f32 %v3149, %v3150
    %v3152 = vrot.slane %v3151, 1
    %v3153 = vadd.f32 %v3151, %v3152
    %v3154 = vadd.f32 %v3096, %v3104
    %v3155 = vrot.slane %v3154, 4
    %v3156 = vadd.f32 %v3154, %v3155
    %v3157 = vrot.slane %v3156, 2
    %v3158 = vadd.f32 %v3156, %v3157
    %v3159 = vrot.slane %v3158, 1
    %v3160 = vadd.f32 %v3158, %v3159
    %v3161 = vmul.f32 %v3089, %v3089
    %v3162 = vmul.f32 %v3090, %v3090
    %v3163 = vmul.f32 %v3091, %v3091
    %v3164 = vmul.f32 %v3092, %v3092
    %v3165 = vmul.f32 %v3093, %v3093
    %v3166 = vmul.f32 %v3094, %v3094
    %v3167 = vmul.f32 %v3095, %v3095
    %v3168 = vmul.f32 %v3096, %v3096
    %v3169 = vmul.f32 %v3097, %v3097
    %v3170 = vmul.f32 %v3098, %v3098
    %v3171 = vmul.f32 %v3099, %v3099
    %v3172 = vmul.f32 %v3100, %v3100
    %v3173 = vmul.f32 %v3101, %v3101
    %v3174 = vmul.f32 %v3102, %v3102
    %v3175 = vmul.f32 %v3103, %v3103
    %v3176 = vmul.f32 %v3104, %v3104
    %v3177 = vadd.f32 %v3161, %v3169
    %v3178 = vrot.slane %v3177, 4
    %v3179 = vadd.f32 %v3177, %v3178
    %v3180 = vrot.slane %v3179, 2
    %v3181 = vadd.f32 %v3179, %v3180
    %v3182 = vrot.slane %v3181, 1
    %v3183 = vadd.f32 %v3181, %v3182
    %v3184 = vadd.f32 %v3162, %v3170
    %v3185 = vrot.slane %v3184, 4
    %v3186 = vadd.f32 %v3184, %v3185
    %v3187 = vrot.slane %v3186, 2
    %v3188 = vadd.f32 %v3186, %v3187
    %v3189 = vrot.slane %v3188, 1
    %v3190 = vadd.f32 %v3188, %v3189
    %v3191 = vadd.f32 %v3163, %v3171
    %v3192 = vrot.slane %v3191, 4
    %v3193 = vadd.f32 %v3191, %v3192
    %v3194 = vrot.slane %v3193, 2
    %v3195 = vadd.f32 %v3193, %v3194
    %v3196 = vrot.slane %v3195, 1
    %v3197 = vadd.f32 %v3195, %v3196
    %v3198 = vadd.f32 %v3164, %v3172
    %v3199 = vrot.slane %v3198, 4
    %v3200 = vadd.f32 %v3198, %v3199
    %v3201 = vrot.slane %v3200, 2
    %v3202 = vadd.f32 %v3200, %v3201
    %v3203 = vrot.slane %v3202, 1
    %v3204 = vadd.f32 %v3202, %v3203
    %v3205 = vadd.f32 %v3165, %v3173
    %v3206 = vrot.slane %v3205, 4
    %v3207 = vadd.f32 %v3205, %v3206
    %v3208 = vrot.slane %v3207, 2
    %v3209 = vadd.f32 %v3207, %v3208
    %v3210 = vrot.slane %v3209, 1
    %v3211 = vadd.f32 %v3209, %v3210
    %v3212 = vadd.f32 %v3166, %v3174
    %v3213 = vrot.slane %v3212, 4
    %v3214 = vadd.f32 %v3212, %v3213
    %v3215 = vrot.slane %v3214, 2
    %v3216 = vadd.f32 %v3214, %v3215
    %v3217 = vrot.slane %v3216, 1
    %v3218 = vadd.f32 %v3216, %v3217
    %v3219 = vadd.f32 %v3167, %v3175
    %v3220 = vrot.slane %v3219, 4
    %v3221 = vadd.f32 %v3219, %v3220
    %v3222 = vrot.slane %v3221, 2
    %v3223 = vadd.f32 %v3221, %v3222
    %v3224 = vrot.slane %v3223, 1
    %v3225 = vadd.f32 %v3223, %v3224
    %v3226 = vadd.f32 %v3168, %v3176
    %v3227 = vrot.slane %v3226, 4
    %v3228 = vadd.f32 %v3226, %v3227
    %v3229 = vrot.slane %v3228, 2
    %v3230 = vadd.f32 %v3228, %v3229
    %v3231 = vrot.slane %v3230, 1
    %v3232 = vadd.f32 %v3230, %v3231
    %v3233 = vadd.f32 %v3111, %v3118
    %v3234 = vadd.f32 %v3183, %v3190
    %v3235 = vadd.f32 %v3233, %v3125
    %v3236 = vadd.f32 %v3234, %v3197
    %v3237 = vadd.f32 %v3235, %v3132
    %v3238 = vadd.f32 %v3236, %v3204
    %v3239 = vadd.f32 %v3237, %v3139
    %v3240 = vadd.f32 %v3238, %v3211
    %v3241 = vadd.f32 %v3239, %v3146
    %v3242 = vadd.f32 %v3240, %v3218
    %v3243 = vadd.f32 %v3241, %v3153
    %v3244 = vadd.f32 %v3242, %v3225
    %v3245 = vadd.f32 %v3243, %v3160
    %v3246 = vadd.f32 %v3244, %v3232
    %v3247 = vrcp.pop 128.0
    %v3248 = vmul.f32 128.0, %v3247
    %v3249 = vsub.f32 1.0, %v3248
    %v3250 = vmul.f32 %v3247, %v3249
    %v3251 = vadd.f32 %v3247, %v3250
    %vm3252 = vweird.f32 %v3247
    %v3253 = vsel %vm3252, %v3247, %v3251
    %v3254 = vmul.f32 %v3245, %v3253
    %v3255 = vmul.f32 %v3246, %v3253
    %v3256 = vmul.f32 %v3254, %v3254
    %v3257 = vsub.f32 %v3255, %v3256
    %v3258 = vadd.f32 %v3257, 1e-05
    %v3259 = vrsqrt.pop %v3258
    %v3260 = vmul.f32 %v3259, %v3258
    %v3261 = vmul.f32 %v3260, %v3259
    %v3262 = vmul.f32 0.5, %v3261
    %v3263 = vsub.f32 1.5, %v3262
    %v3264 = vmul.f32 %v3259, %v3263
    %vm3265 = vweird.f32 %v3258
    %vm3266 = vweird.f32 %v3259
    %vm3267 = vmor %vm3265, %vm3266
    %v3268 = vsel %vm3267, %v3259, %v3264
    %v3269 = vld [vmem:[%s7] sm:$0x1]
    %v3270 = vmul.f32 %v3268, %v3269
    %v3271 = vld [vmem:[%s8] sm:$0x1]
    %v3272 = vmul.f32 %v3254, %v3270
    %v3273 = vsub.f32 %v3271, %v3272
    %v3274 = vld [vmem:[#allocation18] sm:$0xff]
    %v3275 = vld [vmem:[#allocation18 + $0x8] sm:$0xff]
    %v3276 = vld [vmem:[#allocation18 + $0x10] sm:$0xff]
    %v3277 = vld [vmem:[#allocation18 + $0x18] sm:$0xff]
    %v3278 = vld [vmem:[#allocation18 + $0x20] sm:$0xff]
    %v3279 = vld [vmem:[#allocation18 + $0x28] sm:$0xff]
    %v3280 = vld [vmem:[#allocation18 + $0x30] sm:$0xff]
    %v3281 = vld [vmem:[#allocation18 + $0x38] sm:$0xff]
    %v3282 = vld [vmem:[#allocation18 + $0x40] sm:$0xff]
    %v3283 = vld [vmem:[#allocation18 + $0x48] sm:$0xff]
    %v3284 = vld [vmem:[#allocation18 + $0x50] sm:$0xff]
    %v3285 = vld [vmem:[#allocation18 + $0x58] sm:$0xff]
    %v3286 = vld [vmem:[#allocation18 + $0x60] sm:$0xff]
    %v3287 = vld [vmem:[#allocation18 + $0x68] sm:$0xff]
    %v3288 = vld [vmem:[#allocation18 + $0x70] sm:$0xff]
    %v3289 = vld [vmem:[#allocation18 + $0x78] sm:$0xff]
    %v3290 = vld [vmem:[#allocation18 + $0x80] sm:$0xff]
    %v3291 = vld [vmem:[#allocation18 + $0x88] sm:$0xff]
    %v3292 = vld [vmem:[#allocation18 + $0x90] sm:$0xff]
    %v3293 = vld [vmem:[#allocation18 + $0x98] sm:$0xff]
    %v3294 = vld [vmem:[#allocation18 + $0xa0] sm:$0xff]
    %v3295 = vld [vmem:[#allocation18 + $0xa8] sm:$0xff]
    %v3296 = vld [vmem:[#allocation18 + $0xb0] sm:$0xff]
    %v3297 = vld [vmem:[#allocation18 + $0xb8] sm:$0xff]
    %v3298 = vld [vmem:[#allocation18 + $0xc0] sm:$0xff]
    %v3299 = vld [vmem:[#allocation18 + $0xc8] sm:$0xff]
    %v3300 = vld [vmem:[#allocation18 + $0xd0] sm:$0xff]
    %v3301 = vld [vmem:[#allocation18 + $0xd8] sm:$0xff]
    %v3302 = vld [vmem:[#allocation18 + $0xe0] sm:$0xff]
    %v3303 = vld [vmem:[#allocation18 + $0xe8] sm:$0xff]
    %v3304 = vld [vmem:[#allocation18 + $0xf0] sm:$0xff]
    %v3305 = vld [vmem:[#allocation18 + $0xf8] sm:$0xff]
    %v3306 = vld [vmem:[#allocation19] sm:$0x3]
    %v3307 = vld [vmem:[#allocation3] sm:$0xff]
    %v3308 = vld [vmem:[#allocation3 + $0x40] sm:$0xff]
    %v3309 = vperm.slane %v3270, 0
    %v3310 = vmul.f32 %v3307, %v3309
    %v3311 = vmul.f32 %v3308, %v3309
    %v3313 = vperm.slane %v3273, 0
    %v3315 = vadd.f32 %v3310, %v3313
    %v3316 = vadd.f32 %v3311, %v3313
    %v3317 = vmax.f32 %v3315, 0.0
    %v3318 = vmax.f32 %v3316, 0.0
    %v3320 = vperm.slane %v3306, 0
    %v3321 = vperm.slane %v3306, 1
    %3324 = vmatpush.msra.mxu0 %v3304
    %3325 = vmatpush.msra.mxu0 %v3302
    %3326 = vmatpush.msra.mxu0 %v3300
    %3327 = vmatpush.msra.mxu0 %v3298
    %3328 = vmatpush.msra.mxu0 %v3296
    %3329 = vmatpush.msra.mxu0 %v3294
    %3330 = vmatpush.msra.mxu0 %v3292
    %3331 = vmatpush.msra.mxu0 %v3290
    %3332 = vmatpush.msra.mxu0 %v3288
    %3333 = vmatpush.msra.mxu0 %v3286
    %3334 = vmatpush.msra.mxu0 %v3284
    %3335 = vmatpush.msra.mxu0 %v3282
    %3336 = vmatpush.msra.mxu0 %v3280
    %3337 = vmatpush.msra.mxu0 %v3278
    %3338 = vmatpush.msra.mxu0 %v3276
    %3339 = vmatpush.msra.mxu0 %v3274
    %3340 = vmatmul.f32.gmra.mxu0 %v3317
    %v3341 = vpop.f32.mrf.mxu0
    %v3342 = vadd.f32 %v3320, %v3341
    %3343 = vmatmul.f32.gmra.mxu0 %v3318
    %v3344 = vpop.f32.mrf.mxu0
    %v3345 = vadd.f32 %v3320, %v3344
    %3346 = vdwg.mxu0
    %3347 = vmatpush.msra.mxu0 %v3305
    %3348 = vmatpush.msra.mxu0 %v3303
    %3349 = vmatpush.msra.mxu0 %v3301
    %3350 = vmatpush.msra.mxu0 %v3299
    %3351 = vmatpush.msra.mxu0 %v3297
    %3352 = vmatpush.msra.mxu0 %v3295
    %3353 = vmatpush.msra.mxu0 %v3293
    %3354 = vmatpush.msra.mxu0 %v3291
    %3355 = vmatpush.msra.mxu0 %v3289
    %3356 = vmatpush.msra.mxu0 %v3287
    %3357 = vmatpush.msra.mxu0 %v3285
    %3358 = vmatpush.msra.mxu0 %v3283
    %3359 = vmatpush.msra.mxu0 %v3281
    %3360 = vmatpush.msra.mxu0 %v3279
    %3361 = vmatpush.msra.mxu0 %v3277
    %3362 = vmatpush.msra.mxu0 %v3275
    %3363 = vmatmul.f32.gmra.mxu0 %v3317
    %v3364 = vpop.f32.mrf.mxu0
    %v3365 = vadd.f32 %v3321, %v3364
    %3366 = vmatmul.f32.gmra.mxu0 %v3318
    %v3367 = vpop.f32.mrf.mxu0
    %v3368 = vadd.f32 %v3321, %v3367
    %3369 = vdwg.mxu0
    %3370 = vst [vmem:[#allocation4] sm:$0xff] %v3342
    %3371 = vst [vmem:[#allocation4 + $0x40] sm:$0xff] %v3345
    %3372 = vst [vmem:[#allocation4 + $0x80] sm:$0xff] %v3365
    %3373 = vst [vmem:[#allocation4 + $0xc0] sm:$0xff] %v3368
    %v3374 = vld [vmem:[#allocation3 + $0x8] sm:$0xff]
    %v3375 = vld [vmem:[#allocation3 + $0x48] sm:$0xff]
    %v3376 = vmul.f32 %v3374, %v3309
    %v3377 = vmul.f32 %v3375, %v3309
    %v3378 = vadd.f32 %v3376, %v3313
    %v3379 = vadd.f32 %v3377, %v3313
    %v3380 = vmax.f32 %v3378, 0.0
    %v3381 = vmax.f32 %v3379, 0.0
    %3382 = vmatpush.msra.mxu0 %v3304
    %3383 = vmatpush.msra.mxu0 %v3302
    %3384 = vmatpush.msra.mxu0 %v3300
    %3385 = vmatpush.msra.mxu0 %v3298
    %3386 = vmatpush.msra.mxu0 %v3296
    %3387 = vmatpush.msra.mxu0 %v3294
    %3388 = vmatpush.msra.mxu0 %v3292
    %3389 = vmatpush.msra.mxu0 %v3290
    %3390 = vmatpush.msra.mxu0 %v3288
    %3391 = vmatpush.msra.mxu0 %v3286
    %3392 = vmatpush.msra.mxu0 %v3284
    %3393 = vmatpush.msra.mxu0 %v3282
    %3394 = vmatpush.msra.mxu0 %v3280
    %3395 = vmatpush.msra.mxu0 %v3278
    %3396 = vmatpush.msra.mxu0 %v3276
    %3397 = vmatpush.msra.mxu0 %v3274
    %3398 = vmatmul.f32.gmra.mxu0 %v3380
    %v3399 = vpop.f32.mrf.mxu0
    %v3400 = vadd.f32 %v3320, %v3399
    %3401 = vmatmul.f32.gmra.mxu0 %v3381
    %v3402 = vpop.f32.mrf.mxu0
    %v3403 = vadd.f32 %v3320, %v3402
    %3404 = vdwg.mxu0
    %3405 = vmatpush.msra.mxu0 %v3305
    %3406 = vmatpush.msra.mxu0 %v3303
    %3407 = vmatpush.msra.mxu0 %v3301
    %3408 = vmatpush.msra.mxu0 %v3299
    %3409 = vmatpush.msra.mxu0 %v3297
    %3410 = vmatpush.msra.mxu0 %v3295
    %3411 = vmatpush.msra.mxu0 %v3293
    %3412 = vmatpush.msra.mxu0 %v3291
    %3413 = vmatpush.msra.mxu0 %v3289
    %3414 = vmatpush.msra.mxu0 %v3287
    %3415 = vmatpush.msra.mxu0 %v3285
    %3416 = vmatpush.msra.mxu0 %v3283
    %3417 = vmatpush.msra.mxu0 %v3281
    %3418 = vmatpush.msra.mxu0 %v3279
    %3419 = vmatpush.msra.mxu0 %v3277
    %3420 = vmatpush.msra.mxu0 %v3275
    %3421 = vmatmul.f32.gmra.mxu0 %v3380
    %v3422 = vpop.f32.mrf.mxu0
    %v3423 = vadd.f32 %v3321, %v3422
    %3424 = vmatmul.f32.gmra.mxu0 %v3381
    %v3425 = vpop.f32.mrf.mxu0
    %v3426 = vadd.f32 %v3321, %v3425
    %3427 = vdwg.mxu0
    %3428 = vst [vmem:[#allocation4 + $0x8] sm:$0xff] %v3400
    %3429 = vst [vmem:[#allocation4 + $0x48] sm:$0xff] %v3403
    %3430 = vst [vmem:[#allocation4 + $0x88] sm:$0xff] %v3423
    %3431 = vst [vmem:[#allocation4 + $0xc8] sm:$0xff] %v3426
    %v3432 = vld [vmem:[#allocation3 + $0x10] sm:$0xff]
    %v3433 = vld [vmem:[#allocation3 + $0x50] sm:$0xff]
    %v3434 = vmul.f32 %v3432, %v3309
    %v3435 = vmul.f32 %v3433, %v3309
    %v3436 = vadd.f32 %v3434, %v3313
    %v3437 = vadd.f32 %v3435, %v3313
    %v3438 = vmax.f32 %v3436, 0.0
    %v3439 = vmax.f32 %v3437, 0.0
    %3440 = vmatpush.msra.mxu0 %v3304
    %3441 = vmatpush.msra.mxu0 %v3302
    %3442 = vmatpush.msra.mxu0 %v3300
    %3443 = vmatpush.msra.mxu0 %v3298
    %3444 = vmatpush.msra.mxu0 %v3296
    %3445 = vmatpush.msra.mxu0 %v3294
    %3446 = vmatpush.msra.mxu0 %v3292
    %3447 = vmatpush.msra.mxu0 %v3290
    %3448 = vmatpush.msra.mxu0 %v3288
    %3449 = vmatpush.msra.mxu0 %v3286
    %3450 = vmatpush.msra.mxu0 %v3284
    %3451 = vmatpush.msra.mxu0 %v3282
    %3452 = vmatpush.msra.mxu0 %v3280
    %3453 = vmatpush.msra.mxu0 %v3278
    %3454 = vmatpush.msra.mxu0 %v3276
    %3455 = vmatpush.msra.mxu0 %v3274
    %3456 = vmatmul.f32.gmra.mxu0 %v3438
    %v3457 = vpop.f32.mrf.mxu0
    %v3458 = vadd.f32 %v3320, %v3457
    %3459 = vmatmul.f32.gmra.mxu0 %v3439
    %v3460 = vpop.f32.mrf.mxu0
    %v3461 = vadd.f32 %v3320, %v3460
    %3462 = vdwg.mxu0
    %3463 = vmatpush.msra.mxu0 %v3305
    %3464 = vmatpush.msra.mxu0 %v3303
    %3465 = vmatpush.msra.mxu0 %v3301
    %3466 = vmatpush.msra.mxu0 %v3299
    %3467 = vmatpush.msra.mxu0 %v3297
    %3468 = vmatpush.msra.mxu0 %v3295
    %3469 = vmatpush.msra.mxu0 %v3293
    %3470 = vmatpush.msra.mxu0 %v3291
    %3471 = vmatpush.msra.mxu0 %v3289
    %3472 = vmatpush.msra.mxu0 %v3287
    %3473 = vmatpush.msra.mxu0 %v3285
    %3474 = vmatpush.msra.mxu0 %v3283
    %3475 = vmatpush.msra.mxu0 %v3281
    %3476 = vmatpush.msra.mxu0 %v3279
    %3477 = vmatpush.msra.mxu0 %v3277
    %3478 = vmatpush.msra.mxu0 %v3275
    %3479 = vmatmul.f32.gmra.mxu0 %v3438
    %v3480 = vpop.f32.mrf.mxu0
    %v3481 = vadd.f32 %v3321, %v3480
    %3482 = vmatmul.f32.gmra.mxu0 %v3439
    %v3483 = vpop.f32.mrf.mxu0
    %v3484 = vadd.f32 %v3321, %v3483
    %3485 = vdwg.mxu0
    %3486 = vst [vmem:[#allocation4 + $0x10] sm:$0xff] %v3458
    %3487 = vst [vmem:[#allocation4 + $0x50] sm:$0xff] %v3461
    %3488 = vst [vmem:[#allocation4 + $0x90] sm:$0xff] %v3481
    %3489 = vst [vmem:[#allocation4 + $0xd0] sm:$0xff] %v3484
    %v3490 = vld [vmem:[#allocation3 + $0x18] sm:$0xff]
    %v3491 = vld [vmem:[#allocation3 + $0x58] sm:$0xff]
    %v3492 = vmul.f32 %v3490, %v3309
    %v3493 = vmul.f32 %v3491, %v3309
    %v3494 = vadd.f32 %v3492, %v3313
    %v3495 = vadd.f32 %v3493, %v3313
    %v3496 = vmax.f32 %v3494, 0.0
    %v3497 = vmax.f32 %v3495, 0.0
    %3498 = vmatpush.msra.mxu0 %v3304
    %3499 = vmatpush.msra.mxu0 %v3302
    %3500 = vmatpush.msra.mxu0 %v3300
    %3501 = vmatpush.msra.mxu0 %v3298
    %3502 = vmatpush.msra.mxu0 %v3296
    %3503 = vmatpush.msra.mxu0 %v3294
    %3504 = vmatpush.msra.mxu0 %v3292
    %3505 = vmatpush.msra.mxu0 %v3290
    %3506 = vmatpush.msra.mxu0 %v3288
    %3507 = vmatpush.msra.mxu0 %v3286
    %3508 = vmatpush.msra.mxu0 %v3284
    %3509 = vmatpush.msra.mxu0 %v3282
    %3510 = vmatpush.msra.mxu0 %v3280
    %3511 = vmatpush.msra.mxu0 %v3278
    %3512 = vmatpush.msra.mxu0 %v3276
    %3513 = vmatpush.msra.mxu0 %v3274
    %3514 = vmatmul.f32.gmra.mxu0 %v3496
    %v3515 = vpop.f32.mrf.mxu0
    %v3516 = vadd.f32 %v3320, %v3515
    %3517 = vmatmul.f32.gmra.mxu0 %v3497
    %v3518 = vpop.f32.mrf.mxu0
    %v3519 = vadd.f32 %v3320, %v3518
    %3520 = vdwg.mxu0
    %3521 = vmatpush.msra.mxu0 %v3305
    %3522 = vmatpush.msra.mxu0 %v3303
    %3523 = vmatpush.msra.mxu0 %v3301
    %3524 = vmatpush.msra.mxu0 %v3299
    %3525 = vmatpush.msra.mxu0 %v3297
    %3526 = vmatpush.msra.mxu0 %v3295
    %3527 = vmatpush.msra.mxu0 %v3293
    %3528 = vmatpush.msra.mxu0 %v3291
    %3529 = vmatpush.msra.mxu0 %v3289
    %3530 = vmatpush.msra.mxu0 %v3287
    %3531 = vmatpush.msra.mxu0 %v3285
    %3532 = vmatpush.msra.mxu0 %v3283
    %3533 = vmatpush.msra.mxu0 %v3281
    %3534 = vmatpush.msra.mxu0 %v3279
    %3535 = vmatpush.msra.mxu0 %v3277
    %3536 = vmatpush.msra.mxu0 %v3275
    %3537 = vmatmul.f32.gmra.mxu0 %v3496
    %v3538 = vpop.f32.mrf.mxu0
    %v3539 = vadd.f32 %v3321, %v3538
    %3540 = vmatmul.f32.gmra.mxu0 %v3497
    %v3541 = vpop.f32.mrf.mxu0
    %v3542 = vadd.f32 %v3321, %v3541
    %3543 = vdwg.mxu0
    %3544 = vst [vmem:[#allocation4 + $0x18] sm:$0xff] %v3516
    %3545 = vst [vmem:[#allocation4 + $0x58] sm:$0xff] %v3519
    %3546 = vst [vmem:[#allocation4 + $0x98] sm:$0xff] %v3539
    %3547 = vst [vmem:[#allocation4 + $0xd8] sm:$0xff] %v3542
    %v3548 = vld [vmem:[#allocation3 + $0x20] sm:$0xff]
    %v3549 = vld [vmem:[#allocation3 + $0x60] sm:$0xff]
    %v3550 = vmul.f32 %v3548, %v3309
    %v3551 = vmul.f32 %v3549, %v3309
    %v3552 = vadd.f32 %v3550, %v3313
    %v3553 = vadd.f32 %v3551, %v3313
    %v3554 = vmax.f32 %v3552, 0.0
    %v3555 = vmax.f32 %v3553, 0.0
    %3556 = vmatpush.msra.mxu0 %v3304
    %3557 = vmatpush.msra.mxu0 %v3302
    %3558 = vmatpush.msra.mxu0 %v3300
    %3559 = vmatpush.msra.mxu0 %v3298
    %3560 = vmatpush.msra.mxu0 %v3296
    %3561 = vmatpush.msra.mxu0 %v3294
    %3562 = vmatpush.msra.mxu0 %v3292
    %3563 = vmatpush.msra.mxu0 %v3290
    %3564 = vmatpush.msra.mxu0 %v3288
    %3565 = vmatpush.msra.mxu0 %v3286
    %3566 = vmatpush.msra.mxu0 %v3284
    %3567 = vmatpush.msra.mxu0 %v3282
    %3568 = vmatpush.msra.mxu0 %v3280
    %3569 = vmatpush.msra.mxu0 %v3278
    %3570 = vmatpush.msra.mxu0 %v3276
    %3571 = vmatpush.msra.mxu0 %v3274
    %3572 = vmatmul.f32.gmra.mxu0 %v3554
    %v3573 = vpop.f32.mrf.mxu0
    %v3574 = vadd.f32 %v3320, %v3573
    %3575 = vmatmul.f32.gmra.mxu0 %v3555
    %v3576 = vpop.f32.mrf.mxu0
    %v3577 = vadd.f32 %v3320, %v3576
    %3578 = vdwg.mxu0
    %3579 = vmatpush.msra.mxu0 %v3305
    %3580 = vmatpush.msra.mxu0 %v3303
    %3581 = vmatpush.msra.mxu0 %v3301
    %3582 = vmatpush.msra.mxu0 %v3299
    %3583 = vmatpush.msra.mxu0 %v3297
    %3584 = vmatpush.msra.mxu0 %v3295
    %3585 = vmatpush.msra.mxu0 %v3293
    %3586 = vmatpush.msra.mxu0 %v3291
    %3587 = vmatpush.msra.mxu0 %v3289
    %3588 = vmatpush.msra.mxu0 %v3287
    %3589 = vmatpush.msra.mxu0 %v3285
    %3590 = vmatpush.msra.mxu0 %v3283
    %3591 = vmatpush.msra.mxu0 %v3281
    %3592 = vmatpush.msra.mxu0 %v3279
    %3593 = vmatpush.msra.mxu0 %v3277
    %3594 = vmatpush.msra.mxu0 %v3275
    %3595 = vmatmul.f32.gmra.mxu0 %v3554
    %v3596 = vpop.f32.mrf.mxu0
    %v3597 = vadd.f32 %v3321, %v3596
    %3598 = vmatmul.f32.gmra.mxu0 %v3555
    %v3599 = vpop.f32.mrf.mxu0
    %v3600 = vadd.f32 %v3321, %v3599
    %3601 = vdwg.mxu0
    %3602 = vst [vmem:[#allocation4 + $0x20] sm:$0xff] %v3574
    %3603 = vst [vmem:[#allocation4 + $0x60] sm:$0xff] %v3577
    %3604 = vst [vmem:[#allocation4 + $0xa0] sm:$0xff] %v3597
    %3605 = vst [vmem:[#allocation4 + $0xe0] sm:$0xff] %v3600
    %v3606 = vld [vmem:[#allocation3 + $0x28] sm:$0xff]
    %v3607 = vld [vmem:[#allocation3 + $0x68] sm:$0xff]
    %v3608 = vmul.f32 %v3606, %v3309
    %v3609 = vmul.f32 %v3607, %v3309
    %v3610 = vadd.f32 %v3608, %v3313
    %v3611 = vadd.f32 %v3609, %v3313
    %v3612 = vmax.f32 %v3610, 0.0
    %v3613 = vmax.f32 %v3611, 0.0
    %3614 = vmatpush.msra.mxu0 %v3304
    %3615 = vmatpush.msra.mxu0 %v3302
    %3616 = vmatpush.msra.mxu0 %v3300
    %3617 = vmatpush.msra.mxu0 %v3298
    %3618 = vmatpush.msra.mxu0 %v3296
    %3619 = vmatpush.msra.mxu0 %v3294
    %3620 = vmatpush.msra.mxu0 %v3292
    %3621 = vmatpush.msra.mxu0 %v3290
    %3622 = vmatpush.msra.mxu0 %v3288
    %3623 = vmatpush.msra.mxu0 %v3286
    %3624 = vmatpush.msra.mxu0 %v3284
    %3625 = vmatpush.msra.mxu0 %v3282
    %3626 = vmatpush.msra.mxu0 %v3280
    %3627 = vmatpush.msra.mxu0 %v3278
    %3628 = vmatpush.msra.mxu0 %v3276
    %3629 = vmatpush.msra.mxu0 %v3274
    %3630 = vmatmul.f32.gmra.mxu0 %v3612
    %v3631 = vpop.f32.mrf.mxu0
    %v3632 = vadd.f32 %v3320, %v3631
    %3633 = vmatmul.f32.gmra.mxu0 %v3613
    %v3634 = vpop.f32.mrf.mxu0
    %v3635 = vadd.f32 %v3320, %v3634
    %3636 = vdwg.mxu0
    %3637 = vmatpush.msra.mxu0 %v3305
    %3638 = vmatpush.msra.mxu0 %v3303
    %3639 = vmatpush.msra.mxu0 %v3301
    %3640 = vmatpush.msra.mxu0 %v3299
    %3641 = vmatpush.msra.mxu0 %v3297
    %3642 = vmatpush.msra.mxu0 %v3295
    %3643 = vmatpush.msra.mxu0 %v3293
    %3644 = vmatpush.msra.mxu0 %v3291
    %3645 = vmatpush.msra.mxu0 %v3289
    %3646 = vmatpush.msra.mxu0 %v3287
    %3647 = vmatpush.msra.mxu0 %v3285
    %3648 = vmatpush.msra.mxu0 %v3283
    %3649 = vmatpush.msra.mxu0 %v3281
    %3650 = vmatpush.msra.mxu0 %v3279
    %3651 = vmatpush.msra.mxu0 %v3277
    %3652 = vmatpush.msra.mxu0 %v3275
    %3653 = vmatmul.f32.gmra.mxu0 %v3612
    %v3654 = vpop.f32.mrf.mxu0
    %v3655 = vadd.f32 %v3321, %v3654
    %3656 = vmatmul.f32.gmra.mxu0 %v3613
    %v3657 = vpop.f32.mrf.mxu0
    %v3658 = vadd.f32 %v3321, %v3657
    %3659 = vdwg.mxu0
    %3660 = vst [vmem:[#allocation4 + $0x28] sm:$0xff] %v3632
    %3661 = vst [vmem:[#allocation4 + $0x68] sm:$0xff] %v3635
    %3662 = vst [vmem:[#allocation4 + $0xa8] sm:$0xff] %v3655
    %3663 = vst [vmem:[#allocation4 + $0xe8] sm:$0xff] %v3658
    %v3664 = vld [vmem:[#allocation3 + $0x30] sm:$0xff]
    %v3665 = vld [vmem:[#allocation3 + $0x70] sm:$0xff]
    %v3666 = vmul.f32 %v3664, %v3309
    %v3667 = vmul.f32 %v3665, %v3309
    %v3668 = vadd.f32 %v3666, %v3313
    %v3669 = vadd.f32 %v3667, %v3313
    %v3670 = vmax.f32 %v3668, 0.0
    %v3671 = vmax.f32 %v3669, 0.0
    %3672 = vmatpush.msra.mxu0 %v3304
    %3673 = vmatpush.msra.mxu0 %v3302
    %3674 = vmatpush.msra.mxu0 %v3300
    %3675 = vmatpush.msra.mxu0 %v3298
    %3676 = vmatpush.msra.mxu0 %v3296
    %3677 = vmatpush.msra.mxu0 %v3294
    %3678 = vmatpush.msra.mxu0 %v3292
    %3679 = vmatpush.msra.mxu0 %v3290
    %3680 = vmatpush.msra.mxu0 %v3288
    %3681 = vmatpush.msra.mxu0 %v3286
    %3682 = vmatpush.msra.mxu0 %v3284
    %3683 = vmatpush.msra.mxu0 %v3282
    %3684 = vmatpush.msra.mxu0 %v3280
    %3685 = vmatpush.msra.mxu0 %v3278
    %3686 = vmatpush.msra.mxu0 %v3276
    %3687 = vmatpush.msra.mxu0 %v3274
    %3688 = vmatmul.f32.gmra.mxu0 %v3670
    %v3689 = vpop.f32.mrf.mxu0
    %v3690 = vadd.f32 %v3320, %v3689
    %3691 = vmatmul.f32.gmra.mxu0 %v3671
    %v3692 = vpop.f32.mrf.mxu0
    %v3693 = vadd.f32 %v3320, %v3692
    %3694 = vdwg.mxu0
    %3695 = vmatpush.msra.mxu0 %v3305
    %3696 = vmatpush.msra.mxu0 %v3303
    %3697 = vmatpush.msra.mxu0 %v3301
    %3698 = vmatpush.msra.mxu0 %v3299
    %3699 = vmatpush.msra.mxu0 %v3297
    %3700 = vmatpush.msra.mxu0 %v3295
    %3701 = vmatpush.msra.mxu0 %v3293
    %3702 = vmatpush.msra.mxu0 %v3291
    %3703 = vmatpush.msra.mxu0 %v3289
    %3704 = vmatpush.msra.mxu0 %v3287
    %3705 = vmatpush.msra.mxu0 %v3285
    %3706 = vmatpush.msra.mxu0 %v3283
    %3707 = vmatpush.msra.mxu0 %v3281
    %3708 = vmatpush.msra.mxu0 %v3279
    %3709 = vmatpush.msra.mxu0 %v3277
    %3710 = vmatpush.msra.mxu0 %v3275
    %3711 = vmatmul.f32.gmra.mxu0 %v3670
    %v3712 = vpop.f32.mrf.mxu0
    %v3713 = vadd.f32 %v3321, %v3712
    %3714 = vmatmul.f32.gmra.mxu0 %v3671
    %v3715 = vpop.f32.mrf.mxu0
    %v3716 = vadd.f32 %v3321, %v3715
    %3717 = vdwg.mxu0
    %3718 = vst [vmem:[#allocation4 + $0x30] sm:$0xff] %v3690
    %3719 = vst [vmem:[#allocation4 + $0x70] sm:$0xff] %v3693
    %3720 = vst [vmem:[#allocation4 + $0xb0] sm:$0xff] %v3713
    %3721 = vst [vmem:[#allocation4 + $0xf0] sm:$0xff] %v3716
    %v3722 = vld [vmem:[#allocation3 + $0x38] sm:$0xff]
    %v3723 = vld [vmem:[#allocation3 + $0x78] sm:$0xff]
    %v3724 = vmul.f32 %v3722, %v3309
    %v3725 = vmul.f32 %v3723, %v3309
    %v3726 = vadd.f32 %v3724, %v3313
    %v3727 = vadd.f32 %v3725, %v3313
    %v3728 = vmax.f32 %v3726, 0.0
    %v3729 = vmax.f32 %v3727, 0.0
    %3730 = vmatpush.msra.mxu0 %v3304
    %3731 = vmatpush.msra.mxu0 %v3302
    %3732 = vmatpush.msra.mxu0 %v3300
    %3733 = vmatpush.msra.mxu0 %v3298
    %3734 = vmatpush.msra.mxu0 %v3296
    %3735 = vmatpush.msra.mxu0 %v3294
    %3736 = vmatpush.msra.mxu0 %v3292
    %3737 = vmatpush.msra.mxu0 %v3290
    %3738 = vmatpush.msra.mxu0 %v3288
    %3739 = vmatpush.msra.mxu0 %v3286
    %3740 = vmatpush.msra.mxu0 %v3284
    %3741 = vmatpush.msra.mxu0 %v3282
    %3742 = vmatpush.msra.mxu0 %v3280
    %3743 = vmatpush.msra.mxu0 %v3278
    %3744 = vmatpush.msra.mxu0 %v3276
    %3745 = vmatpush.msra.mxu0 %v3274
    %3746 = vmatmul.f32.gmra.mxu0 %v3728
    %v3747 = vpop.f32.mrf.mxu0
    %v3748 = vadd.f32 %v3320, %v3747
    %3749 = vmatmul.f32.gmra.mxu0 %v3729
    %v3750 = vpop.f32.mrf.mxu0
    %v3751 = vadd.f32 %v3320, %v3750
    %3752 = vdwg.mxu0
    %3753 = vmatpush.msra.mxu0 %v3305
    %3754 = vmatpush.msra.mxu0 %v3303
    %3755 = vmatpush.msra.mxu0 %v3301
    %3756 = vmatpush.msra.mxu0 %v3299
    %3757 = vmatpush.msra.mxu0 %v3297
    %3758 = vmatpush.msra.mxu0 %v3295
    %3759 = vmatpush.msra.mxu0 %v3293
    %3760 = vmatpush.msra.mxu0 %v3291
    %3761 = vmatpush.msra.mxu0 %v3289
    %3762 = vmatpush.msra.mxu0 %v3287
    %3763 = vmatpush.msra.mxu0 %v3285
    %3764 = vmatpush.msra.mxu0 %v3283
    %3765 = vmatpush.msra.mxu0 %v3281
    %3766 = vmatpush.msra.mxu0 %v3279
    %3767 = vmatpush.msra.mxu0 %v3277
    %3768 = vmatpush.msra.mxu0 %v3275
    %3769 = vmatmul.f32.gmra.mxu0 %v3728
    %v3770 = vpop.f32.mrf.mxu0
    %v3771 = vadd.f32 %v3321, %v3770
    %3772 = vmatmul.f32.gmra.mxu0 %v3729
    %v3773 = vpop.f32.mrf.mxu0
    %v3774 = vadd.f32 %v3321, %v3773
    %3775 = vdwg.mxu0
    %3776 = vst [vmem:[#allocation4 + $0x38] sm:$0xff] %v3748
    %3777 = vst [vmem:[#allocation4 + $0x78] sm:$0xff] %v3751
    %3778 = vst [vmem:[#allocation4 + $0xb8] sm:$0xff] %v3771
    %3779 = vst [vmem:[#allocation4 + $0xf8] sm:$0xff] %v3774
    %v3780 = vld [vmem:[#allocation4] sm:$0xff]
    %v3781 = vld [vmem:[#allocation4 + $0x8] sm:$0xff]
    %v3782 = vld [vmem:[#allocation4 + $0x10] sm:$0xff]
    %v3783 = vld [vmem:[#allocation4 + $0x18] sm:$0xff]
    %v3784 = vld [vmem:[#allocation4 + $0x20] sm:$0xff]
    %v3785 = vld [vmem:[#allocation4 + $0x28] sm:$0xff]
    %v3786 = vld [vmem:[#allocation4 + $0x30] sm:$0xff]
    %v3787 = vld [vmem:[#allocation4 + $0x38] sm:$0xff]
    %v3788 = vld [vmem:[#allocation4 + $0x40] sm:$0xff]
    %v3789 = vld [vmem:[#allocation4 + $0x48] sm:$0xff]
    %v3790 = vld [vmem:[#allocation4 + $0x50] sm:$0xff]
    %v3791 = vld [vmem:[#allocation4 + $0x58] sm:$0xff]
    %v3792 = vld [vmem:[#allocation4 + $0x60] sm:$0xff]
    %v3793 = vld [vmem:[#allocation4 + $0x68] sm:$0xff]
    %v3794 = vld [vmem:[#allocation4 + $0x70] sm:$0xff]
    %v3795 = vld [vmem:[#allocation4 + $0x78] sm:$0xff]
    %v3796 = vld [vmem:[#allocation4 + $0x80] sm:$0xff]
    %v3797 = vld [vmem:[#allocation4 + $0x88] sm:$0xff]
    %v3798 = vld [vmem:[#allocation4 + $0x90] sm:$0xff]
    %v3799 = vld [vmem:[#allocation4 + $0x98] sm:$0xff]
    %v3800 = vld [vmem:[#allocation4 + $0xa0] sm:$0xff]
    %v3801 = vld [vmem:[#allocation4 + $0xa8] sm:$0xff]
    %v3802 = vld [vmem:[#allocation4 + $0xb0] sm:$0xff]
    %v3803 = vld [vmem:[#allocation4 + $0xb8] sm:$0xff]
    %v3804 = vld [vmem:[#allocation4 + $0xc0] sm:$0xff]
    %v3805 = vld [vmem:[#allocation4 + $0xc8] sm:$0xff]
    %v3806 = vld [vmem:[#allocation4 + $0xd0] sm:$0xff]
    %v3807 = vld [vmem:[#allocation4 + $0xd8] sm:$0xff]
    %v3808 = vld [vmem:[#allocation4 + $0xe0] sm:$0xff]
    %v3809 = vld [vmem:[#allocation4 + $0xe8] sm:$0xff]
    %v3810 = vld [vmem:[#allocation4 + $0xf0] sm:$0xff]
    %v3811 = vld [vmem:[#allocation4 + $0xf8] sm:$0xff]
    %v3812 = vadd.f32 %v3780, %v3788
    %v3813 = vadd.f32 %v3812, %v3796
    %v3814 = vadd.f32 %v3813, %v3804
    %v3815 = vrot.slane %v3814, 4
    %v3816 = vadd.f32 %v3814, %v3815
    %v3817 = vrot.slane %v3816, 2
    %v3818 = vadd.f32 %v3816, %v3817
    %v3819 = vrot.slane %v3818, 1
    %v3820 = vadd.f32 %v3818, %v3819
    %v3821 = vadd.f32 %v3781, %v3789
    %v3822 = vadd.f32 %v3821, %v3797
    %v3823 = vadd.f32 %v3822, %v3805
    %v3824 = vrot.slane %v3823, 4
    %v3825 = vadd.f32 %v3823, %v3824
    %v3826 = vrot.slane %v3825, 2
    %v3827 = vadd.f32 %v3825, %v3826
    %v3828 = vrot.slane %v3827, 1
    %v3829 = vadd.f32 %v3827, %v3828
    %v3830 = vadd.f32 %v3782, %v3790
    %v3831 = vadd.f32 %v3830, %v3798
    %v3832 = vadd.f32 %v3831, %v3806
    %v3833 = vrot.slane %v3832, 4
    %v3834 = vadd.f32 %v3832, %v3833
    %v3835 = vrot.slane %v3834, 2
    %v3836 = vadd.f32 %v3834, %v3835
    %v3837 = vrot.slane %v3836, 1
    %v3838 = vadd.f32 %v3836, %v3837
    %v3839 = vadd.f32 %v3783, %v3791
    %v3840 = vadd.f32 %v3839, %v3799
    %v3841 = vadd.f32 %v3840, %v3807
    %v3842 = vrot.slane %v3841, 4
    %v3843 = vadd.f32 %v3841, %v3842
    %v3844 = vrot.slane %v3843, 2
    %v3845 = vadd.f32 %v3843, %v3844
    %v3846 = vrot.slane %v3845, 1
    %v3847 = vadd.f32 %v3845, %v3846
    %v3848 = vadd.f32 %v3784, %v3792
    %v3849 = vadd.f32 %v3848, %v3800
    %v3850 = vadd.f32 %v3849, %v3808
    %v3851 = vrot.slane %v3850, 4
    %v3852 = vadd.f32 %v3850, %v3851
    %v3853 = vrot.slane %v3852, 2
    %v3854 = vadd.f32 %v3852, %v3853
    %v3855 = vrot.slane %v3854, 1
    %v3856 = vadd.f32 %v3854, %v3855
    %v3857 = vadd.f32 %v3785, %v3793
    %v3858 = vadd.f32 %v3857, %v3801
    %v3859 = vadd.f32 %v3858, %v3809
    %v3860 = vrot.slane %v3859, 4
    %v3861 = vadd.f32 %v3859, %v3860
    %v3862 = vrot.slane %v3861, 2
    %v3863 = vadd.f32 %v3861, %v3862
    %v3864 = vrot.slane %v3863, 1
    %v3865 = vadd.f32 %v3863, %v3864
    %v3866 = vadd.f32 %v3786, %v3794
    %v3867 = vadd.f32 %v3866, %v3802
    %v3868 = vadd.f32 %v3867, %v3810
    %v3869 = vrot.slane %v3868, 4
    %v3870 = vadd.f32 %v3868, %v3869
    %v3871 = vrot.slane %v3870, 2
    %v3872 = vadd.f32 %v3870, %v3871
    %v3873 = vrot.slane %v3872, 1
    %v3874 = vadd.f32 %v3872, %v3873
    %v3875 = vadd.f32 %v3787, %v3795
    %v3876 = vadd.f32 %v3875, %v3803
    %v3877 = vadd.f32 %v3876, %v3811
    %v3878 = vrot.slane %v3877, 4
    %v3879 = vadd.f32 %v3877, %v3878
    %v3880 = vrot.slane %v3879, 2
    %v3881 = vadd.f32 %v3879, %v3880
    %v3882 = vrot.slane %v3881, 1
    %v3883 = vadd.f32 %v3881, %v3882
    %v3884 = vmul.f32 %v3780, %v3780
    %v3885 = vmul.f32 %v3781, %v3781
    %v3886 = vmul.f32 %v3782, %v3782
    %v3887 = vmul.f32 %v3783, %v3783
    %v3888 = vmul.f32 %v3784, %v3784
    %v3889 = vmul.f32 %v3785, %v3785
    %v3890 = vmul.f32 %v3786, %v3786
    %v3891 = vmul.f32 %v3787, %v3787
    %v3892 = vmul.f32 %v3788, %v3788
    %v3893 = vmul.f32 %v3789, %v3789
    %v3894 = vmul.f32 %v3790, %v3790
    %v3895 = vmul.f32 %v3791, %v3791
    %v3896 = vmul.f32 %v3792, %v3792
    %v3897 = vmul.f32 %v3793, %v3793
    %v3898 = vmul.f32 %v3794, %v3794
    %v3899 = vmul.f32 %v3795, %v3795
    %v3900 = vmul.f32 %v3796, %v3796
    %v3901 = vmul.f32 %v3797, %v3797
    %v3902 = vmul.f32 %v3798, %v3798
    %v3903 = vmul.f32 %v3799, %v3799
    %v3904 = vmul.f32 %v3800, %v3800
    %v3905 = vmul.f32 %v3801, %v3801
    %v3906 = vmul.f32 %v3802, %v3802
    %v3907 = vmul.f32 %v3803, %v3803
    %v3908 = vmul.f32 %v3804, %v3804
    %v3909 = vmul.f32 %v3805, %v3805
    %v3910 = vmul.f32 %v3806, %v3806
    %v3911 = vmul.f32 %v3807, %v3807
    %v3912 = vmul.f32 %v3808, %v3808
    %v3913 = vmul.f32 %v3809, %v3809
    %v3914 = vmul.f32 %v3810, %v3810
    %v3915 = vmul.f32 %v3811, %v3811
    %v3916 = vadd.f32 %v3884, %v3892
    %v3917 = vadd.f32 %v3916, %v3900
    %v3918 = vadd.f32 %v3917, %v3908
    %v3919 = vrot.slane %v3918, 4
    %v3920 = vadd.f32 %v3918, %v3919
    %v3921 = vrot.slane %v3920, 2
    %v3922 = vadd.f32 %v3920, %v3921
    %v3923 = vrot.slane %v3922, 1
    %v3924 = vadd.f32 %v3922, %v3923
    %v3925 = vadd.f32 %v3885, %v3893
    %v3926 = vadd.f32 %v3925, %v3901
    %v3927 = vadd.f32 %v3926, %v3909
    %v3928 = vrot.slane %v3927, 4
    %v3929 = vadd.f32 %v3927, %v3928
    %v3930 = vrot.slane %v3929, 2
    %v3931 = vadd.f32 %v3929, %v3930
    %v3932 = vrot.slane %v3931, 1
    %v3933 = vadd.f32 %v3931, %v3932
    %v3934 = vadd.f32 %v3886, %v3894
    %v3935 = vadd.f32 %v3934, %v3902
    %v3936 = vadd.f32 %v3935, %v3910
    %v3937 = vrot.slane %v3936, 4
    %v3938 = vadd.f32 %v3936, %v3937
    %v3939 = vrot.slane %v3938, 2
    %v3940 = vadd.f32 %v3938, %v3939
    %v3941 = vrot.slane %v3940, 1
    %v3942 = vadd.f32 %v3940, %v3941
    %v3943 = vadd.f32 %v3887, %v3895
    %v3944 = vadd.f32 %v3943, %v3903
    %v3945 = vadd.f32 %v3944, %v3911
    %v3946 = vrot.slane %v3945, 4
    %v3947 = vadd.f32 %v3945, %v3946
    %v3948 = vrot.slane %v3947, 2
    %v3949 = vadd.f32 %v3947, %v3948
    %v3950 = vrot.slane %v3949, 1
    %v3951 = vadd.f32 %v3949, %v3950
    %v3952 = vadd.f32 %v3888, %v3896
    %v3953 = vadd.f32 %v3952, %v3904
    %v3954 = vadd.f32 %v3953, %v3912
    %v3955 = vrot.slane %v3954, 4
    %v3956 = vadd.f32 %v3954, %v3955
    %v3957 = vrot.slane %v3956, 2
    %v3958 = vadd.f32 %v3956, %v3957
    %v3959 = vrot.slane %v3958, 1
    %v3960 = vadd.f32 %v3958, %v3959
    %v3961 = vadd.f32 %v3889, %v3897
    %v3962 = vadd.f32 %v3961, %v3905
    %v3963 = vadd.f32 %v3962, %v3913
    %v3964 = vrot.slane %v3963, 4
    %v3965 = vadd.f32 %v3963, %v3964
    %v3966 = vrot.slane %v3965, 2
    %v3967 = vadd.f32 %v3965, %v3966
    %v3968 = vrot.slane %v3967, 1
    %v3969 = vadd.f32 %v3967, %v3968
    %v3970 = vadd.f32 %v3890, %v3898
    %v3971 = vadd.f32 %v3970, %v3906
    %v3972 = vadd.f32 %v3971, %v3914
    %v3973 = vrot.slane %v3972, 4
    %v3974 = vadd.f32 %v3972, %v3973
    %v3975 = vrot.slane %v3974, 2
    %v3976 = vadd.f32 %v3974, %v3975
    %v3977 = vrot.slane %v3976, 1
    %v3978 = vadd.f32 %v3976, %v3977
    %v3979 = vadd.f32 %v3891, %v3899
    %v3980 = vadd.f32 %v3979, %v3907
    %v3981 = vadd.f32 %v3980, %v3915
    %v3982 = vrot.slane %v3981, 4
    %v3983 = vadd.f32 %v3981, %v3982
    %v3984 = vrot.slane %v3983, 2
    %v3985 = vadd.f32 %v3983, %v3984
    %v3986 = vrot.slane %v3985, 1
    %v3987 = vadd.f32 %v3985, %v3986
    %3989 = vrot.lane.b32.xlu0 %v3820, 64
    %v3990 = vpop.permute.xlu0 %3989
    %v3992 = vadd.f32 %v3820, %v3990
    %3994 = vrot.lane.b32.xlu0 %v3924, 64
    %v3995 = vpop.permute.xlu0 %3994
    %v3997 = vadd.f32 %v3924, %v3995
    %v3998 = vadd.f32 %v3992, %v3829
    %v3999 = vadd.f32 %v3997, %v3933
    %4001 = vrot.lane.b32.xlu0 %v3829, 64
    %v4002 = vpop.permute.xlu0 %4001
    %v4004 = vadd.f32 %v3998, %v4002
    %4006 = vrot.lane.b32.xlu0 %v3933, 64
    %v4007 = vpop.permute.xlu0 %4006
    %v4009 = vadd.f32 %v3999, %v4007
    %v4010 = vadd.f32 %v4004, %v3838
    %v4011 = vadd.f32 %v4009, %v3942
    %4013 = vrot.lane.b32.xlu0 %v3838, 64
    %v4014 = vpop.permute.xlu0 %4013
    %v4016 = vadd.f32 %v4010, %v4014
    %4018 = vrot.lane.b32.xlu0 %v3942, 64
    %v4019 = vpop.permute.xlu0 %4018
    %v4021 = vadd.f32 %v4011, %v4019
    %v4022 = vadd.f32 %v4016, %v3847
    %v4023 = vadd.f32 %v4021, %v3951
    %4025 = vrot.lane.b32.xlu0 %v3847, 64
    %v4026 = vpop.permute.xlu0 %4025
    %v4028 = vadd.f32 %v4022, %v4026
    %4030 = vrot.lane.b32.xlu0 %v3951, 64
    %v4031 = vpop.permute.xlu0 %4030
    %v4033 = vadd.f32 %v4023, %v4031
    %v4034 = vadd.f32 %v4028, %v3856
    %v4035 = vadd.f32 %v4033, %v3960
    %4037 = vrot.lane.b32.xlu0 %v3856, 64
    %v4038 = vpop.permute.xlu0 %4037
    %v4040 = vadd.f32 %v4034, %v4038
    %4042 = vrot.lane.b32.xlu0 %v3960, 64
    %v4043 = vpop.permute.xlu0 %4042
    %v4045 = vadd.f32 %v4035, %v4043
    %v4046 = vadd.f32 %v4040, %v3865
    %v4047 = vadd.f32 %v4045, %v3969
    %4049 = vrot.lane.b32.xlu0 %v3865, 64
    %v4050 = vpop.permute.xlu0 %4049
    %v4052 = vadd.f32 %v4046, %v4050
    %4054 = vrot.lane.b32.xlu0 %v3969, 64
    %v4055 = vpop.permute.xlu0 %4054
    %v4057 = vadd.f32 %v4047, %v4055
    %v4058 = vadd.f32 %v4052, %v3874
    %v4059 = vadd.f32 %v4057, %v3978
    %4061 = vrot.lane.b32.xlu0 %v3874, 64
    %v4062 = vpop.permute.xlu0 %4061
    %v4064 = vadd.f32 %v4058, %v4062
    %4066 = vrot.lane.b32.xlu0 %v3978, 64
    %v4067 = vpop.permute.xlu0 %4066
    %v4069 = vadd.f32 %v4059, %v4067
    %v4070 = vadd.f32 %v4064, %v3883
    %v4071 = vadd.f32 %v4069, %v3987
    %4073 = vrot.lane.b32.xlu0 %v3883, 64
    %v4074 = vpop.permute.xlu0 %4073
    %v4076 = vadd.f32 %v4070, %v4074
    %4078 = vrot.lane.b32.xlu0 %v3987, 64
    %v4079 = vpop.permute.xlu0 %4078
    %v4081 = vadd.f32 %v4071, %v4079
    %v4082 = vrcp.pop 512.0
    %v4083 = vmul.f32 512.0, %v4082
    %v4084 = vsub.f32 1.0, %v4083
    %v4085 = vmul.f32 %v4082, %v4084
    %v4086 = vadd.f32 %v4082, %v4085
    %vm4087 = vweird.f32 %v4082
    %v4088 = vsel %vm4087, %v4082, %v4086
    %v4089 = vmul.f32 %v4076, %v4088
    %v4090 = vmul.f32 %v4081, %v4088
    %v4091 = vmul.f32 %v4089, %v4089
    %v4092 = vsub.f32 %v4090, %v4091
    %v4093 = vadd.f32 %v4092, 1e-05
    %v4094 = vrsqrt.pop %v4093
    %v4095 = vmul.f32 %v4094, %v4093
    %v4096 = vmul.f32 %v4095, %v4094
    %v4097 = vmul.f32 0.5, %v4096
    %v4098 = vsub.f32 1.5, %v4097
    %v4099 = vmul.f32 %v4094, %v4098
    %vm4100 = vweird.f32 %v4093
    %vm4101 = vweird.f32 %v4094
    %vm4102 = vmor %vm4100, %vm4101
    %v4103 = vsel %vm4102, %v4094, %v4099
    %v4104 = vld [vmem:[%s11] sm:$0x1]
    %v4105 = vmul.f32 %v4103, %v4104
    %v4106 = vld [vmem:[%s12] sm:$0x1]
    %v4107 = vmul.f32 %v4089, %v4105
    %v4108 = vsub.f32 %v4106, %v4107
    %v4109 = vld [vmem:[#allocation4] sm:$0xff]
    %v4110 = vld [vmem:[#allocation4 + $0x40] sm:$0xff]
    %v4111 = vld [vmem:[#allocation4 + $0x80] sm:$0xff]
    %v4112 = vld [vmem:[#allocation4 + $0xc0] sm:$0xff]
    %v4113 = vperm.slane %v4105, 0
    %v4114 = vmul.f32 %v4109, %v4113
    %v4115 = vmul.f32 %v4110, %v4113
    %v4116 = vmul.f32 %v4111, %v4113
    %v4117 = vmul.f32 %v4112, %v4113
    %v4119 = vperm.slane %v4108, 0
    %v4121 = vadd.f32 %v4114, %v4119
    %v4122 = vadd.f32 %v4115, %v4119
    %v4123 = vadd.f32 %v4116, %v4119
    %v4124 = vadd.f32 %v4117, %v4119
    %v4125 = vmax.f32 %v4121, 0.0
    %v4126 = vmax.f32 %v4122, 0.0
    %v4127 = vmax.f32 %v4123, 0.0
    %v4128 = vmax.f32 %v4124, 0.0
    %vm4129 = vcmask 523264
    %4130 = vst.msk [vmem:[#allocation4] sm:$0xff] %vm4129, %v4125
    %4131 = vst.msk [vmem:[#allocation4 + $0x40] sm:$0xff] %vm4129, %v4126
    %4132 = vst.msk [vmem:[#allocation4 + $0x80] sm:$0xff] %vm4129, %v4127
    %4133 = vst.msk [vmem:[#allocation4 + $0xc0] sm:$0xff] %vm4129, %v4128
    %v4134 = vld [vmem:[#allocation4] sm:$0xff]
    %v4135 = vld [vmem:[#allocation4 + $0x40] sm:$0xff]
    %v4136 = vld [vmem:[#allocation4 + $0x80] sm:$0xff]
    %v4137 = vld [vmem:[#allocation4 + $0xc0] sm:$0xff]
    %4139 = vrot.lane.b32.xlu0 %v4113, 64
    %v4140 = vpop.permute.xlu0 %4139
    %v4142 = vmul.f32 %v4134, %v4140
    %v4143 = vmul.f32 %v4135, %v4140
    %v4144 = vmul.f32 %v4136, %v4140
    %v4145 = vmul.f32 %v4137, %v4140
    %4146 = vrot.lane.b32.xlu0 %v4119, 64
    %v4147 = vpop.permute.xlu0 %4146
    %v4149 = vadd.f32 %v4142, %v4147
    %v4150 = vadd.f32 %v4143, %v4147
    %v4151 = vadd.f32 %v4144, %v4147
    %v4152 = vadd.f32 %v4145, %v4147
    %v4153 = vmax.f32 %v4149, 0.0
    %v4154 = vmax.f32 %v4150, 0.0
    %v4155 = vmax.f32 %v4151, 0.0
    %v4156 = vmax.f32 %v4152, 0.0
    %vm4157 = vcmask 1048064
    %4158 = vst.msk [vmem:[#allocation4] sm:$0xff] %vm4157, %v4153
    %4159 = vst.msk [vmem:[#allocation4 + $0x40] sm:$0xff] %vm4157, %v4154
    %4160 = vst.msk [vmem:[#allocation4 + $0x80] sm:$0xff] %vm4157, %v4155
    %4161 = vst.msk [vmem:[#allocation4 + $0xc0] sm:$0xff] %vm4157, %v4156
    %v4162 = vld [vmem:[#allocation4 + $0x8] sm:$0xff]
    %v4163 = vld [vmem:[#allocation4 + $0x48] sm:$0xff]
    %v4164 = vld [vmem:[#allocation4 + $0x88] sm:$0xff]
    %v4165 = vld [vmem:[#allocation4 + $0xc8] sm:$0xff]
    %v4166 = vmul.f32 %v4162, %v4113
    %v4167 = vmul.f32 %v4163, %v4113
    %v4168 = vmul.f32 %v4164, %v4113
    %v4169 = vmul.f32 %v4165, %v4113
    %v4170 = vadd.f32 %v4166, %v4119
    %v4171 = vadd.f32 %v4167, %v4119
    %v4172 = vadd.f32 %v4168, %v4119
    %v4173 = vadd.f32 %v4169, %v4119
    %v4174 = vmax.f32 %v4170, 0.0
    %v4175 = vmax.f32 %v4171, 0.0
    %v4176 = vmax.f32 %v4172, 0.0
    %v4177 = vmax.f32 %v4173, 0.0
    %4178 = vst.msk [vmem:[#allocation4 + $0x8] sm:$0xff] %vm4129, %v4174
    %4179 = vst.msk [vmem:[#allocation4 + $0x48] sm:$0xff] %vm4129, %v4175
    %4180 = vst.msk [vmem:[#allocation4 + $0x88] sm:$0xff] %vm4129, %v4176
    %4181 = vst.msk [vmem:[#allocation4 + $0xc8] sm:$0xff] %vm4129, %v4177
    %v4182 = vld [vmem:[#allocation4 + $0x8] sm:$0xff]
    %v4183 = vld [vmem:[#allocation4 + $0x48] sm:$0xff]
    %v4184 = vld [vmem:[#allocation4 + $0x88] sm:$0xff]
    %v4185 = vld [vmem:[#allocation4 + $0xc8] sm:$0xff]
    %v4186 = vmul.f32 %v4182, %v4140
    %v4187 = vmul.f32 %v4183, %v4140
    %v4188 = vmul.f32 %v4184, %v4140
    %v4189 = vmul.f32 %v4185, %v4140
    %v4190 = vadd.f32 %v4186, %v4147
    %v4191 = vadd.f32 %v4187, %v4147
    %v4192 = vadd.f32 %v4188, %v4147
    %v4193 = vadd.f32 %v4189, %v4147
    %v4194 = vmax.f32 %v4190, 0.0
    %v4195 = vmax.f32 %v4191, 0.0
    %v4196 = vmax.f32 %v4192, 0.0
    %v4197 = vmax.f32 %v4193, 0.0
    %4198 = vst.msk [vmem:[#allocation4 + $0x8] sm:$0xff] %vm4157, %v4194
    %4199 = vst.msk [vmem:[#allocation4 + $0x48] sm:$0xff] %vm4157, %v4195
    %4200 = vst.msk [vmem:[#allocation4 + $0x88] sm:$0xff] %vm4157, %v4196
    %4201 = vst.msk [vmem:[#allocation4 + $0xc8] sm:$0xff] %vm4157, %v4197
    %v4202 = vld [vmem:[#allocation4 + $0x10] sm:$0xff]
    %v4203 = vld [vmem:[#allocation4 + $0x50] sm:$0xff]
    %v4204 = vld [vmem:[#allocation4 + $0x90] sm:$0xff]
    %v4205 = vld [vmem:[#allocation4 + $0xd0] sm:$0xff]
    %v4206 = vmul.f32 %v4202, %v4113
    %v4207 = vmul.f32 %v4203, %v4113
    %v4208 = vmul.f32 %v4204, %v4113
    %v4209 = vmul.f32 %v4205, %v4113
    %v4210 = vadd.f32 %v4206, %v4119
    %v4211 = vadd.f32 %v4207, %v4119
    %v4212 = vadd.f32 %v4208, %v4119
    %v4213 = vadd.f32 %v4209, %v4119
    %v4214 = vmax.f32 %v4210, 0.0
    %v4215 = vmax.f32 %v4211, 0.0
    %v4216 = vmax.f32 %v4212, 0.0
    %v4217 = vmax.f32 %v4213, 0.0
    %4218 = vst.msk [vmem:[#allocation4 + $0x10] sm:$0xff] %vm4129, %v4214
    %4219 = vst.msk [vmem:[#allocation4 + $0x50] sm:$0xff] %vm4129, %v4215
    %4220 = vst.msk [vmem:[#allocation4 + $0x90] sm:$0xff] %vm4129, %v4216
    %4221 = vst.msk [vmem:[#allocation4 + $0xd0] sm:$0xff] %vm4129, %v4217
    %v4222 = vld [vmem:[#allocation4 + $0x10] sm:$0xff]
    %v4223 = vld [vmem:[#allocation4 + $0x50] sm:$0xff]
    %v4224 = vld [vmem:[#allocation4 + $0x90] sm:$0xff]
    %v4225 = vld [vmem:[#allocation4 + $0xd0] sm:$0xff]
    %v4226 = vmul.f32 %v4222, %v4140
    %v4227 = vmul.f32 %v4223, %v4140
    %v4228 = vmul.f32 %v4224, %v4140
    %v4229 = vmul.f32 %v4225, %v4140
    %v4230 = vadd.f32 %v4226, %v4147
    %v4231 = vadd.f32 %v4227, %v4147
    %v4232 = vadd.f32 %v4228, %v4147
    %v4233 = vadd.f32 %v4229, %v4147
    %v4234 = vmax.f32 %v4230, 0.0
    %v4235 = vmax.f32 %v4231, 0.0
    %v4236 = vmax.f32 %v4232, 0.0
    %v4237 = vmax.f32 %v4233, 0.0
    %4238 = vst.msk [vmem:[#allocation4 + $0x10] sm:$0xff] %vm4157, %v4234
    %4239 = vst.msk [vmem:[#allocation4 + $0x50] sm:$0xff] %vm4157, %v4235
    %4240 = vst.msk [vmem:[#allocation4 + $0x90] sm:$0xff] %vm4157, %v4236
    %4241 = vst.msk [vmem:[#allocation4 + $0xd0] sm:$0xff] %vm4157, %v4237
    %v4242 = vld [vmem:[#allocation4 + $0x18] sm:$0xff]
    %v4243 = vld [vmem:[#allocation4 + $0x58] sm:$0xff]
    %v4244 = vld [vmem:[#allocation4 + $0x98] sm:$0xff]
    %v4245 = vld [vmem:[#allocation4 + $0xd8] sm:$0xff]
    %v4246 = vmul.f32 %v4242, %v4113
    %v4247 = vmul.f32 %v4243, %v4113
    %v4248 = vmul.f32 %v4244, %v4113
    %v4249 = vmul.f32 %v4245, %v4113
    %v4250 = vadd.f32 %v4246, %v4119
    %v4251 = vadd.f32 %v4247, %v4119
    %v4252 = vadd.f32 %v4248, %v4119
    %v4253 = vadd.f32 %v4249, %v4119
    %v4254 = vmax.f32 %v4250, 0.0
    %v4255 = vmax.f32 %v4251, 0.0
    %v4256 = vmax.f32 %v4252, 0.0
    %v4257 = vmax.f32 %v4253, 0.0
    %4258 = vst.msk [vmem:[#allocation4 + $0x18] sm:$0xff] %vm4129, %v4254
    %4259 = vst.msk [vmem:[#allocation4 + $0x58] sm:$0xff] %vm4129, %v4255
    %4260 = vst.msk [vmem:[#allocation4 + $0x98] sm:$0xff] %vm4129, %v4256
    %4261 = vst.msk [vmem:[#allocation4 + $0xd8] sm:$0xff] %vm4129, %v4257
    %v4262 = vld [vmem:[#allocation4 + $0x18] sm:$0xff]
    %v4263 = vld [vmem:[#allocation4 + $0x58] sm:$0xff]
    %v4264 = vld [vmem:[#allocation4 + $0x98] sm:$0xff]
    %v4265 = vld [vmem:[#allocation4 + $0xd8] sm:$0xff]
    %v4266 = vmul.f32 %v4262, %v4140
    %v4267 = vmul.f32 %v4263, %v4140
    %v4268 = vmul.f32 %v4264, %v4140
    %v4269 = vmul.f32 %v4265, %v4140
    %v4270 = vadd.f32 %v4266, %v4147
    %v4271 = vadd.f32 %v4267, %v4147
    %v4272 = vadd.f32 %v4268, %v4147
    %v4273 = vadd.f32 %v4269, %v4147
    %v4274 = vmax.f32 %v4270, 0.0
    %v4275 = vmax.f32 %v4271, 0.0
    %v4276 = vmax.f32 %v4272, 0.0
    %v4277 = vmax.f32 %v4273, 0.0
    %4278 = vst.msk [vmem:[#allocation4 + $0x18] sm:$0xff] %vm4157, %v4274
    %4279 = vst.msk [vmem:[#allocation4 + $0x58] sm:$0xff] %vm4157, %v4275
    %4280 = vst.msk [vmem:[#allocation4 + $0x98] sm:$0xff] %vm4157, %v4276
    %4281 = vst.msk [vmem:[#allocation4 + $0xd8] sm:$0xff] %vm4157, %v4277
    %v4282 = vld [vmem:[#allocation4 + $0x20] sm:$0xff]
    %v4283 = vld [vmem:[#allocation4 + $0x60] sm:$0xff]
    %v4284 = vld [vmem:[#allocation4 + $0xa0] sm:$0xff]
    %v4285 = vld [vmem:[#allocation4 + $0xe0] sm:$0xff]
    %v4286 = vmul.f32 %v4282, %v4113
    %v4287 = vmul.f32 %v4283, %v4113
    %v4288 = vmul.f32 %v4284, %v4113
    %v4289 = vmul.f32 %v4285, %v4113
    %v4290 = vadd.f32 %v4286, %v4119
    %v4291 = vadd.f32 %v4287, %v4119
    %v4292 = vadd.f32 %v4288, %v4119
    %v4293 = vadd.f32 %v4289, %v4119
    %v4294 = vmax.f32 %v4290, 0.0
    %v4295 = vmax.f32 %v4291, 0.0
    %v4296 = vmax.f32 %v4292, 0.0
    %v4297 = vmax.f32 %v4293, 0.0
    %4298 = vst.msk [vmem:[#allocation4 + $0x20] sm:$0xff] %vm4129, %v4294
    %4299 = vst.msk [vmem:[#allocation4 + $0x60] sm:$0xff] %vm4129, %v4295
    %4300 = vst.msk [vmem:[#allocation4 + $0xa0] sm:$0xff] %vm4129, %v4296
    %4301 = vst.msk [vmem:[#allocation4 + $0xe0] sm:$0xff] %vm4129, %v4297
    %v4302 = vld [vmem:[#allocation4 + $0x20] sm:$0xff]
    %v4303 = vld [vmem:[#allocation4 + $0x60] sm:$0xff]
    %v4304 = vld [vmem:[#allocation4 + $0xa0] sm:$0xff]
    %v4305 = vld [vmem:[#allocation4 + $0xe0] sm:$0xff]
    %v4306 = vmul.f32 %v4302, %v4140
    %v4307 = vmul.f32 %v4303, %v4140
    %v4308 = vmul.f32 %v4304, %v4140
    %v4309 = vmul.f32 %v4305, %v4140
    %v4310 = vadd.f32 %v4306, %v4147
    %v4311 = vadd.f32 %v4307, %v4147
    %v4312 = vadd.f32 %v4308, %v4147
    %v4313 = vadd.f32 %v4309, %v4147
    %v4314 = vmax.f32 %v4310, 0.0
    %v4315 = vmax.f32 %v4311, 0.0
    %v4316 = vmax.f32 %v4312, 0.0
    %v4317 = vmax.f32 %v4313, 0.0
    %4318 = vst.msk [vmem:[#allocation4 + $0x20] sm:$0xff] %vm4157, %v4314
    %4319 = vst.msk [vmem:[#allocation4 + $0x60] sm:$0xff] %vm4157, %v4315
    %4320 = vst.msk [vmem:[#allocation4 + $0xa0] sm:$0xff] %vm4157, %v4316
    %4321 = vst.msk [vmem:[#allocation4 + $0xe0] sm:$0xff] %vm4157, %v4317
    %v4322 = vld [vmem:[#allocation4 + $0x28] sm:$0xff]
    %v4323 = vld [vmem:[#allocation4 + $0x68] sm:$0xff]
    %v4324 = vld [vmem:[#allocation4 + $0xa8] sm:$0xff]
    %v4325 = vld [vmem:[#allocation4 + $0xe8] sm:$0xff]
    %v4326 = vmul.f32 %v4322, %v4113
    %v4327 = vmul.f32 %v4323, %v4113
    %v4328 = vmul.f32 %v4324, %v4113
    %v4329 = vmul.f32 %v4325, %v4113
    %v4330 = vadd.f32 %v4326, %v4119
    %v4331 = vadd.f32 %v4327, %v4119
    %v4332 = vadd.f32 %v4328, %v4119
    %v4333 = vadd.f32 %v4329, %v4119
    %v4334 = vmax.f32 %v4330, 0.0
    %v4335 = vmax.f32 %v4331, 0.0
    %v4336 = vmax.f32 %v4332, 0.0
    %v4337 = vmax.f32 %v4333, 0.0
    %4338 = vst.msk [vmem:[#allocation4 + $0x28] sm:$0xff] %vm4129, %v4334
    %4339 = vst.msk [vmem:[#allocation4 + $0x68] sm:$0xff] %vm4129, %v4335
    %4340 = vst.msk [vmem:[#allocation4 + $0xa8] sm:$0xff] %vm4129, %v4336
    %4341 = vst.msk [vmem:[#allocation4 + $0xe8] sm:$0xff] %vm4129, %v4337
    %v4342 = vld [vmem:[#allocation4 + $0x28] sm:$0xff]
    %v4343 = vld [vmem:[#allocation4 + $0x68] sm:$0xff]
    %v4344 = vld [vmem:[#allocation4 + $0xa8] sm:$0xff]
    %v4345 = vld [vmem:[#allocation4 + $0xe8] sm:$0xff]
    %v4346 = vmul.f32 %v4342, %v4140
    %v4347 = vmul.f32 %v4343, %v4140
    %v4348 = vmul.f32 %v4344, %v4140
    %v4349 = vmul.f32 %v4345, %v4140
    %v4350 = vadd.f32 %v4346, %v4147
    %v4351 = vadd.f32 %v4347, %v4147
    %v4352 = vadd.f32 %v4348, %v4147
    %v4353 = vadd.f32 %v4349, %v4147
    %v4354 = vmax.f32 %v4350, 0.0
    %v4355 = vmax.f32 %v4351, 0.0
    %v4356 = vmax.f32 %v4352, 0.0
    %v4357 = vmax.f32 %v4353, 0.0
    %4358 = vst.msk [vmem:[#allocation4 + $0x28] sm:$0xff] %vm4157, %v4354
    %4359 = vst.msk [vmem:[#allocation4 + $0x68] sm:$0xff] %vm4157, %v4355
    %4360 = vst.msk [vmem:[#allocation4 + $0xa8] sm:$0xff] %vm4157, %v4356
    %4361 = vst.msk [vmem:[#allocation4 + $0xe8] sm:$0xff] %vm4157, %v4357
    %v4362 = vld [vmem:[#allocation4 + $0x30] sm:$0xff]
    %v4363 = vld [vmem:[#allocation4 + $0x70] sm:$0xff]
    %v4364 = vld [vmem:[#allocation4 + $0xb0] sm:$0xff]
    %v4365 = vld [vmem:[#allocation4 + $0xf0] sm:$0xff]
    %v4366 = vmul.f32 %v4362, %v4113
    %v4367 = vmul.f32 %v4363, %v4113
    %v4368 = vmul.f32 %v4364, %v4113
    %v4369 = vmul.f32 %v4365, %v4113
    %v4370 = vadd.f32 %v4366, %v4119
    %v4371 = vadd.f32 %v4367, %v4119
    %v4372 = vadd.f32 %v4368, %v4119
    %v4373 = vadd.f32 %v4369, %v4119
    %v4374 = vmax.f32 %v4370, 0.0
    %v4375 = vmax.f32 %v4371, 0.0
    %v4376 = vmax.f32 %v4372, 0.0
    %v4377 = vmax.f32 %v4373, 0.0
    %4378 = vst.msk [vmem:[#allocation4 + $0x30] sm:$0xff] %vm4129, %v4374
    %4379 = vst.msk [vmem:[#allocation4 + $0x70] sm:$0xff] %vm4129, %v4375
    %4380 = vst.msk [vmem:[#allocation4 + $0xb0] sm:$0xff] %vm4129, %v4376
    %4381 = vst.msk [vmem:[#allocation4 + $0xf0] sm:$0xff] %vm4129, %v4377
    %v4382 = vld [vmem:[#allocation4 + $0x30] sm:$0xff]
    %v4383 = vld [vmem:[#allocation4 + $0x70] sm:$0xff]
    %v4384 = vld [vmem:[#allocation4 + $0xb0] sm:$0xff]
    %v4385 = vld [vmem:[#allocation4 + $0xf0] sm:$0xff]
    %v4386 = vmul.f32 %v4382, %v4140
    %v4387 = vmul.f32 %v4383, %v4140
    %v4388 = vmul.f32 %v4384, %v4140
    %v4389 = vmul.f32 %v4385, %v4140
    %v4390 = vadd.f32 %v4386, %v4147
    %v4391 = vadd.f32 %v4387, %v4147
    %v4392 = vadd.f32 %v4388, %v4147
    %v4393 = vadd.f32 %v4389, %v4147
    %v4394 = vmax.f32 %v4390, 0.0
    %v4395 = vmax.f32 %v4391, 0.0
    %v4396 = vmax.f32 %v4392, 0.0
    %v4397 = vmax.f32 %v4393, 0.0
    %4398 = vst.msk [vmem:[#allocation4 + $0x30] sm:$0xff] %vm4157, %v4394
    %4399 = vst.msk [vmem:[#allocation4 + $0x70] sm:$0xff] %vm4157, %v4395
    %4400 = vst.msk [vmem:[#allocation4 + $0xb0] sm:$0xff] %vm4157, %v4396
    %4401 = vst.msk [vmem:[#allocation4 + $0xf0] sm:$0xff] %vm4157, %v4397
    %v4402 = vld [vmem:[#allocation4 + $0x38] sm:$0xff]
    %v4403 = vld [vmem:[#allocation4 + $0x78] sm:$0xff]
    %v4404 = vld [vmem:[#allocation4 + $0xb8] sm:$0xff]
    %v4405 = vld [vmem:[#allocation4 + $0xf8] sm:$0xff]
    %v4406 = vmul.f32 %v4402, %v4113
    %v4407 = vmul.f32 %v4403, %v4113
    %v4408 = vmul.f32 %v4404, %v4113
    %v4409 = vmul.f32 %v4405, %v4113
    %v4410 = vadd.f32 %v4406, %v4119
    %v4411 = vadd.f32 %v4407, %v4119
    %v4412 = vadd.f32 %v4408, %v4119
    %v4413 = vadd.f32 %v4409, %v4119
    %v4414 = vmax.f32 %v4410, 0.0
    %v4415 = vmax.f32 %v4411, 0.0
    %v4416 = vmax.f32 %v4412, 0.0
    %v4417 = vmax.f32 %v4413, 0.0
    %4418 = vst.msk [vmem:[#allocation4 + $0x38] sm:$0xff] %vm4129, %v4414
    %4419 = vst.msk [vmem:[#allocation4 + $0x78] sm:$0xff] %vm4129, %v4415
    %4420 = vst.msk [vmem:[#allocation4 + $0xb8] sm:$0xff] %vm4129, %v4416
    %4421 = vst.msk [vmem:[#allocation4 + $0xf8] sm:$0xff] %vm4129, %v4417
    %v4422 = vld [vmem:[#allocation4 + $0x38] sm:$0xff]
    %v4423 = vld [vmem:[#allocation4 + $0x78] sm:$0xff]
    %v4424 = vld [vmem:[#allocation4 + $0xb8] sm:$0xff]
    %v4425 = vld [vmem:[#allocation4 + $0xf8] sm:$0xff]
    %v4426 = vmul.f32 %v4422, %v4140
    %v4427 = vmul.f32 %v4423, %v4140
    %v4428 = vmul.f32 %v4424, %v4140
    %v4429 = vmul.f32 %v4425, %v4140
    %v4430 = vadd.f32 %v4426, %v4147
    %v4431 = vadd.f32 %v4427, %v4147
    %v4432 = vadd.f32 %v4428, %v4147
    %v4433 = vadd.f32 %v4429, %v4147
    %v4434 = vmax.f32 %v4430, 0.0
    %v4435 = vmax.f32 %v4431, 0.0
    %v4436 = vmax.f32 %v4432, 0.0
    %v4437 = vmax.f32 %v4433, 0.0
    %4438 = vst.msk [vmem:[#allocation4 + $0x38] sm:$0xff] %vm4157, %v4434
    %4439 = vst.msk [vmem:[#allocation4 + $0x78] sm:$0xff] %vm4157, %v4435
    %4440 = vst.msk [vmem:[#allocation4 + $0xb8] sm:$0xff] %vm4157, %v4436
    %4441 = vst.msk [vmem:[#allocation4 + $0xf8] sm:$0xff] %vm4157, %v4437
    %4442 = vst [vmem:[#allocation5] ss:$8 sm:$0xf] 0.0
    %4443 = vst [vmem:[#allocation5] ss:$8 sm:$0xf0] 0.0
    %s4444 = scalar_lea.vmem [#allocation5], 257
    %4445 = vst [vmem:[%s4444] ss:$8 sm:$0xf] 0.0
    %4446 = vst [vmem:[%s4444] ss:$8 sm:$0xf0] 0.0
    %v4447 = vld [vmem:[#allocation4] ss:$8 sm:$0xf]
    %v4448 = vld [vmem:[#allocation4] ss:$8 sm:$0xf0]
    %v4449 = vor.u32 %v4447, %v4448
    %s4450 = scalar_lea.vmem [#allocation5], 1
    %4451 = vst [vmem:[%s4450] ss:$8 sm:$0xf] %v4449
    %4452 = vst [vmem:[%s4450] ss:$8 sm:$0xf0] %v4449
    %s4453 = scalar_lea.vmem [#allocation4], 128
    %v4454 = vld [vmem:[%s4453] ss:$8 sm:$0xf]
    %v4455 = vld [vmem:[%s4453] ss:$8 sm:$0xf0]
    %v4456 = vor.u32 %v4454, %v4455
    %s4457 = scalar_lea.vmem [#allocation5], 2
    %4458 = vst [vmem:[%s4457] ss:$8 sm:$0xf] %v4456
    %4459 = vst [vmem:[%s4457] ss:$8 sm:$0xf0] %v4456
    %s4460 = scalar_lea.vmem [#allocation4], 64
    %v4461 = vld [vmem:[%s4460] ss:$8 sm:$0xf]
    %v4462 = vld [vmem:[%s4460] ss:$8 sm:$0xf0]
    %v4463 = vor.u32 %v4461, %v4462
    %s4464 = scalar_lea.vmem [#allocation5], 3
    %4465 = vst [vmem:[%s4464] ss:$8 sm:$0xf] %v4463
    %4466 = vst [vmem:[%s4464] ss:$8 sm:$0xf0] %v4463
    %s4467 = scalar_lea.vmem [#allocation4], 192
    %v4468 = vld [vmem:[%s4467] ss:$8 sm:$0xf]
    %v4469 = vld [vmem:[%s4467] ss:$8 sm:$0xf0]
    %v4470 = vor.u32 %v4468, %v4469
    %s4471 = scalar_lea.vmem [#allocation5], 4
    %4472 = vst [vmem:[%s4471] ss:$8 sm:$0xf] %v4470
    %4473 = vst [vmem:[%s4471] ss:$8 sm:$0xf0] %v4470
    %s4474 = scalar_lea.vmem [#allocation4], 2
    %v4475 = vld [vmem:[%s4474] ss:$8 sm:$0xf]
    %v4476 = vld [vmem:[%s4474] ss:$8 sm:$0xf0]
    %v4477 = vor.u32 %v4475, %v4476
    %s4478 = scalar_lea.vmem [#allocation5], 5
    %4479 = vst [vmem:[%s4478] ss:$8 sm:$0xf] %v4477
    %4480 = vst [vmem:[%s4478] ss:$8 sm:$0xf0] %v4477
    %s4481 = scalar_lea.vmem [#allocation4], 130
    %v4482 = vld [vmem:[%s4481] ss:$8 sm:$0xf]
    %v4483 = vld [vmem:[%s4481] ss:$8 sm:$0xf0]
    %v4484 = vor.u32 %v4482, %v4483
    %s4485 = scalar_lea.vmem [#allocation5], 6
    %4486 = vst [vmem:[%s4485] ss:$8 sm:$0xf] %v4484
    %4487 = vst [vmem:[%s4485] ss:$8 sm:$0xf0] %v4484
    %s4488 = scalar_lea.vmem [#allocation4], 66
    %v4489 = vld [vmem:[%s4488] ss:$8 sm:$0xf]
    %v4490 = vld [vmem:[%s4488] ss:$8 sm:$0xf0]
    %v4491 = vor.u32 %v4489, %v4490
    %s4492 = scalar_lea.vmem [#allocation5], 7
    %4493 = vst [vmem:[%s4492] ss:$8 sm:$0xf] %v4491
    %4494 = vst [vmem:[%s4492] ss:$8 sm:$0xf0] %v4491
    %s4495 = scalar_lea.vmem [#allocation4], 194
    %v4496 = vld [vmem:[%s4495] ss:$8 sm:$0xf]
    %v4497 = vld [vmem:[%s4495] ss:$8 sm:$0xf0]
    %v4498 = vor.u32 %v4496, %v4497
    %s4499 = scalar_lea.vmem [#allocation5], 64
    %4500 = vst [vmem:[%s4499] ss:$8 sm:$0xf] %v4498
    %4501 = vst [vmem:[%s4499] ss:$8 sm:$0xf0] %v4498
    %s4502 = scalar_lea.vmem [#allocation4], 4
    %v4503 = vld [vmem:[%s4502] ss:$8 sm:$0xf]
    %v4504 = vld [vmem:[%s4502] ss:$8 sm:$0xf0]
    %v4505 = vor.u32 %v4503, %v4504
    %s4506 = scalar_lea.vmem [#allocation5], 65
    %4507 = vst [vmem:[%s4506] ss:$8 sm:$0xf] %v4505
    %4508 = vst [vmem:[%s4506] ss:$8 sm:$0xf0] %v4505
    %s4509 = scalar_lea.vmem [#allocation4], 132
    %v4510 = vld [vmem:[%s4509] ss:$8 sm:$0xf]
    %v4511 = vld [vmem:[%s4509] ss:$8 sm:$0xf0]
    %v4512 = vor.u32 %v4510, %v4511
    %s4513 = scalar_lea.vmem [#allocation5], 66
    %4514 = vst [vmem:[%s4513] ss:$8 sm:$0xf] %v4512
    %4515 = vst [vmem:[%s4513] ss:$8 sm:$0xf0] %v4512
    %s4516 = scalar_lea.vmem [#allocation4], 68
    %v4517 = vld [vmem:[%s4516] ss:$8 sm:$0xf]
    %v4518 = vld [vmem:[%s4516] ss:$8 sm:$0xf0]
    %v4519 = vor.u32 %v4517, %v4518
    %s4520 = scalar_lea.vmem [#allocation5], 67
    %4521 = vst [vmem:[%s4520] ss:$8 sm:$0xf] %v4519
    %4522 = vst [vmem:[%s4520] ss:$8 sm:$0xf0] %v4519
    %s4523 = scalar_lea.vmem [#allocation4], 196
    %v4524 = vld [vmem:[%s4523] ss:$8 sm:$0xf]
    %v4525 = vld [vmem:[%s4523] ss:$8 sm:$0xf0]
    %v4526 = vor.u32 %v4524, %v4525
    %s4527 = scalar_lea.vmem [#allocation5], 68
    %4528 = vst [vmem:[%s4527] ss:$8 sm:$0xf] %v4526
    %4529 = vst [vmem:[%s4527] ss:$8 sm:$0xf0] %v4526
    %s4530 = scalar_lea.vmem [#allocation4], 6
    %v4531 = vld [vmem:[%s4530] ss:$8 sm:$0xf]
    %v4532 = vld [vmem:[%s4530] ss:$8 sm:$0xf0]
    %v4533 = vor.u32 %v4531, %v4532
    %s4534 = scalar_lea.vmem [#allocation5], 69
    %4535 = vst [vmem:[%s4534] ss:$8 sm:$0xf] %v4533
    %4536 = vst [vmem:[%s4534] ss:$8 sm:$0xf0] %v4533
    %s4537 = scalar_lea.vmem [#allocation4], 134
    %v4538 = vld [vmem:[%s4537] ss:$8 sm:$0xf]
    %v4539 = vld [vmem:[%s4537] ss:$8 sm:$0xf0]
    %v4540 = vor.u32 %v4538, %v4539
    %s4541 = scalar_lea.vmem [#allocation5], 70
    %4542 = vst [vmem:[%s4541] ss:$8 sm:$0xf] %v4540
    %4543 = vst [vmem:[%s4541] ss:$8 sm:$0xf0] %v4540
    %s4544 = scalar_lea.vmem [#allocation4], 70
    %v4545 = vld [vmem:[%s4544] ss:$8 sm:$0xf]
    %v4546 = vld [vmem:[%s4544] ss:$8 sm:$0xf0]
    %v4547 = vor.u32 %v4545, %v4546
    %s4548 = scalar_lea.vmem [#allocation5], 71
    %4549 = vst [vmem:[%s4548] ss:$8 sm:$0xf] %v4547
    %4550 = vst [vmem:[%s4548] ss:$8 sm:$0xf0] %v4547
    %s4551 = scalar_lea.vmem [#allocation4], 198
    %v4552 = vld [vmem:[%s4551] ss:$8 sm:$0xf]
    %v4553 = vld [vmem:[%s4551] ss:$8 sm:$0xf0]
    %v4554 = vor.u32 %v4552, %v4553
    %s4555 = scalar_lea.vmem [#allocation5], 128
    %4556 = vst [vmem:[%s4555] ss:$8 sm:$0xf] %v4554
    %4557 = vst [vmem:[%s4555] ss:$8 sm:$0xf0] %v4554
    %s4558 = scalar_lea.vmem [#allocation4], 1
    %v4559 = vld [vmem:[%s4558] ss:$8 sm:$0xf]
    %v4560 = vld [vmem:[%s4558] ss:$8 sm:$0xf0]
    %v4561 = vor.u32 %v4559, %v4560
    %s4562 = scalar_lea.vmem [#allocation5], 129
    %4563 = vst [vmem:[%s4562] ss:$8 sm:$0xf] %v4561
    %4564 = vst [vmem:[%s4562] ss:$8 sm:$0xf0] %v4561
    %s4565 = scalar_lea.vmem [#allocation4], 129
    %v4566 = vld [vmem:[%s4565] ss:$8 sm:$0xf]
    %v4567 = vld [vmem:[%s4565] ss:$8 sm:$0xf0]
    %v4568 = vor.u32 %v4566, %v4567
    %s4569 = scalar_lea.vmem [#allocation5], 130
    %4570 = vst [vmem:[%s4569] ss:$8 sm:$0xf] %v4568
    %4571 = vst [vmem:[%s4569] ss:$8 sm:$0xf0] %v4568
    %s4572 = scalar_lea.vmem [#allocation4], 65
    %v4573 = vld [vmem:[%s4572] ss:$8 sm:$0xf]
    %v4574 = vld [vmem:[%s4572] ss:$8 sm:$0xf0]
    %v4575 = vor.u32 %v4573, %v4574
    %s4576 = scalar_lea.vmem [#allocation5], 131
    %4577 = vst [vmem:[%s4576] ss:$8 sm:$0xf] %v4575
    %4578 = vst [vmem:[%s4576] ss:$8 sm:$0xf0] %v4575
    %s4579 = scalar_lea.vmem [#allocation4], 193
    %v4580 = vld [vmem:[%s4579] ss:$8 sm:$0xf]
    %v4581 = vld [vmem:[%s4579] ss:$8 sm:$0xf0]
    %v4582 = vor.u32 %v4580, %v4581
    %s4583 = scalar_lea.vmem [#allocation5], 132
    %4584 = vst [vmem:[%s4583] ss:$8 sm:$0xf] %v4582
    %4585 = vst [vmem:[%s4583] ss:$8 sm:$0xf0] %v4582
    %s4586 = scalar_lea.vmem [#allocation4], 3
    %v4587 = vld [vmem:[%s4586] ss:$8 sm:$0xf]
    %v4588 = vld [vmem:[%s4586] ss:$8 sm:$0xf0]
    %v4589 = vor.u32 %v4587, %v4588
    %s4590 = scalar_lea.vmem [#allocation5], 133
    %4591 = vst [vmem:[%s4590] ss:$8 sm:$0xf] %v4589
    %4592 = vst [vmem:[%s4590] ss:$8 sm:$0xf0] %v4589
    %s4593 = scalar_lea.vmem [#allocation4], 131
    %v4594 = vld [vmem:[%s4593] ss:$8 sm:$0xf]
    %v4595 = vld [vmem:[%s4593] ss:$8 sm:$0xf0]
    %v4596 = vor.u32 %v4594, %v4595
    %s4597 = scalar_lea.vmem [#allocation5], 134
    %4598 = vst [vmem:[%s4597] ss:$8 sm:$0xf] %v4596
    %4599 = vst [vmem:[%s4597] ss:$8 sm:$0xf0] %v4596
    %s4600 = scalar_lea.vmem [#allocation4], 67
    %v4601 = vld [vmem:[%s4600] ss:$8 sm:$0xf]
    %v4602 = vld [vmem:[%s4600] ss:$8 sm:$0xf0]
    %v4603 = vor.u32 %v4601, %v4602
    %s4604 = scalar_lea.vmem [#allocation5], 135
    %4605 = vst [vmem:[%s4604] ss:$8 sm:$0xf] %v4603
    %4606 = vst [vmem:[%s4604] ss:$8 sm:$0xf0] %v4603
    %s4607 = scalar_lea.vmem [#allocation4], 195
    %v4608 = vld [vmem:[%s4607] ss:$8 sm:$0xf]
    %v4609 = vld [vmem:[%s4607] ss:$8 sm:$0xf0]
    %v4610 = vor.u32 %v4608, %v4609
    %s4611 = scalar_lea.vmem [#allocation5], 192
    %4612 = vst [vmem:[%s4611] ss:$8 sm:$0xf] %v4610
    %4613 = vst [vmem:[%s4611] ss:$8 sm:$0xf0] %v4610
    %s4614 = scalar_lea.vmem [#allocation4], 5
    %v4615 = vld [vmem:[%s4614] ss:$8 sm:$0xf]
    %v4616 = vld [vmem:[%s4614] ss:$8 sm:$0xf0]
    %v4617 = vor.u32 %v4615, %v4616
    %s4618 = scalar_lea.vmem [#allocation5], 193
    %4619 = vst [vmem:[%s4618] ss:$8 sm:$0xf] %v4617
    %4620 = vst [vmem:[%s4618] ss:$8 sm:$0xf0] %v4617
    %s4621 = scalar_lea.vmem [#allocation4], 133
    %v4622 = vld [vmem:[%s4621] ss:$8 sm:$0xf]
    %v4623 = vld [vmem:[%s4621] ss:$8 sm:$0xf0]
    %v4624 = vor.u32 %v4622, %v4623
    %s4625 = scalar_lea.vmem [#allocation5], 194
    %4626 = vst [vmem:[%s4625] ss:$8 sm:$0xf] %v4624
    %4627 = vst [vmem:[%s4625] ss:$8 sm:$0xf0] %v4624
    %s4628 = scalar_lea.vmem [#allocation4], 69
    %v4629 = vld [vmem:[%s4628] ss:$8 sm:$0xf]
    %v4630 = vld [vmem:[%s4628] ss:$8 sm:$0xf0]
    %v4631 = vor.u32 %v4629, %v4630
    %s4632 = scalar_lea.vmem [#allocation5], 195
    %4633 = vst [vmem:[%s4632] ss:$8 sm:$0xf] %v4631
    %4634 = vst [vmem:[%s4632] ss:$8 sm:$0xf0] %v4631
    %s4635 = scalar_lea.vmem [#allocation4], 197
    %v4636 = vld [vmem:[%s4635] ss:$8 sm:$0xf]
    %v4637 = vld [vmem:[%s4635] ss:$8 sm:$0xf0]
    %v4638 = vor.u32 %v4636, %v4637
    %s4639 = scalar_lea.vmem [#allocation5], 196
    %4640 = vst [vmem:[%s4639] ss:$8 sm:$0xf] %v4638
    %4641 = vst [vmem:[%s4639] ss:$8 sm:$0xf0] %v4638
    %s4642 = scalar_lea.vmem [#allocation4], 7
    %v4643 = vld [vmem:[%s4642] ss:$8 sm:$0xf]
    %v4644 = vld [vmem:[%s4642] ss:$8 sm:$0xf0]
    %v4645 = vor.u32 %v4643, %v4644
    %s4646 = scalar_lea.vmem [#allocation5], 197
    %4647 = vst [vmem:[%s4646] ss:$8 sm:$0xf] %v4645
    %4648 = vst [vmem:[%s4646] ss:$8 sm:$0xf0] %v4645
    %s4649 = scalar_lea.vmem [#allocation4], 135
    %v4650 = vld [vmem:[%s4649] ss:$8 sm:$0xf]
    %v4651 = vld [vmem:[%s4649] ss:$8 sm:$0xf0]
    %v4652 = vor.u32 %v4650, %v4651
    %s4653 = scalar_lea.vmem [#allocation5], 198
    %4654 = vst [vmem:[%s4653] ss:$8 sm:$0xf] %v4652
    %4655 = vst [vmem:[%s4653] ss:$8 sm:$0xf0] %v4652
    %s4656 = scalar_lea.vmem [#allocation4], 71
    %v4657 = vld [vmem:[%s4656] ss:$8 sm:$0xf]
    %v4658 = vld [vmem:[%s4656] ss:$8 sm:$0xf0]
    %v4659 = vor.u32 %v4657, %v4658
    %s4660 = scalar_lea.vmem [#allocation5], 199
    %4661 = vst [vmem:[%s4660] ss:$8 sm:$0xf] %v4659
    %4662 = vst [vmem:[%s4660] ss:$8 sm:$0xf0] %v4659
    %s4663 = scalar_lea.vmem [#allocation4], 199
    %v4664 = vld [vmem:[%s4663] ss:$8 sm:$0xf]
    %v4665 = vld [vmem:[%s4663] ss:$8 sm:$0xf0]
    %v4666 = vor.u32 %v4664, %v4665
    %s4667 = scalar_lea.vmem [#allocation5], 256
    %4668 = vst [vmem:[%s4667] ss:$8 sm:$0xf] %v4666
    %4669 = vst [vmem:[%s4667] ss:$8 sm:$0xf0] %v4666
    %v4670 = vlaneseq
    %v4671 = vshrl.u32 %v4670, 7
    %v4672 = vadd.s32 %v4671, 8
    %v4673 = vadd.s32 %v4671, 16
    %v4674 = vadd.s32 %v4671, 24
    %vm4675 = vcmp.lt.s32.totalorder %v4671, 0
    %v4676 = vsub.s32 0, %v4671
    %v4677 = vsel %vm4675, %v4676, %v4671
    %v4678 = vshrl.u32 %v4677, 4
    %v4679 = vand.u32 %v4677, 15
    %v4680 = vsub.s32 0, %v4679
    %v4681 = vsel %vm4675, %v4680, %v4679
    %vm4682 = vcmp.lt.s32.totalorder %v4672, 0
    %v4683 = vsub.s32 0, %v4672
    %v4684 = vsel %vm4682, %v4683, %v4672
    %v4685 = vshrl.u32 %v4684, 4
    %v4686 = vand.u32 %v4684, 15
    %v4687 = vsub.s32 0, %v4686
    %v4688 = vsel %vm4682, %v4687, %v4686
    %vm4689 = vcmp.lt.s32.totalorder %v4673, 0
    %v4690 = vsub.s32 0, %v4673
    %v4691 = vsel %vm4689, %v4690, %v4673
    %v4692 = vshrl.u32 %v4691, 4
    %v4693 = vand.u32 %v4691, 15
    %v4694 = vsub.s32 0, %v4693
    %v4695 = vsel %vm4689, %v4694, %v4693
    %vm4696 = vcmp.lt.s32.totalorder %v4674, 0
    %v4697 = vsub.s32 0, %v4674
    %v4698 = vsel %vm4696, %v4697, %v4674
    %v4699 = vshrl.u32 %v4698, 4
    %v4700 = vand.u32 %v4698, 15
    %v4701 = vsub.s32 0, %v4700
    %v4702 = vsel %vm4696, %v4701, %v4700
    %vm4703 = vcmp.ne.s32.totalorder %v4681, 0
    %vm4704 = vcmp.ne.s32.totalorder %v4688, 0
    %vm4705 = vcmp.ne.s32.totalorder %v4695, 0
    %vm4706 = vcmp.ne.s32.totalorder %v4702, 0
    %vm4707 = vcmp.lt.s32.totalorder %v4681, 0
    %vm4708 = vcmp.lt.s32.totalorder %v4688, 0
    %vm4709 = vcmp.lt.s32.totalorder %v4695, 0
    %vm4710 = vcmp.lt.s32.totalorder %v4702, 0
    %vm4711 = vmand %vm4707, %vm4703
    %vm4712 = vmand %vm4708, %vm4704
    %vm4713 = vmand %vm4709, %vm4705
    %vm4714 = vmand %vm4710, %vm4706
    %v4715 = vadd.s32 %v4681, 16
    %v4716 = vadd.s32 %v4688, 16
    %v4717 = vadd.s32 %v4695, 16
    %v4718 = vadd.s32 %v4702, 16
    %v4719 = vsel %vm4711, %v4715, %v4681
    %v4720 = vsel %vm4712, %v4716, %v4688
    %v4721 = vsel %vm4713, %v4717, %v4695
    %v4722 = vsel %vm4714, %v4718, %v4702
    %v4723 = vld [vmem:[#allocation6] sm:$0x1]
    %v4725 = vperm.slane %v4723, 0
    %4726 = vset.pattern.permute.xlu0 0
    %4727 = vperm.xlu0 %4726, %v4725
    %v4728 = vpop.permute.xlu0 %4727
    %v4730 = vadd.f32 %v4728, 0.0
    %v4731 = vld [vmem:[#allocation5] sm:$0xff]
    %v4732 = vld [vmem:[#allocation5 + $0x8] sm:$0xff]
    %v4733 = vld [vmem:[#allocation5 + $0x10] sm:$0xff]
    %v4734 = vld [vmem:[#allocation5 + $0x18] sm:$0xff]
    %v4735 = vld [vmem:[#allocation5 + $0x20] sm:$0xff]
    %v4736 = vld [vmem:[#allocation5 + $0x28] sm:$0xff]
    %v4737 = vld [vmem:[#allocation5 + $0x30] sm:$0xff]
    %v4738 = vld [vmem:[#allocation5 + $0x38] sm:$0xff]
    %v4739 = vld [vmem:[#allocation5 + $0x40] sm:$0xff]
    %v4740 = vld [vmem:[#allocation5 + $0x48] sm:$0xff]
    %v4741 = vld [vmem:[#allocation5 + $0x50] sm:$0xff]
    %v4742 = vld [vmem:[#allocation5 + $0x58] sm:$0xff]
    %v4743 = vld [vmem:[#allocation5 + $0x60] sm:$0xff]
    %v4744 = vld [vmem:[#allocation5 + $0x68] sm:$0xff]
    %v4745 = vld [vmem:[#allocation5 + $0x70] sm:$0xff]
    %v4746 = vld [vmem:[#allocation5 + $0x78] sm:$0xff]
    %v4747 = vld [vmem:[#allocation5 + $0x80] sm:$0xff]
    %v4748 = vld [vmem:[#allocation5 + $0x88] sm:$0xff]
    %v4749 = vld [vmem:[#allocation5 + $0x90] sm:$0xff]
    %v4750 = vld [vmem:[#allocation5 + $0x98] sm:$0xff]
    %v4751 = vld [vmem:[#allocation5 + $0xa0] sm:$0xff]
    %v4752 = vld [vmem:[#allocation5 + $0xa8] sm:$0xff]
    %v4753 = vld [vmem:[#allocation5 + $0xb0] sm:$0xff]
    %v4754 = vld [vmem:[#allocation5 + $0xb8] sm:$0xff]
    %v4755 = vld [vmem:[#allocation5 + $0xc0] sm:$0xff]
    %v4756 = vld [vmem:[#allocation5 + $0xc8] sm:$0xff]
    %v4757 = vld [vmem:[#allocation5 + $0xd0] sm:$0xff]
    %v4758 = vld [vmem:[#allocation5 + $0xd8] sm:$0xff]
    %v4759 = vld [vmem:[#allocation5 + $0xe0] sm:$0xff]
    %v4760 = vld [vmem:[#allocation5 + $0xe8] sm:$0xff]
    %v4761 = vld [vmem:[#allocation5 + $0xf0] sm:$0xff]
    %v4762 = vld [vmem:[#allocation5 + $0xf8] sm:$0xff]
    %v4763 = vadd.s32 %v4719, 4294967295
    %v4764 = vadd.s32 %v4720, 4294967295
    %v4765 = vadd.s32 %v4721, 4294967295
    %v4766 = vadd.s32 %v4722, 4294967295
    %vm4767 = vcmp.ge.s32.totalorder %v4763, 0
    %vm4768 = vcmp.ge.s32.totalorder %v4764, 0
    %vm4769 = vcmp.ge.s32.totalorder %v4765, 0
    %vm4770 = vcmp.ge.s32.totalorder %v4766, 0
    %vm4771 = vcmp.le.s32.totalorder %v4763, 15
    %vm4772 = vcmp.le.s32.totalorder %v4764, 15
    %vm4773 = vcmp.le.s32.totalorder %v4765, 15
    %vm4774 = vcmp.le.s32.totalorder %v4766, 15
    %vm4775 = vmand %vm4767, %vm4771
    %vm4776 = vmand %vm4768, %vm4772
    %vm4777 = vmand %vm4769, %vm4773
    %vm4778 = vmand %vm4770, %vm4774
    %v4779 = vsel %vm4775, 1, 0
    %v4780 = vsel %vm4776, 1, 0
    %v4781 = vsel %vm4777, 1, 0
    %v4782 = vsel %vm4778, 1, 0
    %vm4783 = vcmp.eq.s32.totalorder %v4779, 1
    %vm4784 = vcmp.eq.s32.totalorder %v4780, 1
    %vm4785 = vcmp.eq.s32.totalorder %v4781, 1
    %vm4786 = vcmp.eq.s32.totalorder %v4782, 1
    %v4787 = vsel %vm4783, %v4731, 0.0
    %v4788 = vsel %vm4783, %v4732, 0.0
    %v4789 = vsel %vm4783, %v4733, 0.0
    %v4790 = vsel %vm4783, %v4734, 0.0
    %v4791 = vsel %vm4783, %v4735, 0.0
    %v4792 = vsel %vm4783, %v4736, 0.0
    %v4793 = vsel %vm4783, %v4737, 0.0
    %v4794 = vsel %vm4783, %v4738, 0.0
    %v4795 = vsel %vm4784, %v4739, 0.0
    %v4796 = vsel %vm4784, %v4740, 0.0
    %v4797 = vsel %vm4784, %v4741, 0.0
    %v4798 = vsel %vm4784, %v4742, 0.0
    %v4799 = vsel %vm4784, %v4743, 0.0
    %v4800 = vsel %vm4784, %v4744, 0.0
    %v4801 = vsel %vm4784, %v4745, 0.0
    %v4802 = vsel %vm4784, %v4746, 0.0
    %v4803 = vsel %vm4785, %v4747, 0.0
    %v4804 = vsel %vm4785, %v4748, 0.0
    %v4805 = vsel %vm4785, %v4749, 0.0
    %v4806 = vsel %vm4785, %v4750, 0.0
    %v4807 = vsel %vm4785, %v4751, 0.0
    %v4808 = vsel %vm4785, %v4752, 0.0
    %v4809 = vsel %vm4785, %v4753, 0.0
    %v4810 = vsel %vm4785, %v4754, 0.0
    %v4811 = vsel %vm4786, %v4755, 0.0
    %v4812 = vsel %vm4786, %v4756, 0.0
    %v4813 = vsel %vm4786, %v4757, 0.0
    %v4814 = vsel %vm4786, %v4758, 0.0
    %v4815 = vsel %vm4786, %v4759, 0.0
    %v4816 = vsel %vm4786, %v4760, 0.0
    %v4817 = vsel %vm4786, %v4761, 0.0
    %v4818 = vsel %vm4786, %v4762, 0.0
    %v4819 = vld [vmem:[#allocation21] sm:$0xff]
    %v4820 = vld [vmem:[#allocation21 + $0x8] sm:$0xff]
    %v4821 = vld [vmem:[#allocation21 + $0x10] sm:$0xff]
    %v4822 = vld [vmem:[#allocation21 + $0x18] sm:$0xff]
    %v4823 = vld [vmem:[#allocation21 + $0x20] sm:$0xff]
    %v4824 = vld [vmem:[#allocation21 + $0x28] sm:$0xff]
    %v4825 = vld [vmem:[#allocation21 + $0x30] sm:$0xff]
    %v4826 = vld [vmem:[#allocation21 + $0x38] sm:$0xff]
    %v4827 = vld [vmem:[#allocation21 + $0x40] sm:$0xff]
    %v4828 = vld [vmem:[#allocation21 + $0x48] sm:$0xff]
    %v4829 = vld [vmem:[#allocation21 + $0x50] sm:$0xff]
    %v4830 = vld [vmem:[#allocation21 + $0x58] sm:$0xff]
    %v4831 = vld [vmem:[#allocation21 + $0x60] sm:$0xff]
    %v4832 = vld [vmem:[#allocation21 + $0x68] sm:$0xff]
    %v4833 = vld [vmem:[#allocation21 + $0x70] sm:$0xff]
    %v4834 = vld [vmem:[#allocation21 + $0x78] sm:$0xff]
    %v4835 = vld [vmem:[#allocation21 + $0x80] sm:$0xff]
    %v4836 = vld [vmem:[#allocation21 + $0x88] sm:$0xff]
    %v4837 = vld [vmem:[#allocation21 + $0x90] sm:$0xff]
    %v4838 = vld [vmem:[#allocation21 + $0x98] sm:$0xff]
    %v4839 = vld [vmem:[#allocation21 + $0xa0] sm:$0xff]
    %v4840 = vld [vmem:[#allocation21 + $0xa8] sm:$0xff]
    %v4841 = vld [vmem:[#allocation21 + $0xb0] sm:$0xff]
    %v4842 = vld [vmem:[#allocation21 + $0xb8] sm:$0xff]
    %v4843 = vld [vmem:[#allocation21 + $0xc0] sm:$0xff]
    %v4844 = vld [vmem:[#allocation21 + $0xc8] sm:$0xff]
    %v4845 = vld [vmem:[#allocation21 + $0xd0] sm:$0xff]
    %v4846 = vld [vmem:[#allocation21 + $0xd8] sm:$0xff]
    %v4847 = vld [vmem:[#allocation21 + $0xe0] sm:$0xff]
    %v4848 = vld [vmem:[#allocation21 + $0xe8] sm:$0xff]
    %v4849 = vld [vmem:[#allocation21 + $0xf0] sm:$0xff]
    %v4850 = vld [vmem:[#allocation21 + $0xf8] sm:$0xff]
    %v4851 = vld [vmem:[#allocation21 + $0x100] sm:$0xff]
    %v4852 = vld [vmem:[#allocation21 + $0x108] sm:$0xff]
    %v4853 = vld [vmem:[#allocation21 + $0x110] sm:$0xff]
    %v4854 = vld [vmem:[#allocation21 + $0x118] sm:$0xff]
    %v4855 = vld [vmem:[#allocation21 + $0x120] sm:$0xff]
    %v4856 = vld [vmem:[#allocation21 + $0x128] sm:$0xff]
    %v4857 = vld [vmem:[#allocation21 + $0x130] sm:$0xff]
    %v4858 = vld [vmem:[#allocation21 + $0x138] sm:$0xff]
    %v4859 = vld [vmem:[#allocation21 + $0x140] sm:$0xff]
    %v4860 = vld [vmem:[#allocation21 + $0x148] sm:$0xff]
    %v4861 = vld [vmem:[#allocation21 + $0x150] sm:$0xff]
    %v4862 = vld [vmem:[#allocation21 + $0x158] sm:$0xff]
    %v4863 = vld [vmem:[#allocation21 + $0x160] sm:$0xff]
    %v4864 = vld [vmem:[#allocation21 + $0x168] sm:$0xff]
    %v4865 = vld [vmem:[#allocation21 + $0x170] sm:$0xff]
    %v4866 = vld [vmem:[#allocation21 + $0x178] sm:$0xff]
    %v4867 = vld [vmem:[#allocation21 + $0x180] sm:$0xff]
    %v4868 = vld [vmem:[#allocation21 + $0x188] sm:$0xff]
    %v4869 = vld [vmem:[#allocation21 + $0x190] sm:$0xff]
    %v4870 = vld [vmem:[#allocation21 + $0x198] sm:$0xff]
    %v4871 = vld [vmem:[#allocation21 + $0x1a0] sm:$0xff]
    %v4872 = vld [vmem:[#allocation21 + $0x1a8] sm:$0xff]
    %v4873 = vld [vmem:[#allocation21 + $0x1b0] sm:$0xff]
    %v4874 = vld [vmem:[#allocation21 + $0x1b8] sm:$0xff]
    %v4875 = vld [vmem:[#allocation21 + $0x1c0] sm:$0xff]
    %v4876 = vld [vmem:[#allocation21 + $0x1c8] sm:$0xff]
    %v4877 = vld [vmem:[#allocation21 + $0x1d0] sm:$0xff]
    %v4878 = vld [vmem:[#allocation21 + $0x1d8] sm:$0xff]
    %v4879 = vld [vmem:[#allocation21 + $0x1e0] sm:$0xff]
    %v4880 = vld [vmem:[#allocation21 + $0x1e8] sm:$0xff]
    %v4881 = vld [vmem:[#allocation21 + $0x1f0] sm:$0xff]
    %v4882 = vld [vmem:[#allocation21 + $0x1f8] sm:$0xff]
    %v4883 = vld [vmem:[#allocation21 + $0x200] sm:$0xff]
    %v4884 = vld [vmem:[#allocation21 + $0x208] sm:$0xff]
    %v4885 = vld [vmem:[#allocation21 + $0x210] sm:$0xff]
    %v4886 = vld [vmem:[#allocation21 + $0x218] sm:$0xff]
    %v4887 = vld [vmem:[#allocation21 + $0x220] sm:$0xff]
    %v4888 = vld [vmem:[#allocation21 + $0x228] sm:$0xff]
    %v4889 = vld [vmem:[#allocation21 + $0x230] sm:$0xff]
    %v4890 = vld [vmem:[#allocation21 + $0x238] sm:$0xff]
    %v4891 = vld [vmem:[#allocation21 + $0x240] sm:$0xff]
    %v4892 = vld [vmem:[#allocation21 + $0x248] sm:$0xff]
    %v4893 = vld [vmem:[#allocation21 + $0x250] sm:$0xff]
    %v4894 = vld [vmem:[#allocation21 + $0x258] sm:$0xff]
    %v4895 = vld [vmem:[#allocation21 + $0x260] sm:$0xff]
    %v4896 = vld [vmem:[#allocation21 + $0x268] sm:$0xff]
    %v4897 = vld [vmem:[#allocation21 + $0x270] sm:$0xff]
    %v4898 = vld [vmem:[#allocation21 + $0x278] sm:$0xff]
    %v4899 = vld [vmem:[#allocation21 + $0x280] sm:$0xff]
    %v4900 = vld [vmem:[#allocation21 + $0x288] sm:$0xff]
    %v4901 = vld [vmem:[#allocation21 + $0x290] sm:$0xff]
    %v4902 = vld [vmem:[#allocation21 + $0x298] sm:$0xff]
    %v4903 = vld [vmem:[#allocation21 + $0x2a0] sm:$0xff]
    %v4904 = vld [vmem:[#allocation21 + $0x2a8] sm:$0xff]
    %v4905 = vld [vmem:[#allocation21 + $0x2b0] sm:$0xff]
    %v4906 = vld [vmem:[#allocation21 + $0x2b8] sm:$0xff]
    %v4907 = vld [vmem:[#allocation21 + $0x2c0] sm:$0xff]
    %v4908 = vld [vmem:[#allocation21 + $0x2c8] sm:$0xff]
    %v4909 = vld [vmem:[#allocation21 + $0x2d0] sm:$0xff]
    %v4910 = vld [vmem:[#allocation21 + $0x2d8] sm:$0xff]
    %v4911 = vld [vmem:[#allocation21 + $0x2e0] sm:$0xff]
    %v4912 = vld [vmem:[#allocation21 + $0x2e8] sm:$0xff]
    %v4913 = vld [vmem:[#allocation21 + $0x2f0] sm:$0xff]
    %v4914 = vld [vmem:[#allocation21 + $0x2f8] sm:$0xff]
    %v4915 = vld [vmem:[#allocation21 + $0x300] sm:$0xff]
    %v4916 = vld [vmem:[#allocation21 + $0x308] sm:$0xff]
    %v4917 = vld [vmem:[#allocation21 + $0x310] sm:$0xff]
    %v4918 = vld [vmem:[#allocation21 + $0x318] sm:$0xff]
    %v4919 = vld [vmem:[#allocation21 + $0x320] sm:$0xff]
    %v4920 = vld [vmem:[#allocation21 + $0x328] sm:$0xff]
    %v4921 = vld [vmem:[#allocation21 + $0x330] sm:$0xff]
    %v4922 = vld [vmem:[#allocation21 + $0x338] sm:$0xff]
    %v4923 = vld [vmem:[#allocation21 + $0x340] sm:$0xff]
    %v4924 = vld [vmem:[#allocation21 + $0x348] sm:$0xff]
    %v4925 = vld [vmem:[#allocation21 + $0x350] sm:$0xff]
    %v4926 = vld [vmem:[#allocation21 + $0x358] sm:$0xff]
    %v4927 = vld [vmem:[#allocation21 + $0x360] sm:$0xff]
    %v4928 = vld [vmem:[#allocation21 + $0x368] sm:$0xff]
    %v4929 = vld [vmem:[#allocation21 + $0x370] sm:$0xff]
    %v4930 = vld [vmem:[#allocation21 + $0x378] sm:$0xff]
    %v4931 = vld [vmem:[#allocation21 + $0x380] sm:$0xff]
    %v4932 = vld [vmem:[#allocation21 + $0x388] sm:$0xff]
    %v4933 = vld [vmem:[#allocation21 + $0x390] sm:$0xff]
    %v4934 = vld [vmem:[#allocation21 + $0x398] sm:$0xff]
    %v4935 = vld [vmem:[#allocation21 + $0x3a0] sm:$0xff]
    %v4936 = vld [vmem:[#allocation21 + $0x3a8] sm:$0xff]
    %v4937 = vld [vmem:[#allocation21 + $0x3b0] sm:$0xff]
    %v4938 = vld [vmem:[#allocation21 + $0x3b8] sm:$0xff]
    %v4939 = vld [vmem:[#allocation21 + $0x3c0] sm:$0xff]
    %v4940 = vld [vmem:[#allocation21 + $0x3c8] sm:$0xff]
    %v4941 = vld [vmem:[#allocation21 + $0x3d0] sm:$0xff]
    %v4942 = vld [vmem:[#allocation21 + $0x3d8] sm:$0xff]
    %v4943 = vld [vmem:[#allocation21 + $0x3e0] sm:$0xff]
    %v4944 = vld [vmem:[#allocation21 + $0x3e8] sm:$0xff]
    %v4945 = vld [vmem:[#allocation21 + $0x3f0] sm:$0xff]
    %v4946 = vld [vmem:[#allocation21 + $0x3f8] sm:$0xff]
    %4947 = vmatpush.msra.mxu0 %v4834
    %4948 = vmatpush.msra.mxu0 %v4833
    %4949 = vmatpush.msra.mxu0 %v4832
    %4950 = vmatpush.msra.mxu0 %v4831
    %4951 = vmatpush.msra.mxu0 %v4830
    %4952 = vmatpush.msra.mxu0 %v4829
    %4953 = vmatpush.msra.mxu0 %v4828
    %4954 = vmatpush.msra.mxu0 %v4827
    %4955 = vmatpush.msra.mxu0 %v4826
    %4956 = vmatpush.msra.mxu0 %v4825
    %4957 = vmatpush.msra.mxu0 %v4824
    %4958 = vmatpush.msra.mxu0 %v4823
    %4959 = vmatpush.msra.mxu0 %v4822
    %4960 = vmatpush.msra.mxu0 %v4821
    %4961 = vmatpush.msra.mxu0 %v4820
    %4962 = vmatpush.msra.mxu0 %v4819
    %4963 = vmatmul.f32.gmra.mxu0 %v4787
    %v4964 = vpop.f32.mrf.mxu0
    %v4965 = vadd.f32 0.0, %v4964
    %4966 = vmatmul.f32.gmra.mxu0 %v4795
    %v4967 = vpop.f32.mrf.mxu0
    %v4968 = vadd.f32 0.0, %v4967
    %4969 = vmatmul.f32.gmra.mxu0 %v4803
    %v4970 = vpop.f32.mrf.mxu0
    %v4971 = vadd.f32 0.0, %v4970
    %4972 = vmatmul.f32.gmra.mxu0 %v4811
    %v4973 = vpop.f32.mrf.mxu0
    %v4974 = vadd.f32 0.0, %v4973
    %4975 = vdwg.mxu0
    %4976 = vmatpush.msra.mxu0 %v4850
    %4977 = vmatpush.msra.mxu0 %v4849
    %4978 = vmatpush.msra.mxu0 %v4848
    %4979 = vmatpush.msra.mxu0 %v4847
    %4980 = vmatpush.msra.mxu0 %v4846
    %4981 = vmatpush.msra.mxu0 %v4845
    %4982 = vmatpush.msra.mxu0 %v4844
    %4983 = vmatpush.msra.mxu0 %v4843
    %4984 = vmatpush.msra.mxu0 %v4842
    %4985 = vmatpush.msra.mxu0 %v4841
    %4986 = vmatpush.msra.mxu0 %v4840
    %4987 = vmatpush.msra.mxu0 %v4839
    %4988 = vmatpush.msra.mxu0 %v4838
    %4989 = vmatpush.msra.mxu0 %v4837
    %4990 = vmatpush.msra.mxu0 %v4836
    %4991 = vmatpush.msra.mxu0 %v4835
    %4992 = vmatmul.f32.gmra.mxu0 %v4788
    %v4993 = vpop.f32.mrf.mxu0
    %v4994 = vadd.f32 %v4965, %v4993
    %4995 = vmatmul.f32.gmra.mxu0 %v4796
    %v4996 = vpop.f32.mrf.mxu0
    %v4997 = vadd.f32 %v4968, %v4996
    %4998 = vmatmul.f32.gmra.mxu0 %v4804
    %v4999 = vpop.f32.mrf.mxu0
    %v5000 = vadd.f32 %v4971, %v4999
    %5001 = vmatmul.f32.gmra.mxu0 %v4812
    %v5002 = vpop.f32.mrf.mxu0
    %v5003 = vadd.f32 %v4974, %v5002
    %5004 = vdwg.mxu0
    %5005 = vmatpush.msra.mxu0 %v4866
    %5006 = vmatpush.msra.mxu0 %v4865
    %5007 = vmatpush.msra.mxu0 %v4864
    %5008 = vmatpush.msra.mxu0 %v4863
    %5009 = vmatpush.msra.mxu0 %v4862
    %5010 = vmatpush.msra.mxu0 %v4861
    %5011 = vmatpush.msra.mxu0 %v4860
    %5012 = vmatpush.msra.mxu0 %v4859
    %5013 = vmatpush.msra.mxu0 %v4858
    %5014 = vmatpush.msra.mxu0 %v4857
    %5015 = vmatpush.msra.mxu0 %v4856
    %5016 = vmatpush.msra.mxu0 %v4855
    %5017 = vmatpush.msra.mxu0 %v4854
    %5018 = vmatpush.msra.mxu0 %v4853
    %5019 = vmatpush.msra.mxu0 %v4852
    %5020 = vmatpush.msra.mxu0 %v4851
    %5021 = vmatmul.f32.gmra.mxu0 %v4789
    %v5022 = vpop.f32.mrf.mxu0
    %v5023 = vadd.f32 %v4994, %v5022
    %5024 = vmatmul.f32.gmra.mxu0 %v4797
    %v5025 = vpop.f32.mrf.mxu0
    %v5026 = vadd.f32 %v4997, %v5025
    %5027 = vmatmul.f32.gmra.mxu0 %v4805
    %v5028 = vpop.f32.mrf.mxu0
    %v5029 = vadd.f32 %v5000, %v5028
    %5030 = vmatmul.f32.gmra.mxu0 %v4813
    %v5031 = vpop.f32.mrf.mxu0
    %v5032 = vadd.f32 %v5003, %v5031
    %5033 = vdwg.mxu0
    %5034 = vmatpush.msra.mxu0 %v4882
    %5035 = vmatpush.msra.mxu0 %v4881
    %5036 = vmatpush.msra.mxu0 %v4880
    %5037 = vmatpush.msra.mxu0 %v4879
    %5038 = vmatpush.msra.mxu0 %v4878
    %5039 = vmatpush.msra.mxu0 %v4877
    %5040 = vmatpush.msra.mxu0 %v4876
    %5041 = vmatpush.msra.mxu0 %v4875
    %5042 = vmatpush.msra.mxu0 %v4874
    %5043 = vmatpush.msra.mxu0 %v4873
    %5044 = vmatpush.msra.mxu0 %v4872
    %5045 = vmatpush.msra.mxu0 %v4871
    %5046 = vmatpush.msra.mxu0 %v4870
    %5047 = vmatpush.msra.mxu0 %v4869
    %5048 = vmatpush.msra.mxu0 %v4868
    %5049 = vmatpush.msra.mxu0 %v4867
    %5050 = vmatmul.f32.gmra.mxu0 %v4790
    %v5051 = vpop.f32.mrf.mxu0
    %v5052 = vadd.f32 %v5023, %v5051
    %5053 = vmatmul.f32.gmra.mxu0 %v4798
    %v5054 = vpop.f32.mrf.mxu0
    %v5055 = vadd.f32 %v5026, %v5054
    %5056 = vmatmul.f32.gmra.mxu0 %v4806
    %v5057 = vpop.f32.mrf.mxu0
    %v5058 = vadd.f32 %v5029, %v5057
    %5059 = vmatmul.f32.gmra.mxu0 %v4814
    %v5060 = vpop.f32.mrf.mxu0
    %v5061 = vadd.f32 %v5032, %v5060
    %5062 = vdwg.mxu0
    %5063 = vmatpush.msra.mxu0 %v4898
    %5064 = vmatpush.msra.mxu0 %v4897
    %5065 = vmatpush.msra.mxu0 %v4896
    %5066 = vmatpush.msra.mxu0 %v4895
    %5067 = vmatpush.msra.mxu0 %v4894
    %5068 = vmatpush.msra.mxu0 %v4893
    %5069 = vmatpush.msra.mxu0 %v4892
    %5070 = vmatpush.msra.mxu0 %v4891
    %5071 = vmatpush.msra.mxu0 %v4890
    %5072 = vmatpush.msra.mxu0 %v4889
    %5073 = vmatpush.msra.mxu0 %v4888
    %5074 = vmatpush.msra.mxu0 %v4887
    %5075 = vmatpush.msra.mxu0 %v4886
    %5076 = vmatpush.msra.mxu0 %v4885
    %5077 = vmatpush.msra.mxu0 %v4884
    %5078 = vmatpush.msra.mxu0 %v4883
    %5079 = vmatmul.f32.gmra.mxu0 %v4791
    %v5080 = vpop.f32.mrf.mxu0
    %v5081 = vadd.f32 %v5052, %v5080
    %5082 = vmatmul.f32.gmra.mxu0 %v4799
    %v5083 = vpop.f32.mrf.mxu0
    %v5084 = vadd.f32 %v5055, %v5083
    %5085 = vmatmul.f32.gmra.mxu0 %v4807
    %v5086 = vpop.f32.mrf.mxu0
    %v5087 = vadd.f32 %v5058, %v5086
    %5088 = vmatmul.f32.gmra.mxu0 %v4815
    %v5089 = vpop.f32.mrf.mxu0
    %v5090 = vadd.f32 %v5061, %v5089
    %5091 = vdwg.mxu0
    %5092 = vmatpush.msra.mxu0 %v4914
    %5093 = vmatpush.msra.mxu0 %v4913
    %5094 = vmatpush.msra.mxu0 %v4912
    %5095 = vmatpush.msra.mxu0 %v4911
    %5096 = vmatpush.msra.mxu0 %v4910
    %5097 = vmatpush.msra.mxu0 %v4909
    %5098 = vmatpush.msra.mxu0 %v4908
    %5099 = vmatpush.msra.mxu0 %v4907
    %5100 = vmatpush.msra.mxu0 %v4906
    %5101 = vmatpush.msra.mxu0 %v4905
    %5102 = vmatpush.msra.mxu0 %v4904
    %5103 = vmatpush.msra.mxu0 %v4903
    %5104 = vmatpush.msra.mxu0 %v4902
    %5105 = vmatpush.msra.mxu0 %v4901
    %5106 = vmatpush.msra.mxu0 %v4900
    %5107 = vmatpush.msra.mxu0 %v4899
    %5108 = vmatmul.f32.gmra.mxu0 %v4792
    %v5109 = vpop.f32.mrf.mxu0
    %v5110 = vadd.f32 %v5081, %v5109
    %5111 = vmatmul.f32.gmra.mxu0 %v4800
    %v5112 = vpop.f32.mrf.mxu0
    %v5113 = vadd.f32 %v5084, %v5112
    %5114 = vmatmul.f32.gmra.mxu0 %v4808
    %v5115 = vpop.f32.mrf.mxu0
    %v5116 = vadd.f32 %v5087, %v5115
    %5117 = vmatmul.f32.gmra.mxu0 %v4816
    %v5118 = vpop.f32.mrf.mxu0
    %v5119 = vadd.f32 %v5090, %v5118
    %5120 = vdwg.mxu0
    %5121 = vmatpush.msra.mxu0 %v4930
    %5122 = vmatpush.msra.mxu0 %v4929
    %5123 = vmatpush.msra.mxu0 %v4928
    %5124 = vmatpush.msra.mxu0 %v4927
    %5125 = vmatpush.msra.mxu0 %v4926
    %5126 = vmatpush.msra.mxu0 %v4925
    %5127 = vmatpush.msra.mxu0 %v4924
    %5128 = vmatpush.msra.mxu0 %v4923
    %5129 = vmatpush.msra.mxu0 %v4922
    %5130 = vmatpush.msra.mxu0 %v4921
    %5131 = vmatpush.msra.mxu0 %v4920
    %5132 = vmatpush.msra.mxu0 %v4919
    %5133 = vmatpush.msra.mxu0 %v4918
    %5134 = vmatpush.msra.mxu0 %v4917
    %5135 = vmatpush.msra.mxu0 %v4916
    %5136 = vmatpush.msra.mxu0 %v4915
    %5137 = vmatmul.f32.gmra.mxu0 %v4793
    %v5138 = vpop.f32.mrf.mxu0
    %v5139 = vadd.f32 %v5110, %v5138
    %5140 = vmatmul.f32.gmra.mxu0 %v4801
    %v5141 = vpop.f32.mrf.mxu0
    %v5142 = vadd.f32 %v5113, %v5141
    %5143 = vmatmul.f32.gmra.mxu0 %v4809
    %v5144 = vpop.f32.mrf.mxu0
    %v5145 = vadd.f32 %v5116, %v5144
    %5146 = vmatmul.f32.gmra.mxu0 %v4817
    %v5147 = vpop.f32.mrf.mxu0
    %v5148 = vadd.f32 %v5119, %v5147
    %5149 = vdwg.mxu0
    %5150 = vmatpush.msra.mxu0 %v4946
    %5151 = vmatpush.msra.mxu0 %v4945
    %5152 = vmatpush.msra.mxu0 %v4944
    %5153 = vmatpush.msra.mxu0 %v4943
    %5154 = vmatpush.msra.mxu0 %v4942
    %5155 = vmatpush.msra.mxu0 %v4941
    %5156 = vmatpush.msra.mxu0 %v4940
    %5157 = vmatpush.msra.mxu0 %v4939
    %5158 = vmatpush.msra.mxu0 %v4938
    %5159 = vmatpush.msra.mxu0 %v4937
    %5160 = vmatpush.msra.mxu0 %v4936
    %5161 = vmatpush.msra.mxu0 %v4935
    %5162 = vmatpush.msra.mxu0 %v4934
    %5163 = vmatpush.msra.mxu0 %v4933
    %5164 = vmatpush.msra.mxu0 %v4932
    %5165 = vmatpush.msra.mxu0 %v4931
    %5166 = vmatmul.f32.gmra.mxu0 %v4794
    %v5167 = vpop.f32.mrf.mxu0
    %v5168 = vadd.f32 %v5139, %v5167
    %5169 = vmatmul.f32.gmra.mxu0 %v4802
    %v5170 = vpop.f32.mrf.mxu0
    %v5171 = vadd.f32 %v5142, %v5170
    %5172 = vmatmul.f32.gmra.mxu0 %v4810
    %v5173 = vpop.f32.mrf.mxu0
    %v5174 = vadd.f32 %v5145, %v5173
    %5175 = vmatmul.f32.gmra.mxu0 %v4818
    %v5176 = vpop.f32.mrf.mxu0
    %v5177 = vadd.f32 %v5148, %v5176
    %5178 = vdwg.mxu0
    %v5179 = vadd.f32 %v4730, %v5168
    %v5180 = vadd.f32 %v4730, %v5171
    %v5181 = vadd.f32 %v4730, %v5174
    %v5182 = vadd.f32 %v4730, %v5177
    %v5183 = vld [vmem:[#allocation5] sm:$0xfe]
    %v5184 = vld [vmem:[#allocation5 + $0x8] sm:$0xfe]
    %v5185 = vld [vmem:[#allocation5 + $0x10] sm:$0xfe]
    %v5186 = vld [vmem:[#allocation5 + $0x18] sm:$0xfe]
    %v5187 = vld [vmem:[#allocation5 + $0x20] sm:$0xfe]
    %v5188 = vld [vmem:[#allocation5 + $0x28] sm:$0xfe]
    %v5189 = vld [vmem:[#allocation5 + $0x30] sm:$0xfe]
    %v5190 = vld [vmem:[#allocation5 + $0x38] sm:$0xfe]
    %v5191 = vld [vmem:[#allocation5 + $0x40] sm:$0xff]
    %v5192 = vld [vmem:[#allocation5 + $0x48] sm:$0xff]
    %v5193 = vld [vmem:[#allocation5 + $0x50] sm:$0xff]
    %v5194 = vld [vmem:[#allocation5 + $0x58] sm:$0xff]
    %v5195 = vld [vmem:[#allocation5 + $0x60] sm:$0xff]
    %v5196 = vld [vmem:[#allocation5 + $0x68] sm:$0xff]
    %v5197 = vld [vmem:[#allocation5 + $0x70] sm:$0xff]
    %v5198 = vld [vmem:[#allocation5 + $0x78] sm:$0xff]
    %v5199 = vld [vmem:[#allocation5 + $0x80] sm:$0xff]
    %v5200 = vld [vmem:[#allocation5 + $0x88] sm:$0xff]
    %v5201 = vld [vmem:[#allocation5 + $0x90] sm:$0xff]
    %v5202 = vld [vmem:[#allocation5 + $0x98] sm:$0xff]
    %v5203 = vld [vmem:[#allocation5 + $0xa0] sm:$0xff]
    %v5204 = vld [vmem:[#allocation5 + $0xa8] sm:$0xff]
    %v5205 = vld [vmem:[#allocation5 + $0xb0] sm:$0xff]
    %v5206 = vld [vmem:[#allocation5 + $0xb8] sm:$0xff]
    %v5207 = vld [vmem:[#allocation5 + $0xc0] sm:$0xff]
    %v5208 = vld [vmem:[#allocation5 + $0xc8] sm:$0xff]
    %v5209 = vld [vmem:[#allocation5 + $0xd0] sm:$0xff]
    %v5210 = vld [vmem:[#allocation5 + $0xd8] sm:$0xff]
    %v5211 = vld [vmem:[#allocation5 + $0xe0] sm:$0xff]
    %v5212 = vld [vmem:[#allocation5 + $0xe8] sm:$0xff]
    %v5213 = vld [vmem:[#allocation5 + $0xf0] sm:$0xff]
    %v5214 = vld [vmem:[#allocation5 + $0xf8] sm:$0xff]
    %v5215 = vld [vmem:[#allocation5 + $0x100] sm:$0x1]
    %v5216 = vld [vmem:[#allocation5 + $0x108] sm:$0x1]
    %v5217 = vld [vmem:[#allocation5 + $0x110] sm:$0x1]
    %v5218 = vld [vmem:[#allocation5 + $0x118] sm:$0x1]
    %v5219 = vld [vmem:[#allocation5 + $0x120] sm:$0x1]
    %v5220 = vld [vmem:[#allocation5 + $0x128] sm:$0x1]
    %v5221 = vld [vmem:[#allocation5 + $0x130] sm:$0x1]
    %v5222 = vld [vmem:[#allocation5 + $0x138] sm:$0x1]
    %vm5263 = vcmask 1046528
    %v5264 = vrot.slane %v5183, 1
    %v5265 = vrot.slane %v5191, 1
    %v5266 = vsel %vm5263, %v5264, %v5265
    %v5267 = vrot.slane %v5184, 1
    %v5268 = vrot.slane %v5192, 1
    %v5269 = vsel %vm5263, %v5267, %v5268
    %v5270 = vrot.slane %v5185, 1
    %v5271 = vrot.slane %v5193, 1
    %v5272 = vsel %vm5263, %v5270, %v5271
    %v5273 = vrot.slane %v5186, 1
    %v5274 = vrot.slane %v5194, 1
    %v5275 = vsel %vm5263, %v5273, %v5274
    %v5276 = vrot.slane %v5187, 1
    %v5277 = vrot.slane %v5195, 1
    %v5278 = vsel %vm5263, %v5276, %v5277
    %v5279 = vrot.slane %v5188, 1
    %v5280 = vrot.slane %v5196, 1
    %v5281 = vsel %vm5263, %v5279, %v5280
    %v5282 = vrot.slane %v5189, 1
    %v5283 = vrot.slane %v5197, 1
    %v5284 = vsel %vm5263, %v5282, %v5283
    %v5285 = vrot.slane %v5190, 1
    %v5286 = vrot.slane %v5198, 1
    %v5287 = vsel %vm5263, %v5285, %v5286
    %v5288 = vrot.slane %v5199, 1
    %v5289 = vsel %vm5263, %v5265, %v5288
    %v5290 = vrot.slane %v5200, 1
    %v5291 = vsel %vm5263, %v5268, %v5290
    %v5292 = vrot.slane %v5201, 1
    %v5293 = vsel %vm5263, %v5271, %v5292
    %v5294 = vrot.slane %v5202, 1
    %v5295 = vsel %vm5263, %v5274, %v5294
    %v5296 = vrot.slane %v5203, 1
    %v5297 = vsel %vm5263, %v5277, %v5296
    %v5298 = vrot.slane %v5204, 1
    %v5299 = vsel %vm5263, %v5280, %v5298
    %v5300 = vrot.slane %v5205, 1
    %v5301 = vsel %vm5263, %v5283, %v5300
    %v5302 = vrot.slane %v5206, 1
    %v5303 = vsel %vm5263, %v5286, %v5302
    %v5304 = vrot.slane %v5207, 1
    %v5305 = vsel %vm5263, %v5288, %v5304
    %v5306 = vrot.slane %v5208, 1
    %v5307 = vsel %vm5263, %v5290, %v5306
    %v5308 = vrot.slane %v5209, 1
    %v5309 = vsel %vm5263, %v5292, %v5308
    %v5310 = vrot.slane %v5210, 1
    %v5311 = vsel %vm5263, %v5294, %v5310
    %v5312 = vrot.slane %v5211, 1
    %v5313 = vsel %vm5263, %v5296, %v5312
    %v5314 = vrot.slane %v5212, 1
    %v5315 = vsel %vm5263, %v5298, %v5314
    %v5316 = vrot.slane %v5213, 1
    %v5317 = vsel %vm5263, %v5300, %v5316
    %v5318 = vrot.slane %v5214, 1
    %v5319 = vsel %vm5263, %v5302, %v5318
    %v5320 = vrot.slane %v5215, 1
    %v5321 = vsel %vm5263, %v5304, %v5320
    %v5322 = vrot.slane %v5216, 1
    %v5323 = vsel %vm5263, %v5306, %v5322
    %v5324 = vrot.slane %v5217, 1
    %v5325 = vsel %vm5263, %v5308, %v5324
    %v5326 = vrot.slane %v5218, 1
    %v5327 = vsel %vm5263, %v5310, %v5326
    %v5328 = vrot.slane %v5219, 1
    %v5329 = vsel %vm5263, %v5312, %v5328
    %v5330 = vrot.slane %v5220, 1
    %v5331 = vsel %vm5263, %v5314, %v5330
    %v5332 = vrot.slane %v5221, 1
    %v5333 = vsel %vm5263, %v5316, %v5332
    %v5334 = vrot.slane %v5222, 1
    %v5335 = vsel %vm5263, %v5318, %v5334
    %5496 = vrot.lane.b32.xlu0 %v4819, 112
    %v5497 = vpop.permute.xlu0 %5496
    %5498 = vrot.lane.b32.xlu0 %v4820, 112
    %v5499 = vpop.permute.xlu0 %5498
    %5500 = vrot.lane.b32.xlu0 %v4821, 112
    %v5501 = vpop.permute.xlu0 %5500
    %5502 = vrot.lane.b32.xlu0 %v4822, 112
    %v5503 = vpop.permute.xlu0 %5502
    %5504 = vrot.lane.b32.xlu0 %v4823, 112
    %v5505 = vpop.permute.xlu0 %5504
    %5506 = vrot.lane.b32.xlu0 %v4824, 112
    %v5507 = vpop.permute.xlu0 %5506
    %5508 = vrot.lane.b32.xlu0 %v4825, 112
    %v5509 = vpop.permute.xlu0 %5508
    %5510 = vrot.lane.b32.xlu0 %v4826, 112
    %v5511 = vpop.permute.xlu0 %5510
    %5512 = vrot.lane.b32.xlu0 %v4827, 112
    %v5513 = vpop.permute.xlu0 %5512
    %5514 = vrot.lane.b32.xlu0 %v4828, 112
    %v5515 = vpop.permute.xlu0 %5514
    %5516 = vrot.lane.b32.xlu0 %v4829, 112
    %v5517 = vpop.permute.xlu0 %5516
    %5518 = vrot.lane.b32.xlu0 %v4830, 112
    %v5519 = vpop.permute.xlu0 %5518
    %5520 = vrot.lane.b32.xlu0 %v4831, 112
    %v5521 = vpop.permute.xlu0 %5520
    %5522 = vrot.lane.b32.xlu0 %v4832, 112
    %v5523 = vpop.permute.xlu0 %5522
    %5524 = vrot.lane.b32.xlu0 %v4833, 112
    %v5525 = vpop.permute.xlu0 %5524
    %5526 = vrot.lane.b32.xlu0 %v4834, 112
    %v5527 = vpop.permute.xlu0 %5526
    %5528 = vrot.lane.b32.xlu0 %v4835, 112
    %v5529 = vpop.permute.xlu0 %5528
    %5530 = vrot.lane.b32.xlu0 %v4836, 112
    %v5531 = vpop.permute.xlu0 %5530
    %5532 = vrot.lane.b32.xlu0 %v4837, 112
    %v5533 = vpop.permute.xlu0 %5532
    %5534 = vrot.lane.b32.xlu0 %v4838, 112
    %v5535 = vpop.permute.xlu0 %5534
    %5536 = vrot.lane.b32.xlu0 %v4839, 112
    %v5537 = vpop.permute.xlu0 %5536
    %5538 = vrot.lane.b32.xlu0 %v4840, 112
    %v5539 = vpop.permute.xlu0 %5538
    %5540 = vrot.lane.b32.xlu0 %v4841, 112
    %v5541 = vpop.permute.xlu0 %5540
    %5542 = vrot.lane.b32.xlu0 %v4842, 112
    %v5543 = vpop.permute.xlu0 %5542
    %5544 = vrot.lane.b32.xlu0 %v4843, 112
    %v5545 = vpop.permute.xlu0 %5544
    %5546 = vrot.lane.b32.xlu0 %v4844, 112
    %v5547 = vpop.permute.xlu0 %5546
    %5548 = vrot.lane.b32.xlu0 %v4845, 112
    %v5549 = vpop.permute.xlu0 %5548
    %5550 = vrot.lane.b32.xlu0 %v4846, 112
    %v5551 = vpop.permute.xlu0 %5550
    %5552 = vrot.lane.b32.xlu0 %v4847, 112
    %v5553 = vpop.permute.xlu0 %5552
    %5554 = vrot.lane.b32.xlu0 %v4848, 112
    %v5555 = vpop.permute.xlu0 %5554
    %5556 = vrot.lane.b32.xlu0 %v4849, 112
    %v5557 = vpop.permute.xlu0 %5556
    %5558 = vrot.lane.b32.xlu0 %v4850, 112
    %v5559 = vpop.permute.xlu0 %5558
    %5560 = vrot.lane.b32.xlu0 %v4851, 112
    %v5561 = vpop.permute.xlu0 %5560
    %5562 = vrot.lane.b32.xlu0 %v4852, 112
    %v5563 = vpop.permute.xlu0 %5562
    %5564 = vrot.lane.b32.xlu0 %v4853, 112
    %v5565 = vpop.permute.xlu0 %5564
    %5566 = vrot.lane.b32.xlu0 %v4854, 112
    %v5567 = vpop.permute.xlu0 %5566
    %5568 = vrot.lane.b32.xlu0 %v4855, 112
    %v5569 = vpop.permute.xlu0 %5568
    %5570 = vrot.lane.b32.xlu0 %v4856, 112
    %v5571 = vpop.permute.xlu0 %5570
    %5572 = vrot.lane.b32.xlu0 %v4857, 112
    %v5573 = vpop.permute.xlu0 %5572
    %5574 = vrot.lane.b32.xlu0 %v4858, 112
    %v5575 = vpop.permute.xlu0 %5574
    %5576 = vrot.lane.b32.xlu0 %v4859, 112
    %v5577 = vpop.permute.xlu0 %5576
    %5578 = vrot.lane.b32.xlu0 %v4860, 112
    %v5579 = vpop.permute.xlu0 %5578
    %5580 = vrot.lane.b32.xlu0 %v4861, 112
    %v5581 = vpop.permute.xlu0 %5580
    %5582 = vrot.lane.b32.xlu0 %v4862, 112
    %v5583 = vpop.permute.xlu0 %5582
    %5584 = vrot.lane.b32.xlu0 %v4863, 112
    %v5585 = vpop.permute.xlu0 %5584
    %5586 = vrot.lane.b32.xlu0 %v4864, 112
    %v5587 = vpop.permute.xlu0 %5586
    %5588 = vrot.lane.b32.xlu0 %v4865, 112
    %v5589 = vpop.permute.xlu0 %5588
    %5590 = vrot.lane.b32.xlu0 %v4866, 112
    %v5591 = vpop.permute.xlu0 %5590
    %5592 = vrot.lane.b32.xlu0 %v4867, 112
    %v5593 = vpop.permute.xlu0 %5592
    %5594 = vrot.lane.b32.xlu0 %v4868, 112
    %v5595 = vpop.permute.xlu0 %5594
    %5596 = vrot.lane.b32.xlu0 %v4869, 112
    %v5597 = vpop.permute.xlu0 %5596
    %5598 = vrot.lane.b32.xlu0 %v4870, 112
    %v5599 = vpop.permute.xlu0 %5598
    %5600 = vrot.lane.b32.xlu0 %v4871, 112
    %v5601 = vpop.permute.xlu0 %5600
    %5602 = vrot.lane.b32.xlu0 %v4872, 112
    %v5603 = vpop.permute.xlu0 %5602
    %5604 = vrot.lane.b32.xlu0 %v4873, 112
    %v5605 = vpop.permute.xlu0 %5604
    %5606 = vrot.lane.b32.xlu0 %v4874, 112
    %v5607 = vpop.permute.xlu0 %5606
    %5608 = vrot.lane.b32.xlu0 %v4875, 112
    %v5609 = vpop.permute.xlu0 %5608
    %5610 = vrot.lane.b32.xlu0 %v4876, 112
    %v5611 = vpop.permute.xlu0 %5610
    %5612 = vrot.lane.b32.xlu0 %v4877, 112
    %v5613 = vpop.permute.xlu0 %5612
    %5614 = vrot.lane.b32.xlu0 %v4878, 112
    %v5615 = vpop.permute.xlu0 %5614
    %5616 = vrot.lane.b32.xlu0 %v4879, 112
    %v5617 = vpop.permute.xlu0 %5616
    %5618 = vrot.lane.b32.xlu0 %v4880, 112
    %v5619 = vpop.permute.xlu0 %5618
    %5620 = vrot.lane.b32.xlu0 %v4881, 112
    %v5621 = vpop.permute.xlu0 %5620
    %5622 = vrot.lane.b32.xlu0 %v4882, 112
    %v5623 = vpop.permute.xlu0 %5622
    %5624 = vrot.lane.b32.xlu0 %v4883, 112
    %v5625 = vpop.permute.xlu0 %5624
    %5626 = vrot.lane.b32.xlu0 %v4884, 112
    %v5627 = vpop.permute.xlu0 %5626
    %5628 = vrot.lane.b32.xlu0 %v4885, 112
    %v5629 = vpop.permute.xlu0 %5628
    %5630 = vrot.lane.b32.xlu0 %v4886, 112
    %v5631 = vpop.permute.xlu0 %5630
    %5632 = vrot.lane.b32.xlu0 %v4887, 112
    %v5633 = vpop.permute.xlu0 %5632
    %5634 = vrot.lane.b32.xlu0 %v4888, 112
    %v5635 = vpop.permute.xlu0 %5634
    %5636 = vrot.lane.b32.xlu0 %v4889, 112
    %v5637 = vpop.permute.xlu0 %5636
    %5638 = vrot.lane.b32.xlu0 %v4890, 112
    %v5639 = vpop.permute.xlu0 %5638
    %5640 = vrot.lane.b32.xlu0 %v4891, 112
    %v5641 = vpop.permute.xlu0 %5640
    %5642 = vrot.lane.b32.xlu0 %v4892, 112
    %v5643 = vpop.permute.xlu0 %5642
    %5644 = vrot.lane.b32.xlu0 %v4893, 112
    %v5645 = vpop.permute.xlu0 %5644
    %5646 = vrot.lane.b32.xlu0 %v4894, 112
    %v5647 = vpop.permute.xlu0 %5646
    %5648 = vrot.lane.b32.xlu0 %v4895, 112
    %v5649 = vpop.permute.xlu0 %5648
    %5650 = vrot.lane.b32.xlu0 %v4896, 112
    %v5651 = vpop.permute.xlu0 %5650
    %5652 = vrot.lane.b32.xlu0 %v4897, 112
    %v5653 = vpop.permute.xlu0 %5652
    %5654 = vrot.lane.b32.xlu0 %v4898, 112
    %v5655 = vpop.permute.xlu0 %5654
    %5656 = vrot.lane.b32.xlu0 %v4899, 112
    %v5657 = vpop.permute.xlu0 %5656
    %5658 = vrot.lane.b32.xlu0 %v4900, 112
    %v5659 = vpop.permute.xlu0 %5658
    %5660 = vrot.lane.b32.xlu0 %v4901, 112
    %v5661 = vpop.permute.xlu0 %5660
    %5662 = vrot.lane.b32.xlu0 %v4902, 112
    %v5663 = vpop.permute.xlu0 %5662
    %5664 = vrot.lane.b32.xlu0 %v4903, 112
    %v5665 = vpop.permute.xlu0 %5664
    %5666 = vrot.lane.b32.xlu0 %v4904, 112
    %v5667 = vpop.permute.xlu0 %5666
    %5668 = vrot.lane.b32.xlu0 %v4905, 112
    %v5669 = vpop.permute.xlu0 %5668
    %5670 = vrot.lane.b32.xlu0 %v4906, 112
    %v5671 = vpop.permute.xlu0 %5670
    %5672 = vrot.lane.b32.xlu0 %v4907, 112
    %v5673 = vpop.permute.xlu0 %5672
    %5674 = vrot.lane.b32.xlu0 %v4908, 112
    %v5675 = vpop.permute.xlu0 %5674
    %5676 = vrot.lane.b32.xlu0 %v4909, 112
    %v5677 = vpop.permute.xlu0 %5676
    %5678 = vrot.lane.b32.xlu0 %v4910, 112
    %v5679 = vpop.permute.xlu0 %5678
    %5680 = vrot.lane.b32.xlu0 %v4911, 112
    %v5681 = vpop.permute.xlu0 %5680
    %5682 = vrot.lane.b32.xlu0 %v4912, 112
    %v5683 = vpop.permute.xlu0 %5682
    %5684 = vrot.lane.b32.xlu0 %v4913, 112
    %v5685 = vpop.permute.xlu0 %5684
    %5686 = vrot.lane.b32.xlu0 %v4914, 112
    %v5687 = vpop.permute.xlu0 %5686
    %5688 = vrot.lane.b32.xlu0 %v4915, 112
    %v5689 = vpop.permute.xlu0 %5688
    %5690 = vrot.lane.b32.xlu0 %v4916, 112
    %v5691 = vpop.permute.xlu0 %5690
    %5692 = vrot.lane.b32.xlu0 %v4917, 112
    %v5693 = vpop.permute.xlu0 %5692
    %5694 = vrot.lane.b32.xlu0 %v4918, 112
    %v5695 = vpop.permute.xlu0 %5694
    %5696 = vrot.lane.b32.xlu0 %v4919, 112
    %v5697 = vpop.permute.xlu0 %5696
    %5698 = vrot.lane.b32.xlu0 %v4920, 112
    %v5699 = vpop.permute.xlu0 %5698
    %5700 = vrot.lane.b32.xlu0 %v4921, 112
    %v5701 = vpop.permute.xlu0 %5700
    %5702 = vrot.lane.b32.xlu0 %v4922, 112
    %v5703 = vpop.permute.xlu0 %5702
    %5704 = vrot.lane.b32.xlu0 %v4923, 112
    %v5705 = vpop.permute.xlu0 %5704
    %5706 = vrot.lane.b32.xlu0 %v4924, 112
    %v5707 = vpop.permute.xlu0 %5706
    %5708 = vrot.lane.b32.xlu0 %v4925, 112
    %v5709 = vpop.permute.xlu0 %5708
    %5710 = vrot.lane.b32.xlu0 %v4926, 112
    %v5711 = vpop.permute.xlu0 %5710
    %5712 = vrot.lane.b32.xlu0 %v4927, 112
    %v5713 = vpop.permute.xlu0 %5712
    %5714 = vrot.lane.b32.xlu0 %v4928, 112
    %v5715 = vpop.permute.xlu0 %5714
    %5716 = vrot.lane.b32.xlu0 %v4929, 112
    %v5717 = vpop.permute.xlu0 %5716
    %5718 = vrot.lane.b32.xlu0 %v4930, 112
    %v5719 = vpop.permute.xlu0 %5718
    %5720 = vrot.lane.b32.xlu0 %v4931, 112
    %v5721 = vpop.permute.xlu0 %5720
    %5722 = vrot.lane.b32.xlu0 %v4932, 112
    %v5723 = vpop.permute.xlu0 %5722
    %5724 = vrot.lane.b32.xlu0 %v4933, 112
    %v5725 = vpop.permute.xlu0 %5724
    %5726 = vrot.lane.b32.xlu0 %v4934, 112
    %v5727 = vpop.permute.xlu0 %5726
    %5728 = vrot.lane.b32.xlu0 %v4935, 112
    %v5729 = vpop.permute.xlu0 %5728
    %5730 = vrot.lane.b32.xlu0 %v4936, 112
    %v5731 = vpop.permute.xlu0 %5730
    %5732 = vrot.lane.b32.xlu0 %v4937, 112
    %v5733 = vpop.permute.xlu0 %5732
    %5734 = vrot.lane.b32.xlu0 %v4938, 112
    %v5735 = vpop.permute.xlu0 %5734
    %5736 = vrot.lane.b32.xlu0 %v4939, 112
    %v5737 = vpop.permute.xlu0 %5736
    %5738 = vrot.lane.b32.xlu0 %v4940, 112
    %v5739 = vpop.permute.xlu0 %5738
    %5740 = vrot.lane.b32.xlu0 %v4941, 112
    %v5741 = vpop.permute.xlu0 %5740
    %5742 = vrot.lane.b32.xlu0 %v4942, 112
    %v5743 = vpop.permute.xlu0 %5742
    %5744 = vrot.lane.b32.xlu0 %v4943, 112
    %v5745 = vpop.permute.xlu0 %5744
    %5746 = vrot.lane.b32.xlu0 %v4944, 112
    %v5747 = vpop.permute.xlu0 %5746
    %5748 = vrot.lane.b32.xlu0 %v4945, 112
    %v5749 = vpop.permute.xlu0 %5748
    %5750 = vrot.lane.b32.xlu0 %v4946, 112
    %v5751 = vpop.permute.xlu0 %5750
    %5880 = vmatpush.msra.mxu0 %v5527
    %5881 = vmatpush.msra.mxu0 %v5525
    %5882 = vmatpush.msra.mxu0 %v5523
    %5883 = vmatpush.msra.mxu0 %v5521
    %5884 = vmatpush.msra.mxu0 %v5519
    %5885 = vmatpush.msra.mxu0 %v5517
    %5886 = vmatpush.msra.mxu0 %v5515
    %5887 = vmatpush.msra.mxu0 %v5513
    %5888 = vmatpush.msra.mxu0 %v5511
    %5889 = vmatpush.msra.mxu0 %v5509
    %5890 = vmatpush.msra.mxu0 %v5507
    %5891 = vmatpush.msra.mxu0 %v5505
    %5892 = vmatpush.msra.mxu0 %v5503
    %5893 = vmatpush.msra.mxu0 %v5501
    %5894 = vmatpush.msra.mxu0 %v5499
    %5895 = vmatpush.msra.mxu0 %v5497
    %5896 = vmatmul.f32.gmra.mxu0 %v5266
    %v5897 = vpop.f32.mrf.mxu0
    %v5898 = vadd.f32 0.0, %v5897
    %5899 = vmatmul.f32.gmra.mxu0 %v5289
    %v5900 = vpop.f32.mrf.mxu0
    %v5901 = vadd.f32 0.0, %v5900
    %5902 = vmatmul.f32.gmra.mxu0 %v5305
    %v5903 = vpop.f32.mrf.mxu0
    %v5904 = vadd.f32 0.0, %v5903
    %5905 = vmatmul.f32.gmra.mxu0 %v5321
    %v5906 = vpop.f32.mrf.mxu0
    %v5907 = vadd.f32 0.0, %v5906
    %5908 = vdwg.mxu0
    %5909 = vmatpush.msra.mxu0 %v5559
    %5910 = vmatpush.msra.mxu0 %v5557
    %5911 = vmatpush.msra.mxu0 %v5555
    %5912 = vmatpush.msra.mxu0 %v5553
    %5913 = vmatpush.msra.mxu0 %v5551
    %5914 = vmatpush.msra.mxu0 %v5549
    %5915 = vmatpush.msra.mxu0 %v5547
    %5916 = vmatpush.msra.mxu0 %v5545
    %5917 = vmatpush.msra.mxu0 %v5543
    %5918 = vmatpush.msra.mxu0 %v5541
    %5919 = vmatpush.msra.mxu0 %v5539
    %5920 = vmatpush.msra.mxu0 %v5537
    %5921 = vmatpush.msra.mxu0 %v5535
    %5922 = vmatpush.msra.mxu0 %v5533
    %5923 = vmatpush.msra.mxu0 %v5531
    %5924 = vmatpush.msra.mxu0 %v5529
    %5925 = vmatmul.f32.gmra.mxu0 %v5269
    %v5926 = vpop.f32.mrf.mxu0
    %v5927 = vadd.f32 %v5898, %v5926
    %5928 = vmatmul.f32.gmra.mxu0 %v5291
    %v5929 = vpop.f32.mrf.mxu0
    %v5930 = vadd.f32 %v5901, %v5929
    %5931 = vmatmul.f32.gmra.mxu0 %v5307
    %v5932 = vpop.f32.mrf.mxu0
    %v5933 = vadd.f32 %v5904, %v5932
    %5934 = vmatmul.f32.gmra.mxu0 %v5323
    %v5935 = vpop.f32.mrf.mxu0
    %v5936 = vadd.f32 %v5907, %v5935
    %5937 = vdwg.mxu0
    %5938 = vmatpush.msra.mxu0 %v5591
    %5939 = vmatpush.msra.mxu0 %v5589
    %5940 = vmatpush.msra.mxu0 %v5587
    %5941 = vmatpush.msra.mxu0 %v5585
    %5942 = vmatpush.msra.mxu0 %v5583
    %5943 = vmatpush.msra.mxu0 %v5581
    %5944 = vmatpush.msra.mxu0 %v5579
    %5945 = vmatpush.msra.mxu0 %v5577
    %5946 = vmatpush.msra.mxu0 %v5575
    %5947 = vmatpush.msra.mxu0 %v5573
    %5948 = vmatpush.msra.mxu0 %v5571
    %5949 = vmatpush.msra.mxu0 %v5569
    %5950 = vmatpush.msra.mxu0 %v5567
    %5951 = vmatpush.msra.mxu0 %v5565
    %5952 = vmatpush.msra.mxu0 %v5563
    %5953 = vmatpush.msra.mxu0 %v5561
    %5954 = vmatmul.f32.gmra.mxu0 %v5272
    %v5955 = vpop.f32.mrf.mxu0
    %v5956 = vadd.f32 %v5927, %v5955
    %5957 = vmatmul.f32.gmra.mxu0 %v5293
    %v5958 = vpop.f32.mrf.mxu0
    %v5959 = vadd.f32 %v5930, %v5958
    %5960 = vmatmul.f32.gmra.mxu0 %v5309
    %v5961 = vpop.f32.mrf.mxu0
    %v5962 = vadd.f32 %v5933, %v5961
    %5963 = vmatmul.f32.gmra.mxu0 %v5325
    %v5964 = vpop.f32.mrf.mxu0
    %v5965 = vadd.f32 %v5936, %v5964
    %5966 = vdwg.mxu0
    %5967 = vmatpush.msra.mxu0 %v5623
    %5968 = vmatpush.msra.mxu0 %v5621
    %5969 = vmatpush.msra.mxu0 %v5619
    %5970 = vmatpush.msra.mxu0 %v5617
    %5971 = vmatpush.msra.mxu0 %v5615
    %5972 = vmatpush.msra.mxu0 %v5613
    %5973 = vmatpush.msra.mxu0 %v5611
    %5974 = vmatpush.msra.mxu0 %v5609
    %5975 = vmatpush.msra.mxu0 %v5607
    %5976 = vmatpush.msra.mxu0 %v5605
    %5977 = vmatpush.msra.mxu0 %v5603
    %5978 = vmatpush.msra.mxu0 %v5601
    %5979 = vmatpush.msra.mxu0 %v5599
    %5980 = vmatpush.msra.mxu0 %v5597
    %5981 = vmatpush.msra.mxu0 %v5595
    %5982 = vmatpush.msra.mxu0 %v5593
    %5983 = vmatmul.f32.gmra.mxu0 %v5275
    %v5984 = vpop.f32.mrf.mxu0
    %v5985 = vadd.f32 %v5956, %v5984
    %5986 = vmatmul.f32.gmra.mxu0 %v5295
    %v5987 = vpop.f32.mrf.mxu0
    %v5988 = vadd.f32 %v5959, %v5987
    %5989 = vmatmul.f32.gmra.mxu0 %v5311
    %v5990 = vpop.f32.mrf.mxu0
    %v5991 = vadd.f32 %v5962, %v5990
    %5992 = vmatmul.f32.gmra.mxu0 %v5327
    %v5993 = vpop.f32.mrf.mxu0
    %v5994 = vadd.f32 %v5965, %v5993
    %5995 = vdwg.mxu0
    %5996 = vmatpush.msra.mxu0 %v5655
    %5997 = vmatpush.msra.mxu0 %v5653
    %5998 = vmatpush.msra.mxu0 %v5651
    %5999 = vmatpush.msra.mxu0 %v5649
    %6000 = vmatpush.msra.mxu0 %v5647
    %6001 = vmatpush.msra.mxu0 %v5645
    %6002 = vmatpush.msra.mxu0 %v5643
    %6003 = vmatpush.msra.mxu0 %v5641
    %6004 = vmatpush.msra.mxu0 %v5639
    %6005 = vmatpush.msra.mxu0 %v5637
    %6006 = vmatpush.msra.mxu0 %v5635
    %6007 = vmatpush.msra.mxu0 %v5633
    %6008 = vmatpush.msra.mxu0 %v5631
    %6009 = vmatpush.msra.mxu0 %v5629
    %6010 = vmatpush.msra.mxu0 %v5627
    %6011 = vmatpush.msra.mxu0 %v5625
    %6012 = vmatmul.f32.gmra.mxu0 %v5278
    %v6013 = vpop.f32.mrf.mxu0
    %v6014 = vadd.f32 %v5985, %v6013
    %6015 = vmatmul.f32.gmra.mxu0 %v5297
    %v6016 = vpop.f32.mrf.mxu0
    %v6017 = vadd.f32 %v5988, %v6016
    %6018 = vmatmul.f32.gmra.mxu0 %v5313
    %v6019 = vpop.f32.mrf.mxu0
    %v6020 = vadd.f32 %v5991, %v6019
    %6021 = vmatmul.f32.gmra.mxu0 %v5329
    %v6022 = vpop.f32.mrf.mxu0
    %v6023 = vadd.f32 %v5994, %v6022
    %6024 = vdwg.mxu0
    %6025 = vmatpush.msra.mxu0 %v5687
    %6026 = vmatpush.msra.mxu0 %v5685
    %6027 = vmatpush.msra.mxu0 %v5683
    %6028 = vmatpush.msra.mxu0 %v5681
    %6029 = vmatpush.msra.mxu0 %v5679
    %6030 = vmatpush.msra.mxu0 %v5677
    %6031 = vmatpush.msra.mxu0 %v5675
    %6032 = vmatpush.msra.mxu0 %v5673
    %6033 = vmatpush.msra.mxu0 %v5671
    %6034 = vmatpush.msra.mxu0 %v5669
    %6035 = vmatpush.msra.mxu0 %v5667
    %6036 = vmatpush.msra.mxu0 %v5665
    %6037 = vmatpush.msra.mxu0 %v5663
    %6038 = vmatpush.msra.mxu0 %v5661
    %6039 = vmatpush.msra.mxu0 %v5659
    %6040 = vmatpush.msra.mxu0 %v5657
    %6041 = vmatmul.f32.gmra.mxu0 %v5281
    %v6042 = vpop.f32.mrf.mxu0
    %v6043 = vadd.f32 %v6014, %v6042
    %6044 = vmatmul.f32.gmra.mxu0 %v5299
    %v6045 = vpop.f32.mrf.mxu0
    %v6046 = vadd.f32 %v6017, %v6045
    %6047 = vmatmul.f32.gmra.mxu0 %v5315
    %v6048 = vpop.f32.mrf.mxu0
    %v6049 = vadd.f32 %v6020, %v6048
    %6050 = vmatmul.f32.gmra.mxu0 %v5331
    %v6051 = vpop.f32.mrf.mxu0
    %v6052 = vadd.f32 %v6023, %v6051
    %6053 = vdwg.mxu0
    %6054 = vmatpush.msra.mxu0 %v5719
    %6055 = vmatpush.msra.mxu0 %v5717
    %6056 = vmatpush.msra.mxu0 %v5715
    %6057 = vmatpush.msra.mxu0 %v5713
    %6058 = vmatpush.msra.mxu0 %v5711
    %6059 = vmatpush.msra.mxu0 %v5709
    %6060 = vmatpush.msra.mxu0 %v5707
    %6061 = vmatpush.msra.mxu0 %v5705
    %6062 = vmatpush.msra.mxu0 %v5703
    %6063 = vmatpush.msra.mxu0 %v5701
    %6064 = vmatpush.msra.mxu0 %v5699
    %6065 = vmatpush.msra.mxu0 %v5697
    %6066 = vmatpush.msra.mxu0 %v5695
    %6067 = vmatpush.msra.mxu0 %v5693
    %6068 = vmatpush.msra.mxu0 %v5691
    %6069 = vmatpush.msra.mxu0 %v5689
    %6070 = vmatmul.f32.gmra.mxu0 %v5284
    %v6071 = vpop.f32.mrf.mxu0
    %v6072 = vadd.f32 %v6043, %v6071
    %6073 = vmatmul.f32.gmra.mxu0 %v5301
    %v6074 = vpop.f32.mrf.mxu0
    %v6075 = vadd.f32 %v6046, %v6074
    %6076 = vmatmul.f32.gmra.mxu0 %v5317
    %v6077 = vpop.f32.mrf.mxu0
    %v6078 = vadd.f32 %v6049, %v6077
    %6079 = vmatmul.f32.gmra.mxu0 %v5333
    %v6080 = vpop.f32.mrf.mxu0
    %v6081 = vadd.f32 %v6052, %v6080
    %6082 = vdwg.mxu0
    %6083 = vmatpush.msra.mxu0 %v5751
    %6084 = vmatpush.msra.mxu0 %v5749
    %6085 = vmatpush.msra.mxu0 %v5747
    %6086 = vmatpush.msra.mxu0 %v5745
    %6087 = vmatpush.msra.mxu0 %v5743
    %6088 = vmatpush.msra.mxu0 %v5741
    %6089 = vmatpush.msra.mxu0 %v5739
    %6090 = vmatpush.msra.mxu0 %v5737
    %6091 = vmatpush.msra.mxu0 %v5735
    %6092 = vmatpush.msra.mxu0 %v5733
    %6093 = vmatpush.msra.mxu0 %v5731
    %6094 = vmatpush.msra.mxu0 %v5729
    %6095 = vmatpush.msra.mxu0 %v5727
    %6096 = vmatpush.msra.mxu0 %v5725
    %6097 = vmatpush.msra.mxu0 %v5723
    %6098 = vmatpush.msra.mxu0 %v5721
    %6099 = vmatmul.f32.gmra.mxu0 %v5287
    %v6100 = vpop.f32.mrf.mxu0
    %v6101 = vadd.f32 %v6072, %v6100
    %6102 = vmatmul.f32.gmra.mxu0 %v5303
    %v6103 = vpop.f32.mrf.mxu0
    %v6104 = vadd.f32 %v6075, %v6103
    %6105 = vmatmul.f32.gmra.mxu0 %v5319
    %v6106 = vpop.f32.mrf.mxu0
    %v6107 = vadd.f32 %v6078, %v6106
    %6108 = vmatmul.f32.gmra.mxu0 %v5335
    %v6109 = vpop.f32.mrf.mxu0
    %v6110 = vadd.f32 %v6081, %v6109
    %6111 = vdwg.mxu0
    %v6112 = vadd.f32 %v5179, %v6101
    %v6113 = vadd.f32 %v5180, %v6104
    %v6114 = vadd.f32 %v5181, %v6107
    %v6115 = vadd.f32 %v5182, %v6110
    %v6116 = vld [vmem:[#allocation5] sm:$0xfc]
    %v6117 = vld [vmem:[#allocation5 + $0x8] sm:$0xfc]
    %v6118 = vld [vmem:[#allocation5 + $0x10] sm:$0xfc]
    %v6119 = vld [vmem:[#allocation5 + $0x18] sm:$0xfc]
    %v6120 = vld [vmem:[#allocation5 + $0x20] sm:$0xfc]
    %v6121 = vld [vmem:[#allocation5 + $0x28] sm:$0xfc]
    %v6122 = vld [vmem:[#allocation5 + $0x30] sm:$0xfc]
    %v6123 = vld [vmem:[#allocation5 + $0x38] sm:$0xfc]
    %v6124 = vld [vmem:[#allocation5 + $0x100] sm:$0x3]
    %v6125 = vld [vmem:[#allocation5 + $0x108] sm:$0x3]
    %v6126 = vld [vmem:[#allocation5 + $0x110] sm:$0x3]
    %v6127 = vld [vmem:[#allocation5 + $0x118] sm:$0x3]
    %v6128 = vld [vmem:[#allocation5 + $0x120] sm:$0x3]
    %v6129 = vld [vmem:[#allocation5 + $0x128] sm:$0x3]
    %v6130 = vld [vmem:[#allocation5 + $0x130] sm:$0x3]
    %v6131 = vld [vmem:[#allocation5 + $0x138] sm:$0x3]
    %v6132 = vadd.s32 %v4719, 1
    %v6133 = vadd.s32 %v4720, 1
    %v6134 = vadd.s32 %v4721, 1
    %v6135 = vadd.s32 %v4722, 1
    %vm6136 = vcmp.ge.s32.totalorder %v6132, 0
    %vm6137 = vcmp.ge.s32.totalorder %v6133, 0
    %vm6138 = vcmp.ge.s32.totalorder %v6134, 0
    %vm6139 = vcmp.ge.s32.totalorder %v6135, 0
    %vm6140 = vcmp.le.s32.totalorder %v6132, 15
    %vm6141 = vcmp.le.s32.totalorder %v6133, 15
    %vm6142 = vcmp.le.s32.totalorder %v6134, 15
    %vm6143 = vcmp.le.s32.totalorder %v6135, 15
    %vm6144 = vmand %vm6136, %vm6140
    %vm6145 = vmand %vm6137, %vm6141
    %vm6146 = vmand %vm6138, %vm6142
    %vm6147 = vmand %vm6139, %vm6143
    %v6148 = vsel %vm6144, 1, 0
    %v6149 = vsel %vm6145, 1, 0
    %v6150 = vsel %vm6146, 1, 0
    %v6151 = vsel %vm6147, 1, 0
    %vm6152 = vcmp.eq.s32.totalorder %v6148, 1
    %vm6153 = vcmp.eq.s32.totalorder %v6149, 1
    %vm6154 = vcmp.eq.s32.totalorder %v6150, 1
    %vm6155 = vcmp.eq.s32.totalorder %v6151, 1
    %vm6172 = vcmask 1045504
    %v6173 = vrot.slane %v6116, 2
    %v6174 = vrot.slane %v5191, 2
    %v6175 = vsel %vm6172, %v6173, %v6174
    %v6176 = vrot.slane %v6117, 2
    %v6177 = vrot.slane %v5192, 2
    %v6178 = vsel %vm6172, %v6176, %v6177
    %v6179 = vrot.slane %v6118, 2
    %v6180 = vrot.slane %v5193, 2
    %v6181 = vsel %vm6172, %v6179, %v6180
    %v6182 = vrot.slane %v6119, 2
    %v6183 = vrot.slane %v5194, 2
    %v6184 = vsel %vm6172, %v6182, %v6183
    %v6185 = vrot.slane %v6120, 2
    %v6186 = vrot.slane %v5195, 2
    %v6187 = vsel %vm6172, %v6185, %v6186
    %v6188 = vrot.slane %v6121, 2
    %v6189 = vrot.slane %v5196, 2
    %v6190 = vsel %vm6172, %v6188, %v6189
    %v6191 = vrot.slane %v6122, 2
    %v6192 = vrot.slane %v5197, 2
    %v6193 = vsel %vm6172, %v6191, %v6192
    %v6194 = vrot.slane %v6123, 2
    %v6195 = vrot.slane %v5198, 2
    %v6196 = vsel %vm6172, %v6194, %v6195
    %v6197 = vrot.slane %v5199, 2
    %v6198 = vsel %vm6172, %v6174, %v6197
    %v6199 = vrot.slane %v5200, 2
    %v6200 = vsel %vm6172, %v6177, %v6199
    %v6201 = vrot.slane %v5201, 2
    %v6202 = vsel %vm6172, %v6180, %v6201
    %v6203 = vrot.slane %v5202, 2
    %v6204 = vsel %vm6172, %v6183, %v6203
    %v6205 = vrot.slane %v5203, 2
    %v6206 = vsel %vm6172, %v6186, %v6205
    %v6207 = vrot.slane %v5204, 2
    %v6208 = vsel %vm6172, %v6189, %v6207
    %v6209 = vrot.slane %v5205, 2
    %v6210 = vsel %vm6172, %v6192, %v6209
    %v6211 = vrot.slane %v5206, 2
    %v6212 = vsel %vm6172, %v6195, %v6211
    %v6213 = vrot.slane %v5207, 2
    %v6214 = vsel %vm6172, %v6197, %v6213
    %v6215 = vrot.slane %v5208, 2
    %v6216 = vsel %vm6172, %v6199, %v6215
    %v6217 = vrot.slane %v5209, 2
    %v6218 = vsel %vm6172, %v6201, %v6217
    %v6219 = vrot.slane %v5210, 2
    %v6220 = vsel %vm6172, %v6203, %v6219
    %v6221 = vrot.slane %v5211, 2
    %v6222 = vsel %vm6172, %v6205, %v6221
    %v6223 = vrot.slane %v5212, 2
    %v6224 = vsel %vm6172, %v6207, %v6223
    %v6225 = vrot.slane %v5213, 2
    %v6226 = vsel %vm6172, %v6209, %v6225
    %v6227 = vrot.slane %v5214, 2
    %v6228 = vsel %vm6172, %v6211, %v6227
    %v6229 = vrot.slane %v6124, 2
    %v6230 = vsel %vm6172, %v6213, %v6229
    %v6231 = vrot.slane %v6125, 2
    %v6232 = vsel %vm6172, %v6215, %v6231
    %v6233 = vrot.slane %v6126, 2
    %v6234 = vsel %vm6172, %v6217, %v6233
    %v6235 = vrot.slane %v6127, 2
    %v6236 = vsel %vm6172, %v6219, %v6235
    %v6237 = vrot.slane %v6128, 2
    %v6238 = vsel %vm6172, %v6221, %v6237
    %v6239 = vrot.slane %v6129, 2
    %v6240 = vsel %vm6172, %v6223, %v6239
    %v6241 = vrot.slane %v6130, 2
    %v6242 = vsel %vm6172, %v6225, %v6241
    %v6243 = vrot.slane %v6131, 2
    %v6244 = vsel %vm6172, %v6227, %v6243
    %v6277 = vsel %vm6152, %v6175, 0.0
    %v6278 = vsel %vm6152, %v6178, 0.0
    %v6279 = vsel %vm6152, %v6181, 0.0
    %v6280 = vsel %vm6152, %v6184, 0.0
    %v6281 = vsel %vm6152, %v6187, 0.0
    %v6282 = vsel %vm6152, %v6190, 0.0
    %v6283 = vsel %vm6152, %v6193, 0.0
    %v6284 = vsel %vm6152, %v6196, 0.0
    %v6285 = vsel %vm6153, %v6198, 0.0
    %v6286 = vsel %vm6153, %v6200, 0.0
    %v6287 = vsel %vm6153, %v6202, 0.0
    %v6288 = vsel %vm6153, %v6204, 0.0
    %v6289 = vsel %vm6153, %v6206, 0.0
    %v6290 = vsel %vm6153, %v6208, 0.0
    %v6291 = vsel %vm6153, %v6210, 0.0
    %v6292 = vsel %vm6153, %v6212, 0.0
    %v6293 = vsel %vm6154, %v6214, 0.0
    %v6294 = vsel %vm6154, %v6216, 0.0
    %v6295 = vsel %vm6154, %v6218, 0.0
    %v6296 = vsel %vm6154, %v6220, 0.0
    %v6297 = vsel %vm6154, %v6222, 0.0
    %v6298 = vsel %vm6154, %v6224, 0.0
    %v6299 = vsel %vm6154, %v6226, 0.0
    %v6300 = vsel %vm6154, %v6228, 0.0
    %v6301 = vsel %vm6155, %v6230, 0.0
    %v6302 = vsel %vm6155, %v6232, 0.0
    %v6303 = vsel %vm6155, %v6234, 0.0
    %v6304 = vsel %vm6155, %v6236, 0.0
    %v6305 = vsel %vm6155, %v6238, 0.0
    %v6306 = vsel %vm6155, %v6240, 0.0
    %v6307 = vsel %vm6155, %v6242, 0.0
    %v6308 = vsel %vm6155, %v6244, 0.0
    %6309 = vrot.lane.b32.xlu0 %v4819, 96
    %v6310 = vpop.permute.xlu0 %6309
    %6311 = vrot.lane.b32.xlu0 %v4820, 96
    %v6312 = vpop.permute.xlu0 %6311
    %6313 = vrot.lane.b32.xlu0 %v4821, 96
    %v6314 = vpop.permute.xlu0 %6313
    %6315 = vrot.lane.b32.xlu0 %v4822, 96
    %v6316 = vpop.permute.xlu0 %6315
    %6317 = vrot.lane.b32.xlu0 %v4823, 96
    %v6318 = vpop.permute.xlu0 %6317
    %6319 = vrot.lane.b32.xlu0 %v4824, 96
    %v6320 = vpop.permute.xlu0 %6319
    %6321 = vrot.lane.b32.xlu0 %v4825, 96
    %v6322 = vpop.permute.xlu0 %6321
    %6323 = vrot.lane.b32.xlu0 %v4826, 96
    %v6324 = vpop.permute.xlu0 %6323
    %6325 = vrot.lane.b32.xlu0 %v4827, 96
    %v6326 = vpop.permute.xlu0 %6325
    %6327 = vrot.lane.b32.xlu0 %v4828, 96
    %v6328 = vpop.permute.xlu0 %6327
    %6329 = vrot.lane.b32.xlu0 %v4829, 96
    %v6330 = vpop.permute.xlu0 %6329
    %6331 = vrot.lane.b32.xlu0 %v4830, 96
    %v6332 = vpop.permute.xlu0 %6331
    %6333 = vrot.lane.b32.xlu0 %v4831, 96
    %v6334 = vpop.permute.xlu0 %6333
    %6335 = vrot.lane.b32.xlu0 %v4832, 96
    %v6336 = vpop.permute.xlu0 %6335
    %6337 = vrot.lane.b32.xlu0 %v4833, 96
    %v6338 = vpop.permute.xlu0 %6337
    %6339 = vrot.lane.b32.xlu0 %v4834, 96
    %v6340 = vpop.permute.xlu0 %6339
    %6341 = vrot.lane.b32.xlu0 %v4835, 96
    %v6342 = vpop.permute.xlu0 %6341
    %6343 = vrot.lane.b32.xlu0 %v4836, 96
    %v6344 = vpop.permute.xlu0 %6343
    %6345 = vrot.lane.b32.xlu0 %v4837, 96
    %v6346 = vpop.permute.xlu0 %6345
    %6347 = vrot.lane.b32.xlu0 %v4838, 96
    %v6348 = vpop.permute.xlu0 %6347
    %6349 = vrot.lane.b32.xlu0 %v4839, 96
    %v6350 = vpop.permute.xlu0 %6349
    %6351 = vrot.lane.b32.xlu0 %v4840, 96
    %v6352 = vpop.permute.xlu0 %6351
    %6353 = vrot.lane.b32.xlu0 %v4841, 96
    %v6354 = vpop.permute.xlu0 %6353
    %6355 = vrot.lane.b32.xlu0 %v4842, 96
    %v6356 = vpop.permute.xlu0 %6355
    %6357 = vrot.lane.b32.xlu0 %v4843, 96
    %v6358 = vpop.permute.xlu0 %6357
    %6359 = vrot.lane.b32.xlu0 %v4844, 96
    %v6360 = vpop.permute.xlu0 %6359
    %6361 = vrot.lane.b32.xlu0 %v4845, 96
    %v6362 = vpop.permute.xlu0 %6361
    %6363 = vrot.lane.b32.xlu0 %v4846, 96
    %v6364 = vpop.permute.xlu0 %6363
    %6365 = vrot.lane.b32.xlu0 %v4847, 96
    %v6366 = vpop.permute.xlu0 %6365
    %6367 = vrot.lane.b32.xlu0 %v4848, 96
    %v6368 = vpop.permute.xlu0 %6367
    %6369 = vrot.lane.b32.xlu0 %v4849, 96
    %v6370 = vpop.permute.xlu0 %6369
    %6371 = vrot.lane.b32.xlu0 %v4850, 96
    %v6372 = vpop.permute.xlu0 %6371
    %6373 = vrot.lane.b32.xlu0 %v4851, 96
    %v6374 = vpop.permute.xlu0 %6373
    %6375 = vrot.lane.b32.xlu0 %v4852, 96
    %v6376 = vpop.permute.xlu0 %6375
    %6377 = vrot.lane.b32.xlu0 %v4853, 96
    %v6378 = vpop.permute.xlu0 %6377
    %6379 = vrot.lane.b32.xlu0 %v4854, 96
    %v6380 = vpop.permute.xlu0 %6379
    %6381 = vrot.lane.b32.xlu0 %v4855, 96
    %v6382 = vpop.permute.xlu0 %6381
    %6383 = vrot.lane.b32.xlu0 %v4856, 96
    %v6384 = vpop.permute.xlu0 %6383
    %6385 = vrot.lane.b32.xlu0 %v4857, 96
    %v6386 = vpop.permute.xlu0 %6385
    %6387 = vrot.lane.b32.xlu0 %v4858, 96
    %v6388 = vpop.permute.xlu0 %6387
    %6389 = vrot.lane.b32.xlu0 %v4859, 96
    %v6390 = vpop.permute.xlu0 %6389
    %6391 = vrot.lane.b32.xlu0 %v4860, 96
    %v6392 = vpop.permute.xlu0 %6391
    %6393 = vrot.lane.b32.xlu0 %v4861, 96
    %v6394 = vpop.permute.xlu0 %6393
    %6395 = vrot.lane.b32.xlu0 %v4862, 96
    %v6396 = vpop.permute.xlu0 %6395
    %6397 = vrot.lane.b32.xlu0 %v4863, 96
    %v6398 = vpop.permute.xlu0 %6397
    %6399 = vrot.lane.b32.xlu0 %v4864, 96
    %v6400 = vpop.permute.xlu0 %6399
    %6401 = vrot.lane.b32.xlu0 %v4865, 96
    %v6402 = vpop.permute.xlu0 %6401
    %6403 = vrot.lane.b32.xlu0 %v4866, 96
    %v6404 = vpop.permute.xlu0 %6403
    %6405 = vrot.lane.b32.xlu0 %v4867, 96
    %v6406 = vpop.permute.xlu0 %6405
    %6407 = vrot.lane.b32.xlu0 %v4868, 96
    %v6408 = vpop.permute.xlu0 %6407
    %6409 = vrot.lane.b32.xlu0 %v4869, 96
    %v6410 = vpop.permute.xlu0 %6409
    %6411 = vrot.lane.b32.xlu0 %v4870, 96
    %v6412 = vpop.permute.xlu0 %6411
    %6413 = vrot.lane.b32.xlu0 %v4871, 96
    %v6414 = vpop.permute.xlu0 %6413
    %6415 = vrot.lane.b32.xlu0 %v4872, 96
    %v6416 = vpop.permute.xlu0 %6415
    %6417 = vrot.lane.b32.xlu0 %v4873, 96
    %v6418 = vpop.permute.xlu0 %6417
    %6419 = vrot.lane.b32.xlu0 %v4874, 96
    %v6420 = vpop.permute.xlu0 %6419
    %6421 = vrot.lane.b32.xlu0 %v4875, 96
    %v6422 = vpop.permute.xlu0 %6421
    %6423 = vrot.lane.b32.xlu0 %v4876, 96
    %v6424 = vpop.permute.xlu0 %6423
    %6425 = vrot.lane.b32.xlu0 %v4877, 96
    %v6426 = vpop.permute.xlu0 %6425
    %6427 = vrot.lane.b32.xlu0 %v4878, 96
    %v6428 = vpop.permute.xlu0 %6427
    %6429 = vrot.lane.b32.xlu0 %v4879, 96
    %v6430 = vpop.permute.xlu0 %6429
    %6431 = vrot.lane.b32.xlu0 %v4880, 96
    %v6432 = vpop.permute.xlu0 %6431
    %6433 = vrot.lane.b32.xlu0 %v4881, 96
    %v6434 = vpop.permute.xlu0 %6433
    %6435 = vrot.lane.b32.xlu0 %v4882, 96
    %v6436 = vpop.permute.xlu0 %6435
    %6437 = vrot.lane.b32.xlu0 %v4883, 96
    %v6438 = vpop.permute.xlu0 %6437
    %6439 = vrot.lane.b32.xlu0 %v4884, 96
    %v6440 = vpop.permute.xlu0 %6439
    %6441 = vrot.lane.b32.xlu0 %v4885, 96
    %v6442 = vpop.permute.xlu0 %6441
    %6443 = vrot.lane.b32.xlu0 %v4886, 96
    %v6444 = vpop.permute.xlu0 %6443
    %6445 = vrot.lane.b32.xlu0 %v4887, 96
    %v6446 = vpop.permute.xlu0 %6445
    %6447 = vrot.lane.b32.xlu0 %v4888, 96
    %v6448 = vpop.permute.xlu0 %6447
    %6449 = vrot.lane.b32.xlu0 %v4889, 96
    %v6450 = vpop.permute.xlu0 %6449
    %6451 = vrot.lane.b32.xlu0 %v4890, 96
    %v6452 = vpop.permute.xlu0 %6451
    %6453 = vrot.lane.b32.xlu0 %v4891, 96
    %v6454 = vpop.permute.xlu0 %6453
    %6455 = vrot.lane.b32.xlu0 %v4892, 96
    %v6456 = vpop.permute.xlu0 %6455
    %6457 = vrot.lane.b32.xlu0 %v4893, 96
    %v6458 = vpop.permute.xlu0 %6457
    %6459 = vrot.lane.b32.xlu0 %v4894, 96
    %v6460 = vpop.permute.xlu0 %6459
    %6461 = vrot.lane.b32.xlu0 %v4895, 96
    %v6462 = vpop.permute.xlu0 %6461
    %6463 = vrot.lane.b32.xlu0 %v4896, 96
    %v6464 = vpop.permute.xlu0 %6463
    %6465 = vrot.lane.b32.xlu0 %v4897, 96
    %v6466 = vpop.permute.xlu0 %6465
    %6467 = vrot.lane.b32.xlu0 %v4898, 96
    %v6468 = vpop.permute.xlu0 %6467
    %6469 = vrot.lane.b32.xlu0 %v4899, 96
    %v6470 = vpop.permute.xlu0 %6469
    %6471 = vrot.lane.b32.xlu0 %v4900, 96
    %v6472 = vpop.permute.xlu0 %6471
    %6473 = vrot.lane.b32.xlu0 %v4901, 96
    %v6474 = vpop.permute.xlu0 %6473
    %6475 = vrot.lane.b32.xlu0 %v4902, 96
    %v6476 = vpop.permute.xlu0 %6475
    %6477 = vrot.lane.b32.xlu0 %v4903, 96
    %v6478 = vpop.permute.xlu0 %6477
    %6479 = vrot.lane.b32.xlu0 %v4904, 96
    %v6480 = vpop.permute.xlu0 %6479
    %6481 = vrot.lane.b32.xlu0 %v4905, 96
    %v6482 = vpop.permute.xlu0 %6481
    %6483 = vrot.lane.b32.xlu0 %v4906, 96
    %v6484 = vpop.permute.xlu0 %6483
    %6485 = vrot.lane.b32.xlu0 %v4907, 96
    %v6486 = vpop.permute.xlu0 %6485
    %6487 = vrot.lane.b32.xlu0 %v4908, 96
    %v6488 = vpop.permute.xlu0 %6487
    %6489 = vrot.lane.b32.xlu0 %v4909, 96
    %v6490 = vpop.permute.xlu0 %6489
    %6491 = vrot.lane.b32.xlu0 %v4910, 96
    %v6492 = vpop.permute.xlu0 %6491
    %6493 = vrot.lane.b32.xlu0 %v4911, 96
    %v6494 = vpop.permute.xlu0 %6493
    %6495 = vrot.lane.b32.xlu0 %v4912, 96
    %v6496 = vpop.permute.xlu0 %6495
    %6497 = vrot.lane.b32.xlu0 %v4913, 96
    %v6498 = vpop.permute.xlu0 %6497
    %6499 = vrot.lane.b32.xlu0 %v4914, 96
    %v6500 = vpop.permute.xlu0 %6499
    %6501 = vrot.lane.b32.xlu0 %v4915, 96
    %v6502 = vpop.permute.xlu0 %6501
    %6503 = vrot.lane.b32.xlu0 %v4916, 96
    %v6504 = vpop.permute.xlu0 %6503
    %6505 = vrot.lane.b32.xlu0 %v4917, 96
    %v6506 = vpop.permute.xlu0 %6505
    %6507 = vrot.lane.b32.xlu0 %v4918, 96
    %v6508 = vpop.permute.xlu0 %6507
    %6509 = vrot.lane.b32.xlu0 %v4919, 96
    %v6510 = vpop.permute.xlu0 %6509
    %6511 = vrot.lane.b32.xlu0 %v4920, 96
    %v6512 = vpop.permute.xlu0 %6511
    %6513 = vrot.lane.b32.xlu0 %v4921, 96
    %v6514 = vpop.permute.xlu0 %6513
    %6515 = vrot.lane.b32.xlu0 %v4922, 96
    %v6516 = vpop.permute.xlu0 %6515
    %6517 = vrot.lane.b32.xlu0 %v4923, 96
    %v6518 = vpop.permute.xlu0 %6517
    %6519 = vrot.lane.b32.xlu0 %v4924, 96
    %v6520 = vpop.permute.xlu0 %6519
    %6521 = vrot.lane.b32.xlu0 %v4925, 96
    %v6522 = vpop.permute.xlu0 %6521
    %6523 = vrot.lane.b32.xlu0 %v4926, 96
    %v6524 = vpop.permute.xlu0 %6523
    %6525 = vrot.lane.b32.xlu0 %v4927, 96
    %v6526 = vpop.permute.xlu0 %6525
    %6527 = vrot.lane.b32.xlu0 %v4928, 96
    %v6528 = vpop.permute.xlu0 %6527
    %6529 = vrot.lane.b32.xlu0 %v4929, 96
    %v6530 = vpop.permute.xlu0 %6529
    %6531 = vrot.lane.b32.xlu0 %v4930, 96
    %v6532 = vpop.permute.xlu0 %6531
    %6533 = vrot.lane.b32.xlu0 %v4931, 96
    %v6534 = vpop.permute.xlu0 %6533
    %6535 = vrot.lane.b32.xlu0 %v4932, 96
    %v6536 = vpop.permute.xlu0 %6535
    %6537 = vrot.lane.b32.xlu0 %v4933, 96
    %v6538 = vpop.permute.xlu0 %6537
    %6539 = vrot.lane.b32.xlu0 %v4934, 96
    %v6540 = vpop.permute.xlu0 %6539
    %6541 = vrot.lane.b32.xlu0 %v4935, 96
    %v6542 = vpop.permute.xlu0 %6541
    %6543 = vrot.lane.b32.xlu0 %v4936, 96
    %v6544 = vpop.permute.xlu0 %6543
    %6545 = vrot.lane.b32.xlu0 %v4937, 96
    %v6546 = vpop.permute.xlu0 %6545
    %6547 = vrot.lane.b32.xlu0 %v4938, 96
    %v6548 = vpop.permute.xlu0 %6547
    %6549 = vrot.lane.b32.xlu0 %v4939, 96
    %v6550 = vpop.permute.xlu0 %6549
    %6551 = vrot.lane.b32.xlu0 %v4940, 96
    %v6552 = vpop.permute.xlu0 %6551
    %6553 = vrot.lane.b32.xlu0 %v4941, 96
    %v6554 = vpop.permute.xlu0 %6553
    %6555 = vrot.lane.b32.xlu0 %v4942, 96
    %v6556 = vpop.permute.xlu0 %6555
    %6557 = vrot.lane.b32.xlu0 %v4943, 96
    %v6558 = vpop.permute.xlu0 %6557
    %6559 = vrot.lane.b32.xlu0 %v4944, 96
    %v6560 = vpop.permute.xlu0 %6559
    %6561 = vrot.lane.b32.xlu0 %v4945, 96
    %v6562 = vpop.permute.xlu0 %6561
    %6563 = vrot.lane.b32.xlu0 %v4946, 96
    %v6564 = vpop.permute.xlu0 %6563
    %6693 = vmatpush.msra.mxu0 %v6340
    %6694 = vmatpush.msra.mxu0 %v6338
    %6695 = vmatpush.msra.mxu0 %v6336
    %6696 = vmatpush.msra.mxu0 %v6334
    %6697 = vmatpush.msra.mxu0 %v6332
    %6698 = vmatpush.msra.mxu0 %v6330
    %6699 = vmatpush.msra.mxu0 %v6328
    %6700 = vmatpush.msra.mxu0 %v6326
    %6701 = vmatpush.msra.mxu0 %v6324
    %6702 = vmatpush.msra.mxu0 %v6322
    %6703 = vmatpush.msra.mxu0 %v6320
    %6704 = vmatpush.msra.mxu0 %v6318
    %6705 = vmatpush.msra.mxu0 %v6316
    %6706 = vmatpush.msra.mxu0 %v6314
    %6707 = vmatpush.msra.mxu0 %v6312
    %6708 = vmatpush.msra.mxu0 %v6310
    %6709 = vmatmul.f32.gmra.mxu0 %v6277
    %v6710 = vpop.f32.mrf.mxu0
    %v6711 = vadd.f32 0.0, %v6710
    %6712 = vmatmul.f32.gmra.mxu0 %v6285
    %v6713 = vpop.f32.mrf.mxu0
    %v6714 = vadd.f32 0.0, %v6713
    %6715 = vmatmul.f32.gmra.mxu0 %v6293
    %v6716 = vpop.f32.mrf.mxu0
    %v6717 = vadd.f32 0.0, %v6716
    %6718 = vmatmul.f32.gmra.mxu0 %v6301
    %v6719 = vpop.f32.mrf.mxu0
    %v6720 = vadd.f32 0.0, %v6719
    %6721 = vdwg.mxu0
    %6722 = vmatpush.msra.mxu0 %v6372
    %6723 = vmatpush.msra.mxu0 %v6370
    %6724 = vmatpush.msra.mxu0 %v6368
    %6725 = vmatpush.msra.mxu0 %v6366
    %6726 = vmatpush.msra.mxu0 %v6364
    %6727 = vmatpush.msra.mxu0 %v6362
    %6728 = vmatpush.msra.mxu0 %v6360
    %6729 = vmatpush.msra.mxu0 %v6358
    %6730 = vmatpush.msra.mxu0 %v6356
    %6731 = vmatpush.msra.mxu0 %v6354
    %6732 = vmatpush.msra.mxu0 %v6352
    %6733 = vmatpush.msra.mxu0 %v6350
    %6734 = vmatpush.msra.mxu0 %v6348
    %6735 = vmatpush.msra.mxu0 %v6346
    %6736 = vmatpush.msra.mxu0 %v6344
    %6737 = vmatpush.msra.mxu0 %v6342
    %6738 = vmatmul.f32.gmra.mxu0 %v6278
    %v6739 = vpop.f32.mrf.mxu0
    %v6740 = vadd.f32 %v6711, %v6739
    %6741 = vmatmul.f32.gmra.mxu0 %v6286
    %v6742 = vpop.f32.mrf.mxu0
    %v6743 = vadd.f32 %v6714, %v6742
    %6744 = vmatmul.f32.gmra.mxu0 %v6294
    %v6745 = vpop.f32.mrf.mxu0
    %v6746 = vadd.f32 %v6717, %v6745
    %6747 = vmatmul.f32.gmra.mxu0 %v6302
    %v6748 = vpop.f32.mrf.mxu0
    %v6749 = vadd.f32 %v6720, %v6748
    %6750 = vdwg.mxu0
    %6751 = vmatpush.msra.mxu0 %v6404
    %6752 = vmatpush.msra.mxu0 %v6402
    %6753 = vmatpush.msra.mxu0 %v6400
    %6754 = vmatpush.msra.mxu0 %v6398
    %6755 = vmatpush.msra.mxu0 %v6396
    %6756 = vmatpush.msra.mxu0 %v6394
    %6757 = vmatpush.msra.mxu0 %v6392
    %6758 = vmatpush.msra.mxu0 %v6390
    %6759 = vmatpush.msra.mxu0 %v6388
    %6760 = vmatpush.msra.mxu0 %v6386
    %6761 = vmatpush.msra.mxu0 %v6384
    %6762 = vmatpush.msra.mxu0 %v6382
    %6763 = vmatpush.msra.mxu0 %v6380
    %6764 = vmatpush.msra.mxu0 %v6378
    %6765 = vmatpush.msra.mxu0 %v6376
    %6766 = vmatpush.msra.mxu0 %v6374
    %6767 = vmatmul.f32.gmra.mxu0 %v6279
    %v6768 = vpop.f32.mrf.mxu0
    %v6769 = vadd.f32 %v6740, %v6768
    %6770 = vmatmul.f32.gmra.mxu0 %v6287
    %v6771 = vpop.f32.mrf.mxu0
    %v6772 = vadd.f32 %v6743, %v6771
    %6773 = vmatmul.f32.gmra.mxu0 %v6295
    %v6774 = vpop.f32.mrf.mxu0
    %v6775 = vadd.f32 %v6746, %v6774
    %6776 = vmatmul.f32.gmra.mxu0 %v6303
    %v6777 = vpop.f32.mrf.mxu0
    %v6778 = vadd.f32 %v6749, %v6777
    %6779 = vdwg.mxu0
    %6780 = vmatpush.msra.mxu0 %v6436
    %6781 = vmatpush.msra.mxu0 %v6434
    %6782 = vmatpush.msra.mxu0 %v6432
    %6783 = vmatpush.msra.mxu0 %v6430
    %6784 = vmatpush.msra.mxu0 %v6428
    %6785 = vmatpush.msra.mxu0 %v6426
    %6786 = vmatpush.msra.mxu0 %v6424
    %6787 = vmatpush.msra.mxu0 %v6422
    %6788 = vmatpush.msra.mxu0 %v6420
    %6789 = vmatpush.msra.mxu0 %v6418
    %6790 = vmatpush.msra.mxu0 %v6416
    %6791 = vmatpush.msra.mxu0 %v6414
    %6792 = vmatpush.msra.mxu0 %v6412
    %6793 = vmatpush.msra.mxu0 %v6410
    %6794 = vmatpush.msra.mxu0 %v6408
    %6795 = vmatpush.msra.mxu0 %v6406
    %6796 = vmatmul.f32.gmra.mxu0 %v6280
    %v6797 = vpop.f32.mrf.mxu0
    %v6798 = vadd.f32 %v6769, %v6797
    %6799 = vmatmul.f32.gmra.mxu0 %v6288
    %v6800 = vpop.f32.mrf.mxu0
    %v6801 = vadd.f32 %v6772, %v6800
    %6802 = vmatmul.f32.gmra.mxu0 %v6296
    %v6803 = vpop.f32.mrf.mxu0
    %v6804 = vadd.f32 %v6775, %v6803
    %6805 = vmatmul.f32.gmra.mxu0 %v6304
    %v6806 = vpop.f32.mrf.mxu0
    %v6807 = vadd.f32 %v6778, %v6806
    %6808 = vdwg.mxu0
    %6809 = vmatpush.msra.mxu0 %v6468
    %6810 = vmatpush.msra.mxu0 %v6466
    %6811 = vmatpush.msra.mxu0 %v6464
    %6812 = vmatpush.msra.mxu0 %v6462
    %6813 = vmatpush.msra.mxu0 %v6460
    %6814 = vmatpush.msra.mxu0 %v6458
    %6815 = vmatpush.msra.mxu0 %v6456
    %6816 = vmatpush.msra.mxu0 %v6454
    %6817 = vmatpush.msra.mxu0 %v6452
    %6818 = vmatpush.msra.mxu0 %v6450
    %6819 = vmatpush.msra.mxu0 %v6448
    %6820 = vmatpush.msra.mxu0 %v6446
    %6821 = vmatpush.msra.mxu0 %v6444
    %6822 = vmatpush.msra.mxu0 %v6442
    %6823 = vmatpush.msra.mxu0 %v6440
    %6824 = vmatpush.msra.mxu0 %v6438
    %6825 = vmatmul.f32.gmra.mxu0 %v6281
    %v6826 = vpop.f32.mrf.mxu0
    %v6827 = vadd.f32 %v6798, %v6826
    %6828 = vmatmul.f32.gmra.mxu0 %v6289
    %v6829 = vpop.f32.mrf.mxu0
    %v6830 = vadd.f32 %v6801, %v6829
    %6831 = vmatmul.f32.gmra.mxu0 %v6297
    %v6832 = vpop.f32.mrf.mxu0
    %v6833 = vadd.f32 %v6804, %v6832
    %6834 = vmatmul.f32.gmra.mxu0 %v6305
    %v6835 = vpop.f32.mrf.mxu0
    %v6836 = vadd.f32 %v6807, %v6835
    %6837 = vdwg.mxu0
    %6838 = vmatpush.msra.mxu0 %v6500
    %6839 = vmatpush.msra.mxu0 %v6498
    %6840 = vmatpush.msra.mxu0 %v6496
    %6841 = vmatpush.msra.mxu0 %v6494
    %6842 = vmatpush.msra.mxu0 %v6492
    %6843 = vmatpush.msra.mxu0 %v6490
    %6844 = vmatpush.msra.mxu0 %v6488
    %6845 = vmatpush.msra.mxu0 %v6486
    %6846 = vmatpush.msra.mxu0 %v6484
    %6847 = vmatpush.msra.mxu0 %v6482
    %6848 = vmatpush.msra.mxu0 %v6480
    %6849 = vmatpush.msra.mxu0 %v6478
    %6850 = vmatpush.msra.mxu0 %v6476
    %6851 = vmatpush.msra.mxu0 %v6474
    %6852 = vmatpush.msra.mxu0 %v6472
    %6853 = vmatpush.msra.mxu0 %v6470
    %6854 = vmatmul.f32.gmra.mxu0 %v6282
    %v6855 = vpop.f32.mrf.mxu0
    %v6856 = vadd.f32 %v6827, %v6855
    %6857 = vmatmul.f32.gmra.mxu0 %v6290
    %v6858 = vpop.f32.mrf.mxu0
    %v6859 = vadd.f32 %v6830, %v6858
    %6860 = vmatmul.f32.gmra.mxu0 %v6298
    %v6861 = vpop.f32.mrf.mxu0
    %v6862 = vadd.f32 %v6833, %v6861
    %6863 = vmatmul.f32.gmra.mxu0 %v6306
    %v6864 = vpop.f32.mrf.mxu0
    %v6865 = vadd.f32 %v6836, %v6864
    %6866 = vdwg.mxu0
    %6867 = vmatpush.msra.mxu0 %v6532
    %6868 = vmatpush.msra.mxu0 %v6530
    %6869 = vmatpush.msra.mxu0 %v6528
    %6870 = vmatpush.msra.mxu0 %v6526
    %6871 = vmatpush.msra.mxu0 %v6524
    %6872 = vmatpush.msra.mxu0 %v6522
    %6873 = vmatpush.msra.mxu0 %v6520
    %6874 = vmatpush.msra.mxu0 %v6518
    %6875 = vmatpush.msra.mxu0 %v6516
    %6876 = vmatpush.msra.mxu0 %v6514
    %6877 = vmatpush.msra.mxu0 %v6512
    %6878 = vmatpush.msra.mxu0 %v6510
    %6879 = vmatpush.msra.mxu0 %v6508
    %6880 = vmatpush.msra.mxu0 %v6506
    %6881 = vmatpush.msra.mxu0 %v6504
    %6882 = vmatpush.msra.mxu0 %v6502
    %6883 = vmatmul.f32.gmra.mxu0 %v6283
    %v6884 = vpop.f32.mrf.mxu0
    %v6885 = vadd.f32 %v6856, %v6884
    %6886 = vmatmul.f32.gmra.mxu0 %v6291
    %v6887 = vpop.f32.mrf.mxu0
    %v6888 = vadd.f32 %v6859, %v6887
    %6889 = vmatmul.f32.gmra.mxu0 %v6299
    %v6890 = vpop.f32.mrf.mxu0
    %v6891 = vadd.f32 %v6862, %v6890
    %6892 = vmatmul.f32.gmra.mxu0 %v6307
    %v6893 = vpop.f32.mrf.mxu0
    %v6894 = vadd.f32 %v6865, %v6893
    %6895 = vdwg.mxu0
    %6896 = vmatpush.msra.mxu0 %v6564
    %6897 = vmatpush.msra.mxu0 %v6562
    %6898 = vmatpush.msra.mxu0 %v6560
    %6899 = vmatpush.msra.mxu0 %v6558
    %6900 = vmatpush.msra.mxu0 %v6556
    %6901 = vmatpush.msra.mxu0 %v6554
    %6902 = vmatpush.msra.mxu0 %v6552
    %6903 = vmatpush.msra.mxu0 %v6550
    %6904 = vmatpush.msra.mxu0 %v6548
    %6905 = vmatpush.msra.mxu0 %v6546
    %6906 = vmatpush.msra.mxu0 %v6544
    %6907 = vmatpush.msra.mxu0 %v6542
    %6908 = vmatpush.msra.mxu0 %v6540
    %6909 = vmatpush.msra.mxu0 %v6538
    %6910 = vmatpush.msra.mxu0 %v6536
    %6911 = vmatpush.msra.mxu0 %v6534
    %6912 = vmatmul.f32.gmra.mxu0 %v6284
    %v6913 = vpop.f32.mrf.mxu0
    %v6914 = vadd.f32 %v6885, %v6913
    %6915 = vmatmul.f32.gmra.mxu0 %v6292
    %v6916 = vpop.f32.mrf.mxu0
    %v6917 = vadd.f32 %v6888, %v6916
    %6918 = vmatmul.f32.gmra.mxu0 %v6300
    %v6919 = vpop.f32.mrf.mxu0
    %v6920 = vadd.f32 %v6891, %v6919
    %6921 = vmatmul.f32.gmra.mxu0 %v6308
    %v6922 = vpop.f32.mrf.mxu0
    %v6923 = vadd.f32 %v6894, %v6922
    %6924 = vdwg.mxu0
    %v6925 = vadd.f32 %v6112, %v6914
    %v6926 = vadd.f32 %v6113, %v6917
    %v6927 = vadd.f32 %v6114, %v6920
    %v6928 = vadd.f32 %v6115, %v6923
    %v6929 = vtanh.pop %v6925
    %v6930 = vtanh.pop %v6926
    %v6931 = vtanh.pop %v6927
    %v6932 = vtanh.pop %v6928
    %6933 = vst.msk [vmem:[#allocation22] sm:$0xff] %vm763, %v6929
    %6934 = vst.msk [vmem:[#allocation22 + $0x8] sm:$0xff] %vm763, %v6930
    %6935 = vst.msk [vmem:[#allocation22 + $0x10] sm:$0xff] %vm763, %v6931
    %6936 = vst.msk [vmem:[#allocation22 + $0x18] sm:$0xff] %vm763, %v6932
    // Predicated region
    $region98: #{_lambda_.1} parent=1 // pred_check
      _
    $region99: #{_lambda_.1} parent=1 // pred_check_branch
      %6938 = sbr.rel (0) target = $region101
    $region100: #{_lambda_.1} parent=1 // pred_region
      %6940 = vsyncadd [#allocation9], 0
      %s6941 = sshll.u32 [#allocation22], 4
      %s6942 = int_to_ptr.vmem [resolvable:$true] %s6941
      %s6943 = sshll.u32 %s15, 4
      %s6944 = int_to_ptr.hbm [resolvable:$true] %s6943
      %6949 = dma.vmem_to_hbm [thread:$0]  %s6942, 512, %s6944, [#allocation9], 128, 128, 8
    $region101: #{_lambda_.1} parent=1 // pred_fallthru
      _
    // Predicated region
    $region102: #{_lambda_.1} parent=1 // pred_check
      _
    $region103: #{_lambda_.1} parent=1 // pred_check_branch
      %6951 = sbr.rel (0) target = $region105
    $region104: #{_lambda_.1} parent=1 // pred_region
      %6953 = dma.done [#allocation9], 512
    $region105: #{_lambda_.1} parent=1 // pred_fallthru
      _
    %6954 = vsyncpa [#allocation8], 1
    %6955 = vsyncpa [#allocation11], 1
    %6956 = vsyncpa [#allocation14], 1
    %6957 = vsyncpa [#allocation17], 1
    %6958 = vsyncpa [#allocation20], 1
    %6959 = vsyncpa [#allocation9], 1

</llo_original>
